<compile_context>
chip_gen: v6e
topology: v6e:2x2x1
jax: 0.10.0
libtpu: 0.0.40
codegen_flags: <defaults>
</compile_context>

<pallas_src>
import jax
import jax.numpy as jnp
from jax.experimental import pallas as pl
from jax.experimental.pallas import tpu as pltpu


# ---------------------------------------------------------------------------
# Fused kernel factory
# ---------------------------------------------------------------------------
def _make_fused_kernel(layer_dims, kernel_sizes):
    """layer_dims: tuple of (h, w, cin, cout) per conv layer (static)."""
    n_conv = len(layer_dims)
    n_pool = n_conv - 1

    def kernel(*refs):
        # ---- unpack refs: inputs, output, scratch -------------------------
        idx = 0
        x_ref = refs[idx]; idx += 1
        conv_w, conv_b = [], []
        for _ in range(n_conv):
            conv_w.append(refs[idx]); conv_b.append(refs[idx + 1]); idx += 2
        pool_s = list(refs[idx:idx + n_pool]); idx += n_pool
        hw1_ref, hb1_ref, hw2_ref, hb2_ref = refs[idx:idx + 4]; idx += 4
        o_ref = refs[idx]; idx += 1
        pad_refs = list(refs[idx:idx + n_conv]); idx += n_conv
        patch_refs = list(refs[idx:idx + n_conv])

        # current activation, flat (h*w, c) layout (channels on lanes)
        act = x_ref[0].astype(jnp.float32)

        for i, (h, w, cin, cout) in enumerate(layer_dims):
            k = kernel_sizes[i]
            p = k // 2
            hw = h * w
            P = p * w + p                      # flat zero halo before/after the image
            pad_ref = pad_refs[i]
            patch_ref = patch_refs[i]

            # -- zero-padded flat copy of the activation (VMEM only) --------
            pad_ref[...] = jnp.zeros_like(pad_ref)
            pad_ref[P:P + hw, :] = act

            # per-row column index (for horizontal 'same'-padding masks)
            col = jax.lax.broadcasted_iota(jnp.int32, (hw, 1), 0) % w

            # -- im2col: k*k shifted slabs -> one (hw, k*k*cin) patch slab ---
            for dh in range(k):
                for dw in range(k):
                    q = dh * k + dw
                    s = dh * w + dw
                    slab = pad_ref[s:s + hw, :]            # (hw, cin)
                    if dw != p:
                        valid = (col >= (p - dw)) & (col < (w + p - dw))
                        slab = jnp.where(valid, slab, 0.0)
                    patch_ref[:, q * cin:(q + 1) * cin] = slab

            # -- conv as ONE MXU matmul, fused bias + ReLU -------------------
            y = jnp.dot(patch_ref[...], conv_w[i][...],
                        preferred_element_type=jnp.float32)
            y = jnp.maximum(y + conv_b[i][0], 0.0)          # (hw, cout)

            if i < n_conv - 1:
                # -- vectorized MaxPool2d(2): 4-way shifted max, then one
                #    one-hot selection matmul picks the top-left of each window.
                L = hw - w - 1
                m = jnp.maximum(jnp.maximum(y[0:L, :], y[1:1 + L, :]),
                                jnp.maximum(y[w:w + L, :], y[w + 1:w + 1 + L, :]))
                act = jnp.dot(pool_s[i][...], m,
                              preferred_element_type=jnp.float32)   # (hw//4, cout)
            else:
                # -- AdaptiveAvgPool2d((1,1)): global mean over spatial ------
                act = jnp.sum(y, axis=0, keepdims=True) * (1.0 / hw)  # (1, cout)

        # ---- MLP head: Linear -> ReLU -> (Identity) -> Linear -> L2 norm ---
        hid = jnp.dot(act, hw1_ref[...], preferred_element_type=jnp.float32) + hb1_ref[0]
        hid = jnp.maximum(hid, 0.0)
        # use_dropout=False in the reference module -> nn.Identity()
        out = jnp.dot(hid, hw2_ref[...], preferred_element_type=jnp.float32) + hb2_ref[0]
        ssq = jnp.sum(out * out, axis=1, keepdims=True)
        inv = jax.lax.rsqrt(jnp.maximum(ssq, 1e-24))   # = 1/max(||out||, 1e-12), EUP rsqrt
        o_ref[0] = (out * inv).astype(o_ref.dtype)

    return kernel


def _pool_select_matrix(h, w):
    """One-hot rows that gather the top-left corner of every 2x2 window from the
    4-way shifted max (which is computed over the first h*w - w - 1 flat rows)."""
    hw = h * w
    L = hw - w - 1
    ho, wo = h // 2, w // 2
    r = jnp.arange(ho * wo)
    t = 2 * (r // wo) * w + 2 * (r % wo)
    return (t[:, None] == jnp.arange(L)[None, :]).astype(jnp.float32)   # (ho*wo, L)


# ---------------------------------------------------------------------------
# Full forward (single fused pallas_call)
# ---------------------------------------------------------------------------
def cnn_descriptor_forward(x_nchw, params):
    x = jnp.transpose(x_nchw, (0, 2, 3, 1)).astype(jnp.float32)   # NCHW -> NHWC (glue)
    N, H, W, Cin = x.shape
    conv_ws, conv_bs = params["conv_w"], params["conv_b"]
    n_conv = len(conv_ws)

    # static per-layer (h, w, cin, cout)
    layer_dims = []
    kernel_sizes = []
    h, w, c = H, W, Cin
    for i, cw in enumerate(conv_ws):
        k = cw.shape[0]
        assert k % 2 == 1, "padding=k//2 matches 'same' only for odd kernel sizes"
        cout = cw.shape[-1]
        layer_dims.append((h, w, c, cout))
        kernel_sizes.append(k)
        if i < n_conv - 1:
            assert h % 2 == 0 and w % 2 == 0, "MaxPool2d(2) needs even spatial dims"
            h, w = h // 2, w // 2
        c = cout

    # ---- lane-dense 2-D operands prepared once outside the kernel ----------
    inputs = [x.reshape(N, H * W, Cin)]
    in_specs = [pl.BlockSpec((1, H * W, Cin), lambda n: (n, 0, 0))]

    def _const2d(a):
        inputs.append(a)
        in_specs.append(pl.BlockSpec(a.shape, lambda n: (0, 0)))

    for i in range(n_conv):
        k = kernel_sizes[i]
        _, _, cin_i, cout_i = layer_dims[i]
        _const2d(conv_ws[i].reshape(k * k * cin_i, cout_i))   # (K*K*Cin, Cout) weights
        _const2d(conv_bs[i].reshape(1, cout_i))
    for i in range(n_conv - 1):
        h_i, w_i, _, _ = layer_dims[i]
        _const2d(_pool_select_matrix(h_i, w_i))
    _const2d(params["w1"])
    _const2d(params["b1"].reshape(1, -1))
    _const2d(params["w2"])
    _const2d(params["b2"].reshape(1, -1))

    d_out = params["w2"].shape[1]

    # VMEM scratch: flat zero-padded activation + im2col patch slab per layer
    scratch = []
    for i in range(n_conv):
        h_i, w_i, cin_i, _ = layer_dims[i]
        p = kernel_sizes[i] // 2
        scratch.append(pltpu.VMEM((h_i * w_i + 2 * (p * w_i + p), cin_i), jnp.float32))
    for i in range(n_conv):
        h_i, w_i, cin_i, _ = layer_dims[i]
        k = kernel_sizes[i]
        scratch.append(pltpu.VMEM((h_i * w_i, k * k * cin_i), jnp.float32))

    kern = _make_fused_kernel(tuple(layer_dims), tuple(kernel_sizes))
    out = pl.pallas_call(
        kern,
        grid=(N,),
        in_specs=in_specs,
        out_specs=pl.BlockSpec((1, 1, d_out), lambda n: (n, 0, 0)),
        out_shape=jax.ShapeDtypeStruct((N, 1, d_out), jnp.float32),
        scratch_shapes=scratch,
        compiler_params=pltpu.CompilerParams(dimension_semantics=("parallel",)),
    )(*inputs)
    return out.reshape(N, d_out)


# ---------------------------------------------------------------------------
# Deterministic parameter init (matches nn.Conv2d / nn.Linear default bounds)
# ---------------------------------------------------------------------------
def init_params(key, in_ch=3, conv_channels=(32, 64, 64, 128),
                kernel_sizes=(3, 3, 3, 3), descriptor_dim=(64, 32)):
    params = {"conv_w": [], "conv_b": []}
    c = in_ch
    for co, k in zip(conv_channels, kernel_sizes):
        key, k1, k2 = jax.random.split(key, 3)
        bound = 1.0 / float(jnp.sqrt(c * k * k))
        params["conv_w"].append(
            jax.random.uniform(k1, (k, k, c, co), jnp.float32, -bound, bound))
        params["conv_b"].append(
            jax.random.uniform(k2, (co,), jnp.float32, -bound, bound))
        c = co
    d0, d1 = descriptor_dim
    key, k1, k2, k3, k4 = jax.random.split(key, 5)
    bound = 1.0 / float(jnp.sqrt(c))
    params["w1"] = jax.random.uniform(k1, (c, d0), jnp.float32, -bound, bound)
    params["b1"] = jax.random.uniform(k2, (d0,), jnp.float32, -bound, bound)
    bound = 1.0 / float(jnp.sqrt(d0))
    params["w2"] = jax.random.uniform(k3, (d0, d1), jnp.float32, -bound, bound)
    params["b2"] = jax.random.uniform(k4, (d1,), jnp.float32, -bound, bound)
    return params


# ---------------------------------------------------------------------------
# Pure-JAX reference (for correctness check)
# ---------------------------------------------------------------------------
def reference_forward(x_nchw, params):
    x = jnp.transpose(x_nchw, (0, 2, 3, 1))
    n = len(params["conv_w"])
    for i in range(n):
        w = params["conv_w"][i]
        y = jax.lax.conv_general_dilated(
            x, w, window_strides=(1, 1), padding="SAME",
            dimension_numbers=("NHWC", "HWIO", "NHWC"))
        y = jax.nn.relu(y + params["conv_b"][i])
        if i < n - 1:
            y = jax.lax.reduce_window(y, -jnp.inf, jax.lax.max,
                                      (1, 2, 2, 1), (1, 2, 2, 1), "VALID")
        else:
            y = jnp.mean(y, axis=(1, 2), keepdims=True)
        x = y
    x = x.reshape(x.shape[0], -1)
    h = jax.nn.relu(x @ params["w1"] + params["b1"])
    y = h @ params["w2"] + params["b2"]
    return y / jnp.maximum(jnp.linalg.norm(y, axis=1, keepdims=True), 1e-12)


if __name__ == "__main__":
    key = jax.random.PRNGKey(0)
    pkey, xkey = jax.random.split(key)
    params = init_params(pkey)

    # NCHW input like the PyTorch module, small spatial size.
    x = jax.random.normal(xkey, (2, 3, 16, 16), jnp.float32)

    out = jax.block_until_ready(cnn_descriptor_forward(x, params))
    ref = reference_forward(x, params)

    assert out.shape == (2, 32), out.shape
    assert bool(jnp.allclose(out, ref, atol=5e-3, rtol=5e-3)), \
        float(jnp.max(jnp.abs(out - ref)))
    print("KERNEL_OK")
</pallas_src>

<mosaic_0001>
module attributes {stable_mosaic.version = 11 : i64} {
  func.func @kernel(%arg0: i32, %arg1: memref<1x256x3xf32, #tpu.memory_space<vmem>>, %arg2: memref<27x32xf32, #tpu.memory_space<vmem>>, %arg3: memref<1x32xf32, #tpu.memory_space<vmem>>, %arg4: memref<288x64xf32, #tpu.memory_space<vmem>>, %arg5: memref<1x64xf32, #tpu.memory_space<vmem>>, %arg6: memref<576x64xf32, #tpu.memory_space<vmem>>, %arg7: memref<1x64xf32, #tpu.memory_space<vmem>>, %arg8: memref<576x128xf32, #tpu.memory_space<vmem>>, %arg9: memref<1x128xf32, #tpu.memory_space<vmem>>, %arg10: memref<64x239xf32, #tpu.memory_space<vmem>>, %arg11: memref<16x55xf32, #tpu.memory_space<vmem>>, %arg12: memref<4x11xf32, #tpu.memory_space<vmem>>, %arg13: memref<128x64xf32, #tpu.memory_space<vmem>>, %arg14: memref<1x64xf32, #tpu.memory_space<vmem>>, %arg15: memref<64x32xf32, #tpu.memory_space<vmem>>, %arg16: memref<1x32xf32, #tpu.memory_space<vmem>>, %arg17: memref<1x1x32xf32, #tpu.memory_space<vmem>>, %arg18: memref<290x3xf32, #tpu.memory_space<vmem>>, %arg19: memref<82x32xf32, #tpu.memory_space<vmem>>, %arg20: memref<26x64xf32, #tpu.memory_space<vmem>>, %arg21: memref<10x64xf32, #tpu.memory_space<vmem>>, %arg22: memref<256x27xf32, #tpu.memory_space<vmem>>, %arg23: memref<64x288xf32, #tpu.memory_space<vmem>>, %arg24: memref<16x576xf32, #tpu.memory_space<vmem>>, %arg25: memref<4x576xf32, #tpu.memory_space<vmem>>) attributes {dimension_semantics = [#tpu.dimension_semantics<parallel>], iteration_bounds = array<i64: 2>, scalar_prefetch = 0 : i64, scratch_operands = 8 : i64, tpu.core_type = #tpu.core_type<tc>, window_params = [{transform_indices = @transform_0, window_bounds = array<i64: 1, 256, 3>}, {pipeline_mode = #tpu.pipeline_mode<synchronous>, transform_indices = @transform_1, window_bounds = array<i64: 27, 32>}, {pipeline_mode = #tpu.pipeline_mode<synchronous>, transform_indices = @transform_2, window_bounds = array<i64: 1, 32>}, {pipeline_mode = #tpu.pipeline_mode<synchronous>, transform_indices = @transform_3, window_bounds = array<i64: 288, 64>}, {pipeline_mode = #tpu.pipeline_mode<synchronous>, transform_indices = @transform_4, window_bounds = array<i64: 1, 64>}, {pipeline_mode = #tpu.pipeline_mode<synchronous>, transform_indices = @transform_5, window_bounds = array<i64: 576, 64>}, {pipeline_mode = #tpu.pipeline_mode<synchronous>, transform_indices = @transform_6, window_bounds = array<i64: 1, 64>}, {pipeline_mode = #tpu.pipeline_mode<synchronous>, transform_indices = @transform_7, window_bounds = array<i64: 576, 128>}, {pipeline_mode = #tpu.pipeline_mode<synchronous>, transform_indices = @transform_8, window_bounds = array<i64: 1, 128>}, {pipeline_mode = #tpu.pipeline_mode<synchronous>, transform_indices = @transform_9, window_bounds = array<i64: 64, 239>}, {pipeline_mode = #tpu.pipeline_mode<synchronous>, transform_indices = @transform_10, window_bounds = array<i64: 16, 55>}, {pipeline_mode = #tpu.pipeline_mode<synchronous>, transform_indices = @transform_11, window_bounds = array<i64: 4, 11>}, {pipeline_mode = #tpu.pipeline_mode<synchronous>, transform_indices = @transform_12, window_bounds = array<i64: 128, 64>}, {pipeline_mode = #tpu.pipeline_mode<synchronous>, transform_indices = @transform_13, window_bounds = array<i64: 1, 64>}, {pipeline_mode = #tpu.pipeline_mode<synchronous>, transform_indices = @transform_14, window_bounds = array<i64: 64, 32>}, {pipeline_mode = #tpu.pipeline_mode<synchronous>, transform_indices = @transform_15, window_bounds = array<i64: 1, 32>}, {transform_indices = @transform_16, window_bounds = array<i64: 1, 1, 32>}]} {
    %c0 = arith.constant 0 : index
    %c0_0 = arith.constant 0 : index
    %c0_1 = arith.constant 0 : index
    %0 = vector.load %arg1[%c0, %c0_0, %c0_1] : memref<1x256x3xf32, #tpu.memory_space<vmem>>, vector<1x256x3xf32>
    %1 = vector.shape_cast %0 : vector<1x256x3xf32> to vector<256x3xf32>
    %cst = arith.constant 0.000000e+00 : f32
    %2 = vector.broadcast %cst : f32 to vector<290x3xf32>
    %c0_2 = arith.constant 0 : index
    %c0_3 = arith.constant 0 : index
    %3 = vector.load %arg18[%c0_2, %c0_3] : memref<290x3xf32, #tpu.memory_space<vmem>>, vector<290x3xf32>
    tpu.vector_store %arg18[%c0_2, %c0_3], %2 {strides = array<i32>} : memref<290x3xf32, #tpu.memory_space<vmem>>, vector<290x3xf32>,
    %c17 = arith.constant 17 : index
    %c0_4 = arith.constant 0 : index
    %4 = vector.load %arg18[%c17, %c0_4] : memref<290x3xf32, #tpu.memory_space<vmem>>, vector<256x3xf32>
    tpu.vector_store %arg18[%c17, %c0_4], %1 {strides = array<i32>} : memref<290x3xf32, #tpu.memory_space<vmem>>, vector<256x3xf32>,
    %5 = tpu.iota {dimensions = array<i32: 0>} : vector<256x1xi32>
    %c16_i32 = arith.constant 16 : i32
    %c0_i32 = arith.constant 0 : i32
    %6 = arith.cmpi eq, %c16_i32, %c0_i32 : i32
    %c1_i32 = arith.constant 1 : i32
    %7 = arith.select %6, %c1_i32, %c16_i32 : i32
    %8 = vector.broadcast %7 : i32 to vector<256x1xi32>
    %9 = arith.remsi %5, %8 : vector<256x1xi32>
    %c0_i32_5 = arith.constant 0 : i32
    %10 = vector.broadcast %c0_i32_5 : i32 to vector<256x1xi32>
    %11 = arith.cmpi ne, %9, %10 : vector<256x1xi32>
    %c0_i32_6 = arith.constant 0 : i32
    %12 = vector.broadcast %c0_i32_6 : i32 to vector<256x1xi32>
    %13 = arith.cmpi slt, %9, %12 : vector<256x1xi32>
    %c0_i32_7 = arith.constant 0 : i32
    %14 = arith.cmpi slt, %7, %c0_i32_7 : i32
    %15 = vector.broadcast %14 : i1 to vector<256x1xi1>
    %16 = vector.broadcast %15 : vector<256x1xi1> to vector<256x1xi1>
    %17 = arith.xori %13, %16 : vector<256x1xi1>
    %18 = arith.andi %17, %11 : vector<256x1xi1>
    %19 = vector.broadcast %7 : i32 to vector<256x1xi32>
    %20 = arith.addi %9, %19 : vector<256x1xi32>
    %21 = arith.select %18, %20, %9 : vector<256x1xi1>, vector<256x1xi32>
    %c0_8 = arith.constant 0 : index
    %c0_9 = arith.constant 0 : index
    %22 = vector.load %arg18[%c0_8, %c0_9] : memref<290x3xf32, #tpu.memory_space<vmem>>, vector<256x3xf32>
    %c1_i32_10 = arith.constant 1 : i32
    %23 = vector.broadcast %c1_i32_10 : i32 to vector<256x1xi32>
    %24 = arith.cmpi sge, %21, %23 : vector<256x1xi32>
    %c17_i32 = arith.constant 17 : i32
    %25 = vector.broadcast %c17_i32 : i32 to vector<256x1xi32>
    %26 = arith.cmpi slt, %21, %25 : vector<256x1xi32>
    %27 = arith.andi %24, %26 : vector<256x1xi1>
    %cst_11 = arith.constant 0.000000e+00 : f32
    %28 = vector.shape_cast %27 : vector<256x1xi1> to vector<256x1xi1>
    %29 = vector.broadcast %28 : vector<256x1xi1> to vector<256x3xi1>
    %30 = vector.broadcast %cst_11 : f32 to vector<256x3xf32>
    %31 = arith.select %29, %22, %30 : vector<256x3xi1>, vector<256x3xf32>
    %c0_12 = arith.constant 0 : index
    %c0_13 = arith.constant 0 : index
    %32 = vector.load %arg22[%c0_12, %c0_13] : memref<256x27xf32, #tpu.memory_space<vmem>>, vector<256x3xf32>
    tpu.vector_store %arg22[%c0_12, %c0_13], %31 {strides = array<i32>} : memref<256x27xf32, #tpu.memory_space<vmem>>, vector<256x3xf32>,
    %c1 = arith.constant 1 : index
    %c0_14 = arith.constant 0 : index
    %33 = vector.load %arg18[%c1, %c0_14] : memref<290x3xf32, #tpu.memory_space<vmem>>, vector<256x3xf32>
    %c0_15 = arith.constant 0 : index
    %c3 = arith.constant 3 : index
    %34 = vector.load %arg22[%c0_15, %c3] : memref<256x27xf32, #tpu.memory_space<vmem>>, vector<256x3xf32>
    tpu.vector_store %arg22[%c0_15, %c3], %33 {strides = array<i32>} : memref<256x27xf32, #tpu.memory_space<vmem>>, vector<256x3xf32>,
    %c2 = arith.constant 2 : index
    %c0_16 = arith.constant 0 : index
    %35 = vector.load %arg18[%c2, %c0_16] : memref<290x3xf32, #tpu.memory_space<vmem>>, vector<256x3xf32>
    %c-1_i32 = arith.constant -1 : i32
    %36 = vector.broadcast %c-1_i32 : i32 to vector<256x1xi32>
    %37 = arith.cmpi sge, %21, %36 : vector<256x1xi32>
    %c15_i32 = arith.constant 15 : i32
    %38 = vector.broadcast %c15_i32 : i32 to vector<256x1xi32>
    %39 = arith.cmpi slt, %21, %38 : vector<256x1xi32>
    %40 = arith.andi %37, %39 : vector<256x1xi1>
    %cst_17 = arith.constant 0.000000e+00 : f32
    %41 = vector.shape_cast %40 : vector<256x1xi1> to vector<256x1xi1>
    %42 = vector.broadcast %41 : vector<256x1xi1> to vector<256x3xi1>
    %43 = vector.broadcast %cst_17 : f32 to vector<256x3xf32>
    %44 = arith.select %42, %35, %43 : vector<256x3xi1>, vector<256x3xf32>
    %c0_18 = arith.constant 0 : index
    %c6 = arith.constant 6 : index
    %45 = vector.load %arg22[%c0_18, %c6] : memref<256x27xf32, #tpu.memory_space<vmem>>, vector<256x3xf32>
    tpu.vector_store %arg22[%c0_18, %c6], %44 {strides = array<i32>} : memref<256x27xf32, #tpu.memory_space<vmem>>, vector<256x3xf32>,
    %c16 = arith.constant 16 : index
    %c0_19 = arith.constant 0 : index
    %46 = vector.load %arg18[%c16, %c0_19] : memref<290x3xf32, #tpu.memory_space<vmem>>, vector<256x3xf32>
    %c1_i32_20 = arith.constant 1 : i32
    %47 = vector.broadcast %c1_i32_20 : i32 to vector<256x1xi32>
    %48 = arith.cmpi sge, %21, %47 : vector<256x1xi32>
    %c17_i32_21 = arith.constant 17 : i32
    %49 = vector.broadcast %c17_i32_21 : i32 to vector<256x1xi32>
    %50 = arith.cmpi slt, %21, %49 : vector<256x1xi32>
    %51 = arith.andi %48, %50 : vector<256x1xi1>
    %cst_22 = arith.constant 0.000000e+00 : f32
    %52 = vector.shape_cast %51 : vector<256x1xi1> to vector<256x1xi1>
    %53 = vector.broadcast %52 : vector<256x1xi1> to vector<256x3xi1>
    %54 = vector.broadcast %cst_22 : f32 to vector<256x3xf32>
    %55 = arith.select %53, %46, %54 : vector<256x3xi1>, vector<256x3xf32>
    %c0_23 = arith.constant 0 : index
    %c9 = arith.constant 9 : index
    %56 = vector.load %arg22[%c0_23, %c9] : memref<256x27xf32, #tpu.memory_space<vmem>>, vector<256x3xf32>
    tpu.vector_store %arg22[%c0_23, %c9], %55 {strides = array<i32>} : memref<256x27xf32, #tpu.memory_space<vmem>>, vector<256x3xf32>,
    %c17_24 = arith.constant 17 : index
    %c0_25 = arith.constant 0 : index
    %57 = vector.load %arg18[%c17_24, %c0_25] : memref<290x3xf32, #tpu.memory_space<vmem>>, vector<256x3xf32>
    %c0_26 = arith.constant 0 : index
    %c12 = arith.constant 12 : index
    %58 = vector.load %arg22[%c0_26, %c12] : memref<256x27xf32, #tpu.memory_space<vmem>>, vector<256x3xf32>
    tpu.vector_store %arg22[%c0_26, %c12], %57 {strides = array<i32>} : memref<256x27xf32, #tpu.memory_space<vmem>>, vector<256x3xf32>,
    %c18 = arith.constant 18 : index
    %c0_27 = arith.constant 0 : index
    %59 = vector.load %arg18[%c18, %c0_27] : memref<290x3xf32, #tpu.memory_space<vmem>>, vector<256x3xf32>
    %c-1_i32_28 = arith.constant -1 : i32
    %60 = vector.broadcast %c-1_i32_28 : i32 to vector<256x1xi32>
    %61 = arith.cmpi sge, %21, %60 : vector<256x1xi32>
    %c15_i32_29 = arith.constant 15 : i32
    %62 = vector.broadcast %c15_i32_29 : i32 to vector<256x1xi32>
    %63 = arith.cmpi slt, %21, %62 : vector<256x1xi32>
    %64 = arith.andi %61, %63 : vector<256x1xi1>
    %cst_30 = arith.constant 0.000000e+00 : f32
    %65 = vector.shape_cast %64 : vector<256x1xi1> to vector<256x1xi1>
    %66 = vector.broadcast %65 : vector<256x1xi1> to vector<256x3xi1>
    %67 = vector.broadcast %cst_30 : f32 to vector<256x3xf32>
    %68 = arith.select %66, %59, %67 : vector<256x3xi1>, vector<256x3xf32>
    %c0_31 = arith.constant 0 : index
    %c15 = arith.constant 15 : index
    %69 = vector.load %arg22[%c0_31, %c15] : memref<256x27xf32, #tpu.memory_space<vmem>>, vector<256x3xf32>
    tpu.vector_store %arg22[%c0_31, %c15], %68 {strides = array<i32>} : memref<256x27xf32, #tpu.memory_space<vmem>>, vector<256x3xf32>,
    %c32 = arith.constant 32 : index
    %c0_32 = arith.constant 0 : index
    %70 = vector.load %arg18[%c32, %c0_32] : memref<290x3xf32, #tpu.memory_space<vmem>>, vector<256x3xf32>
    %c1_i32_33 = arith.constant 1 : i32
    %71 = vector.broadcast %c1_i32_33 : i32 to vector<256x1xi32>
    %72 = arith.cmpi sge, %21, %71 : vector<256x1xi32>
    %c17_i32_34 = arith.constant 17 : i32
    %73 = vector.broadcast %c17_i32_34 : i32 to vector<256x1xi32>
    %74 = arith.cmpi slt, %21, %73 : vector<256x1xi32>
    %75 = arith.andi %72, %74 : vector<256x1xi1>
    %cst_35 = arith.constant 0.000000e+00 : f32
    %76 = vector.shape_cast %75 : vector<256x1xi1> to vector<256x1xi1>
    %77 = vector.broadcast %76 : vector<256x1xi1> to vector<256x3xi1>
    %78 = vector.broadcast %cst_35 : f32 to vector<256x3xf32>
    %79 = arith.select %77, %70, %78 : vector<256x3xi1>, vector<256x3xf32>
    %c0_36 = arith.constant 0 : index
    %c18_37 = arith.constant 18 : index
    %80 = vector.load %arg22[%c0_36, %c18_37] : memref<256x27xf32, #tpu.memory_space<vmem>>, vector<256x3xf32>
    tpu.vector_store %arg22[%c0_36, %c18_37], %79 {strides = array<i32>} : memref<256x27xf32, #tpu.memory_space<vmem>>, vector<256x3xf32>,
    %c33 = arith.constant 33 : index
    %c0_38 = arith.constant 0 : index
    %81 = vector.load %arg18[%c33, %c0_38] : memref<290x3xf32, #tpu.memory_space<vmem>>, vector<256x3xf32>
    %c0_39 = arith.constant 0 : index
    %c21 = arith.constant 21 : index
    %82 = vector.load %arg22[%c0_39, %c21] : memref<256x27xf32, #tpu.memory_space<vmem>>, vector<256x3xf32>
    tpu.vector_store %arg22[%c0_39, %c21], %81 {strides = array<i32>} : memref<256x27xf32, #tpu.memory_space<vmem>>, vector<256x3xf32>,
    %c34 = arith.constant 34 : index
    %c0_40 = arith.constant 0 : index
    %83 = vector.load %arg18[%c34, %c0_40] : memref<290x3xf32, #tpu.memory_space<vmem>>, vector<256x3xf32>
    %c-1_i32_41 = arith.constant -1 : i32
    %84 = vector.broadcast %c-1_i32_41 : i32 to vector<256x1xi32>
    %85 = arith.cmpi sge, %21, %84 : vector<256x1xi32>
    %c15_i32_42 = arith.constant 15 : i32
    %86 = vector.broadcast %c15_i32_42 : i32 to vector<256x1xi32>
    %87 = arith.cmpi slt, %21, %86 : vector<256x1xi32>
    %88 = arith.andi %85, %87 : vector<256x1xi1>
    %cst_43 = arith.constant 0.000000e+00 : f32
    %89 = vector.shape_cast %88 : vector<256x1xi1> to vector<256x1xi1>
    %90 = vector.broadcast %89 : vector<256x1xi1> to vector<256x3xi1>
    %91 = vector.broadcast %cst_43 : f32 to vector<256x3xf32>
    %92 = arith.select %90, %83, %91 : vector<256x3xi1>, vector<256x3xf32>
    %c0_44 = arith.constant 0 : index
    %c24 = arith.constant 24 : index
    %93 = vector.load %arg22[%c0_44, %c24] : memref<256x27xf32, #tpu.memory_space<vmem>>, vector<256x3xf32>
    tpu.vector_store %arg22[%c0_44, %c24], %92 {strides = array<i32>} : memref<256x27xf32, #tpu.memory_space<vmem>>, vector<256x3xf32>,
    %c0_45 = arith.constant 0 : index
    %c0_46 = arith.constant 0 : index
    %94 = vector.load %arg22[%c0_45, %c0_46] : memref<256x27xf32, #tpu.memory_space<vmem>>, vector<256x27xf32>
    %c0_47 = arith.constant 0 : index
    %c0_48 = arith.constant 0 : index
    %95 = vector.load %arg2[%c0_47, %c0_48] : memref<27x32xf32, #tpu.memory_space<vmem>>, vector<27x32xf32>
    %cst_49 = arith.constant dense<0.000000e+00> : vector<256x32xf32>
    %96 = tpu.matmul %94, %95, %cst_49 {dimension_numbers = #tpu.dot_dimension_numbers<[1], [0], [0], [1], [0, 0, 1, 1], [], []>} : vector<256x27xf32>, vector<27x32xf32>, vector<256x32xf32> -> vector<256x32xf32>
    %c0_50 = arith.constant 0 : index
    %c0_51 = arith.constant 0 : index
    %97 = vector.load %arg3[%c0_50, %c0_51] : memref<1x32xf32, #tpu.memory_space<vmem>>, vector<1x32xf32>
    %98 = vector.shape_cast %97 : vector<1x32xf32> to vector<32xf32>
    %99 = vector.shape_cast %98 : vector<32xf32> to vector<1x32xf32>
    %100 = vector.broadcast %99 : vector<1x32xf32> to vector<256x32xf32>
    %101 = arith.addf %96, %100 : vector<256x32xf32>
    %cst_52 = arith.constant 0.000000e+00 : f32
    %102 = vector.broadcast %cst_52 : f32 to vector<256x32xf32>
    %103 = arith.maximumf %101, %102 : vector<256x32xf32>
    %104 = vector.extract_strided_slice %103 {offsets = [0, 0], sizes = [239, 32], strides = [1, 1]} : vector<256x32xf32> to vector<239x32xf32>
    %105 = vector.extract_strided_slice %103 {offsets = [1, 0], sizes = [239, 32], strides = [1, 1]} : vector<256x32xf32> to vector<239x32xf32>
    %106 = arith.maximumf %104, %105 : vector<239x32xf32>
    %107 = vector.extract_strided_slice %103 {offsets = [16, 0], sizes = [239, 32], strides = [1, 1]} : vector<256x32xf32> to vector<239x32xf32>
    %108 = vector.extract_strided_slice %103 {offsets = [17, 0], sizes = [239, 32], strides = [1, 1]} : vector<256x32xf32> to vector<239x32xf32>
    %109 = arith.maximumf %107, %108 : vector<239x32xf32>
    %110 = arith.maximumf %106, %109 : vector<239x32xf32>
    %c0_53 = arith.constant 0 : index
    %c0_54 = arith.constant 0 : index
    %111 = vector.load %arg10[%c0_53, %c0_54] : memref<64x239xf32, #tpu.memory_space<vmem>>, vector<64x239xf32>
    %cst_55 = arith.constant dense<0.000000e+00> : vector<64x32xf32>
    %112 = tpu.matmul %111, %110, %cst_55 {dimension_numbers = #tpu.dot_dimension_numbers<[1], [0], [0], [1], [0, 0, 1, 1], [], []>} : vector<64x239xf32>, vector<239x32xf32>, vector<64x32xf32> -> vector<64x32xf32>
    %cst_56 = arith.constant 0.000000e+00 : f32
    %113 = vector.broadcast %cst_56 : f32 to vector<82x32xf32>
    %c0_57 = arith.constant 0 : index
    %c0_58 = arith.constant 0 : index
    %114 = vector.load %arg19[%c0_57, %c0_58] : memref<82x32xf32, #tpu.memory_space<vmem>>, vector<82x32xf32>
    tpu.vector_store %arg19[%c0_57, %c0_58], %113 {strides = array<i32>} : memref<82x32xf32, #tpu.memory_space<vmem>>, vector<82x32xf32>,
    %c9_59 = arith.constant 9 : index
    %c0_60 = arith.constant 0 : index
    %115 = vector.load %arg19[%c9_59, %c0_60] : memref<82x32xf32, #tpu.memory_space<vmem>>, vector<64x32xf32>
    tpu.vector_store %arg19[%c9_59, %c0_60], %112 {strides = array<i32>} : memref<82x32xf32, #tpu.memory_space<vmem>>, vector<64x32xf32>,
    %116 = tpu.iota {dimensions = array<i32: 0>} : vector<64x1xi32>
    %c8_i32 = arith.constant 8 : i32
    %c0_i32_61 = arith.constant 0 : i32
    %117 = arith.cmpi eq, %c8_i32, %c0_i32_61 : i32
    %c1_i32_62 = arith.constant 1 : i32
    %118 = arith.select %117, %c1_i32_62, %c8_i32 : i32
    %119 = vector.broadcast %118 : i32 to vector<64x1xi32>
    %120 = arith.remsi %116, %119 : vector<64x1xi32>
    %c0_i32_63 = arith.constant 0 : i32
    %121 = vector.broadcast %c0_i32_63 : i32 to vector<64x1xi32>
    %122 = arith.cmpi ne, %120, %121 : vector<64x1xi32>
    %c0_i32_64 = arith.constant 0 : i32
    %123 = vector.broadcast %c0_i32_64 : i32 to vector<64x1xi32>
    %124 = arith.cmpi slt, %120, %123 : vector<64x1xi32>
    %c0_i32_65 = arith.constant 0 : i32
    %125 = arith.cmpi slt, %118, %c0_i32_65 : i32
    %126 = vector.broadcast %125 : i1 to vector<64x1xi1>
    %127 = vector.broadcast %126 : vector<64x1xi1> to vector<64x1xi1>
    %128 = arith.xori %124, %127 : vector<64x1xi1>
    %129 = arith.andi %128, %122 : vector<64x1xi1>
    %130 = vector.broadcast %118 : i32 to vector<64x1xi32>
    %131 = arith.addi %120, %130 : vector<64x1xi32>
    %132 = arith.select %129, %131, %120 : vector<64x1xi1>, vector<64x1xi32>
    %c0_66 = arith.constant 0 : index
    %c0_67 = arith.constant 0 : index
    %133 = vector.load %arg19[%c0_66, %c0_67] : memref<82x32xf32, #tpu.memory_space<vmem>>, vector<64x32xf32>
    %c1_i32_68 = arith.constant 1 : i32
    %134 = vector.broadcast %c1_i32_68 : i32 to vector<64x1xi32>
    %135 = arith.cmpi sge, %132, %134 : vector<64x1xi32>
    %c9_i32 = arith.constant 9 : i32
    %136 = vector.broadcast %c9_i32 : i32 to vector<64x1xi32>
    %137 = arith.cmpi slt, %132, %136 : vector<64x1xi32>
    %138 = arith.andi %135, %137 : vector<64x1xi1>
    %cst_69 = arith.constant 0.000000e+00 : f32
    %139 = vector.shape_cast %138 : vector<64x1xi1> to vector<64x1xi1>
    %140 = vector.broadcast %139 : vector<64x1xi1> to vector<64x32xi1>
    %141 = vector.broadcast %cst_69 : f32 to vector<64x32xf32>
    %142 = arith.select %140, %133, %141 : vector<64x32xi1>, vector<64x32xf32>
    %c0_70 = arith.constant 0 : index
    %c0_71 = arith.constant 0 : index
    %143 = vector.load %arg23[%c0_70, %c0_71] : memref<64x288xf32, #tpu.memory_space<vmem>>, vector<64x32xf32>
    tpu.vector_store %arg23[%c0_70, %c0_71], %142 {strides = array<i32>} : memref<64x288xf32, #tpu.memory_space<vmem>>, vector<64x32xf32>,
    %c1_72 = arith.constant 1 : index
    %c0_73 = arith.constant 0 : index
    %144 = vector.load %arg19[%c1_72, %c0_73] : memref<82x32xf32, #tpu.memory_space<vmem>>, vector<64x32xf32>
    %c0_74 = arith.constant 0 : index
    %c32_75 = arith.constant 32 : index
    %145 = vector.load %arg23[%c0_74, %c32_75] : memref<64x288xf32, #tpu.memory_space<vmem>>, vector<64x32xf32>
    tpu.vector_store %arg23[%c0_74, %c32_75], %144 {strides = array<i32>} : memref<64x288xf32, #tpu.memory_space<vmem>>, vector<64x32xf32>,
    %c2_76 = arith.constant 2 : index
    %c0_77 = arith.constant 0 : index
    %146 = vector.load %arg19[%c2_76, %c0_77] : memref<82x32xf32, #tpu.memory_space<vmem>>, vector<64x32xf32>
    %c-1_i32_78 = arith.constant -1 : i32
    %147 = vector.broadcast %c-1_i32_78 : i32 to vector<64x1xi32>
    %148 = arith.cmpi sge, %132, %147 : vector<64x1xi32>
    %c7_i32 = arith.constant 7 : i32
    %149 = vector.broadcast %c7_i32 : i32 to vector<64x1xi32>
    %150 = arith.cmpi slt, %132, %149 : vector<64x1xi32>
    %151 = arith.andi %148, %150 : vector<64x1xi1>
    %cst_79 = arith.constant 0.000000e+00 : f32
    %152 = vector.shape_cast %151 : vector<64x1xi1> to vector<64x1xi1>
    %153 = vector.broadcast %152 : vector<64x1xi1> to vector<64x32xi1>
    %154 = vector.broadcast %cst_79 : f32 to vector<64x32xf32>
    %155 = arith.select %153, %146, %154 : vector<64x32xi1>, vector<64x32xf32>
    %c0_80 = arith.constant 0 : index
    %c64 = arith.constant 64 : index
    %156 = vector.load %arg23[%c0_80, %c64] : memref<64x288xf32, #tpu.memory_space<vmem>>, vector<64x32xf32>
    tpu.vector_store %arg23[%c0_80, %c64], %155 {strides = array<i32>} : memref<64x288xf32, #tpu.memory_space<vmem>>, vector<64x32xf32>,
    %c8 = arith.constant 8 : index
    %c0_81 = arith.constant 0 : index
    %157 = vector.load %arg19[%c8, %c0_81] : memref<82x32xf32, #tpu.memory_space<vmem>>, vector<64x32xf32>
    %c1_i32_82 = arith.constant 1 : i32
    %158 = vector.broadcast %c1_i32_82 : i32 to vector<64x1xi32>
    %159 = arith.cmpi sge, %132, %158 : vector<64x1xi32>
    %c9_i32_83 = arith.constant 9 : i32
    %160 = vector.broadcast %c9_i32_83 : i32 to vector<64x1xi32>
    %161 = arith.cmpi slt, %132, %160 : vector<64x1xi32>
    %162 = arith.andi %159, %161 : vector<64x1xi1>
    %cst_84 = arith.constant 0.000000e+00 : f32
    %163 = vector.shape_cast %162 : vector<64x1xi1> to vector<64x1xi1>
    %164 = vector.broadcast %163 : vector<64x1xi1> to vector<64x32xi1>
    %165 = vector.broadcast %cst_84 : f32 to vector<64x32xf32>
    %166 = arith.select %164, %157, %165 : vector<64x32xi1>, vector<64x32xf32>
    %c0_85 = arith.constant 0 : index
    %c96 = arith.constant 96 : index
    %167 = vector.load %arg23[%c0_85, %c96] : memref<64x288xf32, #tpu.memory_space<vmem>>, vector<64x32xf32>
    tpu.vector_store %arg23[%c0_85, %c96], %166 {strides = array<i32>} : memref<64x288xf32, #tpu.memory_space<vmem>>, vector<64x32xf32>,
    %c9_86 = arith.constant 9 : index
    %c0_87 = arith.constant 0 : index
    %168 = vector.load %arg19[%c9_86, %c0_87] : memref<82x32xf32, #tpu.memory_space<vmem>>, vector<64x32xf32>
    %c0_88 = arith.constant 0 : index
    %c128 = arith.constant 128 : index
    %169 = vector.load %arg23[%c0_88, %c128] : memref<64x288xf32, #tpu.memory_space<vmem>>, vector<64x32xf32>
    tpu.vector_store %arg23[%c0_88, %c128], %168 {strides = array<i32>} : memref<64x288xf32, #tpu.memory_space<vmem>>, vector<64x32xf32>,
    %c10 = arith.constant 10 : index
    %c0_89 = arith.constant 0 : index
    %170 = vector.load %arg19[%c10, %c0_89] : memref<82x32xf32, #tpu.memory_space<vmem>>, vector<64x32xf32>
    %c-1_i32_90 = arith.constant -1 : i32
    %171 = vector.broadcast %c-1_i32_90 : i32 to vector<64x1xi32>
    %172 = arith.cmpi sge, %132, %171 : vector<64x1xi32>
    %c7_i32_91 = arith.constant 7 : i32
    %173 = vector.broadcast %c7_i32_91 : i32 to vector<64x1xi32>
    %174 = arith.cmpi slt, %132, %173 : vector<64x1xi32>
    %175 = arith.andi %172, %174 : vector<64x1xi1>
    %cst_92 = arith.constant 0.000000e+00 : f32
    %176 = vector.shape_cast %175 : vector<64x1xi1> to vector<64x1xi1>
    %177 = vector.broadcast %176 : vector<64x1xi1> to vector<64x32xi1>
    %178 = vector.broadcast %cst_92 : f32 to vector<64x32xf32>
    %179 = arith.select %177, %170, %178 : vector<64x32xi1>, vector<64x32xf32>
    %c0_93 = arith.constant 0 : index
    %c160 = arith.constant 160 : index
    %180 = vector.load %arg23[%c0_93, %c160] : memref<64x288xf32, #tpu.memory_space<vmem>>, vector<64x32xf32>
    tpu.vector_store %arg23[%c0_93, %c160], %179 {strides = array<i32>} : memref<64x288xf32, #tpu.memory_space<vmem>>, vector<64x32xf32>,
    %c16_94 = arith.constant 16 : index
    %c0_95 = arith.constant 0 : index
    %181 = vector.load %arg19[%c16_94, %c0_95] : memref<82x32xf32, #tpu.memory_space<vmem>>, vector<64x32xf32>
    %c1_i32_96 = arith.constant 1 : i32
    %182 = vector.broadcast %c1_i32_96 : i32 to vector<64x1xi32>
    %183 = arith.cmpi sge, %132, %182 : vector<64x1xi32>
    %c9_i32_97 = arith.constant 9 : i32
    %184 = vector.broadcast %c9_i32_97 : i32 to vector<64x1xi32>
    %185 = arith.cmpi slt, %132, %184 : vector<64x1xi32>
    %186 = arith.andi %183, %185 : vector<64x1xi1>
    %cst_98 = arith.constant 0.000000e+00 : f32
    %187 = vector.shape_cast %186 : vector<64x1xi1> to vector<64x1xi1>
    %188 = vector.broadcast %187 : vector<64x1xi1> to vector<64x32xi1>
    %189 = vector.broadcast %cst_98 : f32 to vector<64x32xf32>
    %190 = arith.select %188, %181, %189 : vector<64x32xi1>, vector<64x32xf32>
    %c0_99 = arith.constant 0 : index
    %c192 = arith.constant 192 : index
    %191 = vector.load %arg23[%c0_99, %c192] : memref<64x288xf32, #tpu.memory_space<vmem>>, vector<64x32xf32>
    tpu.vector_store %arg23[%c0_99, %c192], %190 {strides = array<i32>} : memref<64x288xf32, #tpu.memory_space<vmem>>, vector<64x32xf32>,
    %c17_100 = arith.constant 17 : index
    %c0_101 = arith.constant 0 : index
    %192 = vector.load %arg19[%c17_100, %c0_101] : memref<82x32xf32, #tpu.memory_space<vmem>>, vector<64x32xf32>
    %c0_102 = arith.constant 0 : index
    %c224 = arith.constant 224 : index
    %193 = vector.load %arg23[%c0_102, %c224] : memref<64x288xf32, #tpu.memory_space<vmem>>, vector<64x32xf32>
    tpu.vector_store %arg23[%c0_102, %c224], %192 {strides = array<i32>} : memref<64x288xf32, #tpu.memory_space<vmem>>, vector<64x32xf32>,
    %c18_103 = arith.constant 18 : index
    %c0_104 = arith.constant 0 : index
    %194 = vector.load %arg19[%c18_103, %c0_104] : memref<82x32xf32, #tpu.memory_space<vmem>>, vector<64x32xf32>
    %c-1_i32_105 = arith.constant -1 : i32
    %195 = vector.broadcast %c-1_i32_105 : i32 to vector<64x1xi32>
    %196 = arith.cmpi sge, %132, %195 : vector<64x1xi32>
    %c7_i32_106 = arith.constant 7 : i32
    %197 = vector.broadcast %c7_i32_106 : i32 to vector<64x1xi32>
    %198 = arith.cmpi slt, %132, %197 : vector<64x1xi32>
    %199 = arith.andi %196, %198 : vector<64x1xi1>
    %cst_107 = arith.constant 0.000000e+00 : f32
    %200 = vector.shape_cast %199 : vector<64x1xi1> to vector<64x1xi1>
    %201 = vector.broadcast %200 : vector<64x1xi1> to vector<64x32xi1>
    %202 = vector.broadcast %cst_107 : f32 to vector<64x32xf32>
    %203 = arith.select %201, %194, %202 : vector<64x32xi1>, vector<64x32xf32>
    %c0_108 = arith.constant 0 : index
    %c256 = arith.constant 256 : index
    %204 = vector.load %arg23[%c0_108, %c256] : memref<64x288xf32, #tpu.memory_space<vmem>>, vector<64x32xf32>
    tpu.vector_store %arg23[%c0_108, %c256], %203 {strides = array<i32>} : memref<64x288xf32, #tpu.memory_space<vmem>>, vector<64x32xf32>,
    %c0_109 = arith.constant 0 : index
    %c0_110 = arith.constant 0 : index
    %205 = vector.load %arg23[%c0_109, %c0_110] : memref<64x288xf32, #tpu.memory_space<vmem>>, vector<64x288xf32>
    %c0_111 = arith.constant 0 : index
    %c0_112 = arith.constant 0 : index
    %206 = vector.load %arg4[%c0_111, %c0_112] : memref<288x64xf32, #tpu.memory_space<vmem>>, vector<288x64xf32>
    %cst_113 = arith.constant dense<0.000000e+00> : vector<64x64xf32>
    %207 = tpu.matmul %205, %206, %cst_113 {dimension_numbers = #tpu.dot_dimension_numbers<[1], [0], [0], [1], [0, 0, 1, 1], [], []>} : vector<64x288xf32>, vector<288x64xf32>, vector<64x64xf32> -> vector<64x64xf32>
    %c0_114 = arith.constant 0 : index
    %c0_115 = arith.constant 0 : index
    %208 = vector.load %arg5[%c0_114, %c0_115] : memref<1x64xf32, #tpu.memory_space<vmem>>, vector<1x64xf32>
    %209 = vector.shape_cast %208 : vector<1x64xf32> to vector<64xf32>
    %210 = vector.shape_cast %209 : vector<64xf32> to vector<1x64xf32>
    %211 = vector.broadcast %210 : vector<1x64xf32> to vector<64x64xf32>
    %212 = arith.addf %207, %211 : vector<64x64xf32>
    %cst_116 = arith.constant 0.000000e+00 : f32
    %213 = vector.broadcast %cst_116 : f32 to vector<64x64xf32>
    %214 = arith.maximumf %212, %213 : vector<64x64xf32>
    %215 = vector.extract_strided_slice %214 {offsets = [0, 0], sizes = [55, 64], strides = [1, 1]} : vector<64x64xf32> to vector<55x64xf32>
    %216 = vector.extract_strided_slice %214 {offsets = [1, 0], sizes = [55, 64], strides = [1, 1]} : vector<64x64xf32> to vector<55x64xf32>
    %217 = arith.maximumf %215, %216 : vector<55x64xf32>
    %218 = vector.extract_strided_slice %214 {offsets = [8, 0], sizes = [55, 64], strides = [1, 1]} : vector<64x64xf32> to vector<55x64xf32>
    %219 = vector.extract_strided_slice %214 {offsets = [9, 0], sizes = [55, 64], strides = [1, 1]} : vector<64x64xf32> to vector<55x64xf32>
    %220 = arith.maximumf %218, %219 : vector<55x64xf32>
    %221 = arith.maximumf %217, %220 : vector<55x64xf32>
    %c0_117 = arith.constant 0 : index
    %c0_118 = arith.constant 0 : index
    %222 = vector.load %arg11[%c0_117, %c0_118] : memref<16x55xf32, #tpu.memory_space<vmem>>, vector<16x55xf32>
    %cst_119 = arith.constant dense<0.000000e+00> : vector<16x64xf32>
    %223 = tpu.matmul %222, %221, %cst_119 {dimension_numbers = #tpu.dot_dimension_numbers<[1], [0], [0], [1], [0, 0, 1, 1], [], []>} : vector<16x55xf32>, vector<55x64xf32>, vector<16x64xf32> -> vector<16x64xf32>
    %cst_120 = arith.constant 0.000000e+00 : f32
    %224 = vector.broadcast %cst_120 : f32 to vector<26x64xf32>
    %c0_121 = arith.constant 0 : index
    %c0_122 = arith.constant 0 : index
    %225 = vector.load %arg20[%c0_121, %c0_122] : memref<26x64xf32, #tpu.memory_space<vmem>>, vector<26x64xf32>
    tpu.vector_store %arg20[%c0_121, %c0_122], %224 {strides = array<i32>} : memref<26x64xf32, #tpu.memory_space<vmem>>, vector<26x64xf32>,
    %c5 = arith.constant 5 : index
    %c0_123 = arith.constant 0 : index
    %226 = vector.load %arg20[%c5, %c0_123] : memref<26x64xf32, #tpu.memory_space<vmem>>, vector<16x64xf32>
    tpu.vector_store %arg20[%c5, %c0_123], %223 {strides = array<i32>} : memref<26x64xf32, #tpu.memory_space<vmem>>, vector<16x64xf32>,
    %227 = tpu.iota {dimensions = array<i32: 0>} : vector<16x1xi32>
    %c4_i32 = arith.constant 4 : i32
    %c0_i32_124 = arith.constant 0 : i32
    %228 = arith.cmpi eq, %c4_i32, %c0_i32_124 : i32
    %c1_i32_125 = arith.constant 1 : i32
    %229 = arith.select %228, %c1_i32_125, %c4_i32 : i32
    %230 = vector.broadcast %229 : i32 to vector<16x1xi32>
    %231 = arith.remsi %227, %230 : vector<16x1xi32>
    %c0_i32_126 = arith.constant 0 : i32
    %232 = vector.broadcast %c0_i32_126 : i32 to vector<16x1xi32>
    %233 = arith.cmpi ne, %231, %232 : vector<16x1xi32>
    %c0_i32_127 = arith.constant 0 : i32
    %234 = vector.broadcast %c0_i32_127 : i32 to vector<16x1xi32>
    %235 = arith.cmpi slt, %231, %234 : vector<16x1xi32>
    %c0_i32_128 = arith.constant 0 : i32
    %236 = arith.cmpi slt, %229, %c0_i32_128 : i32
    %237 = vector.broadcast %236 : i1 to vector<16x1xi1>
    %238 = vector.broadcast %237 : vector<16x1xi1> to vector<16x1xi1>
    %239 = arith.xori %235, %238 : vector<16x1xi1>
    %240 = arith.andi %239, %233 : vector<16x1xi1>
    %241 = vector.broadcast %229 : i32 to vector<16x1xi32>
    %242 = arith.addi %231, %241 : vector<16x1xi32>
    %243 = arith.select %240, %242, %231 : vector<16x1xi1>, vector<16x1xi32>
    %c0_129 = arith.constant 0 : index
    %c0_130 = arith.constant 0 : index
    %244 = vector.load %arg20[%c0_129, %c0_130] : memref<26x64xf32, #tpu.memory_space<vmem>>, vector<16x64xf32>
    %c1_i32_131 = arith.constant 1 : i32
    %245 = vector.broadcast %c1_i32_131 : i32 to vector<16x1xi32>
    %246 = arith.cmpi sge, %243, %245 : vector<16x1xi32>
    %c5_i32 = arith.constant 5 : i32
    %247 = vector.broadcast %c5_i32 : i32 to vector<16x1xi32>
    %248 = arith.cmpi slt, %243, %247 : vector<16x1xi32>
    %249 = arith.andi %246, %248 : vector<16x1xi1>
    %cst_132 = arith.constant 0.000000e+00 : f32
    %250 = vector.shape_cast %249 : vector<16x1xi1> to vector<16x1xi1>
    %251 = vector.broadcast %250 : vector<16x1xi1> to vector<16x64xi1>
    %252 = vector.broadcast %cst_132 : f32 to vector<16x64xf32>
    %253 = arith.select %251, %244, %252 : vector<16x64xi1>, vector<16x64xf32>
    %c0_133 = arith.constant 0 : index
    %c0_134 = arith.constant 0 : index
    %254 = vector.load %arg24[%c0_133, %c0_134] : memref<16x576xf32, #tpu.memory_space<vmem>>, vector<16x64xf32>
    tpu.vector_store %arg24[%c0_133, %c0_134], %253 {strides = array<i32>} : memref<16x576xf32, #tpu.memory_space<vmem>>, vector<16x64xf32>,
    %c1_135 = arith.constant 1 : index
    %c0_136 = arith.constant 0 : index
    %255 = vector.load %arg20[%c1_135, %c0_136] : memref<26x64xf32, #tpu.memory_space<vmem>>, vector<16x64xf32>
    %c0_137 = arith.constant 0 : index
    %c64_138 = arith.constant 64 : index
    %256 = vector.load %arg24[%c0_137, %c64_138] : memref<16x576xf32, #tpu.memory_space<vmem>>, vector<16x64xf32>
    tpu.vector_store %arg24[%c0_137, %c64_138], %255 {strides = array<i32>} : memref<16x576xf32, #tpu.memory_space<vmem>>, vector<16x64xf32>,
    %c2_139 = arith.constant 2 : index
    %c0_140 = arith.constant 0 : index
    %257 = vector.load %arg20[%c2_139, %c0_140] : memref<26x64xf32, #tpu.memory_space<vmem>>, vector<16x64xf32>
    %c-1_i32_141 = arith.constant -1 : i32
    %258 = vector.broadcast %c-1_i32_141 : i32 to vector<16x1xi32>
    %259 = arith.cmpi sge, %243, %258 : vector<16x1xi32>
    %c3_i32 = arith.constant 3 : i32
    %260 = vector.broadcast %c3_i32 : i32 to vector<16x1xi32>
    %261 = arith.cmpi slt, %243, %260 : vector<16x1xi32>
    %262 = arith.andi %259, %261 : vector<16x1xi1>
    %cst_142 = arith.constant 0.000000e+00 : f32
    %263 = vector.shape_cast %262 : vector<16x1xi1> to vector<16x1xi1>
    %264 = vector.broadcast %263 : vector<16x1xi1> to vector<16x64xi1>
    %265 = vector.broadcast %cst_142 : f32 to vector<16x64xf32>
    %266 = arith.select %264, %257, %265 : vector<16x64xi1>, vector<16x64xf32>
    %c0_143 = arith.constant 0 : index
    %c128_144 = arith.constant 128 : index
    %267 = vector.load %arg24[%c0_143, %c128_144] : memref<16x576xf32, #tpu.memory_space<vmem>>, vector<16x64xf32>
    tpu.vector_store %arg24[%c0_143, %c128_144], %266 {strides = array<i32>} : memref<16x576xf32, #tpu.memory_space<vmem>>, vector<16x64xf32>,
    %c4 = arith.constant 4 : index
    %c0_145 = arith.constant 0 : index
    %268 = vector.load %arg20[%c4, %c0_145] : memref<26x64xf32, #tpu.memory_space<vmem>>, vector<16x64xf32>
    %c1_i32_146 = arith.constant 1 : i32
    %269 = vector.broadcast %c1_i32_146 : i32 to vector<16x1xi32>
    %270 = arith.cmpi sge, %243, %269 : vector<16x1xi32>
    %c5_i32_147 = arith.constant 5 : i32
    %271 = vector.broadcast %c5_i32_147 : i32 to vector<16x1xi32>
    %272 = arith.cmpi slt, %243, %271 : vector<16x1xi32>
    %273 = arith.andi %270, %272 : vector<16x1xi1>
    %cst_148 = arith.constant 0.000000e+00 : f32
    %274 = vector.shape_cast %273 : vector<16x1xi1> to vector<16x1xi1>
    %275 = vector.broadcast %274 : vector<16x1xi1> to vector<16x64xi1>
    %276 = vector.broadcast %cst_148 : f32 to vector<16x64xf32>
    %277 = arith.select %275, %268, %276 : vector<16x64xi1>, vector<16x64xf32>
    %c0_149 = arith.constant 0 : index
    %c192_150 = arith.constant 192 : index
    %278 = vector.load %arg24[%c0_149, %c192_150] : memref<16x576xf32, #tpu.memory_space<vmem>>, vector<16x64xf32>
    tpu.vector_store %arg24[%c0_149, %c192_150], %277 {strides = array<i32>} : memref<16x576xf32, #tpu.memory_space<vmem>>, vector<16x64xf32>,
    %c5_151 = arith.constant 5 : index
    %c0_152 = arith.constant 0 : index
    %279 = vector.load %arg20[%c5_151, %c0_152] : memref<26x64xf32, #tpu.memory_space<vmem>>, vector<16x64xf32>
    %c0_153 = arith.constant 0 : index
    %c256_154 = arith.constant 256 : index
    %280 = vector.load %arg24[%c0_153, %c256_154] : memref<16x576xf32, #tpu.memory_space<vmem>>, vector<16x64xf32>
    tpu.vector_store %arg24[%c0_153, %c256_154], %279 {strides = array<i32>} : memref<16x576xf32, #tpu.memory_space<vmem>>, vector<16x64xf32>,
    %c6_155 = arith.constant 6 : index
    %c0_156 = arith.constant 0 : index
    %281 = vector.load %arg20[%c6_155, %c0_156] : memref<26x64xf32, #tpu.memory_space<vmem>>, vector<16x64xf32>
    %c-1_i32_157 = arith.constant -1 : i32
    %282 = vector.broadcast %c-1_i32_157 : i32 to vector<16x1xi32>
    %283 = arith.cmpi sge, %243, %282 : vector<16x1xi32>
    %c3_i32_158 = arith.constant 3 : i32
    %284 = vector.broadcast %c3_i32_158 : i32 to vector<16x1xi32>
    %285 = arith.cmpi slt, %243, %284 : vector<16x1xi32>
    %286 = arith.andi %283, %285 : vector<16x1xi1>
    %cst_159 = arith.constant 0.000000e+00 : f32
    %287 = vector.shape_cast %286 : vector<16x1xi1> to vector<16x1xi1>
    %288 = vector.broadcast %287 : vector<16x1xi1> to vector<16x64xi1>
    %289 = vector.broadcast %cst_159 : f32 to vector<16x64xf32>
    %290 = arith.select %288, %281, %289 : vector<16x64xi1>, vector<16x64xf32>
    %c0_160 = arith.constant 0 : index
    %c320 = arith.constant 320 : index
    %291 = vector.load %arg24[%c0_160, %c320] : memref<16x576xf32, #tpu.memory_space<vmem>>, vector<16x64xf32>
    tpu.vector_store %arg24[%c0_160, %c320], %290 {strides = array<i32>} : memref<16x576xf32, #tpu.memory_space<vmem>>, vector<16x64xf32>,
    %c8_161 = arith.constant 8 : index
    %c0_162 = arith.constant 0 : index
    %292 = vector.load %arg20[%c8_161, %c0_162] : memref<26x64xf32, #tpu.memory_space<vmem>>, vector<16x64xf32>
    %c1_i32_163 = arith.constant 1 : i32
    %293 = vector.broadcast %c1_i32_163 : i32 to vector<16x1xi32>
    %294 = arith.cmpi sge, %243, %293 : vector<16x1xi32>
    %c5_i32_164 = arith.constant 5 : i32
    %295 = vector.broadcast %c5_i32_164 : i32 to vector<16x1xi32>
    %296 = arith.cmpi slt, %243, %295 : vector<16x1xi32>
    %297 = arith.andi %294, %296 : vector<16x1xi1>
    %cst_165 = arith.constant 0.000000e+00 : f32
    %298 = vector.shape_cast %297 : vector<16x1xi1> to vector<16x1xi1>
    %299 = vector.broadcast %298 : vector<16x1xi1> to vector<16x64xi1>
    %300 = vector.broadcast %cst_165 : f32 to vector<16x64xf32>
    %301 = arith.select %299, %292, %300 : vector<16x64xi1>, vector<16x64xf32>
    %c0_166 = arith.constant 0 : index
    %c384 = arith.constant 384 : index
    %302 = vector.load %arg24[%c0_166, %c384] : memref<16x576xf32, #tpu.memory_space<vmem>>, vector<16x64xf32>
    tpu.vector_store %arg24[%c0_166, %c384], %301 {strides = array<i32>} : memref<16x576xf32, #tpu.memory_space<vmem>>, vector<16x64xf32>,
    %c9_167 = arith.constant 9 : index
    %c0_168 = arith.constant 0 : index
    %303 = vector.load %arg20[%c9_167, %c0_168] : memref<26x64xf32, #tpu.memory_space<vmem>>, vector<16x64xf32>
    %c0_169 = arith.constant 0 : index
    %c448 = arith.constant 448 : index
    %304 = vector.load %arg24[%c0_169, %c448] : memref<16x576xf32, #tpu.memory_space<vmem>>, vector<16x64xf32>
    tpu.vector_store %arg24[%c0_169, %c448], %303 {strides = array<i32>} : memref<16x576xf32, #tpu.memory_space<vmem>>, vector<16x64xf32>,
    %c10_170 = arith.constant 10 : index
    %c0_171 = arith.constant 0 : index
    %305 = vector.load %arg20[%c10_170, %c0_171] : memref<26x64xf32, #tpu.memory_space<vmem>>, vector<16x64xf32>
    %c-1_i32_172 = arith.constant -1 : i32
    %306 = vector.broadcast %c-1_i32_172 : i32 to vector<16x1xi32>
    %307 = arith.cmpi sge, %243, %306 : vector<16x1xi32>
    %c3_i32_173 = arith.constant 3 : i32
    %308 = vector.broadcast %c3_i32_173 : i32 to vector<16x1xi32>
    %309 = arith.cmpi slt, %243, %308 : vector<16x1xi32>
    %310 = arith.andi %307, %309 : vector<16x1xi1>
    %cst_174 = arith.constant 0.000000e+00 : f32
    %311 = vector.shape_cast %310 : vector<16x1xi1> to vector<16x1xi1>
    %312 = vector.broadcast %311 : vector<16x1xi1> to vector<16x64xi1>
    %313 = vector.broadcast %cst_174 : f32 to vector<16x64xf32>
    %314 = arith.select %312, %305, %313 : vector<16x64xi1>, vector<16x64xf32>
    %c0_175 = arith.constant 0 : index
    %c512 = arith.constant 512 : index
    %315 = vector.load %arg24[%c0_175, %c512] : memref<16x576xf32, #tpu.memory_space<vmem>>, vector<16x64xf32>
    tpu.vector_store %arg24[%c0_175, %c512], %314 {strides = array<i32>} : memref<16x576xf32, #tpu.memory_space<vmem>>, vector<16x64xf32>,
    %c0_176 = arith.constant 0 : index
    %c0_177 = arith.constant 0 : index
    %316 = vector.load %arg24[%c0_176, %c0_177] : memref<16x576xf32, #tpu.memory_space<vmem>>, vector<16x576xf32>
    %c0_178 = arith.constant 0 : index
    %c0_179 = arith.constant 0 : index
    %317 = vector.load %arg6[%c0_178, %c0_179] : memref<576x64xf32, #tpu.memory_space<vmem>>, vector<576x64xf32>
    %cst_180 = arith.constant dense<0.000000e+00> : vector<16x64xf32>
    %318 = tpu.matmul %316, %317, %cst_180 {dimension_numbers = #tpu.dot_dimension_numbers<[1], [0], [0], [1], [0, 0, 1, 1], [], []>} : vector<16x576xf32>, vector<576x64xf32>, vector<16x64xf32> -> vector<16x64xf32>
    %c0_181 = arith.constant 0 : index
    %c0_182 = arith.constant 0 : index
    %319 = vector.load %arg7[%c0_181, %c0_182] : memref<1x64xf32, #tpu.memory_space<vmem>>, vector<1x64xf32>
    %320 = vector.shape_cast %319 : vector<1x64xf32> to vector<64xf32>
    %321 = vector.shape_cast %320 : vector<64xf32> to vector<1x64xf32>
    %322 = vector.broadcast %321 : vector<1x64xf32> to vector<16x64xf32>
    %323 = arith.addf %318, %322 : vector<16x64xf32>
    %cst_183 = arith.constant 0.000000e+00 : f32
    %324 = vector.broadcast %cst_183 : f32 to vector<16x64xf32>
    %325 = arith.maximumf %323, %324 : vector<16x64xf32>
    %326 = vector.extract_strided_slice %325 {offsets = [0, 0], sizes = [11, 64], strides = [1, 1]} : vector<16x64xf32> to vector<11x64xf32>
    %327 = vector.extract_strided_slice %325 {offsets = [1, 0], sizes = [11, 64], strides = [1, 1]} : vector<16x64xf32> to vector<11x64xf32>
    %328 = arith.maximumf %326, %327 : vector<11x64xf32>
    %329 = vector.extract_strided_slice %325 {offsets = [4, 0], sizes = [11, 64], strides = [1, 1]} : vector<16x64xf32> to vector<11x64xf32>
    %330 = vector.extract_strided_slice %325 {offsets = [5, 0], sizes = [11, 64], strides = [1, 1]} : vector<16x64xf32> to vector<11x64xf32>
    %331 = arith.maximumf %329, %330 : vector<11x64xf32>
    %332 = arith.maximumf %328, %331 : vector<11x64xf32>
    %c0_184 = arith.constant 0 : index
    %c0_185 = arith.constant 0 : index
    %333 = vector.load %arg12[%c0_184, %c0_185] : memref<4x11xf32, #tpu.memory_space<vmem>>, vector<4x11xf32>
    %cst_186 = arith.constant dense<0.000000e+00> : vector<4x64xf32>
    %334 = tpu.matmul %333, %332, %cst_186 {dimension_numbers = #tpu.dot_dimension_numbers<[1], [0], [0], [1], [0, 0, 1, 1], [], []>} : vector<4x11xf32>, vector<11x64xf32>, vector<4x64xf32> -> vector<4x64xf32>
    %cst_187 = arith.constant 0.000000e+00 : f32
    %335 = vector.broadcast %cst_187 : f32 to vector<10x64xf32>
    %c0_188 = arith.constant 0 : index
    %c0_189 = arith.constant 0 : index
    %336 = vector.load %arg21[%c0_188, %c0_189] : memref<10x64xf32, #tpu.memory_space<vmem>>, vector<10x64xf32>
    tpu.vector_store %arg21[%c0_188, %c0_189], %335 {strides = array<i32>} : memref<10x64xf32, #tpu.memory_space<vmem>>, vector<10x64xf32>,
    %c3_190 = arith.constant 3 : index
    %c0_191 = arith.constant 0 : index
    %337 = vector.load %arg21[%c3_190, %c0_191] : memref<10x64xf32, #tpu.memory_space<vmem>>, vector<4x64xf32>
    tpu.vector_store %arg21[%c3_190, %c0_191], %334 {strides = array<i32>} : memref<10x64xf32, #tpu.memory_space<vmem>>, vector<4x64xf32>,
    %338 = tpu.iota {dimensions = array<i32: 0>} : vector<4x1xi32>
    %c2_i32 = arith.constant 2 : i32
    %c0_i32_192 = arith.constant 0 : i32
    %339 = arith.cmpi eq, %c2_i32, %c0_i32_192 : i32
    %c1_i32_193 = arith.constant 1 : i32
    %340 = arith.select %339, %c1_i32_193, %c2_i32 : i32
    %341 = vector.broadcast %340 : i32 to vector<4x1xi32>
    %342 = arith.remsi %338, %341 : vector<4x1xi32>
    %c0_i32_194 = arith.constant 0 : i32
    %343 = vector.broadcast %c0_i32_194 : i32 to vector<4x1xi32>
    %344 = arith.cmpi ne, %342, %343 : vector<4x1xi32>
    %c0_i32_195 = arith.constant 0 : i32
    %345 = vector.broadcast %c0_i32_195 : i32 to vector<4x1xi32>
    %346 = arith.cmpi slt, %342, %345 : vector<4x1xi32>
    %c0_i32_196 = arith.constant 0 : i32
    %347 = arith.cmpi slt, %340, %c0_i32_196 : i32
    %348 = vector.broadcast %347 : i1 to vector<4x1xi1>
    %349 = vector.broadcast %348 : vector<4x1xi1> to vector<4x1xi1>
    %350 = arith.xori %346, %349 : vector<4x1xi1>
    %351 = arith.andi %350, %344 : vector<4x1xi1>
    %352 = vector.broadcast %340 : i32 to vector<4x1xi32>
    %353 = arith.addi %342, %352 : vector<4x1xi32>
    %354 = arith.select %351, %353, %342 : vector<4x1xi1>, vector<4x1xi32>
    %c0_197 = arith.constant 0 : index
    %c0_198 = arith.constant 0 : index
    %355 = vector.load %arg21[%c0_197, %c0_198] : memref<10x64xf32, #tpu.memory_space<vmem>>, vector<4x64xf32>
    %c1_i32_199 = arith.constant 1 : i32
    %356 = vector.broadcast %c1_i32_199 : i32 to vector<4x1xi32>
    %357 = arith.cmpi sge, %354, %356 : vector<4x1xi32>
    %c3_i32_200 = arith.constant 3 : i32
    %358 = vector.broadcast %c3_i32_200 : i32 to vector<4x1xi32>
    %359 = arith.cmpi slt, %354, %358 : vector<4x1xi32>
    %360 = arith.andi %357, %359 : vector<4x1xi1>
    %cst_201 = arith.constant 0.000000e+00 : f32
    %361 = vector.shape_cast %360 : vector<4x1xi1> to vector<4x1xi1>
    %362 = vector.broadcast %361 : vector<4x1xi1> to vector<4x64xi1>
    %363 = vector.broadcast %cst_201 : f32 to vector<4x64xf32>
    %364 = arith.select %362, %355, %363 : vector<4x64xi1>, vector<4x64xf32>
    %c0_202 = arith.constant 0 : index
    %c0_203 = arith.constant 0 : index
    %365 = vector.load %arg25[%c0_202, %c0_203] : memref<4x576xf32, #tpu.memory_space<vmem>>, vector<4x64xf32>
    tpu.vector_store %arg25[%c0_202, %c0_203], %364 {strides = array<i32>} : memref<4x576xf32, #tpu.memory_space<vmem>>, vector<4x64xf32>,
    %c1_204 = arith.constant 1 : index
    %c0_205 = arith.constant 0 : index
    %366 = vector.load %arg21[%c1_204, %c0_205] : memref<10x64xf32, #tpu.memory_space<vmem>>, vector<4x64xf32>
    %c0_206 = arith.constant 0 : index
    %c64_207 = arith.constant 64 : index
    %367 = vector.load %arg25[%c0_206, %c64_207] : memref<4x576xf32, #tpu.memory_space<vmem>>, vector<4x64xf32>
    tpu.vector_store %arg25[%c0_206, %c64_207], %366 {strides = array<i32>} : memref<4x576xf32, #tpu.memory_space<vmem>>, vector<4x64xf32>,
    %c2_208 = arith.constant 2 : index
    %c0_209 = arith.constant 0 : index
    %368 = vector.load %arg21[%c2_208, %c0_209] : memref<10x64xf32, #tpu.memory_space<vmem>>, vector<4x64xf32>
    %c-1_i32_210 = arith.constant -1 : i32
    %369 = vector.broadcast %c-1_i32_210 : i32 to vector<4x1xi32>
    %370 = arith.cmpi sge, %354, %369 : vector<4x1xi32>
    %c1_i32_211 = arith.constant 1 : i32
    %371 = vector.broadcast %c1_i32_211 : i32 to vector<4x1xi32>
    %372 = arith.cmpi slt, %354, %371 : vector<4x1xi32>
    %373 = arith.andi %370, %372 : vector<4x1xi1>
    %cst_212 = arith.constant 0.000000e+00 : f32
    %374 = vector.shape_cast %373 : vector<4x1xi1> to vector<4x1xi1>
    %375 = vector.broadcast %374 : vector<4x1xi1> to vector<4x64xi1>
    %376 = vector.broadcast %cst_212 : f32 to vector<4x64xf32>
    %377 = arith.select %375, %368, %376 : vector<4x64xi1>, vector<4x64xf32>
    %c0_213 = arith.constant 0 : index
    %c128_214 = arith.constant 128 : index
    %378 = vector.load %arg25[%c0_213, %c128_214] : memref<4x576xf32, #tpu.memory_space<vmem>>, vector<4x64xf32>
    tpu.vector_store %arg25[%c0_213, %c128_214], %377 {strides = array<i32>} : memref<4x576xf32, #tpu.memory_space<vmem>>, vector<4x64xf32>,
    %c2_215 = arith.constant 2 : index
    %c0_216 = arith.constant 0 : index
    %379 = vector.load %arg21[%c2_215, %c0_216] : memref<10x64xf32, #tpu.memory_space<vmem>>, vector<4x64xf32>
    %c1_i32_217 = arith.constant 1 : i32
    %380 = vector.broadcast %c1_i32_217 : i32 to vector<4x1xi32>
    %381 = arith.cmpi sge, %354, %380 : vector<4x1xi32>
    %c3_i32_218 = arith.constant 3 : i32
    %382 = vector.broadcast %c3_i32_218 : i32 to vector<4x1xi32>
    %383 = arith.cmpi slt, %354, %382 : vector<4x1xi32>
    %384 = arith.andi %381, %383 : vector<4x1xi1>
    %cst_219 = arith.constant 0.000000e+00 : f32
    %385 = vector.shape_cast %384 : vector<4x1xi1> to vector<4x1xi1>
    %386 = vector.broadcast %385 : vector<4x1xi1> to vector<4x64xi1>
    %387 = vector.broadcast %cst_219 : f32 to vector<4x64xf32>
    %388 = arith.select %386, %379, %387 : vector<4x64xi1>, vector<4x64xf32>
    %c0_220 = arith.constant 0 : index
    %c192_221 = arith.constant 192 : index
    %389 = vector.load %arg25[%c0_220, %c192_221] : memref<4x576xf32, #tpu.memory_space<vmem>>, vector<4x64xf32>
    tpu.vector_store %arg25[%c0_220, %c192_221], %388 {strides = array<i32>} : memref<4x576xf32, #tpu.memory_space<vmem>>, vector<4x64xf32>,
    %c3_222 = arith.constant 3 : index
    %c0_223 = arith.constant 0 : index
    %390 = vector.load %arg21[%c3_222, %c0_223] : memref<10x64xf32, #tpu.memory_space<vmem>>, vector<4x64xf32>
    %c0_224 = arith.constant 0 : index
    %c256_225 = arith.constant 256 : index
    %391 = vector.load %arg25[%c0_224, %c256_225] : memref<4x576xf32, #tpu.memory_space<vmem>>, vector<4x64xf32>
    tpu.vector_store %arg25[%c0_224, %c256_225], %390 {strides = array<i32>} : memref<4x576xf32, #tpu.memory_space<vmem>>, vector<4x64xf32>,
    %c4_226 = arith.constant 4 : index
    %c0_227 = arith.constant 0 : index
    %392 = vector.load %arg21[%c4_226, %c0_227] : memref<10x64xf32, #tpu.memory_space<vmem>>, vector<4x64xf32>
    %c-1_i32_228 = arith.constant -1 : i32
    %393 = vector.broadcast %c-1_i32_228 : i32 to vector<4x1xi32>
    %394 = arith.cmpi sge, %354, %393 : vector<4x1xi32>
    %c1_i32_229 = arith.constant 1 : i32
    %395 = vector.broadcast %c1_i32_229 : i32 to vector<4x1xi32>
    %396 = arith.cmpi slt, %354, %395 : vector<4x1xi32>
    %397 = arith.andi %394, %396 : vector<4x1xi1>
    %cst_230 = arith.constant 0.000000e+00 : f32
    %398 = vector.shape_cast %397 : vector<4x1xi1> to vector<4x1xi1>
    %399 = vector.broadcast %398 : vector<4x1xi1> to vector<4x64xi1>
    %400 = vector.broadcast %cst_230 : f32 to vector<4x64xf32>
    %401 = arith.select %399, %392, %400 : vector<4x64xi1>, vector<4x64xf32>
    %c0_231 = arith.constant 0 : index
    %c320_232 = arith.constant 320 : index
    %402 = vector.load %arg25[%c0_231, %c320_232] : memref<4x576xf32, #tpu.memory_space<vmem>>, vector<4x64xf32>
    tpu.vector_store %arg25[%c0_231, %c320_232], %401 {strides = array<i32>} : memref<4x576xf32, #tpu.memory_space<vmem>>, vector<4x64xf32>,
    %c4_233 = arith.constant 4 : index
    %c0_234 = arith.constant 0 : index
    %403 = vector.load %arg21[%c4_233, %c0_234] : memref<10x64xf32, #tpu.memory_space<vmem>>, vector<4x64xf32>
    %c1_i32_235 = arith.constant 1 : i32
    %404 = vector.broadcast %c1_i32_235 : i32 to vector<4x1xi32>
    %405 = arith.cmpi sge, %354, %404 : vector<4x1xi32>
    %c3_i32_236 = arith.constant 3 : i32
    %406 = vector.broadcast %c3_i32_236 : i32 to vector<4x1xi32>
    %407 = arith.cmpi slt, %354, %406 : vector<4x1xi32>
    %408 = arith.andi %405, %407 : vector<4x1xi1>
    %cst_237 = arith.constant 0.000000e+00 : f32
    %409 = vector.shape_cast %408 : vector<4x1xi1> to vector<4x1xi1>
    %410 = vector.broadcast %409 : vector<4x1xi1> to vector<4x64xi1>
    %411 = vector.broadcast %cst_237 : f32 to vector<4x64xf32>
    %412 = arith.select %410, %403, %411 : vector<4x64xi1>, vector<4x64xf32>
    %c0_238 = arith.constant 0 : index
    %c384_239 = arith.constant 384 : index
    %413 = vector.load %arg25[%c0_238, %c384_239] : memref<4x576xf32, #tpu.memory_space<vmem>>, vector<4x64xf32>
    tpu.vector_store %arg25[%c0_238, %c384_239], %412 {strides = array<i32>} : memref<4x576xf32, #tpu.memory_space<vmem>>, vector<4x64xf32>,
    %c5_240 = arith.constant 5 : index
    %c0_241 = arith.constant 0 : index
    %414 = vector.load %arg21[%c5_240, %c0_241] : memref<10x64xf32, #tpu.memory_space<vmem>>, vector<4x64xf32>
    %c0_242 = arith.constant 0 : index
    %c448_243 = arith.constant 448 : index
    %415 = vector.load %arg25[%c0_242, %c448_243] : memref<4x576xf32, #tpu.memory_space<vmem>>, vector<4x64xf32>
    tpu.vector_store %arg25[%c0_242, %c448_243], %414 {strides = array<i32>} : memref<4x576xf32, #tpu.memory_space<vmem>>, vector<4x64xf32>,
    %c6_244 = arith.constant 6 : index
    %c0_245 = arith.constant 0 : index
    %416 = vector.load %arg21[%c6_244, %c0_245] : memref<10x64xf32, #tpu.memory_space<vmem>>, vector<4x64xf32>
    %c-1_i32_246 = arith.constant -1 : i32
    %417 = vector.broadcast %c-1_i32_246 : i32 to vector<4x1xi32>
    %418 = arith.cmpi sge, %354, %417 : vector<4x1xi32>
    %c1_i32_247 = arith.constant 1 : i32
    %419 = vector.broadcast %c1_i32_247 : i32 to vector<4x1xi32>
    %420 = arith.cmpi slt, %354, %419 : vector<4x1xi32>
    %421 = arith.andi %418, %420 : vector<4x1xi1>
    %cst_248 = arith.constant 0.000000e+00 : f32
    %422 = vector.shape_cast %421 : vector<4x1xi1> to vector<4x1xi1>
    %423 = vector.broadcast %422 : vector<4x1xi1> to vector<4x64xi1>
    %424 = vector.broadcast %cst_248 : f32 to vector<4x64xf32>
    %425 = arith.select %423, %416, %424 : vector<4x64xi1>, vector<4x64xf32>
    %c0_249 = arith.constant 0 : index
    %c512_250 = arith.constant 512 : index
    %426 = vector.load %arg25[%c0_249, %c512_250] : memref<4x576xf32, #tpu.memory_space<vmem>>, vector<4x64xf32>
    tpu.vector_store %arg25[%c0_249, %c512_250], %425 {strides = array<i32>} : memref<4x576xf32, #tpu.memory_space<vmem>>, vector<4x64xf32>,
    %c0_251 = arith.constant 0 : index
    %c0_252 = arith.constant 0 : index
    %427 = vector.load %arg25[%c0_251, %c0_252] : memref<4x576xf32, #tpu.memory_space<vmem>>, vector<4x576xf32>
    %c0_253 = arith.constant 0 : index
    %c0_254 = arith.constant 0 : index
    %428 = vector.load %arg8[%c0_253, %c0_254] : memref<576x128xf32, #tpu.memory_space<vmem>>, vector<576x128xf32>
    %cst_255 = arith.constant dense<0.000000e+00> : vector<4x128xf32>
    %429 = tpu.matmul %427, %428, %cst_255 {dimension_numbers = #tpu.dot_dimension_numbers<[1], [0], [0], [1], [0, 0, 1, 1], [], []>} : vector<4x576xf32>, vector<576x128xf32>, vector<4x128xf32> -> vector<4x128xf32>
    %c0_256 = arith.constant 0 : index
    %c0_257 = arith.constant 0 : index
    %430 = vector.load %arg9[%c0_256, %c0_257] : memref<1x128xf32, #tpu.memory_space<vmem>>, vector<1x128xf32>
    %431 = vector.shape_cast %430 : vector<1x128xf32> to vector<128xf32>
    %432 = vector.shape_cast %431 : vector<128xf32> to vector<1x128xf32>
    %433 = vector.broadcast %432 : vector<1x128xf32> to vector<4x128xf32>
    %434 = arith.addf %429, %433 : vector<4x128xf32>
    %cst_258 = arith.constant 0.000000e+00 : f32
    %435 = vector.broadcast %cst_258 : f32 to vector<4x128xf32>
    %436 = arith.maximumf %434, %435 : vector<4x128xf32>
    %cst_259 = arith.constant dense<0.000000e+00> : vector<128xf32>
    %437 = vector.multi_reduction <add>, %436, %cst_259 [0] : vector<4x128xf32> to vector<128xf32>
    %438 = vector.shape_cast %437 : vector<128xf32> to vector<1x128xf32>
    %cst_260 = arith.constant 2.500000e-01 : f32
    %439 = vector.broadcast %cst_260 : f32 to vector<1x128xf32>
    %440 = arith.mulf %438, %439 : vector<1x128xf32>
    %c0_261 = arith.constant 0 : index
    %c0_262 = arith.constant 0 : index
    %441 = vector.load %arg13[%c0_261, %c0_262] : memref<128x64xf32, #tpu.memory_space<vmem>>, vector<128x64xf32>
    %cst_263 = arith.constant dense<0.000000e+00> : vector<1x64xf32>
    %442 = tpu.matmul %440, %441, %cst_263 {dimension_numbers = #tpu.dot_dimension_numbers<[1], [0], [0], [1], [0, 0, 1, 1], [], []>} : vector<1x128xf32>, vector<128x64xf32>, vector<1x64xf32> -> vector<1x64xf32>
    %c0_264 = arith.constant 0 : index
    %c0_265 = arith.constant 0 : index
    %443 = vector.load %arg14[%c0_264, %c0_265] : memref<1x64xf32, #tpu.memory_space<vmem>>, vector<1x64xf32>
    %444 = vector.shape_cast %443 : vector<1x64xf32> to vector<64xf32>
    %445 = vector.shape_cast %444 : vector<64xf32> to vector<1x64xf32>
    %446 = arith.addf %442, %445 : vector<1x64xf32>
    %cst_266 = arith.constant 0.000000e+00 : f32
    %447 = vector.broadcast %cst_266 : f32 to vector<1x64xf32>
    %448 = arith.maximumf %446, %447 : vector<1x64xf32>
    %c0_267 = arith.constant 0 : index
    %c0_268 = arith.constant 0 : index
    %449 = vector.load %arg15[%c0_267, %c0_268] : memref<64x32xf32, #tpu.memory_space<vmem>>, vector<64x32xf32>
    %cst_269 = arith.constant dense<0.000000e+00> : vector<1x32xf32>
    %450 = tpu.matmul %448, %449, %cst_269 {dimension_numbers = #tpu.dot_dimension_numbers<[1], [0], [0], [1], [0, 0, 1, 1], [], []>} : vector<1x64xf32>, vector<64x32xf32>, vector<1x32xf32> -> vector<1x32xf32>
    %c0_270 = arith.constant 0 : index
    %c0_271 = arith.constant 0 : index
    %451 = vector.load %arg16[%c0_270, %c0_271] : memref<1x32xf32, #tpu.memory_space<vmem>>, vector<1x32xf32>
    %452 = vector.shape_cast %451 : vector<1x32xf32> to vector<32xf32>
    %453 = vector.shape_cast %452 : vector<32xf32> to vector<1x32xf32>
    %454 = arith.addf %450, %453 : vector<1x32xf32>
    %455 = arith.mulf %454, %454 : vector<1x32xf32>
    %cst_272 = arith.constant dense<0.000000e+00> : vector<1xf32>
    %456 = vector.multi_reduction <add>, %455, %cst_272 [1] : vector<1x32xf32> to vector<1xf32>
    %457 = vector.shape_cast %456 : vector<1xf32> to vector<1x1xf32>
    %cst_273 = arith.constant 1.000000e-24 : f32
    %458 = vector.broadcast %cst_273 : f32 to vector<1x1xf32>
    %459 = arith.maximumf %457, %458 : vector<1x1xf32>
    %460 = math.rsqrt %459 : vector<1x1xf32>
    %461 = vector.broadcast %460 : vector<1x1xf32> to vector<1x32xf32>
    %462 = arith.mulf %454, %461 : vector<1x32xf32>
    %c0_274 = arith.constant 0 : index
    %c0_275 = arith.constant 0 : index
    %c0_276 = arith.constant 0 : index
    %463 = vector.load %arg17[%c0_274, %c0_275, %c0_276] : memref<1x1x32xf32, #tpu.memory_space<vmem>>, vector<1x1x32xf32>
    %464 = vector.shape_cast %463 : vector<1x1x32xf32> to vector<1x32xf32>
    %465 = vector.shape_cast %462 : vector<1x32xf32> to vector<1x1x32xf32>
    tpu.vector_store %arg17[%c0_274, %c0_275, %c0_276], %465 {strides = array<i32>} : memref<1x1x32xf32, #tpu.memory_space<vmem>>, vector<1x1x32xf32>,
    return
  }
  func.func @transform_0(%arg0: i32) -> (i32, i32, i32) {
    %c0_i32 = arith.constant 0 : i32
    %c0_i32_0 = arith.constant 0 : i32
    %c0_i32_1 = arith.constant 0 : i32
    return %arg0, %c0_i32, %c0_i32_0 : i32, i32, i32
  }
  func.func @transform_1(%arg0: i32) -> (i32, i32) {
    %c0_i32 = arith.constant 0 : i32
    %c0_i32_0 = arith.constant 0 : i32
    %c0_i32_1 = arith.constant 0 : i32
    return %c0_i32, %c0_i32_0 : i32, i32
  }
  func.func @transform_2(%arg0: i32) -> (i32, i32) {
    %c0_i32 = arith.constant 0 : i32
    %c0_i32_0 = arith.constant 0 : i32
    %c0_i32_1 = arith.constant 0 : i32
    return %c0_i32, %c0_i32_0 : i32, i32
  }
  func.func @transform_3(%arg0: i32) -> (i32, i32) {
    %c0_i32 = arith.constant 0 : i32
    %c0_i32_0 = arith.constant 0 : i32
    %c0_i32_1 = arith.constant 0 : i32
    return %c0_i32, %c0_i32_0 : i32, i32
  }
  func.func @transform_4(%arg0: i32) -> (i32, i32) {
    %c0_i32 = arith.constant 0 : i32
    %c0_i32_0 = arith.constant 0 : i32
    %c0_i32_1 = arith.constant 0 : i32
    return %c0_i32, %c0_i32_0 : i32, i32
  }
  func.func @transform_5(%arg0: i32) -> (i32, i32) {
    %c0_i32 = arith.constant 0 : i32
    %c0_i32_0 = arith.constant 0 : i32
    %c0_i32_1 = arith.constant 0 : i32
    return %c0_i32, %c0_i32_0 : i32, i32
  }
  func.func @transform_6(%arg0: i32) -> (i32, i32) {
    %c0_i32 = arith.constant 0 : i32
    %c0_i32_0 = arith.constant 0 : i32
    %c0_i32_1 = arith.constant 0 : i32
    return %c0_i32, %c0_i32_0 : i32, i32
  }
  func.func @transform_7(%arg0: i32) -> (i32, i32) {
    %c0_i32 = arith.constant 0 : i32
    %c0_i32_0 = arith.constant 0 : i32
    %c0_i32_1 = arith.constant 0 : i32
    return %c0_i32, %c0_i32_0 : i32, i32
  }
  func.func @transform_8(%arg0: i32) -> (i32, i32) {
    %c0_i32 = arith.constant 0 : i32
    %c0_i32_0 = arith.constant 0 : i32
    %c0_i32_1 = arith.constant 0 : i32
    return %c0_i32, %c0_i32_0 : i32, i32
  }
  func.func @transform_9(%arg0: i32) -> (i32, i32) {
    %c0_i32 = arith.constant 0 : i32
    %c0_i32_0 = arith.constant 0 : i32
    %c0_i32_1 = arith.constant 0 : i32
    return %c0_i32, %c0_i32_0 : i32, i32
  }
  func.func @transform_10(%arg0: i32) -> (i32, i32) {
    %c0_i32 = arith.constant 0 : i32
    %c0_i32_0 = arith.constant 0 : i32
    %c0_i32_1 = arith.constant 0 : i32
    return %c0_i32, %c0_i32_0 : i32, i32
  }
  func.func @transform_11(%arg0: i32) -> (i32, i32) {
    %c0_i32 = arith.constant 0 : i32
    %c0_i32_0 = arith.constant 0 : i32
    %c0_i32_1 = arith.constant 0 : i32
    return %c0_i32, %c0_i32_0 : i32, i32
  }
  func.func @transform_12(%arg0: i32) -> (i32, i32) {
    %c0_i32 = arith.constant 0 : i32
    %c0_i32_0 = arith.constant 0 : i32
    %c0_i32_1 = arith.constant 0 : i32
    return %c0_i32, %c0_i32_0 : i32, i32
  }
  func.func @transform_13(%arg0: i32) -> (i32, i32) {
    %c0_i32 = arith.constant 0 : i32
    %c0_i32_0 = arith.constant 0 : i32
    %c0_i32_1 = arith.constant 0 : i32
    return %c0_i32, %c0_i32_0 : i32, i32
  }
  func.func @transform_14(%arg0: i32) -> (i32, i32) {
    %c0_i32 = arith.constant 0 : i32
    %c0_i32_0 = arith.constant 0 : i32
    %c0_i32_1 = arith.constant 0 : i32
    return %c0_i32, %c0_i32_0 : i32, i32
  }
  func.func @transform_15(%arg0: i32) -> (i32, i32) {
    %c0_i32 = arith.constant 0 : i32
    %c0_i32_0 = arith.constant 0 : i32
    %c0_i32_1 = arith.constant 0 : i32
    return %c0_i32, %c0_i32_0 : i32, i32
  }
  func.func @transform_16(%arg0: i32) -> (i32, i32, i32) {
    %c0_i32 = arith.constant 0 : i32
    %c0_i32_0 = arith.constant 0 : i32
    %c0_i32_1 = arith.constant 0 : i32
    return %arg0, %c0_i32, %c0_i32_0 : i32, i32, i32
  }
}

</mosaic_0001>

<llo_original>
// kernel: tpu_custom_call.1
$region0: #{tpu_custom_call.1}
  #allocation0 [shape = 'u32[]', space=smem, size = 0x4, offset = 0x4, fixed_abs, tag = 'smem constant byte address 0x4 - core index']
  #allocation1 [shape = 'u32[144,128]{1,0:T(1,128)}', space=vmem, size = 0x12000, scoped, tag = 'internal scratch']
  #allocation2 [shape = 'f32[290,3]{1,0:T(8,128)}', space=vmem, size = 0x25000, scoped, tag = 'scratch operand']
  #allocation3 [shape = 'f32[82,32]{1,0:T(8,128)}', space=vmem, size = 0xb000, scoped, tag = 'scratch operand']
  #allocation4 [shape = 'f32[26,64]{1,0:T(8,128)}', space=vmem, size = 0x4000, scoped, tag = 'scratch operand']
  #allocation5 [shape = 'f32[10,64]{1,0:T(8,128)}', space=vmem, size = 0x2000, scoped, tag = 'scratch operand']
  #allocation6 [shape = 'f32[256,27]{1,0:T(8,128)}', space=vmem, size = 0x20000, scoped, tag = 'scratch operand']
  #allocation7 [shape = 'f32[64,288]{1,0:T(8,128)}', space=vmem, size = 0x18000, scoped, tag = 'scratch operand']
  #allocation8 [shape = 'f32[16,576]{1,0:T(8,128)}', space=vmem, size = 0xa000, scoped, tag = 'scratch operand']
  #allocation9 [shape = 'f32[4,576]{1,0:T(4,128)}', space=vmem, size = 0x2800, scoped, tag = 'scratch operand']
  %s0 = inlined_call_operand.vmem [shape: f32[2,256,3], index: 0, kind: input, shape index: {}]
  %s1 = inlined_call_operand.vmem [shape: f32[27,32], index: 1, kind: input, shape index: {}]
  %s2 = inlined_call_operand.vmem [shape: f32[1,32], index: 2, kind: input, shape index: {}]
  %s3 = inlined_call_operand.vmem [shape: f32[288,64], index: 3, kind: input, shape index: {}]
  %s4 = inlined_call_operand.vmem [shape: f32[1,64], index: 4, kind: input, shape index: {}]
  %s5 = inlined_call_operand.vmem [shape: f32[576,64], index: 5, kind: input, shape index: {}]
  %s6 = inlined_call_operand.vmem [shape: f32[1,64], index: 6, kind: input, shape index: {}]
  %s7 = inlined_call_operand.vmem [shape: f32[576,128], index: 7, kind: input, shape index: {}]
  %s8 = inlined_call_operand.vmem [shape: f32[1,128], index: 8, kind: input, shape index: {}]
  %s9 = inlined_call_operand.vmem [shape: f32[64,239], index: 9, kind: input, shape index: {}]
  %s10 = inlined_call_operand.vmem [shape: f32[16,55], index: 10, kind: input, shape index: {}]
  %s11 = inlined_call_operand.vmem [shape: f32[4,11], index: 11, kind: input, shape index: {}]
  %s12 = inlined_call_operand.vmem [shape: f32[128,64], index: 12, kind: input, shape index: {}]
  %s13 = inlined_call_operand.vmem [shape: f32[1,64], index: 13, kind: input, shape index: {}]
  %s14 = inlined_call_operand.vmem [shape: f32[64,32], index: 14, kind: input, shape index: {}]
  %s15 = inlined_call_operand.vmem [shape: f32[1,32], index: 15, kind: input, shape index: {}]
  %s16 = inlined_call_operand.hbm [shape: f32[2,1,32], index: 16, kind: output, shape index: {}]
  %s17 = sld [smem:[#allocation0]]
  $region97: #{tpu_custom_call.1} parent=0
    _
  %s19 = ssub.s32 1, %s17
  %s20 = scalar_select 0, %s19, %s17
  $region1: #{tpu_custom_call.1} parent=0
    #allocation10 [shape = 'u8[1024]{0}', space=vmem, size = 0x400, scoped, tag = 'output window, operand 0']
    #allocation11 [shape = 's32[2]{0}', space=sflag, size = 0x8, scoped, tag = 'scoped memory for tpu_custom_call.1']
    %21 = vsyncpa [#allocation11], 0
    %s22 = scalar_lea.sflag [#allocation11], 1
    %23 = vsyncpa %s22, 0
    loop: start=0, step=1, limit=4
    $region2: #{tpu_custom_call.1} parent=1 // loop_pre_header
      _
    $region3: #{tpu_custom_call.1} parent=1 // loop_header
      %s25 = sphi 0, %s29
      %p26 = scmp.ge.s32.totalorder %s25, 4
      %s35 = sphi 0, %s37
      %s38 = sphi 0, %s35
      %s39 = sphi 0, %s38
      %s55 = sphi 0, %s39
      %s59 = sphi 0, %s59
      %s61 = sphi 0, %s59
      %s62 = sphi 0, %s61
      %s76 = sphi 0, %s62
      %s80 = sphi 0, %s80
      %s82 = sphi 0, %s80
      %s83 = sphi 0, %s82
      %s97 = sphi 0, %s83
      %s101 = sphi 0, %s101
      %s103 = sphi 0, %s101
      %s104 = sphi 0, %s103
      %s118 = sphi 0, %s104
      %s122 = sphi 0, %s122
      %s124 = sphi 0, %s122
      %s125 = sphi 0, %s124
      %s139 = sphi 0, %s125
      %s143 = sphi 0, %s143
      %s145 = sphi 0, %s143
      %s146 = sphi 0, %s145
      %s160 = sphi 0, %s146
      %s164 = sphi 0, %s164
      %s166 = sphi 0, %s164
      %s167 = sphi 0, %s166
      %s181 = sphi 0, %s167
      %s185 = sphi 0, %s185
      %s187 = sphi 0, %s185
      %s188 = sphi 0, %s187
      %s202 = sphi 0, %s188
      %s206 = sphi 0, %s206
      %s208 = sphi 0, %s206
      %s209 = sphi 0, %s208
      %s223 = sphi 0, %s209
      %s227 = sphi 0, %s227
      %s229 = sphi 0, %s227
      %s230 = sphi 0, %s229
      %s244 = sphi 0, %s230
      %s248 = sphi 0, %s248
      %s250 = sphi 0, %s248
      %s251 = sphi 0, %s250
      %s265 = sphi 0, %s251
      %s269 = sphi 0, %s269
      %s271 = sphi 0, %s269
      %s272 = sphi 0, %s271
      %s286 = sphi 0, %s272
      %s290 = sphi 0, %s290
      %s292 = sphi 0, %s290
      %s293 = sphi 0, %s292
      %s307 = sphi 0, %s293
      %s311 = sphi 0, %s311
      %s313 = sphi 0, %s311
      %s314 = sphi 0, %s313
      %s328 = sphi 0, %s314
      %s332 = sphi 0, %s332
      %s334 = sphi 0, %s332
      %s335 = sphi 0, %s334
      %s349 = sphi 0, %s335
      %s353 = sphi 0, %s353
      %s355 = sphi 0, %s353
      %s356 = sphi 0, %s355
      %s370 = sphi 0, %s356
      %s376 = sphi 0, %s378
      %s379 = sphi 0, %s376
      %s380 = sphi 0, %s379
      %s396 = sphi 0, %s380
    $region4: #{tpu_custom_call.1} parent=1 // loop_header_branch
      %28 = sbr.rel (%p26) target = $region8
    $region5: #{tpu_custom_call.1} parent=1 // loop_body
      %s30 = ssub.s32 %s25, 1
      %s31 = ssub.s32 %s25, 2
      %s32 = sadd.s32 %s25, 1
      %s33 = ssub.s32 %s25, %s32
      %p34 = scmp.eq.s32.totalorder %s33, 0
      %s36 = sadd.s32 %s35, 1
      %s37 = scalar_select %p34, %s35, %s36
      %p40 = pneg %p34
      %p41 = scmp.eq.s32.totalorder %s25, 1
      %p42 = por %p40, %p41
      %p43 = scmp.ne.s32.totalorder %s35, %s38
      %p44 = scmp.eq.s32.totalorder %s25, 0
      %p45 = por %p43, %p44
      %p46 = scmp.ne.s32.totalorder %s35, %s38
      %p47 = scmp.eq.s32.totalorder %s30, 1
      %p48 = por %p46, %p47
      %p49 = scmp.ne.s32.totalorder %s38, %s39
      %p50 = scmp.eq.s32.totalorder %s30, 0
      %p51 = por %p49, %p50
      %p52 = scmp.ne.s32.totalorder %s38, %s39
      %p53 = scmp.eq.s32.totalorder %s31, 1
      %p54 = por %p52, %p53
      %p56 = scmp.ne.s32.totalorder %s39, %s55
      %p57 = scmp.eq.s32.totalorder %s31, 0
      %p58 = por %p56, %p57
      %s60 = sadd.s32 %s59, 1
      %p63 = scmp.eq.s32.totalorder %s25, 1
      %p64 = scmp.ne.s32.totalorder %s59, %s61
      %p65 = scmp.eq.s32.totalorder %s25, 0
      %p66 = por %p64, %p65
      %p67 = scmp.ne.s32.totalorder %s59, %s61
      %p68 = scmp.eq.s32.totalorder %s30, 1
      %p69 = por %p67, %p68
      %p70 = scmp.ne.s32.totalorder %s61, %s62
      %p71 = scmp.eq.s32.totalorder %s30, 0
      %p72 = por %p70, %p71
      %p73 = scmp.ne.s32.totalorder %s61, %s62
      %p74 = scmp.eq.s32.totalorder %s31, 1
      %p75 = por %p73, %p74
      %p77 = scmp.ne.s32.totalorder %s62, %s76
      %p78 = scmp.eq.s32.totalorder %s31, 0
      %p79 = por %p77, %p78
      %s81 = sadd.s32 %s80, 1
      %p84 = scmp.eq.s32.totalorder %s25, 1
      %p85 = scmp.ne.s32.totalorder %s80, %s82
      %p86 = scmp.eq.s32.totalorder %s25, 0
      %p87 = por %p85, %p86
      %p88 = scmp.ne.s32.totalorder %s80, %s82
      %p89 = scmp.eq.s32.totalorder %s30, 1
      %p90 = por %p88, %p89
      %p91 = scmp.ne.s32.totalorder %s82, %s83
      %p92 = scmp.eq.s32.totalorder %s30, 0
      %p93 = por %p91, %p92
      %p94 = scmp.ne.s32.totalorder %s82, %s83
      %p95 = scmp.eq.s32.totalorder %s31, 1
      %p96 = por %p94, %p95
      %p98 = scmp.ne.s32.totalorder %s83, %s97
      %p99 = scmp.eq.s32.totalorder %s31, 0
      %p100 = por %p98, %p99
      %s102 = sadd.s32 %s101, 1
      %p105 = scmp.eq.s32.totalorder %s25, 1
      %p106 = scmp.ne.s32.totalorder %s101, %s103
      %p107 = scmp.eq.s32.totalorder %s25, 0
      %p108 = por %p106, %p107
      %p109 = scmp.ne.s32.totalorder %s101, %s103
      %p110 = scmp.eq.s32.totalorder %s30, 1
      %p111 = por %p109, %p110
      %p112 = scmp.ne.s32.totalorder %s103, %s104
      %p113 = scmp.eq.s32.totalorder %s30, 0
      %p114 = por %p112, %p113
      %p115 = scmp.ne.s32.totalorder %s103, %s104
      %p116 = scmp.eq.s32.totalorder %s31, 1
      %p117 = por %p115, %p116
      %p119 = scmp.ne.s32.totalorder %s104, %s118
      %p120 = scmp.eq.s32.totalorder %s31, 0
      %p121 = por %p119, %p120
      %s123 = sadd.s32 %s122, 1
      %p126 = scmp.eq.s32.totalorder %s25, 1
      %p127 = scmp.ne.s32.totalorder %s122, %s124
      %p128 = scmp.eq.s32.totalorder %s25, 0
      %p129 = por %p127, %p128
      %p130 = scmp.ne.s32.totalorder %s122, %s124
      %p131 = scmp.eq.s32.totalorder %s30, 1
      %p132 = por %p130, %p131
      %p133 = scmp.ne.s32.totalorder %s124, %s125
      %p134 = scmp.eq.s32.totalorder %s30, 0
      %p135 = por %p133, %p134
      %p136 = scmp.ne.s32.totalorder %s124, %s125
      %p137 = scmp.eq.s32.totalorder %s31, 1
      %p138 = por %p136, %p137
      %p140 = scmp.ne.s32.totalorder %s125, %s139
      %p141 = scmp.eq.s32.totalorder %s31, 0
      %p142 = por %p140, %p141
      %s144 = sadd.s32 %s143, 1
      %p147 = scmp.eq.s32.totalorder %s25, 1
      %p148 = scmp.ne.s32.totalorder %s143, %s145
      %p149 = scmp.eq.s32.totalorder %s25, 0
      %p150 = por %p148, %p149
      %p151 = scmp.ne.s32.totalorder %s143, %s145
      %p152 = scmp.eq.s32.totalorder %s30, 1
      %p153 = por %p151, %p152
      %p154 = scmp.ne.s32.totalorder %s145, %s146
      %p155 = scmp.eq.s32.totalorder %s30, 0
      %p156 = por %p154, %p155
      %p157 = scmp.ne.s32.totalorder %s145, %s146
      %p158 = scmp.eq.s32.totalorder %s31, 1
      %p159 = por %p157, %p158
      %p161 = scmp.ne.s32.totalorder %s146, %s160
      %p162 = scmp.eq.s32.totalorder %s31, 0
      %p163 = por %p161, %p162
      %s165 = sadd.s32 %s164, 1
      %p168 = scmp.eq.s32.totalorder %s25, 1
      %p169 = scmp.ne.s32.totalorder %s164, %s166
      %p170 = scmp.eq.s32.totalorder %s25, 0
      %p171 = por %p169, %p170
      %p172 = scmp.ne.s32.totalorder %s164, %s166
      %p173 = scmp.eq.s32.totalorder %s30, 1
      %p174 = por %p172, %p173
      %p175 = scmp.ne.s32.totalorder %s166, %s167
      %p176 = scmp.eq.s32.totalorder %s30, 0
      %p177 = por %p175, %p176
      %p178 = scmp.ne.s32.totalorder %s166, %s167
      %p179 = scmp.eq.s32.totalorder %s31, 1
      %p180 = por %p178, %p179
      %p182 = scmp.ne.s32.totalorder %s167, %s181
      %p183 = scmp.eq.s32.totalorder %s31, 0
      %p184 = por %p182, %p183
      %s186 = sadd.s32 %s185, 1
      %p189 = scmp.eq.s32.totalorder %s25, 1
      %p190 = scmp.ne.s32.totalorder %s185, %s187
      %p191 = scmp.eq.s32.totalorder %s25, 0
      %p192 = por %p190, %p191
      %p193 = scmp.ne.s32.totalorder %s185, %s187
      %p194 = scmp.eq.s32.totalorder %s30, 1
      %p195 = por %p193, %p194
      %p196 = scmp.ne.s32.totalorder %s187, %s188
      %p197 = scmp.eq.s32.totalorder %s30, 0
      %p198 = por %p196, %p197
      %p199 = scmp.ne.s32.totalorder %s187, %s188
      %p200 = scmp.eq.s32.totalorder %s31, 1
      %p201 = por %p199, %p200
      %p203 = scmp.ne.s32.totalorder %s188, %s202
      %p204 = scmp.eq.s32.totalorder %s31, 0
      %p205 = por %p203, %p204
      %s207 = sadd.s32 %s206, 1
      %p210 = scmp.eq.s32.totalorder %s25, 1
      %p211 = scmp.ne.s32.totalorder %s206, %s208
      %p212 = scmp.eq.s32.totalorder %s25, 0
      %p213 = por %p211, %p212
      %p214 = scmp.ne.s32.totalorder %s206, %s208
      %p215 = scmp.eq.s32.totalorder %s30, 1
      %p216 = por %p214, %p215
      %p217 = scmp.ne.s32.totalorder %s208, %s209
      %p218 = scmp.eq.s32.totalorder %s30, 0
      %p219 = por %p217, %p218
      %p220 = scmp.ne.s32.totalorder %s208, %s209
      %p221 = scmp.eq.s32.totalorder %s31, 1
      %p222 = por %p220, %p221
      %p224 = scmp.ne.s32.totalorder %s209, %s223
      %p225 = scmp.eq.s32.totalorder %s31, 0
      %p226 = por %p224, %p225
      %s228 = sadd.s32 %s227, 1
      %p231 = scmp.eq.s32.totalorder %s25, 1
      %p232 = scmp.ne.s32.totalorder %s227, %s229
      %p233 = scmp.eq.s32.totalorder %s25, 0
      %p234 = por %p232, %p233
      %p235 = scmp.ne.s32.totalorder %s227, %s229
      %p236 = scmp.eq.s32.totalorder %s30, 1
      %p237 = por %p235, %p236
      %p238 = scmp.ne.s32.totalorder %s229, %s230
      %p239 = scmp.eq.s32.totalorder %s30, 0
      %p240 = por %p238, %p239
      %p241 = scmp.ne.s32.totalorder %s229, %s230
      %p242 = scmp.eq.s32.totalorder %s31, 1
      %p243 = por %p241, %p242
      %p245 = scmp.ne.s32.totalorder %s230, %s244
      %p246 = scmp.eq.s32.totalorder %s31, 0
      %p247 = por %p245, %p246
      %s249 = sadd.s32 %s248, 1
      %p252 = scmp.eq.s32.totalorder %s25, 1
      %p253 = scmp.ne.s32.totalorder %s248, %s250
      %p254 = scmp.eq.s32.totalorder %s25, 0
      %p255 = por %p253, %p254
      %p256 = scmp.ne.s32.totalorder %s248, %s250
      %p257 = scmp.eq.s32.totalorder %s30, 1
      %p258 = por %p256, %p257
      %p259 = scmp.ne.s32.totalorder %s250, %s251
      %p260 = scmp.eq.s32.totalorder %s30, 0
      %p261 = por %p259, %p260
      %p262 = scmp.ne.s32.totalorder %s250, %s251
      %p263 = scmp.eq.s32.totalorder %s31, 1
      %p264 = por %p262, %p263
      %p266 = scmp.ne.s32.totalorder %s251, %s265
      %p267 = scmp.eq.s32.totalorder %s31, 0
      %p268 = por %p266, %p267
      %s270 = sadd.s32 %s269, 1
      %p273 = scmp.eq.s32.totalorder %s25, 1
      %p274 = scmp.ne.s32.totalorder %s269, %s271
      %p275 = scmp.eq.s32.totalorder %s25, 0
      %p276 = por %p274, %p275
      %p277 = scmp.ne.s32.totalorder %s269, %s271
      %p278 = scmp.eq.s32.totalorder %s30, 1
      %p279 = por %p277, %p278
      %p280 = scmp.ne.s32.totalorder %s271, %s272
      %p281 = scmp.eq.s32.totalorder %s30, 0
      %p282 = por %p280, %p281
      %p283 = scmp.ne.s32.totalorder %s271, %s272
      %p284 = scmp.eq.s32.totalorder %s31, 1
      %p285 = por %p283, %p284
      %p287 = scmp.ne.s32.totalorder %s272, %s286
      %p288 = scmp.eq.s32.totalorder %s31, 0
      %p289 = por %p287, %p288
      %s291 = sadd.s32 %s290, 1
      %p294 = scmp.eq.s32.totalorder %s25, 1
      %p295 = scmp.ne.s32.totalorder %s290, %s292
      %p296 = scmp.eq.s32.totalorder %s25, 0
      %p297 = por %p295, %p296
      %p298 = scmp.ne.s32.totalorder %s290, %s292
      %p299 = scmp.eq.s32.totalorder %s30, 1
      %p300 = por %p298, %p299
      %p301 = scmp.ne.s32.totalorder %s292, %s293
      %p302 = scmp.eq.s32.totalorder %s30, 0
      %p303 = por %p301, %p302
      %p304 = scmp.ne.s32.totalorder %s292, %s293
      %p305 = scmp.eq.s32.totalorder %s31, 1
      %p306 = por %p304, %p305
      %p308 = scmp.ne.s32.totalorder %s293, %s307
      %p309 = scmp.eq.s32.totalorder %s31, 0
      %p310 = por %p308, %p309
      %s312 = sadd.s32 %s311, 1
      %p315 = scmp.eq.s32.totalorder %s25, 1
      %p316 = scmp.ne.s32.totalorder %s311, %s313
      %p317 = scmp.eq.s32.totalorder %s25, 0
      %p318 = por %p316, %p317
      %p319 = scmp.ne.s32.totalorder %s311, %s313
      %p320 = scmp.eq.s32.totalorder %s30, 1
      %p321 = por %p319, %p320
      %p322 = scmp.ne.s32.totalorder %s313, %s314
      %p323 = scmp.eq.s32.totalorder %s30, 0
      %p324 = por %p322, %p323
      %p325 = scmp.ne.s32.totalorder %s313, %s314
      %p326 = scmp.eq.s32.totalorder %s31, 1
      %p327 = por %p325, %p326
      %p329 = scmp.ne.s32.totalorder %s314, %s328
      %p330 = scmp.eq.s32.totalorder %s31, 0
      %p331 = por %p329, %p330
      %s333 = sadd.s32 %s332, 1
      %p336 = scmp.eq.s32.totalorder %s25, 1
      %p337 = scmp.ne.s32.totalorder %s332, %s334
      %p338 = scmp.eq.s32.totalorder %s25, 0
      %p339 = por %p337, %p338
      %p340 = scmp.ne.s32.totalorder %s332, %s334
      %p341 = scmp.eq.s32.totalorder %s30, 1
      %p342 = por %p340, %p341
      %p343 = scmp.ne.s32.totalorder %s334, %s335
      %p344 = scmp.eq.s32.totalorder %s30, 0
      %p345 = por %p343, %p344
      %p346 = scmp.ne.s32.totalorder %s334, %s335
      %p347 = scmp.eq.s32.totalorder %s31, 1
      %p348 = por %p346, %p347
      %p350 = scmp.ne.s32.totalorder %s335, %s349
      %p351 = scmp.eq.s32.totalorder %s31, 0
      %p352 = por %p350, %p351
      %s354 = sadd.s32 %s353, 1
      %p357 = scmp.eq.s32.totalorder %s25, 1
      %p358 = scmp.ne.s32.totalorder %s353, %s355
      %p359 = scmp.eq.s32.totalorder %s25, 0
      %p360 = por %p358, %p359
      %p361 = scmp.ne.s32.totalorder %s353, %s355
      %p362 = scmp.eq.s32.totalorder %s30, 1
      %p363 = por %p361, %p362
      %p364 = scmp.ne.s32.totalorder %s355, %s356
      %p365 = scmp.eq.s32.totalorder %s30, 0
      %p366 = por %p364, %p365
      %p367 = scmp.ne.s32.totalorder %s355, %s356
      %p368 = scmp.eq.s32.totalorder %s31, 1
      %p369 = por %p367, %p368
      %p371 = scmp.ne.s32.totalorder %s356, %s370
      %p372 = scmp.eq.s32.totalorder %s31, 0
      %p373 = por %p371, %p372
      %s374 = ssub.s32 %s25, %s32
      %p375 = scmp.eq.s32.totalorder %s374, 0
      %s377 = sadd.s32 %s376, 1
      %s378 = scalar_select %p375, %s376, %s377
      %p381 = pneg %p375
      %p382 = scmp.eq.s32.totalorder %s25, 1
      %p383 = por %p381, %p382
      %p384 = scmp.ne.s32.totalorder %s376, %s379
      %p385 = scmp.eq.s32.totalorder %s25, 0
      %p386 = por %p384, %p385
      %p387 = scmp.ne.s32.totalorder %s376, %s379
      %p388 = scmp.eq.s32.totalorder %s30, 1
      %p389 = por %p387, %p388
      %p390 = scmp.ne.s32.totalorder %s379, %s380
      %p391 = scmp.eq.s32.totalorder %s30, 0
      %p392 = por %p390, %p391
      %p393 = scmp.ne.s32.totalorder %s379, %s380
      %p394 = scmp.eq.s32.totalorder %s31, 1
      %p395 = por %p393, %p394
      %p397 = scmp.ne.s32.totalorder %s380, %s396
      %p398 = scmp.eq.s32.totalorder %s31, 0
      %p399 = por %p397, %p398
      %p400 = scmp.le.s32.totalorder 1, %s25
      %p401 = scmp.lt.s32.totalorder %s25, 3
      %p402 = pnand %p400, %p401
      %p403 = pneg %p402
      // Predicated region
      $region9: #{tpu_custom_call.1} parent=5 // pred_check
        _
      $region10: #{tpu_custom_call.1} parent=5 // pred_check_branch
        %405 = sbr.rel (%p402) target = $region12
      $region11: #{tpu_custom_call.1} parent=5 // pred_region
        %s406 = ssub.s32 %s25, 1
        // Predicated region
        $region13: #{tpu_custom_call.1} parent=11 // pred_check
          %p407 = pneg %p72
        $region14: #{tpu_custom_call.1} parent=11 // pred_check_branch
          %409 = sbr.rel (%p407) target = $region16
        $region15: #{tpu_custom_call.1} parent=11 // pred_region
          _
        $region16: #{tpu_custom_call.1} parent=11 // pred_fallthru
          _
        // Predicated region
        $region17: #{tpu_custom_call.1} parent=11 // pred_check
          %p410 = pneg %p93
        $region18: #{tpu_custom_call.1} parent=11 // pred_check_branch
          %412 = sbr.rel (%p410) target = $region20
        $region19: #{tpu_custom_call.1} parent=11 // pred_region
          _
        $region20: #{tpu_custom_call.1} parent=11 // pred_fallthru
          _
        // Predicated region
        $region21: #{tpu_custom_call.1} parent=11 // pred_check
          %p413 = pneg %p114
        $region22: #{tpu_custom_call.1} parent=11 // pred_check_branch
          %415 = sbr.rel (%p413) target = $region24
        $region23: #{tpu_custom_call.1} parent=11 // pred_region
          _
        $region24: #{tpu_custom_call.1} parent=11 // pred_fallthru
          _
        // Predicated region
        $region25: #{tpu_custom_call.1} parent=11 // pred_check
          %p416 = pneg %p135
        $region26: #{tpu_custom_call.1} parent=11 // pred_check_branch
          %418 = sbr.rel (%p416) target = $region28
        $region27: #{tpu_custom_call.1} parent=11 // pred_region
          _
        $region28: #{tpu_custom_call.1} parent=11 // pred_fallthru
          _
        // Predicated region
        $region29: #{tpu_custom_call.1} parent=11 // pred_check
          %p419 = pneg %p156
        $region30: #{tpu_custom_call.1} parent=11 // pred_check_branch
          %421 = sbr.rel (%p419) target = $region32
        $region31: #{tpu_custom_call.1} parent=11 // pred_region
          _
        $region32: #{tpu_custom_call.1} parent=11 // pred_fallthru
          _
        // Predicated region
        $region33: #{tpu_custom_call.1} parent=11 // pred_check
          %p422 = pneg %p177
        $region34: #{tpu_custom_call.1} parent=11 // pred_check_branch
          %424 = sbr.rel (%p422) target = $region36
        $region35: #{tpu_custom_call.1} parent=11 // pred_region
          _
        $region36: #{tpu_custom_call.1} parent=11 // pred_fallthru
          _
        // Predicated region
        $region37: #{tpu_custom_call.1} parent=11 // pred_check
          %p425 = pneg %p198
        $region38: #{tpu_custom_call.1} parent=11 // pred_check_branch
          %427 = sbr.rel (%p425) target = $region40
        $region39: #{tpu_custom_call.1} parent=11 // pred_region
          _
        $region40: #{tpu_custom_call.1} parent=11 // pred_fallthru
          _
        // Predicated region
        $region41: #{tpu_custom_call.1} parent=11 // pred_check
          %p428 = pneg %p219
        $region42: #{tpu_custom_call.1} parent=11 // pred_check_branch
          %430 = sbr.rel (%p428) target = $region44
        $region43: #{tpu_custom_call.1} parent=11 // pred_region
          _
        $region44: #{tpu_custom_call.1} parent=11 // pred_fallthru
          _
        // Predicated region
        $region45: #{tpu_custom_call.1} parent=11 // pred_check
          %p431 = pneg %p240
        $region46: #{tpu_custom_call.1} parent=11 // pred_check_branch
          %433 = sbr.rel (%p431) target = $region48
        $region47: #{tpu_custom_call.1} parent=11 // pred_region
          _
        $region48: #{tpu_custom_call.1} parent=11 // pred_fallthru
          _
        // Predicated region
        $region49: #{tpu_custom_call.1} parent=11 // pred_check
          %p434 = pneg %p261
        $region50: #{tpu_custom_call.1} parent=11 // pred_check_branch
          %436 = sbr.rel (%p434) target = $region52
        $region51: #{tpu_custom_call.1} parent=11 // pred_region
          _
        $region52: #{tpu_custom_call.1} parent=11 // pred_fallthru
          _
        // Predicated region
        $region53: #{tpu_custom_call.1} parent=11 // pred_check
          %p437 = pneg %p282
        $region54: #{tpu_custom_call.1} parent=11 // pred_check_branch
          %439 = sbr.rel (%p437) target = $region56
        $region55: #{tpu_custom_call.1} parent=11 // pred_region
          _
        $region56: #{tpu_custom_call.1} parent=11 // pred_fallthru
          _
        // Predicated region
        $region57: #{tpu_custom_call.1} parent=11 // pred_check
          %p440 = pneg %p303
        $region58: #{tpu_custom_call.1} parent=11 // pred_check_branch
          %442 = sbr.rel (%p440) target = $region60
        $region59: #{tpu_custom_call.1} parent=11 // pred_region
          _
        $region60: #{tpu_custom_call.1} parent=11 // pred_fallthru
          _
        // Predicated region
        $region61: #{tpu_custom_call.1} parent=11 // pred_check
          %p443 = pneg %p324
        $region62: #{tpu_custom_call.1} parent=11 // pred_check_branch
          %445 = sbr.rel (%p443) target = $region64
        $region63: #{tpu_custom_call.1} parent=11 // pred_region
          _
        $region64: #{tpu_custom_call.1} parent=11 // pred_fallthru
          _
        // Predicated region
        $region65: #{tpu_custom_call.1} parent=11 // pred_check
          %p446 = pneg %p345
        $region66: #{tpu_custom_call.1} parent=11 // pred_check_branch
          %448 = sbr.rel (%p446) target = $region68
        $region67: #{tpu_custom_call.1} parent=11 // pred_region
          _
        $region68: #{tpu_custom_call.1} parent=11 // pred_fallthru
          _
        // Predicated region
        $region69: #{tpu_custom_call.1} parent=11 // pred_check
          %p449 = pneg %p366
        $region70: #{tpu_custom_call.1} parent=11 // pred_check_branch
          %451 = sbr.rel (%p449) target = $region72
        $region71: #{tpu_custom_call.1} parent=11 // pred_region
          _
        $region72: #{tpu_custom_call.1} parent=11 // pred_fallthru
          _
      $region12: #{tpu_custom_call.1} parent=5 // pred_fallthru
        _
      %p452 = scmp.lt.s32.totalorder %s25, 2
      // Predicated region
      $region73: #{tpu_custom_call.1} parent=5 // pred_check
        %p453 = pneg %p452
      $region74: #{tpu_custom_call.1} parent=5 // pred_check_branch
        %455 = sbr.rel (%p453) target = $region76
      $region75: #{tpu_custom_call.1} parent=5 // pred_region
        // Predicated region
        $region77: #{tpu_custom_call.1} parent=75 // pred_check
          %p456 = pneg %p45
        $region78: #{tpu_custom_call.1} parent=75 // pred_check_branch
          %458 = sbr.rel (%p456) target = $region80
        $region79: #{tpu_custom_call.1} parent=75 // pred_region
          %p459 = scmp.lt.s32.totalorder %s25, 1
          %s460 = scalar_select %p459, %s25, 1
          %s461 = smul.addr %s460, 32
          %s462 = smul.addr %s461, 8
          %s463 = scalar_lea.vmem %s0, %s462
        $region80: #{tpu_custom_call.1} parent=75 // pred_fallthru
          _
      $region76: #{tpu_custom_call.1} parent=5 // pred_fallthru
        _
      %p464 = scmp.le.s32.totalorder 1, %s25
      %p465 = scmp.lt.s32.totalorder %s25, 3
      %p466 = pnand %p464, %p465
      %p467 = pneg %p466
      // Predicated region
      $region81: #{tpu_custom_call.1} parent=5 // pred_check
        _
      $region82: #{tpu_custom_call.1} parent=5 // pred_check_branch
        %469 = sbr.rel (%p466) target = $region84
      $region83: #{tpu_custom_call.1} parent=5 // pred_region
        %s470 = ssub.s32 %s25, 1
        %p471 = scmp.lt.s32.totalorder %s30, 1
        %s472 = scalar_select %p471, %s30, 1
        %s473 = smul.addr %s472, 32
        %s474 = smul.addr %s473, 8
        %s475 = scalar_lea.vmem %s0, %s474
        %p476 = pneg %p51
        %p477 = pneg %p48
        %p478 = pneg %p72
        %p479 = pneg %p69
        %p480 = pneg %p93
        %p481 = pneg %p90
        %p482 = pneg %p114
        %p483 = pneg %p111
        %p484 = pneg %p135
        %p485 = pneg %p132
        %p486 = pneg %p156
        %p487 = pneg %p153
        %p488 = pneg %p177
        %p489 = pneg %p174
        %p490 = pneg %p198
        %p491 = pneg %p195
        %p492 = pneg %p219
        %p493 = pneg %p216
        %p494 = pneg %p240
        %p495 = pneg %p237
        %p496 = pneg %p261
        %p497 = pneg %p258
        %p498 = pneg %p282
        %p499 = pneg %p279
        %p500 = pneg %p303
        %p501 = pneg %p300
        %p502 = pneg %p324
        %p503 = pneg %p321
        %p504 = pneg %p345
        %p505 = pneg %p342
        %p506 = pneg %p366
        %p507 = pneg %p363
        %p508 = pneg %p392
        %p509 = pneg %p389
        %s510 = sand.u32 %s379, 1
        %s511 = scalar_lea.sflag [#allocation11], %s510
        %s512 = sand.u32 %s379, 1
        %s513 = scalar_lea.vmem [#allocation10], %s512
        %p514 = scmp.lt.s32.totalorder %s30, 1
        %s515 = scalar_select %p514, %s30, 1
        %s516 = smul.addr %s515, 32
        %s517 = smul.addr %s516, 8
        %s518 = scalar_lea.vmem %s0, %s517
        %v519 = vld [vmem:[%s518] sm:$0xff]
        %v520 = vld [vmem:[%s518 + $0x8] sm:$0xff]
        %v521 = vld [vmem:[%s518 + $0x10] sm:$0xff]
        %v522 = vld [vmem:[%s518 + $0x18] sm:$0xff]
        %v523 = vld [vmem:[%s518 + $0x20] sm:$0xff]
        %v524 = vld [vmem:[%s518 + $0x28] sm:$0xff]
        %v525 = vld [vmem:[%s518 + $0x30] sm:$0xff]
        %v526 = vld [vmem:[%s518 + $0x38] sm:$0xff]
        %v527 = vld [vmem:[%s518 + $0x40] sm:$0xff]
        %v528 = vld [vmem:[%s518 + $0x48] sm:$0xff]
        %v529 = vld [vmem:[%s518 + $0x50] sm:$0xff]
        %v530 = vld [vmem:[%s518 + $0x58] sm:$0xff]
        %v531 = vld [vmem:[%s518 + $0x60] sm:$0xff]
        %v532 = vld [vmem:[%s518 + $0x68] sm:$0xff]
        %v533 = vld [vmem:[%s518 + $0x70] sm:$0xff]
        %v534 = vld [vmem:[%s518 + $0x78] sm:$0xff]
        %v535 = vld [vmem:[%s518 + $0x80] sm:$0xff]
        %v536 = vld [vmem:[%s518 + $0x88] sm:$0xff]
        %v537 = vld [vmem:[%s518 + $0x90] sm:$0xff]
        %v538 = vld [vmem:[%s518 + $0x98] sm:$0xff]
        %v539 = vld [vmem:[%s518 + $0xa0] sm:$0xff]
        %v540 = vld [vmem:[%s518 + $0xa8] sm:$0xff]
        %v541 = vld [vmem:[%s518 + $0xb0] sm:$0xff]
        %v542 = vld [vmem:[%s518 + $0xb8] sm:$0xff]
        %v543 = vld [vmem:[%s518 + $0xc0] sm:$0xff]
        %v544 = vld [vmem:[%s518 + $0xc8] sm:$0xff]
        %v545 = vld [vmem:[%s518 + $0xd0] sm:$0xff]
        %v546 = vld [vmem:[%s518 + $0xd8] sm:$0xff]
        %v547 = vld [vmem:[%s518 + $0xe0] sm:$0xff]
        %v548 = vld [vmem:[%s518 + $0xe8] sm:$0xff]
        %v549 = vld [vmem:[%s518 + $0xf0] sm:$0xff]
        %v550 = vld [vmem:[%s518 + $0xf8] sm:$0xff]
        %vm551 = vcmask 23552
        %552 = vst.msk [vmem:[#allocation2] sm:$0xff] %vm551, 0.0
        %553 = vst.msk [vmem:[#allocation2 + $0x8] sm:$0xff] %vm551, 0.0
        %554 = vst.msk [vmem:[#allocation2 + $0x10] sm:$0xff] %vm551, 0.0
        %555 = vst.msk [vmem:[#allocation2 + $0x18] sm:$0xff] %vm551, 0.0
        %556 = vst.msk [vmem:[#allocation2 + $0x20] sm:$0xff] %vm551, 0.0
        %557 = vst.msk [vmem:[#allocation2 + $0x28] sm:$0xff] %vm551, 0.0
        %558 = vst.msk [vmem:[#allocation2 + $0x30] sm:$0xff] %vm551, 0.0
        %559 = vst.msk [vmem:[#allocation2 + $0x38] sm:$0xff] %vm551, 0.0
        %560 = vst.msk [vmem:[#allocation2 + $0x40] sm:$0xff] %vm551, 0.0
        %561 = vst.msk [vmem:[#allocation2 + $0x48] sm:$0xff] %vm551, 0.0
        %562 = vst.msk [vmem:[#allocation2 + $0x50] sm:$0xff] %vm551, 0.0
        %563 = vst.msk [vmem:[#allocation2 + $0x58] sm:$0xff] %vm551, 0.0
        %564 = vst.msk [vmem:[#allocation2 + $0x60] sm:$0xff] %vm551, 0.0
        %565 = vst.msk [vmem:[#allocation2 + $0x68] sm:$0xff] %vm551, 0.0
        %566 = vst.msk [vmem:[#allocation2 + $0x70] sm:$0xff] %vm551, 0.0
        %567 = vst.msk [vmem:[#allocation2 + $0x78] sm:$0xff] %vm551, 0.0
        %568 = vst.msk [vmem:[#allocation2 + $0x80] sm:$0xff] %vm551, 0.0
        %569 = vst.msk [vmem:[#allocation2 + $0x88] sm:$0xff] %vm551, 0.0
        %570 = vst.msk [vmem:[#allocation2 + $0x90] sm:$0xff] %vm551, 0.0
        %571 = vst.msk [vmem:[#allocation2 + $0x98] sm:$0xff] %vm551, 0.0
        %572 = vst.msk [vmem:[#allocation2 + $0xa0] sm:$0xff] %vm551, 0.0
        %573 = vst.msk [vmem:[#allocation2 + $0xa8] sm:$0xff] %vm551, 0.0
        %574 = vst.msk [vmem:[#allocation2 + $0xb0] sm:$0xff] %vm551, 0.0
        %575 = vst.msk [vmem:[#allocation2 + $0xb8] sm:$0xff] %vm551, 0.0
        %576 = vst.msk [vmem:[#allocation2 + $0xc0] sm:$0xff] %vm551, 0.0
        %577 = vst.msk [vmem:[#allocation2 + $0xc8] sm:$0xff] %vm551, 0.0
        %578 = vst.msk [vmem:[#allocation2 + $0xd0] sm:$0xff] %vm551, 0.0
        %579 = vst.msk [vmem:[#allocation2 + $0xd8] sm:$0xff] %vm551, 0.0
        %580 = vst.msk [vmem:[#allocation2 + $0xe0] sm:$0xff] %vm551, 0.0
        %581 = vst.msk [vmem:[#allocation2 + $0xe8] sm:$0xff] %vm551, 0.0
        %582 = vst.msk [vmem:[#allocation2 + $0xf0] sm:$0xff] %vm551, 0.0
        %583 = vst.msk [vmem:[#allocation2 + $0xf8] sm:$0xff] %vm551, 0.0
        %584 = vst.msk [vmem:[#allocation2 + $0x100] sm:$0xff] %vm551, 0.0
        %585 = vst.msk [vmem:[#allocation2 + $0x108] sm:$0xff] %vm551, 0.0
        %586 = vst.msk [vmem:[#allocation2 + $0x110] sm:$0xff] %vm551, 0.0
        %587 = vst.msk [vmem:[#allocation2 + $0x118] sm:$0xff] %vm551, 0.0
        %vm588 = vcmask 17408
        %589 = vst.msk [vmem:[#allocation2 + $0x120] sm:$0x3] %vm588, 0.0
        %590 = vst.msk [vmem:[#allocation2 + $0x11] sm:$0xff] %vm551, %v519
        %591 = vst.msk [vmem:[#allocation2 + $0x19] sm:$0xff] %vm551, %v520
        %592 = vst.msk [vmem:[#allocation2 + $0x21] sm:$0xff] %vm551, %v521
        %593 = vst.msk [vmem:[#allocation2 + $0x29] sm:$0xff] %vm551, %v522
        %594 = vst.msk [vmem:[#allocation2 + $0x31] sm:$0xff] %vm551, %v523
        %595 = vst.msk [vmem:[#allocation2 + $0x39] sm:$0xff] %vm551, %v524
        %596 = vst.msk [vmem:[#allocation2 + $0x41] sm:$0xff] %vm551, %v525
        %597 = vst.msk [vmem:[#allocation2 + $0x49] sm:$0xff] %vm551, %v526
        %598 = vst.msk [vmem:[#allocation2 + $0x51] sm:$0xff] %vm551, %v527
        %599 = vst.msk [vmem:[#allocation2 + $0x59] sm:$0xff] %vm551, %v528
        %600 = vst.msk [vmem:[#allocation2 + $0x61] sm:$0xff] %vm551, %v529
        %601 = vst.msk [vmem:[#allocation2 + $0x69] sm:$0xff] %vm551, %v530
        %602 = vst.msk [vmem:[#allocation2 + $0x71] sm:$0xff] %vm551, %v531
        %603 = vst.msk [vmem:[#allocation2 + $0x79] sm:$0xff] %vm551, %v532
        %604 = vst.msk [vmem:[#allocation2 + $0x81] sm:$0xff] %vm551, %v533
        %605 = vst.msk [vmem:[#allocation2 + $0x89] sm:$0xff] %vm551, %v534
        %606 = vst.msk [vmem:[#allocation2 + $0x91] sm:$0xff] %vm551, %v535
        %607 = vst.msk [vmem:[#allocation2 + $0x99] sm:$0xff] %vm551, %v536
        %608 = vst.msk [vmem:[#allocation2 + $0xa1] sm:$0xff] %vm551, %v537
        %609 = vst.msk [vmem:[#allocation2 + $0xa9] sm:$0xff] %vm551, %v538
        %610 = vst.msk [vmem:[#allocation2 + $0xb1] sm:$0xff] %vm551, %v539
        %611 = vst.msk [vmem:[#allocation2 + $0xb9] sm:$0xff] %vm551, %v540
        %612 = vst.msk [vmem:[#allocation2 + $0xc1] sm:$0xff] %vm551, %v541
        %613 = vst.msk [vmem:[#allocation2 + $0xc9] sm:$0xff] %vm551, %v542
        %614 = vst.msk [vmem:[#allocation2 + $0xd1] sm:$0xff] %vm551, %v543
        %615 = vst.msk [vmem:[#allocation2 + $0xd9] sm:$0xff] %vm551, %v544
        %616 = vst.msk [vmem:[#allocation2 + $0xe1] sm:$0xff] %vm551, %v545
        %617 = vst.msk [vmem:[#allocation2 + $0xe9] sm:$0xff] %vm551, %v546
        %618 = vst.msk [vmem:[#allocation2 + $0xf1] sm:$0xff] %vm551, %v547
        %619 = vst.msk [vmem:[#allocation2 + $0xf9] sm:$0xff] %vm551, %v548
        %620 = vst.msk [vmem:[#allocation2 + $0x101] sm:$0xff] %vm551, %v549
        %621 = vst.msk [vmem:[#allocation2 + $0x109] sm:$0xff] %vm551, %v550
        %v622 = vlaneseq
        %v623 = vshrl.u32 %v622, 7
        %v624 = vadd.s32 %v623, 8
        %v625 = vadd.s32 %v623, 16
        %v626 = vadd.s32 %v623, 24
        %v627 = vadd.s32 %v623, 32
        %v628 = vadd.s32 %v623, 40
        %v629 = vadd.s32 %v623, 48
        %v630 = vadd.s32 %v623, 56
        %v631 = vadd.s32 %v623, 64
        %v632 = vadd.s32 %v623, 72
        %v633 = vadd.s32 %v623, 80
        %v634 = vadd.s32 %v623, 88
        %v635 = vadd.s32 %v623, 96
        %v636 = vadd.s32 %v623, 104
        %v637 = vadd.s32 %v623, 112
        %v638 = vadd.s32 %v623, 120
        %v639 = vadd.s32 %v623, 128
        %v640 = vadd.s32 %v623, 136
        %v641 = vadd.s32 %v623, 144
        %v642 = vadd.s32 %v623, 152
        %v643 = vadd.s32 %v623, 160
        %v644 = vadd.s32 %v623, 168
        %v645 = vadd.s32 %v623, 176
        %v646 = vadd.s32 %v623, 184
        %v647 = vadd.s32 %v623, 192
        %v648 = vadd.s32 %v623, 200
        %v649 = vadd.s32 %v623, 208
        %v650 = vadd.s32 %v623, 216
        %v651 = vadd.s32 %v623, 224
        %v652 = vadd.s32 %v623, 232
        %v653 = vadd.s32 %v623, 240
        %v654 = vadd.s32 %v623, 248
        %vm655 = vcmp.lt.s32.totalorder %v623, 0
        %v656 = vsub.s32 0, %v623
        %v657 = vsel %vm655, %v656, %v623
        %v658 = vshrl.u32 %v657, 4
        %v659 = vand.u32 %v657, 15
        %v660 = vsub.s32 0, %v659
        %v661 = vsel %vm655, %v660, %v659
        %vm662 = vcmp.lt.s32.totalorder %v624, 0
        %v663 = vsub.s32 0, %v624
        %v664 = vsel %vm662, %v663, %v624
        %v665 = vshrl.u32 %v664, 4
        %v666 = vand.u32 %v664, 15
        %v667 = vsub.s32 0, %v666
        %v668 = vsel %vm662, %v667, %v666
        %vm669 = vcmp.lt.s32.totalorder %v625, 0
        %v670 = vsub.s32 0, %v625
        %v671 = vsel %vm669, %v670, %v625
        %v672 = vshrl.u32 %v671, 4
        %v673 = vand.u32 %v671, 15
        %v674 = vsub.s32 0, %v673
        %v675 = vsel %vm669, %v674, %v673
        %vm676 = vcmp.lt.s32.totalorder %v626, 0
        %v677 = vsub.s32 0, %v626
        %v678 = vsel %vm676, %v677, %v626
        %v679 = vshrl.u32 %v678, 4
        %v680 = vand.u32 %v678, 15
        %v681 = vsub.s32 0, %v680
        %v682 = vsel %vm676, %v681, %v680
        %vm683 = vcmp.lt.s32.totalorder %v627, 0
        %v684 = vsub.s32 0, %v627
        %v685 = vsel %vm683, %v684, %v627
        %v686 = vshrl.u32 %v685, 4
        %v687 = vand.u32 %v685, 15
        %v688 = vsub.s32 0, %v687
        %v689 = vsel %vm683, %v688, %v687
        %vm690 = vcmp.lt.s32.totalorder %v628, 0
        %v691 = vsub.s32 0, %v628
        %v692 = vsel %vm690, %v691, %v628
        %v693 = vshrl.u32 %v692, 4
        %v694 = vand.u32 %v692, 15
        %v695 = vsub.s32 0, %v694
        %v696 = vsel %vm690, %v695, %v694
        %vm697 = vcmp.lt.s32.totalorder %v629, 0
        %v698 = vsub.s32 0, %v629
        %v699 = vsel %vm697, %v698, %v629
        %v700 = vshrl.u32 %v699, 4
        %v701 = vand.u32 %v699, 15
        %v702 = vsub.s32 0, %v701
        %v703 = vsel %vm697, %v702, %v701
        %vm704 = vcmp.lt.s32.totalorder %v630, 0
        %v705 = vsub.s32 0, %v630
        %v706 = vsel %vm704, %v705, %v630
        %v707 = vshrl.u32 %v706, 4
        %v708 = vand.u32 %v706, 15
        %v709 = vsub.s32 0, %v708
        %v710 = vsel %vm704, %v709, %v708
        %vm711 = vcmp.lt.s32.totalorder %v631, 0
        %v712 = vsub.s32 0, %v631
        %v713 = vsel %vm711, %v712, %v631
        %v714 = vshrl.u32 %v713, 4
        %v715 = vand.u32 %v713, 15
        %v716 = vsub.s32 0, %v715
        %v717 = vsel %vm711, %v716, %v715
        %vm718 = vcmp.lt.s32.totalorder %v632, 0
        %v719 = vsub.s32 0, %v632
        %v720 = vsel %vm718, %v719, %v632
        %v721 = vshrl.u32 %v720, 4
        %v722 = vand.u32 %v720, 15
        %v723 = vsub.s32 0, %v722
        %v724 = vsel %vm718, %v723, %v722
        %vm725 = vcmp.lt.s32.totalorder %v633, 0
        %v726 = vsub.s32 0, %v633
        %v727 = vsel %vm725, %v726, %v633
        %v728 = vshrl.u32 %v727, 4
        %v729 = vand.u32 %v727, 15
        %v730 = vsub.s32 0, %v729
        %v731 = vsel %vm725, %v730, %v729
        %vm732 = vcmp.lt.s32.totalorder %v634, 0
        %v733 = vsub.s32 0, %v634
        %v734 = vsel %vm732, %v733, %v634
        %v735 = vshrl.u32 %v734, 4
        %v736 = vand.u32 %v734, 15
        %v737 = vsub.s32 0, %v736
        %v738 = vsel %vm732, %v737, %v736
        %vm739 = vcmp.lt.s32.totalorder %v635, 0
        %v740 = vsub.s32 0, %v635
        %v741 = vsel %vm739, %v740, %v635
        %v742 = vshrl.u32 %v741, 4
        %v743 = vand.u32 %v741, 15
        %v744 = vsub.s32 0, %v743
        %v745 = vsel %vm739, %v744, %v743
        %vm746 = vcmp.lt.s32.totalorder %v636, 0
        %v747 = vsub.s32 0, %v636
        %v748 = vsel %vm746, %v747, %v636
        %v749 = vshrl.u32 %v748, 4
        %v750 = vand.u32 %v748, 15
        %v751 = vsub.s32 0, %v750
        %v752 = vsel %vm746, %v751, %v750
        %vm753 = vcmp.lt.s32.totalorder %v637, 0
        %v754 = vsub.s32 0, %v637
        %v755 = vsel %vm753, %v754, %v637
        %v756 = vshrl.u32 %v755, 4
        %v757 = vand.u32 %v755, 15
        %v758 = vsub.s32 0, %v757
        %v759 = vsel %vm753, %v758, %v757
        %vm760 = vcmp.lt.s32.totalorder %v638, 0
        %v761 = vsub.s32 0, %v638
        %v762 = vsel %vm760, %v761, %v638
        %v763 = vshrl.u32 %v762, 4
        %v764 = vand.u32 %v762, 15
        %v765 = vsub.s32 0, %v764
        %v766 = vsel %vm760, %v765, %v764
        %vm767 = vcmp.lt.s32.totalorder %v639, 0
        %v768 = vsub.s32 0, %v639
        %v769 = vsel %vm767, %v768, %v639
        %v770 = vshrl.u32 %v769, 4
        %v771 = vand.u32 %v769, 15
        %v772 = vsub.s32 0, %v771
        %v773 = vsel %vm767, %v772, %v771
        %vm774 = vcmp.lt.s32.totalorder %v640, 0
        %v775 = vsub.s32 0, %v640
        %v776 = vsel %vm774, %v775, %v640
        %v777 = vshrl.u32 %v776, 4
        %v778 = vand.u32 %v776, 15
        %v779 = vsub.s32 0, %v778
        %v780 = vsel %vm774, %v779, %v778
        %vm781 = vcmp.lt.s32.totalorder %v641, 0
        %v782 = vsub.s32 0, %v641
        %v783 = vsel %vm781, %v782, %v641
        %v784 = vshrl.u32 %v783, 4
        %v785 = vand.u32 %v783, 15
        %v786 = vsub.s32 0, %v785
        %v787 = vsel %vm781, %v786, %v785
        %vm788 = vcmp.lt.s32.totalorder %v642, 0
        %v789 = vsub.s32 0, %v642
        %v790 = vsel %vm788, %v789, %v642
        %v791 = vshrl.u32 %v790, 4
        %v792 = vand.u32 %v790, 15
        %v793 = vsub.s32 0, %v792
        %v794 = vsel %vm788, %v793, %v792
        %vm795 = vcmp.lt.s32.totalorder %v643, 0
        %v796 = vsub.s32 0, %v643
        %v797 = vsel %vm795, %v796, %v643
        %v798 = vshrl.u32 %v797, 4
        %v799 = vand.u32 %v797, 15
        %v800 = vsub.s32 0, %v799
        %v801 = vsel %vm795, %v800, %v799
        %vm802 = vcmp.lt.s32.totalorder %v644, 0
        %v803 = vsub.s32 0, %v644
        %v804 = vsel %vm802, %v803, %v644
        %v805 = vshrl.u32 %v804, 4
        %v806 = vand.u32 %v804, 15
        %v807 = vsub.s32 0, %v806
        %v808 = vsel %vm802, %v807, %v806
        %vm809 = vcmp.lt.s32.totalorder %v645, 0
        %v810 = vsub.s32 0, %v645
        %v811 = vsel %vm809, %v810, %v645
        %v812 = vshrl.u32 %v811, 4
        %v813 = vand.u32 %v811, 15
        %v814 = vsub.s32 0, %v813
        %v815 = vsel %vm809, %v814, %v813
        %vm816 = vcmp.lt.s32.totalorder %v646, 0
        %v817 = vsub.s32 0, %v646
        %v818 = vsel %vm816, %v817, %v646
        %v819 = vshrl.u32 %v818, 4
        %v820 = vand.u32 %v818, 15
        %v821 = vsub.s32 0, %v820
        %v822 = vsel %vm816, %v821, %v820
        %vm823 = vcmp.lt.s32.totalorder %v647, 0
        %v824 = vsub.s32 0, %v647
        %v825 = vsel %vm823, %v824, %v647
        %v826 = vshrl.u32 %v825, 4
        %v827 = vand.u32 %v825, 15
        %v828 = vsub.s32 0, %v827
        %v829 = vsel %vm823, %v828, %v827
        %vm830 = vcmp.lt.s32.totalorder %v648, 0
        %v831 = vsub.s32 0, %v648
        %v832 = vsel %vm830, %v831, %v648
        %v833 = vshrl.u32 %v832, 4
        %v834 = vand.u32 %v832, 15
        %v835 = vsub.s32 0, %v834
        %v836 = vsel %vm830, %v835, %v834
        %vm837 = vcmp.lt.s32.totalorder %v649, 0
        %v838 = vsub.s32 0, %v649
        %v839 = vsel %vm837, %v838, %v649
        %v840 = vshrl.u32 %v839, 4
        %v841 = vand.u32 %v839, 15
        %v842 = vsub.s32 0, %v841
        %v843 = vsel %vm837, %v842, %v841
        %vm844 = vcmp.lt.s32.totalorder %v650, 0
        %v845 = vsub.s32 0, %v650
        %v846 = vsel %vm844, %v845, %v650
        %v847 = vshrl.u32 %v846, 4
        %v848 = vand.u32 %v846, 15
        %v849 = vsub.s32 0, %v848
        %v850 = vsel %vm844, %v849, %v848
        %vm851 = vcmp.lt.s32.totalorder %v651, 0
        %v852 = vsub.s32 0, %v651
        %v853 = vsel %vm851, %v852, %v651
        %v854 = vshrl.u32 %v853, 4
        %v855 = vand.u32 %v853, 15
        %v856 = vsub.s32 0, %v855
        %v857 = vsel %vm851, %v856, %v855
        %vm858 = vcmp.lt.s32.totalorder %v652, 0
        %v859 = vsub.s32 0, %v652
        %v860 = vsel %vm858, %v859, %v652
        %v861 = vshrl.u32 %v860, 4
        %v862 = vand.u32 %v860, 15
        %v863 = vsub.s32 0, %v862
        %v864 = vsel %vm858, %v863, %v862
        %vm865 = vcmp.lt.s32.totalorder %v653, 0
        %v866 = vsub.s32 0, %v653
        %v867 = vsel %vm865, %v866, %v653
        %v868 = vshrl.u32 %v867, 4
        %v869 = vand.u32 %v867, 15
        %v870 = vsub.s32 0, %v869
        %v871 = vsel %vm865, %v870, %v869
        %vm872 = vcmp.lt.s32.totalorder %v654, 0
        %v873 = vsub.s32 0, %v654
        %v874 = vsel %vm872, %v873, %v654
        %v875 = vshrl.u32 %v874, 4
        %v876 = vand.u32 %v874, 15
        %v877 = vsub.s32 0, %v876
        %v878 = vsel %vm872, %v877, %v876
        %vm879 = vcmp.ne.s32.totalorder %v661, 0
        %vm880 = vcmp.ne.s32.totalorder %v668, 0
        %vm881 = vcmp.ne.s32.totalorder %v675, 0
        %vm882 = vcmp.ne.s32.totalorder %v682, 0
        %vm883 = vcmp.ne.s32.totalorder %v689, 0
        %vm884 = vcmp.ne.s32.totalorder %v696, 0
        %vm885 = vcmp.ne.s32.totalorder %v703, 0
        %vm886 = vcmp.ne.s32.totalorder %v710, 0
        %vm887 = vcmp.ne.s32.totalorder %v717, 0
        %vm888 = vcmp.ne.s32.totalorder %v724, 0
        %vm889 = vcmp.ne.s32.totalorder %v731, 0
        %vm890 = vcmp.ne.s32.totalorder %v738, 0
        %vm891 = vcmp.ne.s32.totalorder %v745, 0
        %vm892 = vcmp.ne.s32.totalorder %v752, 0
        %vm893 = vcmp.ne.s32.totalorder %v759, 0
        %vm894 = vcmp.ne.s32.totalorder %v766, 0
        %vm895 = vcmp.ne.s32.totalorder %v773, 0
        %vm896 = vcmp.ne.s32.totalorder %v780, 0
        %vm897 = vcmp.ne.s32.totalorder %v787, 0
        %vm898 = vcmp.ne.s32.totalorder %v794, 0
        %vm899 = vcmp.ne.s32.totalorder %v801, 0
        %vm900 = vcmp.ne.s32.totalorder %v808, 0
        %vm901 = vcmp.ne.s32.totalorder %v815, 0
        %vm902 = vcmp.ne.s32.totalorder %v822, 0
        %vm903 = vcmp.ne.s32.totalorder %v829, 0
        %vm904 = vcmp.ne.s32.totalorder %v836, 0
        %vm905 = vcmp.ne.s32.totalorder %v843, 0
        %vm906 = vcmp.ne.s32.totalorder %v850, 0
        %vm907 = vcmp.ne.s32.totalorder %v857, 0
        %vm908 = vcmp.ne.s32.totalorder %v864, 0
        %vm909 = vcmp.ne.s32.totalorder %v871, 0
        %vm910 = vcmp.ne.s32.totalorder %v878, 0
        %vm911 = vcmp.lt.s32.totalorder %v661, 0
        %vm912 = vcmp.lt.s32.totalorder %v668, 0
        %vm913 = vcmp.lt.s32.totalorder %v675, 0
        %vm914 = vcmp.lt.s32.totalorder %v682, 0
        %vm915 = vcmp.lt.s32.totalorder %v689, 0
        %vm916 = vcmp.lt.s32.totalorder %v696, 0
        %vm917 = vcmp.lt.s32.totalorder %v703, 0
        %vm918 = vcmp.lt.s32.totalorder %v710, 0
        %vm919 = vcmp.lt.s32.totalorder %v717, 0
        %vm920 = vcmp.lt.s32.totalorder %v724, 0
        %vm921 = vcmp.lt.s32.totalorder %v731, 0
        %vm922 = vcmp.lt.s32.totalorder %v738, 0
        %vm923 = vcmp.lt.s32.totalorder %v745, 0
        %vm924 = vcmp.lt.s32.totalorder %v752, 0
        %vm925 = vcmp.lt.s32.totalorder %v759, 0
        %vm926 = vcmp.lt.s32.totalorder %v766, 0
        %vm927 = vcmp.lt.s32.totalorder %v773, 0
        %vm928 = vcmp.lt.s32.totalorder %v780, 0
        %vm929 = vcmp.lt.s32.totalorder %v787, 0
        %vm930 = vcmp.lt.s32.totalorder %v794, 0
        %vm931 = vcmp.lt.s32.totalorder %v801, 0
        %vm932 = vcmp.lt.s32.totalorder %v808, 0
        %vm933 = vcmp.lt.s32.totalorder %v815, 0
        %vm934 = vcmp.lt.s32.totalorder %v822, 0
        %vm935 = vcmp.lt.s32.totalorder %v829, 0
        %vm936 = vcmp.lt.s32.totalorder %v836, 0
        %vm937 = vcmp.lt.s32.totalorder %v843, 0
        %vm938 = vcmp.lt.s32.totalorder %v850, 0
        %vm939 = vcmp.lt.s32.totalorder %v857, 0
        %vm940 = vcmp.lt.s32.totalorder %v864, 0
        %vm941 = vcmp.lt.s32.totalorder %v871, 0
        %vm942 = vcmp.lt.s32.totalorder %v878, 0
        %vm943 = vmand %vm911, %vm879
        %vm944 = vmand %vm912, %vm880
        %vm945 = vmand %vm913, %vm881
        %vm946 = vmand %vm914, %vm882
        %vm947 = vmand %vm915, %vm883
        %vm948 = vmand %vm916, %vm884
        %vm949 = vmand %vm917, %vm885
        %vm950 = vmand %vm918, %vm886
        %vm951 = vmand %vm919, %vm887
        %vm952 = vmand %vm920, %vm888
        %vm953 = vmand %vm921, %vm889
        %vm954 = vmand %vm922, %vm890
        %vm955 = vmand %vm923, %vm891
        %vm956 = vmand %vm924, %vm892
        %vm957 = vmand %vm925, %vm893
        %vm958 = vmand %vm926, %vm894
        %vm959 = vmand %vm927, %vm895
        %vm960 = vmand %vm928, %vm896
        %vm961 = vmand %vm929, %vm897
        %vm962 = vmand %vm930, %vm898
        %vm963 = vmand %vm931, %vm899
        %vm964 = vmand %vm932, %vm900
        %vm965 = vmand %vm933, %vm901
        %vm966 = vmand %vm934, %vm902
        %vm967 = vmand %vm935, %vm903
        %vm968 = vmand %vm936, %vm904
        %vm969 = vmand %vm937, %vm905
        %vm970 = vmand %vm938, %vm906
        %vm971 = vmand %vm939, %vm907
        %vm972 = vmand %vm940, %vm908
        %vm973 = vmand %vm941, %vm909
        %vm974 = vmand %vm942, %vm910
        %v975 = vadd.s32 %v661, 16
        %v976 = vadd.s32 %v668, 16
        %v977 = vadd.s32 %v675, 16
        %v978 = vadd.s32 %v682, 16
        %v979 = vadd.s32 %v689, 16
        %v980 = vadd.s32 %v696, 16
        %v981 = vadd.s32 %v703, 16
        %v982 = vadd.s32 %v710, 16
        %v983 = vadd.s32 %v717, 16
        %v984 = vadd.s32 %v724, 16
        %v985 = vadd.s32 %v731, 16
        %v986 = vadd.s32 %v738, 16
        %v987 = vadd.s32 %v745, 16
        %v988 = vadd.s32 %v752, 16
        %v989 = vadd.s32 %v759, 16
        %v990 = vadd.s32 %v766, 16
        %v991 = vadd.s32 %v773, 16
        %v992 = vadd.s32 %v780, 16
        %v993 = vadd.s32 %v787, 16
        %v994 = vadd.s32 %v794, 16
        %v995 = vadd.s32 %v801, 16
        %v996 = vadd.s32 %v808, 16
        %v997 = vadd.s32 %v815, 16
        %v998 = vadd.s32 %v822, 16
        %v999 = vadd.s32 %v829, 16
        %v1000 = vadd.s32 %v836, 16
        %v1001 = vadd.s32 %v843, 16
        %v1002 = vadd.s32 %v850, 16
        %v1003 = vadd.s32 %v857, 16
        %v1004 = vadd.s32 %v864, 16
        %v1005 = vadd.s32 %v871, 16
        %v1006 = vadd.s32 %v878, 16
        %v1007 = vsel %vm943, %v975, %v661
        %v1008 = vsel %vm944, %v976, %v668
        %v1009 = vsel %vm945, %v977, %v675
        %v1010 = vsel %vm946, %v978, %v682
        %v1011 = vsel %vm947, %v979, %v689
        %v1012 = vsel %vm948, %v980, %v696
        %v1013 = vsel %vm949, %v981, %v703
        %v1014 = vsel %vm950, %v982, %v710
        %v1015 = vsel %vm951, %v983, %v717
        %v1016 = vsel %vm952, %v984, %v724
        %v1017 = vsel %vm953, %v985, %v731
        %v1018 = vsel %vm954, %v986, %v738
        %v1019 = vsel %vm955, %v987, %v745
        %v1020 = vsel %vm956, %v988, %v752
        %v1021 = vsel %vm957, %v989, %v759
        %v1022 = vsel %vm958, %v990, %v766
        %v1023 = vsel %vm959, %v991, %v773
        %v1024 = vsel %vm960, %v992, %v780
        %v1025 = vsel %vm961, %v993, %v787
        %v1026 = vsel %vm962, %v994, %v794
        %v1027 = vsel %vm963, %v995, %v801
        %v1028 = vsel %vm964, %v996, %v808
        %v1029 = vsel %vm965, %v997, %v815
        %v1030 = vsel %vm966, %v998, %v822
        %v1031 = vsel %vm967, %v999, %v829
        %v1032 = vsel %vm968, %v1000, %v836
        %v1033 = vsel %vm969, %v1001, %v843
        %v1034 = vsel %vm970, %v1002, %v850
        %v1035 = vsel %vm971, %v1003, %v857
        %v1036 = vsel %vm972, %v1004, %v864
        %v1037 = vsel %vm973, %v1005, %v871
        %v1038 = vsel %vm974, %v1006, %v878
        %v1039 = vld [vmem:[#allocation2] sm:$0xff]
        %v1040 = vld [vmem:[#allocation2 + $0x8] sm:$0xff]
        %v1041 = vld [vmem:[#allocation2 + $0x10] sm:$0xff]
        %v1042 = vld [vmem:[#allocation2 + $0x18] sm:$0xff]
        %v1043 = vld [vmem:[#allocation2 + $0x20] sm:$0xff]
        %v1044 = vld [vmem:[#allocation2 + $0x28] sm:$0xff]
        %v1045 = vld [vmem:[#allocation2 + $0x30] sm:$0xff]
        %v1046 = vld [vmem:[#allocation2 + $0x38] sm:$0xff]
        %v1047 = vld [vmem:[#allocation2 + $0x40] sm:$0xff]
        %v1048 = vld [vmem:[#allocation2 + $0x48] sm:$0xff]
        %v1049 = vld [vmem:[#allocation2 + $0x50] sm:$0xff]
        %v1050 = vld [vmem:[#allocation2 + $0x58] sm:$0xff]
        %v1051 = vld [vmem:[#allocation2 + $0x60] sm:$0xff]
        %v1052 = vld [vmem:[#allocation2 + $0x68] sm:$0xff]
        %v1053 = vld [vmem:[#allocation2 + $0x70] sm:$0xff]
        %v1054 = vld [vmem:[#allocation2 + $0x78] sm:$0xff]
        %v1055 = vld [vmem:[#allocation2 + $0x80] sm:$0xff]
        %v1056 = vld [vmem:[#allocation2 + $0x88] sm:$0xff]
        %v1057 = vld [vmem:[#allocation2 + $0x90] sm:$0xff]
        %v1058 = vld [vmem:[#allocation2 + $0x98] sm:$0xff]
        %v1059 = vld [vmem:[#allocation2 + $0xa0] sm:$0xff]
        %v1060 = vld [vmem:[#allocation2 + $0xa8] sm:$0xff]
        %v1061 = vld [vmem:[#allocation2 + $0xb0] sm:$0xff]
        %v1062 = vld [vmem:[#allocation2 + $0xb8] sm:$0xff]
        %v1063 = vld [vmem:[#allocation2 + $0xc0] sm:$0xff]
        %v1064 = vld [vmem:[#allocation2 + $0xc8] sm:$0xff]
        %v1065 = vld [vmem:[#allocation2 + $0xd0] sm:$0xff]
        %v1066 = vld [vmem:[#allocation2 + $0xd8] sm:$0xff]
        %v1067 = vld [vmem:[#allocation2 + $0xe0] sm:$0xff]
        %v1068 = vld [vmem:[#allocation2 + $0xe8] sm:$0xff]
        %v1069 = vld [vmem:[#allocation2 + $0xf0] sm:$0xff]
        %v1070 = vld [vmem:[#allocation2 + $0xf8] sm:$0xff]
        %vm1071 = vcmp.ge.s32.totalorder %v1007, 1
        %vm1072 = vcmp.ge.s32.totalorder %v1008, 1
        %vm1073 = vcmp.ge.s32.totalorder %v1009, 1
        %vm1074 = vcmp.ge.s32.totalorder %v1010, 1
        %vm1075 = vcmp.ge.s32.totalorder %v1011, 1
        %vm1076 = vcmp.ge.s32.totalorder %v1012, 1
        %vm1077 = vcmp.ge.s32.totalorder %v1013, 1
        %vm1078 = vcmp.ge.s32.totalorder %v1014, 1
        %vm1079 = vcmp.ge.s32.totalorder %v1015, 1
        %vm1080 = vcmp.ge.s32.totalorder %v1016, 1
        %vm1081 = vcmp.ge.s32.totalorder %v1017, 1
        %vm1082 = vcmp.ge.s32.totalorder %v1018, 1
        %vm1083 = vcmp.ge.s32.totalorder %v1019, 1
        %vm1084 = vcmp.ge.s32.totalorder %v1020, 1
        %vm1085 = vcmp.ge.s32.totalorder %v1021, 1
        %vm1086 = vcmp.ge.s32.totalorder %v1022, 1
        %vm1087 = vcmp.ge.s32.totalorder %v1023, 1
        %vm1088 = vcmp.ge.s32.totalorder %v1024, 1
        %vm1089 = vcmp.ge.s32.totalorder %v1025, 1
        %vm1090 = vcmp.ge.s32.totalorder %v1026, 1
        %vm1091 = vcmp.ge.s32.totalorder %v1027, 1
        %vm1092 = vcmp.ge.s32.totalorder %v1028, 1
        %vm1093 = vcmp.ge.s32.totalorder %v1029, 1
        %vm1094 = vcmp.ge.s32.totalorder %v1030, 1
        %vm1095 = vcmp.ge.s32.totalorder %v1031, 1
        %vm1096 = vcmp.ge.s32.totalorder %v1032, 1
        %vm1097 = vcmp.ge.s32.totalorder %v1033, 1
        %vm1098 = vcmp.ge.s32.totalorder %v1034, 1
        %vm1099 = vcmp.ge.s32.totalorder %v1035, 1
        %vm1100 = vcmp.ge.s32.totalorder %v1036, 1
        %vm1101 = vcmp.ge.s32.totalorder %v1037, 1
        %vm1102 = vcmp.ge.s32.totalorder %v1038, 1
        %vm1103 = vcmp.lt.s32.totalorder %v1007, 17
        %vm1104 = vcmp.lt.s32.totalorder %v1008, 17
        %vm1105 = vcmp.lt.s32.totalorder %v1009, 17
        %vm1106 = vcmp.lt.s32.totalorder %v1010, 17
        %vm1107 = vcmp.lt.s32.totalorder %v1011, 17
        %vm1108 = vcmp.lt.s32.totalorder %v1012, 17
        %vm1109 = vcmp.lt.s32.totalorder %v1013, 17
        %vm1110 = vcmp.lt.s32.totalorder %v1014, 17
        %vm1111 = vcmp.lt.s32.totalorder %v1015, 17
        %vm1112 = vcmp.lt.s32.totalorder %v1016, 17
        %vm1113 = vcmp.lt.s32.totalorder %v1017, 17
        %vm1114 = vcmp.lt.s32.totalorder %v1018, 17
        %vm1115 = vcmp.lt.s32.totalorder %v1019, 17
        %vm1116 = vcmp.lt.s32.totalorder %v1020, 17
        %vm1117 = vcmp.lt.s32.totalorder %v1021, 17
        %vm1118 = vcmp.lt.s32.totalorder %v1022, 17
        %vm1119 = vcmp.lt.s32.totalorder %v1023, 17
        %vm1120 = vcmp.lt.s32.totalorder %v1024, 17
        %vm1121 = vcmp.lt.s32.totalorder %v1025, 17
        %vm1122 = vcmp.lt.s32.totalorder %v1026, 17
        %vm1123 = vcmp.lt.s32.totalorder %v1027, 17
        %vm1124 = vcmp.lt.s32.totalorder %v1028, 17
        %vm1125 = vcmp.lt.s32.totalorder %v1029, 17
        %vm1126 = vcmp.lt.s32.totalorder %v1030, 17
        %vm1127 = vcmp.lt.s32.totalorder %v1031, 17
        %vm1128 = vcmp.lt.s32.totalorder %v1032, 17
        %vm1129 = vcmp.lt.s32.totalorder %v1033, 17
        %vm1130 = vcmp.lt.s32.totalorder %v1034, 17
        %vm1131 = vcmp.lt.s32.totalorder %v1035, 17
        %vm1132 = vcmp.lt.s32.totalorder %v1036, 17
        %vm1133 = vcmp.lt.s32.totalorder %v1037, 17
        %vm1134 = vcmp.lt.s32.totalorder %v1038, 17
        %vm1135 = vmand %vm1071, %vm1103
        %vm1136 = vmand %vm1072, %vm1104
        %vm1137 = vmand %vm1073, %vm1105
        %vm1138 = vmand %vm1074, %vm1106
        %vm1139 = vmand %vm1075, %vm1107
        %vm1140 = vmand %vm1076, %vm1108
        %vm1141 = vmand %vm1077, %vm1109
        %vm1142 = vmand %vm1078, %vm1110
        %vm1143 = vmand %vm1079, %vm1111
        %vm1144 = vmand %vm1080, %vm1112
        %vm1145 = vmand %vm1081, %vm1113
        %vm1146 = vmand %vm1082, %vm1114
        %vm1147 = vmand %vm1083, %vm1115
        %vm1148 = vmand %vm1084, %vm1116
        %vm1149 = vmand %vm1085, %vm1117
        %vm1150 = vmand %vm1086, %vm1118
        %vm1151 = vmand %vm1087, %vm1119
        %vm1152 = vmand %vm1088, %vm1120
        %vm1153 = vmand %vm1089, %vm1121
        %vm1154 = vmand %vm1090, %vm1122
        %vm1155 = vmand %vm1091, %vm1123
        %vm1156 = vmand %vm1092, %vm1124
        %vm1157 = vmand %vm1093, %vm1125
        %vm1158 = vmand %vm1094, %vm1126
        %vm1159 = vmand %vm1095, %vm1127
        %vm1160 = vmand %vm1096, %vm1128
        %vm1161 = vmand %vm1097, %vm1129
        %vm1162 = vmand %vm1098, %vm1130
        %vm1163 = vmand %vm1099, %vm1131
        %vm1164 = vmand %vm1100, %vm1132
        %vm1165 = vmand %vm1101, %vm1133
        %vm1166 = vmand %vm1102, %vm1134
        %v1167 = vsel %vm1135, 1, 0
        %v1168 = vsel %vm1136, 1, 0
        %v1169 = vsel %vm1137, 1, 0
        %v1170 = vsel %vm1138, 1, 0
        %v1171 = vsel %vm1139, 1, 0
        %v1172 = vsel %vm1140, 1, 0
        %v1173 = vsel %vm1141, 1, 0
        %v1174 = vsel %vm1142, 1, 0
        %v1175 = vsel %vm1143, 1, 0
        %v1176 = vsel %vm1144, 1, 0
        %v1177 = vsel %vm1145, 1, 0
        %v1178 = vsel %vm1146, 1, 0
        %v1179 = vsel %vm1147, 1, 0
        %v1180 = vsel %vm1148, 1, 0
        %v1181 = vsel %vm1149, 1, 0
        %v1182 = vsel %vm1150, 1, 0
        %v1183 = vsel %vm1151, 1, 0
        %v1184 = vsel %vm1152, 1, 0
        %v1185 = vsel %vm1153, 1, 0
        %v1186 = vsel %vm1154, 1, 0
        %v1187 = vsel %vm1155, 1, 0
        %v1188 = vsel %vm1156, 1, 0
        %v1189 = vsel %vm1157, 1, 0
        %v1190 = vsel %vm1158, 1, 0
        %v1191 = vsel %vm1159, 1, 0
        %v1192 = vsel %vm1160, 1, 0
        %v1193 = vsel %vm1161, 1, 0
        %v1194 = vsel %vm1162, 1, 0
        %v1195 = vsel %vm1163, 1, 0
        %v1196 = vsel %vm1164, 1, 0
        %v1197 = vsel %vm1165, 1, 0
        %v1198 = vsel %vm1166, 1, 0
        %vm1199 = vcmp.eq.s32.totalorder %v1167, 1
        %vm1200 = vcmp.eq.s32.totalorder %v1168, 1
        %vm1201 = vcmp.eq.s32.totalorder %v1169, 1
        %vm1202 = vcmp.eq.s32.totalorder %v1170, 1
        %vm1203 = vcmp.eq.s32.totalorder %v1171, 1
        %vm1204 = vcmp.eq.s32.totalorder %v1172, 1
        %vm1205 = vcmp.eq.s32.totalorder %v1173, 1
        %vm1206 = vcmp.eq.s32.totalorder %v1174, 1
        %vm1207 = vcmp.eq.s32.totalorder %v1175, 1
        %vm1208 = vcmp.eq.s32.totalorder %v1176, 1
        %vm1209 = vcmp.eq.s32.totalorder %v1177, 1
        %vm1210 = vcmp.eq.s32.totalorder %v1178, 1
        %vm1211 = vcmp.eq.s32.totalorder %v1179, 1
        %vm1212 = vcmp.eq.s32.totalorder %v1180, 1
        %vm1213 = vcmp.eq.s32.totalorder %v1181, 1
        %vm1214 = vcmp.eq.s32.totalorder %v1182, 1
        %vm1215 = vcmp.eq.s32.totalorder %v1183, 1
        %vm1216 = vcmp.eq.s32.totalorder %v1184, 1
        %vm1217 = vcmp.eq.s32.totalorder %v1185, 1
        %vm1218 = vcmp.eq.s32.totalorder %v1186, 1
        %vm1219 = vcmp.eq.s32.totalorder %v1187, 1
        %vm1220 = vcmp.eq.s32.totalorder %v1188, 1
        %vm1221 = vcmp.eq.s32.totalorder %v1189, 1
        %vm1222 = vcmp.eq.s32.totalorder %v1190, 1
        %vm1223 = vcmp.eq.s32.totalorder %v1191, 1
        %vm1224 = vcmp.eq.s32.totalorder %v1192, 1
        %vm1225 = vcmp.eq.s32.totalorder %v1193, 1
        %vm1226 = vcmp.eq.s32.totalorder %v1194, 1
        %vm1227 = vcmp.eq.s32.totalorder %v1195, 1
        %vm1228 = vcmp.eq.s32.totalorder %v1196, 1
        %vm1229 = vcmp.eq.s32.totalorder %v1197, 1
        %vm1230 = vcmp.eq.s32.totalorder %v1198, 1
        %v1231 = vsel %vm1199, %v1039, 0.0
        %v1232 = vsel %vm1200, %v1040, 0.0
        %v1233 = vsel %vm1201, %v1041, 0.0
        %v1234 = vsel %vm1202, %v1042, 0.0
        %v1235 = vsel %vm1203, %v1043, 0.0
        %v1236 = vsel %vm1204, %v1044, 0.0
        %v1237 = vsel %vm1205, %v1045, 0.0
        %v1238 = vsel %vm1206, %v1046, 0.0
        %v1239 = vsel %vm1207, %v1047, 0.0
        %v1240 = vsel %vm1208, %v1048, 0.0
        %v1241 = vsel %vm1209, %v1049, 0.0
        %v1242 = vsel %vm1210, %v1050, 0.0
        %v1243 = vsel %vm1211, %v1051, 0.0
        %v1244 = vsel %vm1212, %v1052, 0.0
        %v1245 = vsel %vm1213, %v1053, 0.0
        %v1246 = vsel %vm1214, %v1054, 0.0
        %v1247 = vsel %vm1215, %v1055, 0.0
        %v1248 = vsel %vm1216, %v1056, 0.0
        %v1249 = vsel %vm1217, %v1057, 0.0
        %v1250 = vsel %vm1218, %v1058, 0.0
        %v1251 = vsel %vm1219, %v1059, 0.0
        %v1252 = vsel %vm1220, %v1060, 0.0
        %v1253 = vsel %vm1221, %v1061, 0.0
        %v1254 = vsel %vm1222, %v1062, 0.0
        %v1255 = vsel %vm1223, %v1063, 0.0
        %v1256 = vsel %vm1224, %v1064, 0.0
        %v1257 = vsel %vm1225, %v1065, 0.0
        %v1258 = vsel %vm1226, %v1066, 0.0
        %v1259 = vsel %vm1227, %v1067, 0.0
        %v1260 = vsel %vm1228, %v1068, 0.0
        %v1261 = vsel %vm1229, %v1069, 0.0
        %v1262 = vsel %vm1230, %v1070, 0.0
        %1263 = vst.msk [vmem:[#allocation6] sm:$0xff] %vm551, %v1231
        %1264 = vst.msk [vmem:[#allocation6 + $0x8] sm:$0xff] %vm551, %v1232
        %1265 = vst.msk [vmem:[#allocation6 + $0x10] sm:$0xff] %vm551, %v1233
        %1266 = vst.msk [vmem:[#allocation6 + $0x18] sm:$0xff] %vm551, %v1234
        %1267 = vst.msk [vmem:[#allocation6 + $0x20] sm:$0xff] %vm551, %v1235
        %1268 = vst.msk [vmem:[#allocation6 + $0x28] sm:$0xff] %vm551, %v1236
        %1269 = vst.msk [vmem:[#allocation6 + $0x30] sm:$0xff] %vm551, %v1237
        %1270 = vst.msk [vmem:[#allocation6 + $0x38] sm:$0xff] %vm551, %v1238
        %1271 = vst.msk [vmem:[#allocation6 + $0x40] sm:$0xff] %vm551, %v1239
        %1272 = vst.msk [vmem:[#allocation6 + $0x48] sm:$0xff] %vm551, %v1240
        %1273 = vst.msk [vmem:[#allocation6 + $0x50] sm:$0xff] %vm551, %v1241
        %1274 = vst.msk [vmem:[#allocation6 + $0x58] sm:$0xff] %vm551, %v1242
        %1275 = vst.msk [vmem:[#allocation6 + $0x60] sm:$0xff] %vm551, %v1243
        %1276 = vst.msk [vmem:[#allocation6 + $0x68] sm:$0xff] %vm551, %v1244
        %1277 = vst.msk [vmem:[#allocation6 + $0x70] sm:$0xff] %vm551, %v1245
        %1278 = vst.msk [vmem:[#allocation6 + $0x78] sm:$0xff] %vm551, %v1246
        %1279 = vst.msk [vmem:[#allocation6 + $0x80] sm:$0xff] %vm551, %v1247
        %1280 = vst.msk [vmem:[#allocation6 + $0x88] sm:$0xff] %vm551, %v1248
        %1281 = vst.msk [vmem:[#allocation6 + $0x90] sm:$0xff] %vm551, %v1249
        %1282 = vst.msk [vmem:[#allocation6 + $0x98] sm:$0xff] %vm551, %v1250
        %1283 = vst.msk [vmem:[#allocation6 + $0xa0] sm:$0xff] %vm551, %v1251
        %1284 = vst.msk [vmem:[#allocation6 + $0xa8] sm:$0xff] %vm551, %v1252
        %1285 = vst.msk [vmem:[#allocation6 + $0xb0] sm:$0xff] %vm551, %v1253
        %1286 = vst.msk [vmem:[#allocation6 + $0xb8] sm:$0xff] %vm551, %v1254
        %1287 = vst.msk [vmem:[#allocation6 + $0xc0] sm:$0xff] %vm551, %v1255
        %1288 = vst.msk [vmem:[#allocation6 + $0xc8] sm:$0xff] %vm551, %v1256
        %1289 = vst.msk [vmem:[#allocation6 + $0xd0] sm:$0xff] %vm551, %v1257
        %1290 = vst.msk [vmem:[#allocation6 + $0xd8] sm:$0xff] %vm551, %v1258
        %1291 = vst.msk [vmem:[#allocation6 + $0xe0] sm:$0xff] %vm551, %v1259
        %1292 = vst.msk [vmem:[#allocation6 + $0xe8] sm:$0xff] %vm551, %v1260
        %1293 = vst.msk [vmem:[#allocation6 + $0xf0] sm:$0xff] %vm551, %v1261
        %1294 = vst.msk [vmem:[#allocation6 + $0xf8] sm:$0xff] %vm551, %v1262
        %v1295 = vld [vmem:[#allocation2 + $0x1] sm:$0xff]
        %v1296 = vld [vmem:[#allocation2 + $0x9] sm:$0xff]
        %v1297 = vld [vmem:[#allocation2 + $0x11] sm:$0xff]
        %v1298 = vld [vmem:[#allocation2 + $0x19] sm:$0xff]
        %v1299 = vld [vmem:[#allocation2 + $0x21] sm:$0xff]
        %v1300 = vld [vmem:[#allocation2 + $0x29] sm:$0xff]
        %v1301 = vld [vmem:[#allocation2 + $0x31] sm:$0xff]
        %v1302 = vld [vmem:[#allocation2 + $0x39] sm:$0xff]
        %v1303 = vld [vmem:[#allocation2 + $0x41] sm:$0xff]
        %v1304 = vld [vmem:[#allocation2 + $0x49] sm:$0xff]
        %v1305 = vld [vmem:[#allocation2 + $0x51] sm:$0xff]
        %v1306 = vld [vmem:[#allocation2 + $0x59] sm:$0xff]
        %v1307 = vld [vmem:[#allocation2 + $0x61] sm:$0xff]
        %v1308 = vld [vmem:[#allocation2 + $0x69] sm:$0xff]
        %v1309 = vld [vmem:[#allocation2 + $0x71] sm:$0xff]
        %v1310 = vld [vmem:[#allocation2 + $0x79] sm:$0xff]
        %v1311 = vld [vmem:[#allocation2 + $0x81] sm:$0xff]
        %v1312 = vld [vmem:[#allocation2 + $0x89] sm:$0xff]
        %v1313 = vld [vmem:[#allocation2 + $0x91] sm:$0xff]
        %v1314 = vld [vmem:[#allocation2 + $0x99] sm:$0xff]
        %v1315 = vld [vmem:[#allocation2 + $0xa1] sm:$0xff]
        %v1316 = vld [vmem:[#allocation2 + $0xa9] sm:$0xff]
        %v1317 = vld [vmem:[#allocation2 + $0xb1] sm:$0xff]
        %v1318 = vld [vmem:[#allocation2 + $0xb9] sm:$0xff]
        %v1319 = vld [vmem:[#allocation2 + $0xc1] sm:$0xff]
        %v1320 = vld [vmem:[#allocation2 + $0xc9] sm:$0xff]
        %v1321 = vld [vmem:[#allocation2 + $0xd1] sm:$0xff]
        %v1322 = vld [vmem:[#allocation2 + $0xd9] sm:$0xff]
        %v1323 = vld [vmem:[#allocation2 + $0xe1] sm:$0xff]
        %v1324 = vld [vmem:[#allocation2 + $0xe9] sm:$0xff]
        %v1325 = vld [vmem:[#allocation2 + $0xf1] sm:$0xff]
        %v1326 = vld [vmem:[#allocation2 + $0xf9] sm:$0xff]
        %1359 = vrot.lane.b32.xlu0 %v1295, 3
        %v1360 = vpop.permute.xlu0 %1359
        %1361 = vrot.lane.b32.xlu0 %v1296, 3
        %v1362 = vpop.permute.xlu0 %1361
        %1363 = vrot.lane.b32.xlu0 %v1297, 3
        %v1364 = vpop.permute.xlu0 %1363
        %1365 = vrot.lane.b32.xlu0 %v1298, 3
        %v1366 = vpop.permute.xlu0 %1365
        %1367 = vrot.lane.b32.xlu0 %v1299, 3
        %v1368 = vpop.permute.xlu0 %1367
        %1369 = vrot.lane.b32.xlu0 %v1300, 3
        %v1370 = vpop.permute.xlu0 %1369
        %1371 = vrot.lane.b32.xlu0 %v1301, 3
        %v1372 = vpop.permute.xlu0 %1371
        %1373 = vrot.lane.b32.xlu0 %v1302, 3
        %v1374 = vpop.permute.xlu0 %1373
        %1375 = vrot.lane.b32.xlu0 %v1303, 3
        %v1376 = vpop.permute.xlu0 %1375
        %1377 = vrot.lane.b32.xlu0 %v1304, 3
        %v1378 = vpop.permute.xlu0 %1377
        %1379 = vrot.lane.b32.xlu0 %v1305, 3
        %v1380 = vpop.permute.xlu0 %1379
        %1381 = vrot.lane.b32.xlu0 %v1306, 3
        %v1382 = vpop.permute.xlu0 %1381
        %1383 = vrot.lane.b32.xlu0 %v1307, 3
        %v1384 = vpop.permute.xlu0 %1383
        %1385 = vrot.lane.b32.xlu0 %v1308, 3
        %v1386 = vpop.permute.xlu0 %1385
        %1387 = vrot.lane.b32.xlu0 %v1309, 3
        %v1388 = vpop.permute.xlu0 %1387
        %1389 = vrot.lane.b32.xlu0 %v1310, 3
        %v1390 = vpop.permute.xlu0 %1389
        %1391 = vrot.lane.b32.xlu0 %v1311, 3
        %v1392 = vpop.permute.xlu0 %1391
        %1393 = vrot.lane.b32.xlu0 %v1312, 3
        %v1394 = vpop.permute.xlu0 %1393
        %1395 = vrot.lane.b32.xlu0 %v1313, 3
        %v1396 = vpop.permute.xlu0 %1395
        %1397 = vrot.lane.b32.xlu0 %v1314, 3
        %v1398 = vpop.permute.xlu0 %1397
        %1399 = vrot.lane.b32.xlu0 %v1315, 3
        %v1400 = vpop.permute.xlu0 %1399
        %1401 = vrot.lane.b32.xlu0 %v1316, 3
        %v1402 = vpop.permute.xlu0 %1401
        %1403 = vrot.lane.b32.xlu0 %v1317, 3
        %v1404 = vpop.permute.xlu0 %1403
        %1405 = vrot.lane.b32.xlu0 %v1318, 3
        %v1406 = vpop.permute.xlu0 %1405
        %1407 = vrot.lane.b32.xlu0 %v1319, 3
        %v1408 = vpop.permute.xlu0 %1407
        %1409 = vrot.lane.b32.xlu0 %v1320, 3
        %v1410 = vpop.permute.xlu0 %1409
        %1411 = vrot.lane.b32.xlu0 %v1321, 3
        %v1412 = vpop.permute.xlu0 %1411
        %1413 = vrot.lane.b32.xlu0 %v1322, 3
        %v1414 = vpop.permute.xlu0 %1413
        %1415 = vrot.lane.b32.xlu0 %v1323, 3
        %v1416 = vpop.permute.xlu0 %1415
        %1417 = vrot.lane.b32.xlu0 %v1324, 3
        %v1418 = vpop.permute.xlu0 %1417
        %1419 = vrot.lane.b32.xlu0 %v1325, 3
        %v1420 = vpop.permute.xlu0 %1419
        %1421 = vrot.lane.b32.xlu0 %v1326, 3
        %v1422 = vpop.permute.xlu0 %1421
        %vm1455 = vcmask 48152
        %1456 = vst.msk [vmem:[#allocation6] sm:$0xff] %vm1455, %v1360
        %1457 = vst.msk [vmem:[#allocation6 + $0x8] sm:$0xff] %vm1455, %v1362
        %1458 = vst.msk [vmem:[#allocation6 + $0x10] sm:$0xff] %vm1455, %v1364
        %1459 = vst.msk [vmem:[#allocation6 + $0x18] sm:$0xff] %vm1455, %v1366
        %1460 = vst.msk [vmem:[#allocation6 + $0x20] sm:$0xff] %vm1455, %v1368
        %1461 = vst.msk [vmem:[#allocation6 + $0x28] sm:$0xff] %vm1455, %v1370
        %1462 = vst.msk [vmem:[#allocation6 + $0x30] sm:$0xff] %vm1455, %v1372
        %1463 = vst.msk [vmem:[#allocation6 + $0x38] sm:$0xff] %vm1455, %v1374
        %1464 = vst.msk [vmem:[#allocation6 + $0x40] sm:$0xff] %vm1455, %v1376
        %1465 = vst.msk [vmem:[#allocation6 + $0x48] sm:$0xff] %vm1455, %v1378
        %1466 = vst.msk [vmem:[#allocation6 + $0x50] sm:$0xff] %vm1455, %v1380
        %1467 = vst.msk [vmem:[#allocation6 + $0x58] sm:$0xff] %vm1455, %v1382
        %1468 = vst.msk [vmem:[#allocation6 + $0x60] sm:$0xff] %vm1455, %v1384
        %1469 = vst.msk [vmem:[#allocation6 + $0x68] sm:$0xff] %vm1455, %v1386
        %1470 = vst.msk [vmem:[#allocation6 + $0x70] sm:$0xff] %vm1455, %v1388
        %1471 = vst.msk [vmem:[#allocation6 + $0x78] sm:$0xff] %vm1455, %v1390
        %1472 = vst.msk [vmem:[#allocation6 + $0x80] sm:$0xff] %vm1455, %v1392
        %1473 = vst.msk [vmem:[#allocation6 + $0x88] sm:$0xff] %vm1455, %v1394
        %1474 = vst.msk [vmem:[#allocation6 + $0x90] sm:$0xff] %vm1455, %v1396
        %1475 = vst.msk [vmem:[#allocation6 + $0x98] sm:$0xff] %vm1455, %v1398
        %1476 = vst.msk [vmem:[#allocation6 + $0xa0] sm:$0xff] %vm1455, %v1400
        %1477 = vst.msk [vmem:[#allocation6 + $0xa8] sm:$0xff] %vm1455, %v1402
        %1478 = vst.msk [vmem:[#allocation6 + $0xb0] sm:$0xff] %vm1455, %v1404
        %1479 = vst.msk [vmem:[#allocation6 + $0xb8] sm:$0xff] %vm1455, %v1406
        %1480 = vst.msk [vmem:[#allocation6 + $0xc0] sm:$0xff] %vm1455, %v1408
        %1481 = vst.msk [vmem:[#allocation6 + $0xc8] sm:$0xff] %vm1455, %v1410
        %1482 = vst.msk [vmem:[#allocation6 + $0xd0] sm:$0xff] %vm1455, %v1412
        %1483 = vst.msk [vmem:[#allocation6 + $0xd8] sm:$0xff] %vm1455, %v1414
        %1484 = vst.msk [vmem:[#allocation6 + $0xe0] sm:$0xff] %vm1455, %v1416
        %1485 = vst.msk [vmem:[#allocation6 + $0xe8] sm:$0xff] %vm1455, %v1418
        %1486 = vst.msk [vmem:[#allocation6 + $0xf0] sm:$0xff] %vm1455, %v1420
        %1487 = vst.msk [vmem:[#allocation6 + $0xf8] sm:$0xff] %vm1455, %v1422
        %v1488 = vld [vmem:[#allocation2 + $0x2] sm:$0xff]
        %v1489 = vld [vmem:[#allocation2 + $0xa] sm:$0xff]
        %v1490 = vld [vmem:[#allocation2 + $0x12] sm:$0xff]
        %v1491 = vld [vmem:[#allocation2 + $0x1a] sm:$0xff]
        %v1492 = vld [vmem:[#allocation2 + $0x22] sm:$0xff]
        %v1493 = vld [vmem:[#allocation2 + $0x2a] sm:$0xff]
        %v1494 = vld [vmem:[#allocation2 + $0x32] sm:$0xff]
        %v1495 = vld [vmem:[#allocation2 + $0x3a] sm:$0xff]
        %v1496 = vld [vmem:[#allocation2 + $0x42] sm:$0xff]
        %v1497 = vld [vmem:[#allocation2 + $0x4a] sm:$0xff]
        %v1498 = vld [vmem:[#allocation2 + $0x52] sm:$0xff]
        %v1499 = vld [vmem:[#allocation2 + $0x5a] sm:$0xff]
        %v1500 = vld [vmem:[#allocation2 + $0x62] sm:$0xff]
        %v1501 = vld [vmem:[#allocation2 + $0x6a] sm:$0xff]
        %v1502 = vld [vmem:[#allocation2 + $0x72] sm:$0xff]
        %v1503 = vld [vmem:[#allocation2 + $0x7a] sm:$0xff]
        %v1504 = vld [vmem:[#allocation2 + $0x82] sm:$0xff]
        %v1505 = vld [vmem:[#allocation2 + $0x8a] sm:$0xff]
        %v1506 = vld [vmem:[#allocation2 + $0x92] sm:$0xff]
        %v1507 = vld [vmem:[#allocation2 + $0x9a] sm:$0xff]
        %v1508 = vld [vmem:[#allocation2 + $0xa2] sm:$0xff]
        %v1509 = vld [vmem:[#allocation2 + $0xaa] sm:$0xff]
        %v1510 = vld [vmem:[#allocation2 + $0xb2] sm:$0xff]
        %v1511 = vld [vmem:[#allocation2 + $0xba] sm:$0xff]
        %v1512 = vld [vmem:[#allocation2 + $0xc2] sm:$0xff]
        %v1513 = vld [vmem:[#allocation2 + $0xca] sm:$0xff]
        %v1514 = vld [vmem:[#allocation2 + $0xd2] sm:$0xff]
        %v1515 = vld [vmem:[#allocation2 + $0xda] sm:$0xff]
        %v1516 = vld [vmem:[#allocation2 + $0xe2] sm:$0xff]
        %v1517 = vld [vmem:[#allocation2 + $0xea] sm:$0xff]
        %v1518 = vld [vmem:[#allocation2 + $0xf2] sm:$0xff]
        %v1519 = vld [vmem:[#allocation2 + $0xfa] sm:$0xff]
        %vm1520 = vcmp.ge.s32.totalorder %v1007, 4294967295
        %vm1521 = vcmp.ge.s32.totalorder %v1008, 4294967295
        %vm1522 = vcmp.ge.s32.totalorder %v1009, 4294967295
        %vm1523 = vcmp.ge.s32.totalorder %v1010, 4294967295
        %vm1524 = vcmp.ge.s32.totalorder %v1011, 4294967295
        %vm1525 = vcmp.ge.s32.totalorder %v1012, 4294967295
        %vm1526 = vcmp.ge.s32.totalorder %v1013, 4294967295
        %vm1527 = vcmp.ge.s32.totalorder %v1014, 4294967295
        %vm1528 = vcmp.ge.s32.totalorder %v1015, 4294967295
        %vm1529 = vcmp.ge.s32.totalorder %v1016, 4294967295
        %vm1530 = vcmp.ge.s32.totalorder %v1017, 4294967295
        %vm1531 = vcmp.ge.s32.totalorder %v1018, 4294967295
        %vm1532 = vcmp.ge.s32.totalorder %v1019, 4294967295
        %vm1533 = vcmp.ge.s32.totalorder %v1020, 4294967295
        %vm1534 = vcmp.ge.s32.totalorder %v1021, 4294967295
        %vm1535 = vcmp.ge.s32.totalorder %v1022, 4294967295
        %vm1536 = vcmp.ge.s32.totalorder %v1023, 4294967295
        %vm1537 = vcmp.ge.s32.totalorder %v1024, 4294967295
        %vm1538 = vcmp.ge.s32.totalorder %v1025, 4294967295
        %vm1539 = vcmp.ge.s32.totalorder %v1026, 4294967295
        %vm1540 = vcmp.ge.s32.totalorder %v1027, 4294967295
        %vm1541 = vcmp.ge.s32.totalorder %v1028, 4294967295
        %vm1542 = vcmp.ge.s32.totalorder %v1029, 4294967295
        %vm1543 = vcmp.ge.s32.totalorder %v1030, 4294967295
        %vm1544 = vcmp.ge.s32.totalorder %v1031, 4294967295
        %vm1545 = vcmp.ge.s32.totalorder %v1032, 4294967295
        %vm1546 = vcmp.ge.s32.totalorder %v1033, 4294967295
        %vm1547 = vcmp.ge.s32.totalorder %v1034, 4294967295
        %vm1548 = vcmp.ge.s32.totalorder %v1035, 4294967295
        %vm1549 = vcmp.ge.s32.totalorder %v1036, 4294967295
        %vm1550 = vcmp.ge.s32.totalorder %v1037, 4294967295
        %vm1551 = vcmp.ge.s32.totalorder %v1038, 4294967295
        %vm1552 = vcmp.lt.s32.totalorder %v1007, 15
        %vm1553 = vcmp.lt.s32.totalorder %v1008, 15
        %vm1554 = vcmp.lt.s32.totalorder %v1009, 15
        %vm1555 = vcmp.lt.s32.totalorder %v1010, 15
        %vm1556 = vcmp.lt.s32.totalorder %v1011, 15
        %vm1557 = vcmp.lt.s32.totalorder %v1012, 15
        %vm1558 = vcmp.lt.s32.totalorder %v1013, 15
        %vm1559 = vcmp.lt.s32.totalorder %v1014, 15
        %vm1560 = vcmp.lt.s32.totalorder %v1015, 15
        %vm1561 = vcmp.lt.s32.totalorder %v1016, 15
        %vm1562 = vcmp.lt.s32.totalorder %v1017, 15
        %vm1563 = vcmp.lt.s32.totalorder %v1018, 15
        %vm1564 = vcmp.lt.s32.totalorder %v1019, 15
        %vm1565 = vcmp.lt.s32.totalorder %v1020, 15
        %vm1566 = vcmp.lt.s32.totalorder %v1021, 15
        %vm1567 = vcmp.lt.s32.totalorder %v1022, 15
        %vm1568 = vcmp.lt.s32.totalorder %v1023, 15
        %vm1569 = vcmp.lt.s32.totalorder %v1024, 15
        %vm1570 = vcmp.lt.s32.totalorder %v1025, 15
        %vm1571 = vcmp.lt.s32.totalorder %v1026, 15
        %vm1572 = vcmp.lt.s32.totalorder %v1027, 15
        %vm1573 = vcmp.lt.s32.totalorder %v1028, 15
        %vm1574 = vcmp.lt.s32.totalorder %v1029, 15
        %vm1575 = vcmp.lt.s32.totalorder %v1030, 15
        %vm1576 = vcmp.lt.s32.totalorder %v1031, 15
        %vm1577 = vcmp.lt.s32.totalorder %v1032, 15
        %vm1578 = vcmp.lt.s32.totalorder %v1033, 15
        %vm1579 = vcmp.lt.s32.totalorder %v1034, 15
        %vm1580 = vcmp.lt.s32.totalorder %v1035, 15
        %vm1581 = vcmp.lt.s32.totalorder %v1036, 15
        %vm1582 = vcmp.lt.s32.totalorder %v1037, 15
        %vm1583 = vcmp.lt.s32.totalorder %v1038, 15
        %vm1584 = vmand %vm1520, %vm1552
        %vm1585 = vmand %vm1521, %vm1553
        %vm1586 = vmand %vm1522, %vm1554
        %vm1587 = vmand %vm1523, %vm1555
        %vm1588 = vmand %vm1524, %vm1556
        %vm1589 = vmand %vm1525, %vm1557
        %vm1590 = vmand %vm1526, %vm1558
        %vm1591 = vmand %vm1527, %vm1559
        %vm1592 = vmand %vm1528, %vm1560
        %vm1593 = vmand %vm1529, %vm1561
        %vm1594 = vmand %vm1530, %vm1562
        %vm1595 = vmand %vm1531, %vm1563
        %vm1596 = vmand %vm1532, %vm1564
        %vm1597 = vmand %vm1533, %vm1565
        %vm1598 = vmand %vm1534, %vm1566
        %vm1599 = vmand %vm1535, %vm1567
        %vm1600 = vmand %vm1536, %vm1568
        %vm1601 = vmand %vm1537, %vm1569
        %vm1602 = vmand %vm1538, %vm1570
        %vm1603 = vmand %vm1539, %vm1571
        %vm1604 = vmand %vm1540, %vm1572
        %vm1605 = vmand %vm1541, %vm1573
        %vm1606 = vmand %vm1542, %vm1574
        %vm1607 = vmand %vm1543, %vm1575
        %vm1608 = vmand %vm1544, %vm1576
        %vm1609 = vmand %vm1545, %vm1577
        %vm1610 = vmand %vm1546, %vm1578
        %vm1611 = vmand %vm1547, %vm1579
        %vm1612 = vmand %vm1548, %vm1580
        %vm1613 = vmand %vm1549, %vm1581
        %vm1614 = vmand %vm1550, %vm1582
        %vm1615 = vmand %vm1551, %vm1583
        %v1616 = vsel %vm1584, 1, 0
        %v1617 = vsel %vm1585, 1, 0
        %v1618 = vsel %vm1586, 1, 0
        %v1619 = vsel %vm1587, 1, 0
        %v1620 = vsel %vm1588, 1, 0
        %v1621 = vsel %vm1589, 1, 0
        %v1622 = vsel %vm1590, 1, 0
        %v1623 = vsel %vm1591, 1, 0
        %v1624 = vsel %vm1592, 1, 0
        %v1625 = vsel %vm1593, 1, 0
        %v1626 = vsel %vm1594, 1, 0
        %v1627 = vsel %vm1595, 1, 0
        %v1628 = vsel %vm1596, 1, 0
        %v1629 = vsel %vm1597, 1, 0
        %v1630 = vsel %vm1598, 1, 0
        %v1631 = vsel %vm1599, 1, 0
        %v1632 = vsel %vm1600, 1, 0
        %v1633 = vsel %vm1601, 1, 0
        %v1634 = vsel %vm1602, 1, 0
        %v1635 = vsel %vm1603, 1, 0
        %v1636 = vsel %vm1604, 1, 0
        %v1637 = vsel %vm1605, 1, 0
        %v1638 = vsel %vm1606, 1, 0
        %v1639 = vsel %vm1607, 1, 0
        %v1640 = vsel %vm1608, 1, 0
        %v1641 = vsel %vm1609, 1, 0
        %v1642 = vsel %vm1610, 1, 0
        %v1643 = vsel %vm1611, 1, 0
        %v1644 = vsel %vm1612, 1, 0
        %v1645 = vsel %vm1613, 1, 0
        %v1646 = vsel %vm1614, 1, 0
        %v1647 = vsel %vm1615, 1, 0
        %vm1648 = vcmp.eq.s32.totalorder %v1616, 1
        %vm1649 = vcmp.eq.s32.totalorder %v1617, 1
        %vm1650 = vcmp.eq.s32.totalorder %v1618, 1
        %vm1651 = vcmp.eq.s32.totalorder %v1619, 1
        %vm1652 = vcmp.eq.s32.totalorder %v1620, 1
        %vm1653 = vcmp.eq.s32.totalorder %v1621, 1
        %vm1654 = vcmp.eq.s32.totalorder %v1622, 1
        %vm1655 = vcmp.eq.s32.totalorder %v1623, 1
        %vm1656 = vcmp.eq.s32.totalorder %v1624, 1
        %vm1657 = vcmp.eq.s32.totalorder %v1625, 1
        %vm1658 = vcmp.eq.s32.totalorder %v1626, 1
        %vm1659 = vcmp.eq.s32.totalorder %v1627, 1
        %vm1660 = vcmp.eq.s32.totalorder %v1628, 1
        %vm1661 = vcmp.eq.s32.totalorder %v1629, 1
        %vm1662 = vcmp.eq.s32.totalorder %v1630, 1
        %vm1663 = vcmp.eq.s32.totalorder %v1631, 1
        %vm1664 = vcmp.eq.s32.totalorder %v1632, 1
        %vm1665 = vcmp.eq.s32.totalorder %v1633, 1
        %vm1666 = vcmp.eq.s32.totalorder %v1634, 1
        %vm1667 = vcmp.eq.s32.totalorder %v1635, 1
        %vm1668 = vcmp.eq.s32.totalorder %v1636, 1
        %vm1669 = vcmp.eq.s32.totalorder %v1637, 1
        %vm1670 = vcmp.eq.s32.totalorder %v1638, 1
        %vm1671 = vcmp.eq.s32.totalorder %v1639, 1
        %vm1672 = vcmp.eq.s32.totalorder %v1640, 1
        %vm1673 = vcmp.eq.s32.totalorder %v1641, 1
        %vm1674 = vcmp.eq.s32.totalorder %v1642, 1
        %vm1675 = vcmp.eq.s32.totalorder %v1643, 1
        %vm1676 = vcmp.eq.s32.totalorder %v1644, 1
        %vm1677 = vcmp.eq.s32.totalorder %v1645, 1
        %vm1678 = vcmp.eq.s32.totalorder %v1646, 1
        %vm1679 = vcmp.eq.s32.totalorder %v1647, 1
        %v1680 = vsel %vm1648, %v1488, 0.0
        %v1681 = vsel %vm1649, %v1489, 0.0
        %v1682 = vsel %vm1650, %v1490, 0.0
        %v1683 = vsel %vm1651, %v1491, 0.0
        %v1684 = vsel %vm1652, %v1492, 0.0
        %v1685 = vsel %vm1653, %v1493, 0.0
        %v1686 = vsel %vm1654, %v1494, 0.0
        %v1687 = vsel %vm1655, %v1495, 0.0
        %v1688 = vsel %vm1656, %v1496, 0.0
        %v1689 = vsel %vm1657, %v1497, 0.0
        %v1690 = vsel %vm1658, %v1498, 0.0
        %v1691 = vsel %vm1659, %v1499, 0.0
        %v1692 = vsel %vm1660, %v1500, 0.0
        %v1693 = vsel %vm1661, %v1501, 0.0
        %v1694 = vsel %vm1662, %v1502, 0.0
        %v1695 = vsel %vm1663, %v1503, 0.0
        %v1696 = vsel %vm1664, %v1504, 0.0
        %v1697 = vsel %vm1665, %v1505, 0.0
        %v1698 = vsel %vm1666, %v1506, 0.0
        %v1699 = vsel %vm1667, %v1507, 0.0
        %v1700 = vsel %vm1668, %v1508, 0.0
        %v1701 = vsel %vm1669, %v1509, 0.0
        %v1702 = vsel %vm1670, %v1510, 0.0
        %v1703 = vsel %vm1671, %v1511, 0.0
        %v1704 = vsel %vm1672, %v1512, 0.0
        %v1705 = vsel %vm1673, %v1513, 0.0
        %v1706 = vsel %vm1674, %v1514, 0.0
        %v1707 = vsel %vm1675, %v1515, 0.0
        %v1708 = vsel %vm1676, %v1516, 0.0
        %v1709 = vsel %vm1677, %v1517, 0.0
        %v1710 = vsel %vm1678, %v1518, 0.0
        %v1711 = vsel %vm1679, %v1519, 0.0
        %1744 = vrot.lane.b32.xlu0 %v1680, 6
        %v1745 = vpop.permute.xlu0 %1744
        %1746 = vrot.lane.b32.xlu0 %v1681, 6
        %v1747 = vpop.permute.xlu0 %1746
        %1748 = vrot.lane.b32.xlu0 %v1682, 6
        %v1749 = vpop.permute.xlu0 %1748
        %1750 = vrot.lane.b32.xlu0 %v1683, 6
        %v1751 = vpop.permute.xlu0 %1750
        %1752 = vrot.lane.b32.xlu0 %v1684, 6
        %v1753 = vpop.permute.xlu0 %1752
        %1754 = vrot.lane.b32.xlu0 %v1685, 6
        %v1755 = vpop.permute.xlu0 %1754
        %1756 = vrot.lane.b32.xlu0 %v1686, 6
        %v1757 = vpop.permute.xlu0 %1756
        %1758 = vrot.lane.b32.xlu0 %v1687, 6
        %v1759 = vpop.permute.xlu0 %1758
        %1760 = vrot.lane.b32.xlu0 %v1688, 6
        %v1761 = vpop.permute.xlu0 %1760
        %1762 = vrot.lane.b32.xlu0 %v1689, 6
        %v1763 = vpop.permute.xlu0 %1762
        %1764 = vrot.lane.b32.xlu0 %v1690, 6
        %v1765 = vpop.permute.xlu0 %1764
        %1766 = vrot.lane.b32.xlu0 %v1691, 6
        %v1767 = vpop.permute.xlu0 %1766
        %1768 = vrot.lane.b32.xlu0 %v1692, 6
        %v1769 = vpop.permute.xlu0 %1768
        %1770 = vrot.lane.b32.xlu0 %v1693, 6
        %v1771 = vpop.permute.xlu0 %1770
        %1772 = vrot.lane.b32.xlu0 %v1694, 6
        %v1773 = vpop.permute.xlu0 %1772
        %1774 = vrot.lane.b32.xlu0 %v1695, 6
        %v1775 = vpop.permute.xlu0 %1774
        %1776 = vrot.lane.b32.xlu0 %v1696, 6
        %v1777 = vpop.permute.xlu0 %1776
        %1778 = vrot.lane.b32.xlu0 %v1697, 6
        %v1779 = vpop.permute.xlu0 %1778
        %1780 = vrot.lane.b32.xlu0 %v1698, 6
        %v1781 = vpop.permute.xlu0 %1780
        %1782 = vrot.lane.b32.xlu0 %v1699, 6
        %v1783 = vpop.permute.xlu0 %1782
        %1784 = vrot.lane.b32.xlu0 %v1700, 6
        %v1785 = vpop.permute.xlu0 %1784
        %1786 = vrot.lane.b32.xlu0 %v1701, 6
        %v1787 = vpop.permute.xlu0 %1786
        %1788 = vrot.lane.b32.xlu0 %v1702, 6
        %v1789 = vpop.permute.xlu0 %1788
        %1790 = vrot.lane.b32.xlu0 %v1703, 6
        %v1791 = vpop.permute.xlu0 %1790
        %1792 = vrot.lane.b32.xlu0 %v1704, 6
        %v1793 = vpop.permute.xlu0 %1792
        %1794 = vrot.lane.b32.xlu0 %v1705, 6
        %v1795 = vpop.permute.xlu0 %1794
        %1796 = vrot.lane.b32.xlu0 %v1706, 6
        %v1797 = vpop.permute.xlu0 %1796
        %1798 = vrot.lane.b32.xlu0 %v1707, 6
        %v1799 = vpop.permute.xlu0 %1798
        %1800 = vrot.lane.b32.xlu0 %v1708, 6
        %v1801 = vpop.permute.xlu0 %1800
        %1802 = vrot.lane.b32.xlu0 %v1709, 6
        %v1803 = vpop.permute.xlu0 %1802
        %1804 = vrot.lane.b32.xlu0 %v1710, 6
        %v1805 = vpop.permute.xlu0 %1804
        %1806 = vrot.lane.b32.xlu0 %v1711, 6
        %v1807 = vpop.permute.xlu0 %1806
        %vm1840 = vcmask 72752
        %1841 = vst.msk [vmem:[#allocation6] sm:$0xff] %vm1840, %v1745
        %1842 = vst.msk [vmem:[#allocation6 + $0x8] sm:$0xff] %vm1840, %v1747
        %1843 = vst.msk [vmem:[#allocation6 + $0x10] sm:$0xff] %vm1840, %v1749
        %1844 = vst.msk [vmem:[#allocation6 + $0x18] sm:$0xff] %vm1840, %v1751
        %1845 = vst.msk [vmem:[#allocation6 + $0x20] sm:$0xff] %vm1840, %v1753
        %1846 = vst.msk [vmem:[#allocation6 + $0x28] sm:$0xff] %vm1840, %v1755
        %1847 = vst.msk [vmem:[#allocation6 + $0x30] sm:$0xff] %vm1840, %v1757
        %1848 = vst.msk [vmem:[#allocation6 + $0x38] sm:$0xff] %vm1840, %v1759
        %1849 = vst.msk [vmem:[#allocation6 + $0x40] sm:$0xff] %vm1840, %v1761
        %1850 = vst.msk [vmem:[#allocation6 + $0x48] sm:$0xff] %vm1840, %v1763
        %1851 = vst.msk [vmem:[#allocation6 + $0x50] sm:$0xff] %vm1840, %v1765
        %1852 = vst.msk [vmem:[#allocation6 + $0x58] sm:$0xff] %vm1840, %v1767
        %1853 = vst.msk [vmem:[#allocation6 + $0x60] sm:$0xff] %vm1840, %v1769
        %1854 = vst.msk [vmem:[#allocation6 + $0x68] sm:$0xff] %vm1840, %v1771
        %1855 = vst.msk [vmem:[#allocation6 + $0x70] sm:$0xff] %vm1840, %v1773
        %1856 = vst.msk [vmem:[#allocation6 + $0x78] sm:$0xff] %vm1840, %v1775
        %1857 = vst.msk [vmem:[#allocation6 + $0x80] sm:$0xff] %vm1840, %v1777
        %1858 = vst.msk [vmem:[#allocation6 + $0x88] sm:$0xff] %vm1840, %v1779
        %1859 = vst.msk [vmem:[#allocation6 + $0x90] sm:$0xff] %vm1840, %v1781
        %1860 = vst.msk [vmem:[#allocation6 + $0x98] sm:$0xff] %vm1840, %v1783
        %1861 = vst.msk [vmem:[#allocation6 + $0xa0] sm:$0xff] %vm1840, %v1785
        %1862 = vst.msk [vmem:[#allocation6 + $0xa8] sm:$0xff] %vm1840, %v1787
        %1863 = vst.msk [vmem:[#allocation6 + $0xb0] sm:$0xff] %vm1840, %v1789
        %1864 = vst.msk [vmem:[#allocation6 + $0xb8] sm:$0xff] %vm1840, %v1791
        %1865 = vst.msk [vmem:[#allocation6 + $0xc0] sm:$0xff] %vm1840, %v1793
        %1866 = vst.msk [vmem:[#allocation6 + $0xc8] sm:$0xff] %vm1840, %v1795
        %1867 = vst.msk [vmem:[#allocation6 + $0xd0] sm:$0xff] %vm1840, %v1797
        %1868 = vst.msk [vmem:[#allocation6 + $0xd8] sm:$0xff] %vm1840, %v1799
        %1869 = vst.msk [vmem:[#allocation6 + $0xe0] sm:$0xff] %vm1840, %v1801
        %1870 = vst.msk [vmem:[#allocation6 + $0xe8] sm:$0xff] %vm1840, %v1803
        %1871 = vst.msk [vmem:[#allocation6 + $0xf0] sm:$0xff] %vm1840, %v1805
        %1872 = vst.msk [vmem:[#allocation6 + $0xf8] sm:$0xff] %vm1840, %v1807
        %v1873 = vld [vmem:[#allocation2 + $0x10] sm:$0xff]
        %v1874 = vld [vmem:[#allocation2 + $0x18] sm:$0xff]
        %v1875 = vld [vmem:[#allocation2 + $0x20] sm:$0xff]
        %v1876 = vld [vmem:[#allocation2 + $0x28] sm:$0xff]
        %v1877 = vld [vmem:[#allocation2 + $0x30] sm:$0xff]
        %v1878 = vld [vmem:[#allocation2 + $0x38] sm:$0xff]
        %v1879 = vld [vmem:[#allocation2 + $0x40] sm:$0xff]
        %v1880 = vld [vmem:[#allocation2 + $0x48] sm:$0xff]
        %v1881 = vld [vmem:[#allocation2 + $0x50] sm:$0xff]
        %v1882 = vld [vmem:[#allocation2 + $0x58] sm:$0xff]
        %v1883 = vld [vmem:[#allocation2 + $0x60] sm:$0xff]
        %v1884 = vld [vmem:[#allocation2 + $0x68] sm:$0xff]
        %v1885 = vld [vmem:[#allocation2 + $0x70] sm:$0xff]
        %v1886 = vld [vmem:[#allocation2 + $0x78] sm:$0xff]
        %v1887 = vld [vmem:[#allocation2 + $0x80] sm:$0xff]
        %v1888 = vld [vmem:[#allocation2 + $0x88] sm:$0xff]
        %v1889 = vld [vmem:[#allocation2 + $0x90] sm:$0xff]
        %v1890 = vld [vmem:[#allocation2 + $0x98] sm:$0xff]
        %v1891 = vld [vmem:[#allocation2 + $0xa0] sm:$0xff]
        %v1892 = vld [vmem:[#allocation2 + $0xa8] sm:$0xff]
        %v1893 = vld [vmem:[#allocation2 + $0xb0] sm:$0xff]
        %v1894 = vld [vmem:[#allocation2 + $0xb8] sm:$0xff]
        %v1895 = vld [vmem:[#allocation2 + $0xc0] sm:$0xff]
        %v1896 = vld [vmem:[#allocation2 + $0xc8] sm:$0xff]
        %v1897 = vld [vmem:[#allocation2 + $0xd0] sm:$0xff]
        %v1898 = vld [vmem:[#allocation2 + $0xd8] sm:$0xff]
        %v1899 = vld [vmem:[#allocation2 + $0xe0] sm:$0xff]
        %v1900 = vld [vmem:[#allocation2 + $0xe8] sm:$0xff]
        %v1901 = vld [vmem:[#allocation2 + $0xf0] sm:$0xff]
        %v1902 = vld [vmem:[#allocation2 + $0xf8] sm:$0xff]
        %v1903 = vld [vmem:[#allocation2 + $0x100] sm:$0xff]
        %v1904 = vld [vmem:[#allocation2 + $0x108] sm:$0xff]
        %v1905 = vsel %vm1199, %v1873, 0.0
        %v1906 = vsel %vm1200, %v1874, 0.0
        %v1907 = vsel %vm1201, %v1875, 0.0
        %v1908 = vsel %vm1202, %v1876, 0.0
        %v1909 = vsel %vm1203, %v1877, 0.0
        %v1910 = vsel %vm1204, %v1878, 0.0
        %v1911 = vsel %vm1205, %v1879, 0.0
        %v1912 = vsel %vm1206, %v1880, 0.0
        %v1913 = vsel %vm1207, %v1881, 0.0
        %v1914 = vsel %vm1208, %v1882, 0.0
        %v1915 = vsel %vm1209, %v1883, 0.0
        %v1916 = vsel %vm1210, %v1884, 0.0
        %v1917 = vsel %vm1211, %v1885, 0.0
        %v1918 = vsel %vm1212, %v1886, 0.0
        %v1919 = vsel %vm1213, %v1887, 0.0
        %v1920 = vsel %vm1214, %v1888, 0.0
        %v1921 = vsel %vm1215, %v1889, 0.0
        %v1922 = vsel %vm1216, %v1890, 0.0
        %v1923 = vsel %vm1217, %v1891, 0.0
        %v1924 = vsel %vm1218, %v1892, 0.0
        %v1925 = vsel %vm1219, %v1893, 0.0
        %v1926 = vsel %vm1220, %v1894, 0.0
        %v1927 = vsel %vm1221, %v1895, 0.0
        %v1928 = vsel %vm1222, %v1896, 0.0
        %v1929 = vsel %vm1223, %v1897, 0.0
        %v1930 = vsel %vm1224, %v1898, 0.0
        %v1931 = vsel %vm1225, %v1899, 0.0
        %v1932 = vsel %vm1226, %v1900, 0.0
        %v1933 = vsel %vm1227, %v1901, 0.0
        %v1934 = vsel %vm1228, %v1902, 0.0
        %v1935 = vsel %vm1229, %v1903, 0.0
        %v1936 = vsel %vm1230, %v1904, 0.0
        %1969 = vrot.lane.b32.xlu0 %v1905, 9
        %v1970 = vpop.permute.xlu0 %1969
        %1971 = vrot.lane.b32.xlu0 %v1906, 9
        %v1972 = vpop.permute.xlu0 %1971
        %1973 = vrot.lane.b32.xlu0 %v1907, 9
        %v1974 = vpop.permute.xlu0 %1973
        %1975 = vrot.lane.b32.xlu0 %v1908, 9
        %v1976 = vpop.permute.xlu0 %1975
        %1977 = vrot.lane.b32.xlu0 %v1909, 9
        %v1978 = vpop.permute.xlu0 %1977
        %1979 = vrot.lane.b32.xlu0 %v1910, 9
        %v1980 = vpop.permute.xlu0 %1979
        %1981 = vrot.lane.b32.xlu0 %v1911, 9
        %v1982 = vpop.permute.xlu0 %1981
        %1983 = vrot.lane.b32.xlu0 %v1912, 9
        %v1984 = vpop.permute.xlu0 %1983
        %1985 = vrot.lane.b32.xlu0 %v1913, 9
        %v1986 = vpop.permute.xlu0 %1985
        %1987 = vrot.lane.b32.xlu0 %v1914, 9
        %v1988 = vpop.permute.xlu0 %1987
        %1989 = vrot.lane.b32.xlu0 %v1915, 9
        %v1990 = vpop.permute.xlu0 %1989
        %1991 = vrot.lane.b32.xlu0 %v1916, 9
        %v1992 = vpop.permute.xlu0 %1991
        %1993 = vrot.lane.b32.xlu0 %v1917, 9
        %v1994 = vpop.permute.xlu0 %1993
        %1995 = vrot.lane.b32.xlu0 %v1918, 9
        %v1996 = vpop.permute.xlu0 %1995
        %1997 = vrot.lane.b32.xlu0 %v1919, 9
        %v1998 = vpop.permute.xlu0 %1997
        %1999 = vrot.lane.b32.xlu0 %v1920, 9
        %v2000 = vpop.permute.xlu0 %1999
        %2001 = vrot.lane.b32.xlu0 %v1921, 9
        %v2002 = vpop.permute.xlu0 %2001
        %2003 = vrot.lane.b32.xlu0 %v1922, 9
        %v2004 = vpop.permute.xlu0 %2003
        %2005 = vrot.lane.b32.xlu0 %v1923, 9
        %v2006 = vpop.permute.xlu0 %2005
        %2007 = vrot.lane.b32.xlu0 %v1924, 9
        %v2008 = vpop.permute.xlu0 %2007
        %2009 = vrot.lane.b32.xlu0 %v1925, 9
        %v2010 = vpop.permute.xlu0 %2009
        %2011 = vrot.lane.b32.xlu0 %v1926, 9
        %v2012 = vpop.permute.xlu0 %2011
        %2013 = vrot.lane.b32.xlu0 %v1927, 9
        %v2014 = vpop.permute.xlu0 %2013
        %2015 = vrot.lane.b32.xlu0 %v1928, 9
        %v2016 = vpop.permute.xlu0 %2015
        %2017 = vrot.lane.b32.xlu0 %v1929, 9
        %v2018 = vpop.permute.xlu0 %2017
        %2019 = vrot.lane.b32.xlu0 %v1930, 9
        %v2020 = vpop.permute.xlu0 %2019
        %2021 = vrot.lane.b32.xlu0 %v1931, 9
        %v2022 = vpop.permute.xlu0 %2021
        %2023 = vrot.lane.b32.xlu0 %v1932, 9
        %v2024 = vpop.permute.xlu0 %2023
        %2025 = vrot.lane.b32.xlu0 %v1933, 9
        %v2026 = vpop.permute.xlu0 %2025
        %2027 = vrot.lane.b32.xlu0 %v1934, 9
        %v2028 = vpop.permute.xlu0 %2027
        %2029 = vrot.lane.b32.xlu0 %v1935, 9
        %v2030 = vpop.permute.xlu0 %2029
        %2031 = vrot.lane.b32.xlu0 %v1936, 9
        %v2032 = vpop.permute.xlu0 %2031
        %vm2065 = vcmask 97352
        %2066 = vst.msk [vmem:[#allocation6] sm:$0xff] %vm2065, %v1970
        %2067 = vst.msk [vmem:[#allocation6 + $0x8] sm:$0xff] %vm2065, %v1972
        %2068 = vst.msk [vmem:[#allocation6 + $0x10] sm:$0xff] %vm2065, %v1974
        %2069 = vst.msk [vmem:[#allocation6 + $0x18] sm:$0xff] %vm2065, %v1976
        %2070 = vst.msk [vmem:[#allocation6 + $0x20] sm:$0xff] %vm2065, %v1978
        %2071 = vst.msk [vmem:[#allocation6 + $0x28] sm:$0xff] %vm2065, %v1980
        %2072 = vst.msk [vmem:[#allocation6 + $0x30] sm:$0xff] %vm2065, %v1982
        %2073 = vst.msk [vmem:[#allocation6 + $0x38] sm:$0xff] %vm2065, %v1984
        %2074 = vst.msk [vmem:[#allocation6 + $0x40] sm:$0xff] %vm2065, %v1986
        %2075 = vst.msk [vmem:[#allocation6 + $0x48] sm:$0xff] %vm2065, %v1988
        %2076 = vst.msk [vmem:[#allocation6 + $0x50] sm:$0xff] %vm2065, %v1990
        %2077 = vst.msk [vmem:[#allocation6 + $0x58] sm:$0xff] %vm2065, %v1992
        %2078 = vst.msk [vmem:[#allocation6 + $0x60] sm:$0xff] %vm2065, %v1994
        %2079 = vst.msk [vmem:[#allocation6 + $0x68] sm:$0xff] %vm2065, %v1996
        %2080 = vst.msk [vmem:[#allocation6 + $0x70] sm:$0xff] %vm2065, %v1998
        %2081 = vst.msk [vmem:[#allocation6 + $0x78] sm:$0xff] %vm2065, %v2000
        %2082 = vst.msk [vmem:[#allocation6 + $0x80] sm:$0xff] %vm2065, %v2002
        %2083 = vst.msk [vmem:[#allocation6 + $0x88] sm:$0xff] %vm2065, %v2004
        %2084 = vst.msk [vmem:[#allocation6 + $0x90] sm:$0xff] %vm2065, %v2006
        %2085 = vst.msk [vmem:[#allocation6 + $0x98] sm:$0xff] %vm2065, %v2008
        %2086 = vst.msk [vmem:[#allocation6 + $0xa0] sm:$0xff] %vm2065, %v2010
        %2087 = vst.msk [vmem:[#allocation6 + $0xa8] sm:$0xff] %vm2065, %v2012
        %2088 = vst.msk [vmem:[#allocation6 + $0xb0] sm:$0xff] %vm2065, %v2014
        %2089 = vst.msk [vmem:[#allocation6 + $0xb8] sm:$0xff] %vm2065, %v2016
        %2090 = vst.msk [vmem:[#allocation6 + $0xc0] sm:$0xff] %vm2065, %v2018
        %2091 = vst.msk [vmem:[#allocation6 + $0xc8] sm:$0xff] %vm2065, %v2020
        %2092 = vst.msk [vmem:[#allocation6 + $0xd0] sm:$0xff] %vm2065, %v2022
        %2093 = vst.msk [vmem:[#allocation6 + $0xd8] sm:$0xff] %vm2065, %v2024
        %2094 = vst.msk [vmem:[#allocation6 + $0xe0] sm:$0xff] %vm2065, %v2026
        %2095 = vst.msk [vmem:[#allocation6 + $0xe8] sm:$0xff] %vm2065, %v2028
        %2096 = vst.msk [vmem:[#allocation6 + $0xf0] sm:$0xff] %vm2065, %v2030
        %2097 = vst.msk [vmem:[#allocation6 + $0xf8] sm:$0xff] %vm2065, %v2032
        %v2098 = vld [vmem:[#allocation2 + $0x11] sm:$0xff]
        %v2099 = vld [vmem:[#allocation2 + $0x19] sm:$0xff]
        %v2100 = vld [vmem:[#allocation2 + $0x21] sm:$0xff]
        %v2101 = vld [vmem:[#allocation2 + $0x29] sm:$0xff]
        %v2102 = vld [vmem:[#allocation2 + $0x31] sm:$0xff]
        %v2103 = vld [vmem:[#allocation2 + $0x39] sm:$0xff]
        %v2104 = vld [vmem:[#allocation2 + $0x41] sm:$0xff]
        %v2105 = vld [vmem:[#allocation2 + $0x49] sm:$0xff]
        %v2106 = vld [vmem:[#allocation2 + $0x51] sm:$0xff]
        %v2107 = vld [vmem:[#allocation2 + $0x59] sm:$0xff]
        %v2108 = vld [vmem:[#allocation2 + $0x61] sm:$0xff]
        %v2109 = vld [vmem:[#allocation2 + $0x69] sm:$0xff]
        %v2110 = vld [vmem:[#allocation2 + $0x71] sm:$0xff]
        %v2111 = vld [vmem:[#allocation2 + $0x79] sm:$0xff]
        %v2112 = vld [vmem:[#allocation2 + $0x81] sm:$0xff]
        %v2113 = vld [vmem:[#allocation2 + $0x89] sm:$0xff]
        %v2114 = vld [vmem:[#allocation2 + $0x91] sm:$0xff]
        %v2115 = vld [vmem:[#allocation2 + $0x99] sm:$0xff]
        %v2116 = vld [vmem:[#allocation2 + $0xa1] sm:$0xff]
        %v2117 = vld [vmem:[#allocation2 + $0xa9] sm:$0xff]
        %v2118 = vld [vmem:[#allocation2 + $0xb1] sm:$0xff]
        %v2119 = vld [vmem:[#allocation2 + $0xb9] sm:$0xff]
        %v2120 = vld [vmem:[#allocation2 + $0xc1] sm:$0xff]
        %v2121 = vld [vmem:[#allocation2 + $0xc9] sm:$0xff]
        %v2122 = vld [vmem:[#allocation2 + $0xd1] sm:$0xff]
        %v2123 = vld [vmem:[#allocation2 + $0xd9] sm:$0xff]
        %v2124 = vld [vmem:[#allocation2 + $0xe1] sm:$0xff]
        %v2125 = vld [vmem:[#allocation2 + $0xe9] sm:$0xff]
        %v2126 = vld [vmem:[#allocation2 + $0xf1] sm:$0xff]
        %v2127 = vld [vmem:[#allocation2 + $0xf9] sm:$0xff]
        %v2128 = vld [vmem:[#allocation2 + $0x101] sm:$0xff]
        %v2129 = vld [vmem:[#allocation2 + $0x109] sm:$0xff]
        %2162 = vrot.lane.b32.xlu0 %v2098, 12
        %v2163 = vpop.permute.xlu0 %2162
        %2164 = vrot.lane.b32.xlu0 %v2099, 12
        %v2165 = vpop.permute.xlu0 %2164
        %2166 = vrot.lane.b32.xlu0 %v2100, 12
        %v2167 = vpop.permute.xlu0 %2166
        %2168 = vrot.lane.b32.xlu0 %v2101, 12
        %v2169 = vpop.permute.xlu0 %2168
        %2170 = vrot.lane.b32.xlu0 %v2102, 12
        %v2171 = vpop.permute.xlu0 %2170
        %2172 = vrot.lane.b32.xlu0 %v2103, 12
        %v2173 = vpop.permute.xlu0 %2172
        %2174 = vrot.lane.b32.xlu0 %v2104, 12
        %v2175 = vpop.permute.xlu0 %2174
        %2176 = vrot.lane.b32.xlu0 %v2105, 12
        %v2177 = vpop.permute.xlu0 %2176
        %2178 = vrot.lane.b32.xlu0 %v2106, 12
        %v2179 = vpop.permute.xlu0 %2178
        %2180 = vrot.lane.b32.xlu0 %v2107, 12
        %v2181 = vpop.permute.xlu0 %2180
        %2182 = vrot.lane.b32.xlu0 %v2108, 12
        %v2183 = vpop.permute.xlu0 %2182
        %2184 = vrot.lane.b32.xlu0 %v2109, 12
        %v2185 = vpop.permute.xlu0 %2184
        %2186 = vrot.lane.b32.xlu0 %v2110, 12
        %v2187 = vpop.permute.xlu0 %2186
        %2188 = vrot.lane.b32.xlu0 %v2111, 12
        %v2189 = vpop.permute.xlu0 %2188
        %2190 = vrot.lane.b32.xlu0 %v2112, 12
        %v2191 = vpop.permute.xlu0 %2190
        %2192 = vrot.lane.b32.xlu0 %v2113, 12
        %v2193 = vpop.permute.xlu0 %2192
        %2194 = vrot.lane.b32.xlu0 %v2114, 12
        %v2195 = vpop.permute.xlu0 %2194
        %2196 = vrot.lane.b32.xlu0 %v2115, 12
        %v2197 = vpop.permute.xlu0 %2196
        %2198 = vrot.lane.b32.xlu0 %v2116, 12
        %v2199 = vpop.permute.xlu0 %2198
        %2200 = vrot.lane.b32.xlu0 %v2117, 12
        %v2201 = vpop.permute.xlu0 %2200
        %2202 = vrot.lane.b32.xlu0 %v2118, 12
        %v2203 = vpop.permute.xlu0 %2202
        %2204 = vrot.lane.b32.xlu0 %v2119, 12
        %v2205 = vpop.permute.xlu0 %2204
        %2206 = vrot.lane.b32.xlu0 %v2120, 12
        %v2207 = vpop.permute.xlu0 %2206
        %2208 = vrot.lane.b32.xlu0 %v2121, 12
        %v2209 = vpop.permute.xlu0 %2208
        %2210 = vrot.lane.b32.xlu0 %v2122, 12
        %v2211 = vpop.permute.xlu0 %2210
        %2212 = vrot.lane.b32.xlu0 %v2123, 12
        %v2213 = vpop.permute.xlu0 %2212
        %2214 = vrot.lane.b32.xlu0 %v2124, 12
        %v2215 = vpop.permute.xlu0 %2214
        %2216 = vrot.lane.b32.xlu0 %v2125, 12
        %v2217 = vpop.permute.xlu0 %2216
        %2218 = vrot.lane.b32.xlu0 %v2126, 12
        %v2219 = vpop.permute.xlu0 %2218
        %2220 = vrot.lane.b32.xlu0 %v2127, 12
        %v2221 = vpop.permute.xlu0 %2220
        %2222 = vrot.lane.b32.xlu0 %v2128, 12
        %v2223 = vpop.permute.xlu0 %2222
        %2224 = vrot.lane.b32.xlu0 %v2129, 12
        %v2225 = vpop.permute.xlu0 %2224
        %vm2258 = vcmask 121952
        %2259 = vst.msk [vmem:[#allocation6] sm:$0xff] %vm2258, %v2163
        %2260 = vst.msk [vmem:[#allocation6 + $0x8] sm:$0xff] %vm2258, %v2165
        %2261 = vst.msk [vmem:[#allocation6 + $0x10] sm:$0xff] %vm2258, %v2167
        %2262 = vst.msk [vmem:[#allocation6 + $0x18] sm:$0xff] %vm2258, %v2169
        %2263 = vst.msk [vmem:[#allocation6 + $0x20] sm:$0xff] %vm2258, %v2171
        %2264 = vst.msk [vmem:[#allocation6 + $0x28] sm:$0xff] %vm2258, %v2173
        %2265 = vst.msk [vmem:[#allocation6 + $0x30] sm:$0xff] %vm2258, %v2175
        %2266 = vst.msk [vmem:[#allocation6 + $0x38] sm:$0xff] %vm2258, %v2177
        %2267 = vst.msk [vmem:[#allocation6 + $0x40] sm:$0xff] %vm2258, %v2179
        %2268 = vst.msk [vmem:[#allocation6 + $0x48] sm:$0xff] %vm2258, %v2181
        %2269 = vst.msk [vmem:[#allocation6 + $0x50] sm:$0xff] %vm2258, %v2183
        %2270 = vst.msk [vmem:[#allocation6 + $0x58] sm:$0xff] %vm2258, %v2185
        %2271 = vst.msk [vmem:[#allocation6 + $0x60] sm:$0xff] %vm2258, %v2187
        %2272 = vst.msk [vmem:[#allocation6 + $0x68] sm:$0xff] %vm2258, %v2189
        %2273 = vst.msk [vmem:[#allocation6 + $0x70] sm:$0xff] %vm2258, %v2191
        %2274 = vst.msk [vmem:[#allocation6 + $0x78] sm:$0xff] %vm2258, %v2193
        %2275 = vst.msk [vmem:[#allocation6 + $0x80] sm:$0xff] %vm2258, %v2195
        %2276 = vst.msk [vmem:[#allocation6 + $0x88] sm:$0xff] %vm2258, %v2197
        %2277 = vst.msk [vmem:[#allocation6 + $0x90] sm:$0xff] %vm2258, %v2199
        %2278 = vst.msk [vmem:[#allocation6 + $0x98] sm:$0xff] %vm2258, %v2201
        %2279 = vst.msk [vmem:[#allocation6 + $0xa0] sm:$0xff] %vm2258, %v2203
        %2280 = vst.msk [vmem:[#allocation6 + $0xa8] sm:$0xff] %vm2258, %v2205
        %2281 = vst.msk [vmem:[#allocation6 + $0xb0] sm:$0xff] %vm2258, %v2207
        %2282 = vst.msk [vmem:[#allocation6 + $0xb8] sm:$0xff] %vm2258, %v2209
        %2283 = vst.msk [vmem:[#allocation6 + $0xc0] sm:$0xff] %vm2258, %v2211
        %2284 = vst.msk [vmem:[#allocation6 + $0xc8] sm:$0xff] %vm2258, %v2213
        %2285 = vst.msk [vmem:[#allocation6 + $0xd0] sm:$0xff] %vm2258, %v2215
        %2286 = vst.msk [vmem:[#allocation6 + $0xd8] sm:$0xff] %vm2258, %v2217
        %2287 = vst.msk [vmem:[#allocation6 + $0xe0] sm:$0xff] %vm2258, %v2219
        %2288 = vst.msk [vmem:[#allocation6 + $0xe8] sm:$0xff] %vm2258, %v2221
        %2289 = vst.msk [vmem:[#allocation6 + $0xf0] sm:$0xff] %vm2258, %v2223
        %2290 = vst.msk [vmem:[#allocation6 + $0xf8] sm:$0xff] %vm2258, %v2225
        %v2291 = vld [vmem:[#allocation2 + $0x12] sm:$0xff]
        %v2292 = vld [vmem:[#allocation2 + $0x1a] sm:$0xff]
        %v2293 = vld [vmem:[#allocation2 + $0x22] sm:$0xff]
        %v2294 = vld [vmem:[#allocation2 + $0x2a] sm:$0xff]
        %v2295 = vld [vmem:[#allocation2 + $0x32] sm:$0xff]
        %v2296 = vld [vmem:[#allocation2 + $0x3a] sm:$0xff]
        %v2297 = vld [vmem:[#allocation2 + $0x42] sm:$0xff]
        %v2298 = vld [vmem:[#allocation2 + $0x4a] sm:$0xff]
        %v2299 = vld [vmem:[#allocation2 + $0x52] sm:$0xff]
        %v2300 = vld [vmem:[#allocation2 + $0x5a] sm:$0xff]
        %v2301 = vld [vmem:[#allocation2 + $0x62] sm:$0xff]
        %v2302 = vld [vmem:[#allocation2 + $0x6a] sm:$0xff]
        %v2303 = vld [vmem:[#allocation2 + $0x72] sm:$0xff]
        %v2304 = vld [vmem:[#allocation2 + $0x7a] sm:$0xff]
        %v2305 = vld [vmem:[#allocation2 + $0x82] sm:$0xff]
        %v2306 = vld [vmem:[#allocation2 + $0x8a] sm:$0xff]
        %v2307 = vld [vmem:[#allocation2 + $0x92] sm:$0xff]
        %v2308 = vld [vmem:[#allocation2 + $0x9a] sm:$0xff]
        %v2309 = vld [vmem:[#allocation2 + $0xa2] sm:$0xff]
        %v2310 = vld [vmem:[#allocation2 + $0xaa] sm:$0xff]
        %v2311 = vld [vmem:[#allocation2 + $0xb2] sm:$0xff]
        %v2312 = vld [vmem:[#allocation2 + $0xba] sm:$0xff]
        %v2313 = vld [vmem:[#allocation2 + $0xc2] sm:$0xff]
        %v2314 = vld [vmem:[#allocation2 + $0xca] sm:$0xff]
        %v2315 = vld [vmem:[#allocation2 + $0xd2] sm:$0xff]
        %v2316 = vld [vmem:[#allocation2 + $0xda] sm:$0xff]
        %v2317 = vld [vmem:[#allocation2 + $0xe2] sm:$0xff]
        %v2318 = vld [vmem:[#allocation2 + $0xea] sm:$0xff]
        %v2319 = vld [vmem:[#allocation2 + $0xf2] sm:$0xff]
        %v2320 = vld [vmem:[#allocation2 + $0xfa] sm:$0xff]
        %v2321 = vld [vmem:[#allocation2 + $0x102] sm:$0xff]
        %v2322 = vld [vmem:[#allocation2 + $0x10a] sm:$0xff]
        %v2323 = vsel %vm1648, %v2291, 0.0
        %v2324 = vsel %vm1649, %v2292, 0.0
        %v2325 = vsel %vm1650, %v2293, 0.0
        %v2326 = vsel %vm1651, %v2294, 0.0
        %v2327 = vsel %vm1652, %v2295, 0.0
        %v2328 = vsel %vm1653, %v2296, 0.0
        %v2329 = vsel %vm1654, %v2297, 0.0
        %v2330 = vsel %vm1655, %v2298, 0.0
        %v2331 = vsel %vm1656, %v2299, 0.0
        %v2332 = vsel %vm1657, %v2300, 0.0
        %v2333 = vsel %vm1658, %v2301, 0.0
        %v2334 = vsel %vm1659, %v2302, 0.0
        %v2335 = vsel %vm1660, %v2303, 0.0
        %v2336 = vsel %vm1661, %v2304, 0.0
        %v2337 = vsel %vm1662, %v2305, 0.0
        %v2338 = vsel %vm1663, %v2306, 0.0
        %v2339 = vsel %vm1664, %v2307, 0.0
        %v2340 = vsel %vm1665, %v2308, 0.0
        %v2341 = vsel %vm1666, %v2309, 0.0
        %v2342 = vsel %vm1667, %v2310, 0.0
        %v2343 = vsel %vm1668, %v2311, 0.0
        %v2344 = vsel %vm1669, %v2312, 0.0
        %v2345 = vsel %vm1670, %v2313, 0.0
        %v2346 = vsel %vm1671, %v2314, 0.0
        %v2347 = vsel %vm1672, %v2315, 0.0
        %v2348 = vsel %vm1673, %v2316, 0.0
        %v2349 = vsel %vm1674, %v2317, 0.0
        %v2350 = vsel %vm1675, %v2318, 0.0
        %v2351 = vsel %vm1676, %v2319, 0.0
        %v2352 = vsel %vm1677, %v2320, 0.0
        %v2353 = vsel %vm1678, %v2321, 0.0
        %v2354 = vsel %vm1679, %v2322, 0.0
        %2387 = vrot.lane.b32.xlu0 %v2323, 15
        %v2388 = vpop.permute.xlu0 %2387
        %2389 = vrot.lane.b32.xlu0 %v2324, 15
        %v2390 = vpop.permute.xlu0 %2389
        %2391 = vrot.lane.b32.xlu0 %v2325, 15
        %v2392 = vpop.permute.xlu0 %2391
        %2393 = vrot.lane.b32.xlu0 %v2326, 15
        %v2394 = vpop.permute.xlu0 %2393
        %2395 = vrot.lane.b32.xlu0 %v2327, 15
        %v2396 = vpop.permute.xlu0 %2395
        %2397 = vrot.lane.b32.xlu0 %v2328, 15
        %v2398 = vpop.permute.xlu0 %2397
        %2399 = vrot.lane.b32.xlu0 %v2329, 15
        %v2400 = vpop.permute.xlu0 %2399
        %2401 = vrot.lane.b32.xlu0 %v2330, 15
        %v2402 = vpop.permute.xlu0 %2401
        %2403 = vrot.lane.b32.xlu0 %v2331, 15
        %v2404 = vpop.permute.xlu0 %2403
        %2405 = vrot.lane.b32.xlu0 %v2332, 15
        %v2406 = vpop.permute.xlu0 %2405
        %2407 = vrot.lane.b32.xlu0 %v2333, 15
        %v2408 = vpop.permute.xlu0 %2407
        %2409 = vrot.lane.b32.xlu0 %v2334, 15
        %v2410 = vpop.permute.xlu0 %2409
        %2411 = vrot.lane.b32.xlu0 %v2335, 15
        %v2412 = vpop.permute.xlu0 %2411
        %2413 = vrot.lane.b32.xlu0 %v2336, 15
        %v2414 = vpop.permute.xlu0 %2413
        %2415 = vrot.lane.b32.xlu0 %v2337, 15
        %v2416 = vpop.permute.xlu0 %2415
        %2417 = vrot.lane.b32.xlu0 %v2338, 15
        %v2418 = vpop.permute.xlu0 %2417
        %2419 = vrot.lane.b32.xlu0 %v2339, 15
        %v2420 = vpop.permute.xlu0 %2419
        %2421 = vrot.lane.b32.xlu0 %v2340, 15
        %v2422 = vpop.permute.xlu0 %2421
        %2423 = vrot.lane.b32.xlu0 %v2341, 15
        %v2424 = vpop.permute.xlu0 %2423
        %2425 = vrot.lane.b32.xlu0 %v2342, 15
        %v2426 = vpop.permute.xlu0 %2425
        %2427 = vrot.lane.b32.xlu0 %v2343, 15
        %v2428 = vpop.permute.xlu0 %2427
        %2429 = vrot.lane.b32.xlu0 %v2344, 15
        %v2430 = vpop.permute.xlu0 %2429
        %2431 = vrot.lane.b32.xlu0 %v2345, 15
        %v2432 = vpop.permute.xlu0 %2431
        %2433 = vrot.lane.b32.xlu0 %v2346, 15
        %v2434 = vpop.permute.xlu0 %2433
        %2435 = vrot.lane.b32.xlu0 %v2347, 15
        %v2436 = vpop.permute.xlu0 %2435
        %2437 = vrot.lane.b32.xlu0 %v2348, 15
        %v2438 = vpop.permute.xlu0 %2437
        %2439 = vrot.lane.b32.xlu0 %v2349, 15
        %v2440 = vpop.permute.xlu0 %2439
        %2441 = vrot.lane.b32.xlu0 %v2350, 15
        %v2442 = vpop.permute.xlu0 %2441
        %2443 = vrot.lane.b32.xlu0 %v2351, 15
        %v2444 = vpop.permute.xlu0 %2443
        %2445 = vrot.lane.b32.xlu0 %v2352, 15
        %v2446 = vpop.permute.xlu0 %2445
        %2447 = vrot.lane.b32.xlu0 %v2353, 15
        %v2448 = vpop.permute.xlu0 %2447
        %2449 = vrot.lane.b32.xlu0 %v2354, 15
        %v2450 = vpop.permute.xlu0 %2449
        %vm2483 = vcmask 146552
        %2484 = vst.msk [vmem:[#allocation6] sm:$0xff] %vm2483, %v2388
        %2485 = vst.msk [vmem:[#allocation6 + $0x8] sm:$0xff] %vm2483, %v2390
        %2486 = vst.msk [vmem:[#allocation6 + $0x10] sm:$0xff] %vm2483, %v2392
        %2487 = vst.msk [vmem:[#allocation6 + $0x18] sm:$0xff] %vm2483, %v2394
        %2488 = vst.msk [vmem:[#allocation6 + $0x20] sm:$0xff] %vm2483, %v2396
        %2489 = vst.msk [vmem:[#allocation6 + $0x28] sm:$0xff] %vm2483, %v2398
        %2490 = vst.msk [vmem:[#allocation6 + $0x30] sm:$0xff] %vm2483, %v2400
        %2491 = vst.msk [vmem:[#allocation6 + $0x38] sm:$0xff] %vm2483, %v2402
        %2492 = vst.msk [vmem:[#allocation6 + $0x40] sm:$0xff] %vm2483, %v2404
        %2493 = vst.msk [vmem:[#allocation6 + $0x48] sm:$0xff] %vm2483, %v2406
        %2494 = vst.msk [vmem:[#allocation6 + $0x50] sm:$0xff] %vm2483, %v2408
        %2495 = vst.msk [vmem:[#allocation6 + $0x58] sm:$0xff] %vm2483, %v2410
        %2496 = vst.msk [vmem:[#allocation6 + $0x60] sm:$0xff] %vm2483, %v2412
        %2497 = vst.msk [vmem:[#allocation6 + $0x68] sm:$0xff] %vm2483, %v2414
        %2498 = vst.msk [vmem:[#allocation6 + $0x70] sm:$0xff] %vm2483, %v2416
        %2499 = vst.msk [vmem:[#allocation6 + $0x78] sm:$0xff] %vm2483, %v2418
        %2500 = vst.msk [vmem:[#allocation6 + $0x80] sm:$0xff] %vm2483, %v2420
        %2501 = vst.msk [vmem:[#allocation6 + $0x88] sm:$0xff] %vm2483, %v2422
        %2502 = vst.msk [vmem:[#allocation6 + $0x90] sm:$0xff] %vm2483, %v2424
        %2503 = vst.msk [vmem:[#allocation6 + $0x98] sm:$0xff] %vm2483, %v2426
        %2504 = vst.msk [vmem:[#allocation6 + $0xa0] sm:$0xff] %vm2483, %v2428
        %2505 = vst.msk [vmem:[#allocation6 + $0xa8] sm:$0xff] %vm2483, %v2430
        %2506 = vst.msk [vmem:[#allocation6 + $0xb0] sm:$0xff] %vm2483, %v2432
        %2507 = vst.msk [vmem:[#allocation6 + $0xb8] sm:$0xff] %vm2483, %v2434
        %2508 = vst.msk [vmem:[#allocation6 + $0xc0] sm:$0xff] %vm2483, %v2436
        %2509 = vst.msk [vmem:[#allocation6 + $0xc8] sm:$0xff] %vm2483, %v2438
        %2510 = vst.msk [vmem:[#allocation6 + $0xd0] sm:$0xff] %vm2483, %v2440
        %2511 = vst.msk [vmem:[#allocation6 + $0xd8] sm:$0xff] %vm2483, %v2442
        %2512 = vst.msk [vmem:[#allocation6 + $0xe0] sm:$0xff] %vm2483, %v2444
        %2513 = vst.msk [vmem:[#allocation6 + $0xe8] sm:$0xff] %vm2483, %v2446
        %2514 = vst.msk [vmem:[#allocation6 + $0xf0] sm:$0xff] %vm2483, %v2448
        %2515 = vst.msk [vmem:[#allocation6 + $0xf8] sm:$0xff] %vm2483, %v2450
        %v2516 = vld [vmem:[#allocation2 + $0x20] sm:$0xff]
        %v2517 = vld [vmem:[#allocation2 + $0x28] sm:$0xff]
        %v2518 = vld [vmem:[#allocation2 + $0x30] sm:$0xff]
        %v2519 = vld [vmem:[#allocation2 + $0x38] sm:$0xff]
        %v2520 = vld [vmem:[#allocation2 + $0x40] sm:$0xff]
        %v2521 = vld [vmem:[#allocation2 + $0x48] sm:$0xff]
        %v2522 = vld [vmem:[#allocation2 + $0x50] sm:$0xff]
        %v2523 = vld [vmem:[#allocation2 + $0x58] sm:$0xff]
        %v2524 = vld [vmem:[#allocation2 + $0x60] sm:$0xff]
        %v2525 = vld [vmem:[#allocation2 + $0x68] sm:$0xff]
        %v2526 = vld [vmem:[#allocation2 + $0x70] sm:$0xff]
        %v2527 = vld [vmem:[#allocation2 + $0x78] sm:$0xff]
        %v2528 = vld [vmem:[#allocation2 + $0x80] sm:$0xff]
        %v2529 = vld [vmem:[#allocation2 + $0x88] sm:$0xff]
        %v2530 = vld [vmem:[#allocation2 + $0x90] sm:$0xff]
        %v2531 = vld [vmem:[#allocation2 + $0x98] sm:$0xff]
        %v2532 = vld [vmem:[#allocation2 + $0xa0] sm:$0xff]
        %v2533 = vld [vmem:[#allocation2 + $0xa8] sm:$0xff]
        %v2534 = vld [vmem:[#allocation2 + $0xb0] sm:$0xff]
        %v2535 = vld [vmem:[#allocation2 + $0xb8] sm:$0xff]
        %v2536 = vld [vmem:[#allocation2 + $0xc0] sm:$0xff]
        %v2537 = vld [vmem:[#allocation2 + $0xc8] sm:$0xff]
        %v2538 = vld [vmem:[#allocation2 + $0xd0] sm:$0xff]
        %v2539 = vld [vmem:[#allocation2 + $0xd8] sm:$0xff]
        %v2540 = vld [vmem:[#allocation2 + $0xe0] sm:$0xff]
        %v2541 = vld [vmem:[#allocation2 + $0xe8] sm:$0xff]
        %v2542 = vld [vmem:[#allocation2 + $0xf0] sm:$0xff]
        %v2543 = vld [vmem:[#allocation2 + $0xf8] sm:$0xff]
        %v2544 = vld [vmem:[#allocation2 + $0x100] sm:$0xff]
        %v2545 = vld [vmem:[#allocation2 + $0x108] sm:$0xff]
        %v2546 = vld [vmem:[#allocation2 + $0x110] sm:$0xff]
        %v2547 = vld [vmem:[#allocation2 + $0x118] sm:$0xff]
        %v2548 = vsel %vm1199, %v2516, 0.0
        %v2549 = vsel %vm1200, %v2517, 0.0
        %v2550 = vsel %vm1201, %v2518, 0.0
        %v2551 = vsel %vm1202, %v2519, 0.0
        %v2552 = vsel %vm1203, %v2520, 0.0
        %v2553 = vsel %vm1204, %v2521, 0.0
        %v2554 = vsel %vm1205, %v2522, 0.0
        %v2555 = vsel %vm1206, %v2523, 0.0
        %v2556 = vsel %vm1207, %v2524, 0.0
        %v2557 = vsel %vm1208, %v2525, 0.0
        %v2558 = vsel %vm1209, %v2526, 0.0
        %v2559 = vsel %vm1210, %v2527, 0.0
        %v2560 = vsel %vm1211, %v2528, 0.0
        %v2561 = vsel %vm1212, %v2529, 0.0
        %v2562 = vsel %vm1213, %v2530, 0.0
        %v2563 = vsel %vm1214, %v2531, 0.0
        %v2564 = vsel %vm1215, %v2532, 0.0
        %v2565 = vsel %vm1216, %v2533, 0.0
        %v2566 = vsel %vm1217, %v2534, 0.0
        %v2567 = vsel %vm1218, %v2535, 0.0
        %v2568 = vsel %vm1219, %v2536, 0.0
        %v2569 = vsel %vm1220, %v2537, 0.0
        %v2570 = vsel %vm1221, %v2538, 0.0
        %v2571 = vsel %vm1222, %v2539, 0.0
        %v2572 = vsel %vm1223, %v2540, 0.0
        %v2573 = vsel %vm1224, %v2541, 0.0
        %v2574 = vsel %vm1225, %v2542, 0.0
        %v2575 = vsel %vm1226, %v2543, 0.0
        %v2576 = vsel %vm1227, %v2544, 0.0
        %v2577 = vsel %vm1228, %v2545, 0.0
        %v2578 = vsel %vm1229, %v2546, 0.0
        %v2579 = vsel %vm1230, %v2547, 0.0
        %2612 = vrot.lane.b32.xlu0 %v2548, 18
        %v2613 = vpop.permute.xlu0 %2612
        %2614 = vrot.lane.b32.xlu0 %v2549, 18
        %v2615 = vpop.permute.xlu0 %2614
        %2616 = vrot.lane.b32.xlu0 %v2550, 18
        %v2617 = vpop.permute.xlu0 %2616
        %2618 = vrot.lane.b32.xlu0 %v2551, 18
        %v2619 = vpop.permute.xlu0 %2618
        %2620 = vrot.lane.b32.xlu0 %v2552, 18
        %v2621 = vpop.permute.xlu0 %2620
        %2622 = vrot.lane.b32.xlu0 %v2553, 18
        %v2623 = vpop.permute.xlu0 %2622
        %2624 = vrot.lane.b32.xlu0 %v2554, 18
        %v2625 = vpop.permute.xlu0 %2624
        %2626 = vrot.lane.b32.xlu0 %v2555, 18
        %v2627 = vpop.permute.xlu0 %2626
        %2628 = vrot.lane.b32.xlu0 %v2556, 18
        %v2629 = vpop.permute.xlu0 %2628
        %2630 = vrot.lane.b32.xlu0 %v2557, 18
        %v2631 = vpop.permute.xlu0 %2630
        %2632 = vrot.lane.b32.xlu0 %v2558, 18
        %v2633 = vpop.permute.xlu0 %2632
        %2634 = vrot.lane.b32.xlu0 %v2559, 18
        %v2635 = vpop.permute.xlu0 %2634
        %2636 = vrot.lane.b32.xlu0 %v2560, 18
        %v2637 = vpop.permute.xlu0 %2636
        %2638 = vrot.lane.b32.xlu0 %v2561, 18
        %v2639 = vpop.permute.xlu0 %2638
        %2640 = vrot.lane.b32.xlu0 %v2562, 18
        %v2641 = vpop.permute.xlu0 %2640
        %2642 = vrot.lane.b32.xlu0 %v2563, 18
        %v2643 = vpop.permute.xlu0 %2642
        %2644 = vrot.lane.b32.xlu0 %v2564, 18
        %v2645 = vpop.permute.xlu0 %2644
        %2646 = vrot.lane.b32.xlu0 %v2565, 18
        %v2647 = vpop.permute.xlu0 %2646
        %2648 = vrot.lane.b32.xlu0 %v2566, 18
        %v2649 = vpop.permute.xlu0 %2648
        %2650 = vrot.lane.b32.xlu0 %v2567, 18
        %v2651 = vpop.permute.xlu0 %2650
        %2652 = vrot.lane.b32.xlu0 %v2568, 18
        %v2653 = vpop.permute.xlu0 %2652
        %2654 = vrot.lane.b32.xlu0 %v2569, 18
        %v2655 = vpop.permute.xlu0 %2654
        %2656 = vrot.lane.b32.xlu0 %v2570, 18
        %v2657 = vpop.permute.xlu0 %2656
        %2658 = vrot.lane.b32.xlu0 %v2571, 18
        %v2659 = vpop.permute.xlu0 %2658
        %2660 = vrot.lane.b32.xlu0 %v2572, 18
        %v2661 = vpop.permute.xlu0 %2660
        %2662 = vrot.lane.b32.xlu0 %v2573, 18
        %v2663 = vpop.permute.xlu0 %2662
        %2664 = vrot.lane.b32.xlu0 %v2574, 18
        %v2665 = vpop.permute.xlu0 %2664
        %2666 = vrot.lane.b32.xlu0 %v2575, 18
        %v2667 = vpop.permute.xlu0 %2666
        %2668 = vrot.lane.b32.xlu0 %v2576, 18
        %v2669 = vpop.permute.xlu0 %2668
        %2670 = vrot.lane.b32.xlu0 %v2577, 18
        %v2671 = vpop.permute.xlu0 %2670
        %2672 = vrot.lane.b32.xlu0 %v2578, 18
        %v2673 = vpop.permute.xlu0 %2672
        %2674 = vrot.lane.b32.xlu0 %v2579, 18
        %v2675 = vpop.permute.xlu0 %2674
        %vm2708 = vcmask 171152
        %2709 = vst.msk [vmem:[#allocation6] sm:$0xff] %vm2708, %v2613
        %2710 = vst.msk [vmem:[#allocation6 + $0x8] sm:$0xff] %vm2708, %v2615
        %2711 = vst.msk [vmem:[#allocation6 + $0x10] sm:$0xff] %vm2708, %v2617
        %2712 = vst.msk [vmem:[#allocation6 + $0x18] sm:$0xff] %vm2708, %v2619
        %2713 = vst.msk [vmem:[#allocation6 + $0x20] sm:$0xff] %vm2708, %v2621
        %2714 = vst.msk [vmem:[#allocation6 + $0x28] sm:$0xff] %vm2708, %v2623
        %2715 = vst.msk [vmem:[#allocation6 + $0x30] sm:$0xff] %vm2708, %v2625
        %2716 = vst.msk [vmem:[#allocation6 + $0x38] sm:$0xff] %vm2708, %v2627
        %2717 = vst.msk [vmem:[#allocation6 + $0x40] sm:$0xff] %vm2708, %v2629
        %2718 = vst.msk [vmem:[#allocation6 + $0x48] sm:$0xff] %vm2708, %v2631
        %2719 = vst.msk [vmem:[#allocation6 + $0x50] sm:$0xff] %vm2708, %v2633
        %2720 = vst.msk [vmem:[#allocation6 + $0x58] sm:$0xff] %vm2708, %v2635
        %2721 = vst.msk [vmem:[#allocation6 + $0x60] sm:$0xff] %vm2708, %v2637
        %2722 = vst.msk [vmem:[#allocation6 + $0x68] sm:$0xff] %vm2708, %v2639
        %2723 = vst.msk [vmem:[#allocation6 + $0x70] sm:$0xff] %vm2708, %v2641
        %2724 = vst.msk [vmem:[#allocation6 + $0x78] sm:$0xff] %vm2708, %v2643
        %2725 = vst.msk [vmem:[#allocation6 + $0x80] sm:$0xff] %vm2708, %v2645
        %2726 = vst.msk [vmem:[#allocation6 + $0x88] sm:$0xff] %vm2708, %v2647
        %2727 = vst.msk [vmem:[#allocation6 + $0x90] sm:$0xff] %vm2708, %v2649
        %2728 = vst.msk [vmem:[#allocation6 + $0x98] sm:$0xff] %vm2708, %v2651
        %2729 = vst.msk [vmem:[#allocation6 + $0xa0] sm:$0xff] %vm2708, %v2653
        %2730 = vst.msk [vmem:[#allocation6 + $0xa8] sm:$0xff] %vm2708, %v2655
        %2731 = vst.msk [vmem:[#allocation6 + $0xb0] sm:$0xff] %vm2708, %v2657
        %2732 = vst.msk [vmem:[#allocation6 + $0xb8] sm:$0xff] %vm2708, %v2659
        %2733 = vst.msk [vmem:[#allocation6 + $0xc0] sm:$0xff] %vm2708, %v2661
        %2734 = vst.msk [vmem:[#allocation6 + $0xc8] sm:$0xff] %vm2708, %v2663
        %2735 = vst.msk [vmem:[#allocation6 + $0xd0] sm:$0xff] %vm2708, %v2665
        %2736 = vst.msk [vmem:[#allocation6 + $0xd8] sm:$0xff] %vm2708, %v2667
        %2737 = vst.msk [vmem:[#allocation6 + $0xe0] sm:$0xff] %vm2708, %v2669
        %2738 = vst.msk [vmem:[#allocation6 + $0xe8] sm:$0xff] %vm2708, %v2671
        %2739 = vst.msk [vmem:[#allocation6 + $0xf0] sm:$0xff] %vm2708, %v2673
        %2740 = vst.msk [vmem:[#allocation6 + $0xf8] sm:$0xff] %vm2708, %v2675
        %v2741 = vld [vmem:[#allocation2 + $0x21] sm:$0xff]
        %v2742 = vld [vmem:[#allocation2 + $0x29] sm:$0xff]
        %v2743 = vld [vmem:[#allocation2 + $0x31] sm:$0xff]
        %v2744 = vld [vmem:[#allocation2 + $0x39] sm:$0xff]
        %v2745 = vld [vmem:[#allocation2 + $0x41] sm:$0xff]
        %v2746 = vld [vmem:[#allocation2 + $0x49] sm:$0xff]
        %v2747 = vld [vmem:[#allocation2 + $0x51] sm:$0xff]
        %v2748 = vld [vmem:[#allocation2 + $0x59] sm:$0xff]
        %v2749 = vld [vmem:[#allocation2 + $0x61] sm:$0xff]
        %v2750 = vld [vmem:[#allocation2 + $0x69] sm:$0xff]
        %v2751 = vld [vmem:[#allocation2 + $0x71] sm:$0xff]
        %v2752 = vld [vmem:[#allocation2 + $0x79] sm:$0xff]
        %v2753 = vld [vmem:[#allocation2 + $0x81] sm:$0xff]
        %v2754 = vld [vmem:[#allocation2 + $0x89] sm:$0xff]
        %v2755 = vld [vmem:[#allocation2 + $0x91] sm:$0xff]
        %v2756 = vld [vmem:[#allocation2 + $0x99] sm:$0xff]
        %v2757 = vld [vmem:[#allocation2 + $0xa1] sm:$0xff]
        %v2758 = vld [vmem:[#allocation2 + $0xa9] sm:$0xff]
        %v2759 = vld [vmem:[#allocation2 + $0xb1] sm:$0xff]
        %v2760 = vld [vmem:[#allocation2 + $0xb9] sm:$0xff]
        %v2761 = vld [vmem:[#allocation2 + $0xc1] sm:$0xff]
        %v2762 = vld [vmem:[#allocation2 + $0xc9] sm:$0xff]
        %v2763 = vld [vmem:[#allocation2 + $0xd1] sm:$0xff]
        %v2764 = vld [vmem:[#allocation2 + $0xd9] sm:$0xff]
        %v2765 = vld [vmem:[#allocation2 + $0xe1] sm:$0xff]
        %v2766 = vld [vmem:[#allocation2 + $0xe9] sm:$0xff]
        %v2767 = vld [vmem:[#allocation2 + $0xf1] sm:$0xff]
        %v2768 = vld [vmem:[#allocation2 + $0xf9] sm:$0xff]
        %v2769 = vld [vmem:[#allocation2 + $0x101] sm:$0xff]
        %v2770 = vld [vmem:[#allocation2 + $0x109] sm:$0xff]
        %v2771 = vld [vmem:[#allocation2 + $0x111] sm:$0xff]
        %v2772 = vld [vmem:[#allocation2 + $0x119] sm:$0xff]
        %2805 = vrot.lane.b32.xlu0 %v2741, 21
        %v2806 = vpop.permute.xlu0 %2805
        %2807 = vrot.lane.b32.xlu0 %v2742, 21
        %v2808 = vpop.permute.xlu0 %2807
        %2809 = vrot.lane.b32.xlu0 %v2743, 21
        %v2810 = vpop.permute.xlu0 %2809
        %2811 = vrot.lane.b32.xlu0 %v2744, 21
        %v2812 = vpop.permute.xlu0 %2811
        %2813 = vrot.lane.b32.xlu0 %v2745, 21
        %v2814 = vpop.permute.xlu0 %2813
        %2815 = vrot.lane.b32.xlu0 %v2746, 21
        %v2816 = vpop.permute.xlu0 %2815
        %2817 = vrot.lane.b32.xlu0 %v2747, 21
        %v2818 = vpop.permute.xlu0 %2817
        %2819 = vrot.lane.b32.xlu0 %v2748, 21
        %v2820 = vpop.permute.xlu0 %2819
        %2821 = vrot.lane.b32.xlu0 %v2749, 21
        %v2822 = vpop.permute.xlu0 %2821
        %2823 = vrot.lane.b32.xlu0 %v2750, 21
        %v2824 = vpop.permute.xlu0 %2823
        %2825 = vrot.lane.b32.xlu0 %v2751, 21
        %v2826 = vpop.permute.xlu0 %2825
        %2827 = vrot.lane.b32.xlu0 %v2752, 21
        %v2828 = vpop.permute.xlu0 %2827
        %2829 = vrot.lane.b32.xlu0 %v2753, 21
        %v2830 = vpop.permute.xlu0 %2829
        %2831 = vrot.lane.b32.xlu0 %v2754, 21
        %v2832 = vpop.permute.xlu0 %2831
        %2833 = vrot.lane.b32.xlu0 %v2755, 21
        %v2834 = vpop.permute.xlu0 %2833
        %2835 = vrot.lane.b32.xlu0 %v2756, 21
        %v2836 = vpop.permute.xlu0 %2835
        %2837 = vrot.lane.b32.xlu0 %v2757, 21
        %v2838 = vpop.permute.xlu0 %2837
        %2839 = vrot.lane.b32.xlu0 %v2758, 21
        %v2840 = vpop.permute.xlu0 %2839
        %2841 = vrot.lane.b32.xlu0 %v2759, 21
        %v2842 = vpop.permute.xlu0 %2841
        %2843 = vrot.lane.b32.xlu0 %v2760, 21
        %v2844 = vpop.permute.xlu0 %2843
        %2845 = vrot.lane.b32.xlu0 %v2761, 21
        %v2846 = vpop.permute.xlu0 %2845
        %2847 = vrot.lane.b32.xlu0 %v2762, 21
        %v2848 = vpop.permute.xlu0 %2847
        %2849 = vrot.lane.b32.xlu0 %v2763, 21
        %v2850 = vpop.permute.xlu0 %2849
        %2851 = vrot.lane.b32.xlu0 %v2764, 21
        %v2852 = vpop.permute.xlu0 %2851
        %2853 = vrot.lane.b32.xlu0 %v2765, 21
        %v2854 = vpop.permute.xlu0 %2853
        %2855 = vrot.lane.b32.xlu0 %v2766, 21
        %v2856 = vpop.permute.xlu0 %2855
        %2857 = vrot.lane.b32.xlu0 %v2767, 21
        %v2858 = vpop.permute.xlu0 %2857
        %2859 = vrot.lane.b32.xlu0 %v2768, 21
        %v2860 = vpop.permute.xlu0 %2859
        %2861 = vrot.lane.b32.xlu0 %v2769, 21
        %v2862 = vpop.permute.xlu0 %2861
        %2863 = vrot.lane.b32.xlu0 %v2770, 21
        %v2864 = vpop.permute.xlu0 %2863
        %2865 = vrot.lane.b32.xlu0 %v2771, 21
        %v2866 = vpop.permute.xlu0 %2865
        %2867 = vrot.lane.b32.xlu0 %v2772, 21
        %v2868 = vpop.permute.xlu0 %2867
        %vm2901 = vcmask 195752
        %2902 = vst.msk [vmem:[#allocation6] sm:$0xff] %vm2901, %v2806
        %2903 = vst.msk [vmem:[#allocation6 + $0x8] sm:$0xff] %vm2901, %v2808
        %2904 = vst.msk [vmem:[#allocation6 + $0x10] sm:$0xff] %vm2901, %v2810
        %2905 = vst.msk [vmem:[#allocation6 + $0x18] sm:$0xff] %vm2901, %v2812
        %2906 = vst.msk [vmem:[#allocation6 + $0x20] sm:$0xff] %vm2901, %v2814
        %2907 = vst.msk [vmem:[#allocation6 + $0x28] sm:$0xff] %vm2901, %v2816
        %2908 = vst.msk [vmem:[#allocation6 + $0x30] sm:$0xff] %vm2901, %v2818
        %2909 = vst.msk [vmem:[#allocation6 + $0x38] sm:$0xff] %vm2901, %v2820
        %2910 = vst.msk [vmem:[#allocation6 + $0x40] sm:$0xff] %vm2901, %v2822
        %2911 = vst.msk [vmem:[#allocation6 + $0x48] sm:$0xff] %vm2901, %v2824
        %2912 = vst.msk [vmem:[#allocation6 + $0x50] sm:$0xff] %vm2901, %v2826
        %2913 = vst.msk [vmem:[#allocation6 + $0x58] sm:$0xff] %vm2901, %v2828
        %2914 = vst.msk [vmem:[#allocation6 + $0x60] sm:$0xff] %vm2901, %v2830
        %2915 = vst.msk [vmem:[#allocation6 + $0x68] sm:$0xff] %vm2901, %v2832
        %2916 = vst.msk [vmem:[#allocation6 + $0x70] sm:$0xff] %vm2901, %v2834
        %2917 = vst.msk [vmem:[#allocation6 + $0x78] sm:$0xff] %vm2901, %v2836
        %2918 = vst.msk [vmem:[#allocation6 + $0x80] sm:$0xff] %vm2901, %v2838
        %2919 = vst.msk [vmem:[#allocation6 + $0x88] sm:$0xff] %vm2901, %v2840
        %2920 = vst.msk [vmem:[#allocation6 + $0x90] sm:$0xff] %vm2901, %v2842
        %2921 = vst.msk [vmem:[#allocation6 + $0x98] sm:$0xff] %vm2901, %v2844
        %2922 = vst.msk [vmem:[#allocation6 + $0xa0] sm:$0xff] %vm2901, %v2846
        %2923 = vst.msk [vmem:[#allocation6 + $0xa8] sm:$0xff] %vm2901, %v2848
        %2924 = vst.msk [vmem:[#allocation6 + $0xb0] sm:$0xff] %vm2901, %v2850
        %2925 = vst.msk [vmem:[#allocation6 + $0xb8] sm:$0xff] %vm2901, %v2852
        %2926 = vst.msk [vmem:[#allocation6 + $0xc0] sm:$0xff] %vm2901, %v2854
        %2927 = vst.msk [vmem:[#allocation6 + $0xc8] sm:$0xff] %vm2901, %v2856
        %2928 = vst.msk [vmem:[#allocation6 + $0xd0] sm:$0xff] %vm2901, %v2858
        %2929 = vst.msk [vmem:[#allocation6 + $0xd8] sm:$0xff] %vm2901, %v2860
        %2930 = vst.msk [vmem:[#allocation6 + $0xe0] sm:$0xff] %vm2901, %v2862
        %2931 = vst.msk [vmem:[#allocation6 + $0xe8] sm:$0xff] %vm2901, %v2864
        %2932 = vst.msk [vmem:[#allocation6 + $0xf0] sm:$0xff] %vm2901, %v2866
        %2933 = vst.msk [vmem:[#allocation6 + $0xf8] sm:$0xff] %vm2901, %v2868
        %v2934 = vld [vmem:[#allocation2 + $0x22] sm:$0xff]
        %v2935 = vld [vmem:[#allocation2 + $0x2a] sm:$0xff]
        %v2936 = vld [vmem:[#allocation2 + $0x32] sm:$0xff]
        %v2937 = vld [vmem:[#allocation2 + $0x3a] sm:$0xff]
        %v2938 = vld [vmem:[#allocation2 + $0x42] sm:$0xff]
        %v2939 = vld [vmem:[#allocation2 + $0x4a] sm:$0xff]
        %v2940 = vld [vmem:[#allocation2 + $0x52] sm:$0xff]
        %v2941 = vld [vmem:[#allocation2 + $0x5a] sm:$0xff]
        %v2942 = vld [vmem:[#allocation2 + $0x62] sm:$0xff]
        %v2943 = vld [vmem:[#allocation2 + $0x6a] sm:$0xff]
        %v2944 = vld [vmem:[#allocation2 + $0x72] sm:$0xff]
        %v2945 = vld [vmem:[#allocation2 + $0x7a] sm:$0xff]
        %v2946 = vld [vmem:[#allocation2 + $0x82] sm:$0xff]
        %v2947 = vld [vmem:[#allocation2 + $0x8a] sm:$0xff]
        %v2948 = vld [vmem:[#allocation2 + $0x92] sm:$0xff]
        %v2949 = vld [vmem:[#allocation2 + $0x9a] sm:$0xff]
        %v2950 = vld [vmem:[#allocation2 + $0xa2] sm:$0xff]
        %v2951 = vld [vmem:[#allocation2 + $0xaa] sm:$0xff]
        %v2952 = vld [vmem:[#allocation2 + $0xb2] sm:$0xff]
        %v2953 = vld [vmem:[#allocation2 + $0xba] sm:$0xff]
        %v2954 = vld [vmem:[#allocation2 + $0xc2] sm:$0xff]
        %v2955 = vld [vmem:[#allocation2 + $0xca] sm:$0xff]
        %v2956 = vld [vmem:[#allocation2 + $0xd2] sm:$0xff]
        %v2957 = vld [vmem:[#allocation2 + $0xda] sm:$0xff]
        %v2958 = vld [vmem:[#allocation2 + $0xe2] sm:$0xff]
        %v2959 = vld [vmem:[#allocation2 + $0xea] sm:$0xff]
        %v2960 = vld [vmem:[#allocation2 + $0xf2] sm:$0xff]
        %v2961 = vld [vmem:[#allocation2 + $0xfa] sm:$0xff]
        %v2962 = vld [vmem:[#allocation2 + $0x102] sm:$0xff]
        %v2963 = vld [vmem:[#allocation2 + $0x10a] sm:$0xff]
        %v2964 = vld [vmem:[#allocation2 + $0x112] sm:$0xff]
        %v2965 = vld [vmem:[#allocation2 + $0x11a] sm:$0xff]
        %v2966 = vsel %vm1648, %v2934, 0.0
        %v2967 = vsel %vm1649, %v2935, 0.0
        %v2968 = vsel %vm1650, %v2936, 0.0
        %v2969 = vsel %vm1651, %v2937, 0.0
        %v2970 = vsel %vm1652, %v2938, 0.0
        %v2971 = vsel %vm1653, %v2939, 0.0
        %v2972 = vsel %vm1654, %v2940, 0.0
        %v2973 = vsel %vm1655, %v2941, 0.0
        %v2974 = vsel %vm1656, %v2942, 0.0
        %v2975 = vsel %vm1657, %v2943, 0.0
        %v2976 = vsel %vm1658, %v2944, 0.0
        %v2977 = vsel %vm1659, %v2945, 0.0
        %v2978 = vsel %vm1660, %v2946, 0.0
        %v2979 = vsel %vm1661, %v2947, 0.0
        %v2980 = vsel %vm1662, %v2948, 0.0
        %v2981 = vsel %vm1663, %v2949, 0.0
        %v2982 = vsel %vm1664, %v2950, 0.0
        %v2983 = vsel %vm1665, %v2951, 0.0
        %v2984 = vsel %vm1666, %v2952, 0.0
        %v2985 = vsel %vm1667, %v2953, 0.0
        %v2986 = vsel %vm1668, %v2954, 0.0
        %v2987 = vsel %vm1669, %v2955, 0.0
        %v2988 = vsel %vm1670, %v2956, 0.0
        %v2989 = vsel %vm1671, %v2957, 0.0
        %v2990 = vsel %vm1672, %v2958, 0.0
        %v2991 = vsel %vm1673, %v2959, 0.0
        %v2992 = vsel %vm1674, %v2960, 0.0
        %v2993 = vsel %vm1675, %v2961, 0.0
        %v2994 = vsel %vm1676, %v2962, 0.0
        %v2995 = vsel %vm1677, %v2963, 0.0
        %v2996 = vsel %vm1678, %v2964, 0.0
        %v2997 = vsel %vm1679, %v2965, 0.0
        %3030 = vrot.lane.b32.xlu0 %v2966, 24
        %v3031 = vpop.permute.xlu0 %3030
        %3032 = vrot.lane.b32.xlu0 %v2967, 24
        %v3033 = vpop.permute.xlu0 %3032
        %3034 = vrot.lane.b32.xlu0 %v2968, 24
        %v3035 = vpop.permute.xlu0 %3034
        %3036 = vrot.lane.b32.xlu0 %v2969, 24
        %v3037 = vpop.permute.xlu0 %3036
        %3038 = vrot.lane.b32.xlu0 %v2970, 24
        %v3039 = vpop.permute.xlu0 %3038
        %3040 = vrot.lane.b32.xlu0 %v2971, 24
        %v3041 = vpop.permute.xlu0 %3040
        %3042 = vrot.lane.b32.xlu0 %v2972, 24
        %v3043 = vpop.permute.xlu0 %3042
        %3044 = vrot.lane.b32.xlu0 %v2973, 24
        %v3045 = vpop.permute.xlu0 %3044
        %3046 = vrot.lane.b32.xlu0 %v2974, 24
        %v3047 = vpop.permute.xlu0 %3046
        %3048 = vrot.lane.b32.xlu0 %v2975, 24
        %v3049 = vpop.permute.xlu0 %3048
        %3050 = vrot.lane.b32.xlu0 %v2976, 24
        %v3051 = vpop.permute.xlu0 %3050
        %3052 = vrot.lane.b32.xlu0 %v2977, 24
        %v3053 = vpop.permute.xlu0 %3052
        %3054 = vrot.lane.b32.xlu0 %v2978, 24
        %v3055 = vpop.permute.xlu0 %3054
        %3056 = vrot.lane.b32.xlu0 %v2979, 24
        %v3057 = vpop.permute.xlu0 %3056
        %3058 = vrot.lane.b32.xlu0 %v2980, 24
        %v3059 = vpop.permute.xlu0 %3058
        %3060 = vrot.lane.b32.xlu0 %v2981, 24
        %v3061 = vpop.permute.xlu0 %3060
        %3062 = vrot.lane.b32.xlu0 %v2982, 24
        %v3063 = vpop.permute.xlu0 %3062
        %3064 = vrot.lane.b32.xlu0 %v2983, 24
        %v3065 = vpop.permute.xlu0 %3064
        %3066 = vrot.lane.b32.xlu0 %v2984, 24
        %v3067 = vpop.permute.xlu0 %3066
        %3068 = vrot.lane.b32.xlu0 %v2985, 24
        %v3069 = vpop.permute.xlu0 %3068
        %3070 = vrot.lane.b32.xlu0 %v2986, 24
        %v3071 = vpop.permute.xlu0 %3070
        %3072 = vrot.lane.b32.xlu0 %v2987, 24
        %v3073 = vpop.permute.xlu0 %3072
        %3074 = vrot.lane.b32.xlu0 %v2988, 24
        %v3075 = vpop.permute.xlu0 %3074
        %3076 = vrot.lane.b32.xlu0 %v2989, 24
        %v3077 = vpop.permute.xlu0 %3076
        %3078 = vrot.lane.b32.xlu0 %v2990, 24
        %v3079 = vpop.permute.xlu0 %3078
        %3080 = vrot.lane.b32.xlu0 %v2991, 24
        %v3081 = vpop.permute.xlu0 %3080
        %3082 = vrot.lane.b32.xlu0 %v2992, 24
        %v3083 = vpop.permute.xlu0 %3082
        %3084 = vrot.lane.b32.xlu0 %v2993, 24
        %v3085 = vpop.permute.xlu0 %3084
        %3086 = vrot.lane.b32.xlu0 %v2994, 24
        %v3087 = vpop.permute.xlu0 %3086
        %3088 = vrot.lane.b32.xlu0 %v2995, 24
        %v3089 = vpop.permute.xlu0 %3088
        %3090 = vrot.lane.b32.xlu0 %v2996, 24
        %v3091 = vpop.permute.xlu0 %3090
        %3092 = vrot.lane.b32.xlu0 %v2997, 24
        %v3093 = vpop.permute.xlu0 %3092
        %vm3126 = vcmask 220352
        %3127 = vst.msk [vmem:[#allocation6] sm:$0xff] %vm3126, %v3031
        %3128 = vst.msk [vmem:[#allocation6 + $0x8] sm:$0xff] %vm3126, %v3033
        %3129 = vst.msk [vmem:[#allocation6 + $0x10] sm:$0xff] %vm3126, %v3035
        %3130 = vst.msk [vmem:[#allocation6 + $0x18] sm:$0xff] %vm3126, %v3037
        %3131 = vst.msk [vmem:[#allocation6 + $0x20] sm:$0xff] %vm3126, %v3039
        %3132 = vst.msk [vmem:[#allocation6 + $0x28] sm:$0xff] %vm3126, %v3041
        %3133 = vst.msk [vmem:[#allocation6 + $0x30] sm:$0xff] %vm3126, %v3043
        %3134 = vst.msk [vmem:[#allocation6 + $0x38] sm:$0xff] %vm3126, %v3045
        %3135 = vst.msk [vmem:[#allocation6 + $0x40] sm:$0xff] %vm3126, %v3047
        %3136 = vst.msk [vmem:[#allocation6 + $0x48] sm:$0xff] %vm3126, %v3049
        %3137 = vst.msk [vmem:[#allocation6 + $0x50] sm:$0xff] %vm3126, %v3051
        %3138 = vst.msk [vmem:[#allocation6 + $0x58] sm:$0xff] %vm3126, %v3053
        %3139 = vst.msk [vmem:[#allocation6 + $0x60] sm:$0xff] %vm3126, %v3055
        %3140 = vst.msk [vmem:[#allocation6 + $0x68] sm:$0xff] %vm3126, %v3057
        %3141 = vst.msk [vmem:[#allocation6 + $0x70] sm:$0xff] %vm3126, %v3059
        %3142 = vst.msk [vmem:[#allocation6 + $0x78] sm:$0xff] %vm3126, %v3061
        %3143 = vst.msk [vmem:[#allocation6 + $0x80] sm:$0xff] %vm3126, %v3063
        %3144 = vst.msk [vmem:[#allocation6 + $0x88] sm:$0xff] %vm3126, %v3065
        %3145 = vst.msk [vmem:[#allocation6 + $0x90] sm:$0xff] %vm3126, %v3067
        %3146 = vst.msk [vmem:[#allocation6 + $0x98] sm:$0xff] %vm3126, %v3069
        %3147 = vst.msk [vmem:[#allocation6 + $0xa0] sm:$0xff] %vm3126, %v3071
        %3148 = vst.msk [vmem:[#allocation6 + $0xa8] sm:$0xff] %vm3126, %v3073
        %3149 = vst.msk [vmem:[#allocation6 + $0xb0] sm:$0xff] %vm3126, %v3075
        %3150 = vst.msk [vmem:[#allocation6 + $0xb8] sm:$0xff] %vm3126, %v3077
        %3151 = vst.msk [vmem:[#allocation6 + $0xc0] sm:$0xff] %vm3126, %v3079
        %3152 = vst.msk [vmem:[#allocation6 + $0xc8] sm:$0xff] %vm3126, %v3081
        %3153 = vst.msk [vmem:[#allocation6 + $0xd0] sm:$0xff] %vm3126, %v3083
        %3154 = vst.msk [vmem:[#allocation6 + $0xd8] sm:$0xff] %vm3126, %v3085
        %3155 = vst.msk [vmem:[#allocation6 + $0xe0] sm:$0xff] %vm3126, %v3087
        %3156 = vst.msk [vmem:[#allocation6 + $0xe8] sm:$0xff] %vm3126, %v3089
        %3157 = vst.msk [vmem:[#allocation6 + $0xf0] sm:$0xff] %vm3126, %v3091
        %3158 = vst.msk [vmem:[#allocation6 + $0xf8] sm:$0xff] %vm3126, %v3093
        %v3159 = vld [vmem:[#allocation6] sm:$0xff]
        %v3160 = vld [vmem:[#allocation6 + $0x8] sm:$0xff]
        %v3161 = vld [vmem:[#allocation6 + $0x10] sm:$0xff]
        %v3162 = vld [vmem:[#allocation6 + $0x18] sm:$0xff]
        %v3163 = vld [vmem:[#allocation6 + $0x20] sm:$0xff]
        %v3164 = vld [vmem:[#allocation6 + $0x28] sm:$0xff]
        %v3165 = vld [vmem:[#allocation6 + $0x30] sm:$0xff]
        %v3166 = vld [vmem:[#allocation6 + $0x38] sm:$0xff]
        %v3167 = vld [vmem:[#allocation6 + $0x40] sm:$0xff]
        %v3168 = vld [vmem:[#allocation6 + $0x48] sm:$0xff]
        %v3169 = vld [vmem:[#allocation6 + $0x50] sm:$0xff]
        %v3170 = vld [vmem:[#allocation6 + $0x58] sm:$0xff]
        %v3171 = vld [vmem:[#allocation6 + $0x60] sm:$0xff]
        %v3172 = vld [vmem:[#allocation6 + $0x68] sm:$0xff]
        %v3173 = vld [vmem:[#allocation6 + $0x70] sm:$0xff]
        %v3174 = vld [vmem:[#allocation6 + $0x78] sm:$0xff]
        %v3175 = vld [vmem:[#allocation6 + $0x80] sm:$0xff]
        %v3176 = vld [vmem:[#allocation6 + $0x88] sm:$0xff]
        %v3177 = vld [vmem:[#allocation6 + $0x90] sm:$0xff]
        %v3178 = vld [vmem:[#allocation6 + $0x98] sm:$0xff]
        %v3179 = vld [vmem:[#allocation6 + $0xa0] sm:$0xff]
        %v3180 = vld [vmem:[#allocation6 + $0xa8] sm:$0xff]
        %v3181 = vld [vmem:[#allocation6 + $0xb0] sm:$0xff]
        %v3182 = vld [vmem:[#allocation6 + $0xb8] sm:$0xff]
        %v3183 = vld [vmem:[#allocation6 + $0xc0] sm:$0xff]
        %v3184 = vld [vmem:[#allocation6 + $0xc8] sm:$0xff]
        %v3185 = vld [vmem:[#allocation6 + $0xd0] sm:$0xff]
        %v3186 = vld [vmem:[#allocation6 + $0xd8] sm:$0xff]
        %v3187 = vld [vmem:[#allocation6 + $0xe0] sm:$0xff]
        %v3188 = vld [vmem:[#allocation6 + $0xe8] sm:$0xff]
        %v3189 = vld [vmem:[#allocation6 + $0xf0] sm:$0xff]
        %v3190 = vld [vmem:[#allocation6 + $0xf8] sm:$0xff]
        %v3191 = vld [vmem:[%s1] sm:$0xff]
        %v3192 = vld [vmem:[%s1 + $0x8] sm:$0xff]
        %v3193 = vld [vmem:[%s1 + $0x10] sm:$0xff]
        %v3194 = vld [vmem:[%s1 + $0x18] sm:$0x7]
        %v3195 = vld [vmem:[%s2] sm:$0x1]
        %v3197 = vlaneseq
        %v3198 = vshrl.u32 %v3197, 7
        %v3199 = vsub.s32 0, %v3198
        %v3200 = vrot.slane %v3195, %v3199
        %vm3202 = vcmask 220160
        %v3204 = vsel %vm3202, %v3159, 0
        %v3207 = vsel %vm3202, %v3160, 0
        %v3210 = vsel %vm3202, %v3161, 0
        %v3213 = vsel %vm3202, %v3162, 0
        %v3216 = vsel %vm3202, %v3163, 0
        %v3219 = vsel %vm3202, %v3164, 0
        %v3222 = vsel %vm3202, %v3165, 0
        %v3225 = vsel %vm3202, %v3166, 0
        %v3228 = vsel %vm3202, %v3167, 0
        %v3231 = vsel %vm3202, %v3168, 0
        %v3234 = vsel %vm3202, %v3169, 0
        %v3237 = vsel %vm3202, %v3170, 0
        %v3240 = vsel %vm3202, %v3171, 0
        %v3243 = vsel %vm3202, %v3172, 0
        %v3246 = vsel %vm3202, %v3173, 0
        %v3249 = vsel %vm3202, %v3174, 0
        %v3252 = vsel %vm3202, %v3175, 0
        %v3255 = vsel %vm3202, %v3176, 0
        %v3258 = vsel %vm3202, %v3177, 0
        %v3261 = vsel %vm3202, %v3178, 0
        %v3264 = vsel %vm3202, %v3179, 0
        %v3267 = vsel %vm3202, %v3180, 0
        %v3270 = vsel %vm3202, %v3181, 0
        %v3273 = vsel %vm3202, %v3182, 0
        %v3276 = vsel %vm3202, %v3183, 0
        %v3279 = vsel %vm3202, %v3184, 0
        %v3282 = vsel %vm3202, %v3185, 0
        %v3285 = vsel %vm3202, %v3186, 0
        %v3288 = vsel %vm3202, %v3187, 0
        %v3291 = vsel %vm3202, %v3188, 0
        %v3294 = vsel %vm3202, %v3189, 0
        %v3297 = vsel %vm3202, %v3190, 0
        %vm3299 = vcmask 1042432
        %v3301 = vsel %vm3299, %v3194, 0
        %3303 = vmatprep.subr.mxu0 0.0
        %3304 = vmatpush1.msra.mxu0 0.0
        %3305 = vmatprep.subr.mxu0 0.0
        %3306 = vmatpush1.msra.mxu0 0.0
        %3307 = vmatprep.subr.mxu0 0.0
        %3308 = vmatpush1.msra.mxu0 0.0
        %3309 = vmatprep.subr.mxu0 0.0
        %3310 = vmatpush1.msra.mxu0 0.0
        %3311 = vmatprep.subr.mxu0 0.0
        %3312 = vmatpush1.msra.mxu0 0.0
        %3313 = vmatprep.subr.mxu0 0.0
        %3314 = vmatpush1.msra.mxu0 0.0
        %3315 = vmatprep.subr.mxu0 0.0
        %3316 = vmatpush1.msra.mxu0 0.0
        %3317 = vmatprep.subr.mxu0 0.0
        %3318 = vmatpush1.msra.mxu0 0.0
        %3319 = vmatprep.subr.mxu0 0.0
        %3320 = vmatpush1.msra.mxu0 0.0
        %3321 = vmatprep.subr.mxu0 0.0
        %3322 = vmatpush1.msra.mxu0 0.0
        %3323 = vmatprep.subr.mxu0 0.0
        %3324 = vmatpush1.msra.mxu0 0.0
        %3325 = vmatprep.subr.mxu0 0.0
        %3326 = vmatpush1.msra.mxu0 0.0
        %3327 = vmatprep.subr.mxu0 0.0
        %3328 = vmatpush1.msra.mxu0 %v3301
        %3329 = vmatprep.subr.mxu0 0.0
        %3330 = vmatpush1.msra.mxu0 %v3193
        %3331 = vmatprep.subr.mxu0 0.0
        %3332 = vmatpush1.msra.mxu0 %v3192
        %3333 = vmatprep.subr.mxu0 0.0
        %3334 = vmatpush1.msra.mxu0 %v3191
        %3335 = vmatprep.subr.mxu0 0.0
        %3336 = vmatpush2.msra.mxu0 0.0
        %3337 = vmatprep.subr.mxu0 0.0
        %3338 = vmatpush2.msra.mxu0 0.0
        %3339 = vmatprep.subr.mxu0 0.0
        %3340 = vmatpush2.msra.mxu0 0.0
        %3341 = vmatprep.subr.mxu0 0.0
        %3342 = vmatpush2.msra.mxu0 0.0
        %3343 = vmatprep.subr.mxu0 0.0
        %3344 = vmatpush2.msra.mxu0 0.0
        %3345 = vmatprep.subr.mxu0 0.0
        %3346 = vmatpush2.msra.mxu0 0.0
        %3347 = vmatprep.subr.mxu0 0.0
        %3348 = vmatpush2.msra.mxu0 0.0
        %3349 = vmatprep.subr.mxu0 0.0
        %3350 = vmatpush2.msra.mxu0 0.0
        %3351 = vmatprep.subr.mxu0 0.0
        %3352 = vmatpush2.msra.mxu0 0.0
        %3353 = vmatprep.subr.mxu0 0.0
        %3354 = vmatpush2.msra.mxu0 0.0
        %3355 = vmatprep.subr.mxu0 0.0
        %3356 = vmatpush2.msra.mxu0 0.0
        %3357 = vmatprep.subr.mxu0 0.0
        %3358 = vmatpush2.msra.mxu0 0.0
        %3359 = vmatprep.subr.mxu0 0.0
        %3360 = vmatpush2.msra.mxu0 0.0
        %3361 = vmatprep.subr.mxu0 0.0
        %3362 = vmatpush2.msra.mxu0 0.0
        %3363 = vmatprep.subr.mxu0 0.0
        %3364 = vmatpush2.msra.mxu0 0.0
        %3365 = vmatprep.subr.mxu0 0.0
        %3366 = vmatpush2.msra.mxu0 0.0
        %3367 = vmatprep.mubr.f32.mxu0 0.0
        %3368 = vmatmul.mubr.f32.gmra.mxu0 %v3204
        %v3369 = vpop.f32.mrf.mxu0
        %v3370 = vadd.f32 %v3200, %v3369
        %v3371 = vpop.f32.mrf.mxu0
        %3372 = vmatprep.mubr.f32.mxu0 0.0
        %3373 = vmatmul.mubr.f32.gmra.mxu0 %v3207
        %v3374 = vpop.f32.mrf.mxu0
        %v3375 = vadd.f32 %v3200, %v3374
        %v3376 = vpop.f32.mrf.mxu0
        %3377 = vmatprep.mubr.f32.mxu0 0.0
        %3378 = vmatmul.mubr.f32.gmra.mxu0 %v3210
        %v3379 = vpop.f32.mrf.mxu0
        %v3380 = vadd.f32 %v3200, %v3379
        %v3381 = vpop.f32.mrf.mxu0
        %3382 = vmatprep.mubr.f32.mxu0 0.0
        %3383 = vmatmul.mubr.f32.gmra.mxu0 %v3213
        %v3384 = vpop.f32.mrf.mxu0
        %v3385 = vadd.f32 %v3200, %v3384
        %v3386 = vpop.f32.mrf.mxu0
        %3387 = vmatprep.mubr.f32.mxu0 0.0
        %3388 = vmatmul.mubr.f32.gmra.mxu0 %v3216
        %v3389 = vpop.f32.mrf.mxu0
        %v3390 = vadd.f32 %v3200, %v3389
        %v3391 = vpop.f32.mrf.mxu0
        %3392 = vmatprep.mubr.f32.mxu0 0.0
        %3393 = vmatmul.mubr.f32.gmra.mxu0 %v3219
        %v3394 = vpop.f32.mrf.mxu0
        %v3395 = vadd.f32 %v3200, %v3394
        %v3396 = vpop.f32.mrf.mxu0
        %3397 = vmatprep.mubr.f32.mxu0 0.0
        %3398 = vmatmul.mubr.f32.gmra.mxu0 %v3222
        %v3399 = vpop.f32.mrf.mxu0
        %v3400 = vadd.f32 %v3200, %v3399
        %v3401 = vpop.f32.mrf.mxu0
        %3402 = vmatprep.mubr.f32.mxu0 0.0
        %3403 = vmatmul.mubr.f32.gmra.mxu0 %v3225
        %v3404 = vpop.f32.mrf.mxu0
        %v3405 = vadd.f32 %v3200, %v3404
        %v3406 = vpop.f32.mrf.mxu0
        %3407 = vmatprep.mubr.f32.mxu0 0.0
        %3408 = vmatmul.mubr.f32.gmra.mxu0 %v3228
        %v3409 = vpop.f32.mrf.mxu0
        %v3410 = vadd.f32 %v3200, %v3409
        %v3411 = vpop.f32.mrf.mxu0
        %3412 = vmatprep.mubr.f32.mxu0 0.0
        %3413 = vmatmul.mubr.f32.gmra.mxu0 %v3231
        %v3414 = vpop.f32.mrf.mxu0
        %v3415 = vadd.f32 %v3200, %v3414
        %v3416 = vpop.f32.mrf.mxu0
        %3417 = vmatprep.mubr.f32.mxu0 0.0
        %3418 = vmatmul.mubr.f32.gmra.mxu0 %v3234
        %v3419 = vpop.f32.mrf.mxu0
        %v3420 = vadd.f32 %v3200, %v3419
        %v3421 = vpop.f32.mrf.mxu0
        %3422 = vmatprep.mubr.f32.mxu0 0.0
        %3423 = vmatmul.mubr.f32.gmra.mxu0 %v3237
        %v3424 = vpop.f32.mrf.mxu0
        %v3425 = vadd.f32 %v3200, %v3424
        %v3426 = vpop.f32.mrf.mxu0
        %3427 = vmatprep.mubr.f32.mxu0 0.0
        %3428 = vmatmul.mubr.f32.gmra.mxu0 %v3240
        %v3429 = vpop.f32.mrf.mxu0
        %v3430 = vadd.f32 %v3200, %v3429
        %v3431 = vpop.f32.mrf.mxu0
        %3432 = vmatprep.mubr.f32.mxu0 0.0
        %3433 = vmatmul.mubr.f32.gmra.mxu0 %v3243
        %v3434 = vpop.f32.mrf.mxu0
        %v3435 = vadd.f32 %v3200, %v3434
        %v3436 = vpop.f32.mrf.mxu0
        %3437 = vmatprep.mubr.f32.mxu0 0.0
        %3438 = vmatmul.mubr.f32.gmra.mxu0 %v3246
        %v3439 = vpop.f32.mrf.mxu0
        %v3440 = vadd.f32 %v3200, %v3439
        %v3441 = vpop.f32.mrf.mxu0
        %3442 = vmatprep.mubr.f32.mxu0 0.0
        %3443 = vmatmul.mubr.f32.gmra.mxu0 %v3249
        %v3444 = vpop.f32.mrf.mxu0
        %v3445 = vadd.f32 %v3200, %v3444
        %v3446 = vpop.f32.mrf.mxu0
        %3447 = vmatprep.mubr.f32.mxu0 0.0
        %3448 = vmatmul.mubr.f32.gmra.mxu0 %v3252
        %v3449 = vpop.f32.mrf.mxu0
        %v3450 = vadd.f32 %v3200, %v3449
        %v3451 = vpop.f32.mrf.mxu0
        %3452 = vmatprep.mubr.f32.mxu0 0.0
        %3453 = vmatmul.mubr.f32.gmra.mxu0 %v3255
        %v3454 = vpop.f32.mrf.mxu0
        %v3455 = vadd.f32 %v3200, %v3454
        %v3456 = vpop.f32.mrf.mxu0
        %3457 = vmatprep.mubr.f32.mxu0 0.0
        %3458 = vmatmul.mubr.f32.gmra.mxu0 %v3258
        %v3459 = vpop.f32.mrf.mxu0
        %v3460 = vadd.f32 %v3200, %v3459
        %v3461 = vpop.f32.mrf.mxu0
        %3462 = vmatprep.mubr.f32.mxu0 0.0
        %3463 = vmatmul.mubr.f32.gmra.mxu0 %v3261
        %v3464 = vpop.f32.mrf.mxu0
        %v3465 = vadd.f32 %v3200, %v3464
        %v3466 = vpop.f32.mrf.mxu0
        %3467 = vmatprep.mubr.f32.mxu0 0.0
        %3468 = vmatmul.mubr.f32.gmra.mxu0 %v3264
        %v3469 = vpop.f32.mrf.mxu0
        %v3470 = vadd.f32 %v3200, %v3469
        %v3471 = vpop.f32.mrf.mxu0
        %3472 = vmatprep.mubr.f32.mxu0 0.0
        %3473 = vmatmul.mubr.f32.gmra.mxu0 %v3267
        %v3474 = vpop.f32.mrf.mxu0
        %v3475 = vadd.f32 %v3200, %v3474
        %v3476 = vpop.f32.mrf.mxu0
        %3477 = vmatprep.mubr.f32.mxu0 0.0
        %3478 = vmatmul.mubr.f32.gmra.mxu0 %v3270
        %v3479 = vpop.f32.mrf.mxu0
        %v3480 = vadd.f32 %v3200, %v3479
        %v3481 = vpop.f32.mrf.mxu0
        %3482 = vmatprep.mubr.f32.mxu0 0.0
        %3483 = vmatmul.mubr.f32.gmra.mxu0 %v3273
        %v3484 = vpop.f32.mrf.mxu0
        %v3485 = vadd.f32 %v3200, %v3484
        %v3486 = vpop.f32.mrf.mxu0
        %3487 = vmatprep.mubr.f32.mxu0 0.0
        %3488 = vmatmul.mubr.f32.gmra.mxu0 %v3276
        %v3489 = vpop.f32.mrf.mxu0
        %v3490 = vadd.f32 %v3200, %v3489
        %v3491 = vpop.f32.mrf.mxu0
        %3492 = vmatprep.mubr.f32.mxu0 0.0
        %3493 = vmatmul.mubr.f32.gmra.mxu0 %v3279
        %v3494 = vpop.f32.mrf.mxu0
        %v3495 = vadd.f32 %v3200, %v3494
        %v3496 = vpop.f32.mrf.mxu0
        %3497 = vmatprep.mubr.f32.mxu0 0.0
        %3498 = vmatmul.mubr.f32.gmra.mxu0 %v3282
        %v3499 = vpop.f32.mrf.mxu0
        %v3500 = vadd.f32 %v3200, %v3499
        %v3501 = vpop.f32.mrf.mxu0
        %3502 = vmatprep.mubr.f32.mxu0 0.0
        %3503 = vmatmul.mubr.f32.gmra.mxu0 %v3285
        %v3504 = vpop.f32.mrf.mxu0
        %v3505 = vadd.f32 %v3200, %v3504
        %v3506 = vpop.f32.mrf.mxu0
        %3507 = vmatprep.mubr.f32.mxu0 0.0
        %3508 = vmatmul.mubr.f32.gmra.mxu0 %v3288
        %v3509 = vpop.f32.mrf.mxu0
        %v3510 = vadd.f32 %v3200, %v3509
        %v3511 = vpop.f32.mrf.mxu0
        %3512 = vmatprep.mubr.f32.mxu0 0.0
        %3513 = vmatmul.mubr.f32.gmra.mxu0 %v3291
        %v3514 = vpop.f32.mrf.mxu0
        %v3515 = vadd.f32 %v3200, %v3514
        %v3516 = vpop.f32.mrf.mxu0
        %3517 = vmatprep.mubr.f32.mxu0 0.0
        %3518 = vmatmul.mubr.f32.gmra.mxu0 %v3294
        %v3519 = vpop.f32.mrf.mxu0
        %v3520 = vadd.f32 %v3200, %v3519
        %v3521 = vpop.f32.mrf.mxu0
        %3522 = vmatprep.mubr.f32.mxu0 0.0
        %3523 = vmatmul.mubr.f32.gmra.mxu0 %v3297
        %v3524 = vpop.f32.mrf.mxu0
        %v3525 = vadd.f32 %v3200, %v3524
        %v3526 = vpop.f32.mrf.mxu0
        %3527 = vdwg.mxu0
        %v3528 = vmax.f32 %v3370, 0.0
        %v3529 = vmax.f32 %v3375, 0.0
        %v3530 = vmax.f32 %v3380, 0.0
        %v3531 = vmax.f32 %v3385, 0.0
        %v3532 = vmax.f32 %v3390, 0.0
        %v3533 = vmax.f32 %v3395, 0.0
        %v3534 = vmax.f32 %v3400, 0.0
        %v3535 = vmax.f32 %v3405, 0.0
        %v3536 = vmax.f32 %v3410, 0.0
        %v3537 = vmax.f32 %v3415, 0.0
        %v3538 = vmax.f32 %v3420, 0.0
        %v3539 = vmax.f32 %v3425, 0.0
        %v3540 = vmax.f32 %v3430, 0.0
        %v3541 = vmax.f32 %v3435, 0.0
        %v3542 = vmax.f32 %v3440, 0.0
        %v3543 = vmax.f32 %v3445, 0.0
        %v3544 = vmax.f32 %v3450, 0.0
        %v3545 = vmax.f32 %v3455, 0.0
        %v3546 = vmax.f32 %v3460, 0.0
        %v3547 = vmax.f32 %v3465, 0.0
        %v3548 = vmax.f32 %v3470, 0.0
        %v3549 = vmax.f32 %v3475, 0.0
        %v3550 = vmax.f32 %v3480, 0.0
        %v3551 = vmax.f32 %v3485, 0.0
        %v3552 = vmax.f32 %v3490, 0.0
        %v3553 = vmax.f32 %v3495, 0.0
        %v3554 = vmax.f32 %v3500, 0.0
        %v3555 = vmax.f32 %v3505, 0.0
        %v3556 = vmax.f32 %v3510, 0.0
        %v3557 = vmax.f32 %v3515, 0.0
        %v3558 = vmax.f32 %v3520, 0.0
        %v3559 = vmax.f32 %v3525, 0.0
        %vm3590 = vcmask 1046528
        %v3591 = vrot.slane %v3528, 1
        %v3592 = vrot.slane %v3529, 1
        %v3593 = vsel %vm3590, %v3591, %v3592
        %v3594 = vrot.slane %v3530, 1
        %v3595 = vsel %vm3590, %v3592, %v3594
        %v3596 = vrot.slane %v3531, 1
        %v3597 = vsel %vm3590, %v3594, %v3596
        %v3598 = vrot.slane %v3532, 1
        %v3599 = vsel %vm3590, %v3596, %v3598
        %v3600 = vrot.slane %v3533, 1
        %v3601 = vsel %vm3590, %v3598, %v3600
        %v3602 = vrot.slane %v3534, 1
        %v3603 = vsel %vm3590, %v3600, %v3602
        %v3604 = vrot.slane %v3535, 1
        %v3605 = vsel %vm3590, %v3602, %v3604
        %v3606 = vrot.slane %v3536, 1
        %v3607 = vsel %vm3590, %v3604, %v3606
        %v3608 = vrot.slane %v3537, 1
        %v3609 = vsel %vm3590, %v3606, %v3608
        %v3610 = vrot.slane %v3538, 1
        %v3611 = vsel %vm3590, %v3608, %v3610
        %v3612 = vrot.slane %v3539, 1
        %v3613 = vsel %vm3590, %v3610, %v3612
        %v3614 = vrot.slane %v3540, 1
        %v3615 = vsel %vm3590, %v3612, %v3614
        %v3616 = vrot.slane %v3541, 1
        %v3617 = vsel %vm3590, %v3614, %v3616
        %v3618 = vrot.slane %v3542, 1
        %v3619 = vsel %vm3590, %v3616, %v3618
        %v3620 = vrot.slane %v3543, 1
        %v3621 = vsel %vm3590, %v3618, %v3620
        %v3622 = vrot.slane %v3544, 1
        %v3623 = vsel %vm3590, %v3620, %v3622
        %v3624 = vrot.slane %v3545, 1
        %v3625 = vsel %vm3590, %v3622, %v3624
        %v3626 = vrot.slane %v3546, 1
        %v3627 = vsel %vm3590, %v3624, %v3626
        %v3628 = vrot.slane %v3547, 1
        %v3629 = vsel %vm3590, %v3626, %v3628
        %v3630 = vrot.slane %v3548, 1
        %v3631 = vsel %vm3590, %v3628, %v3630
        %v3632 = vrot.slane %v3549, 1
        %v3633 = vsel %vm3590, %v3630, %v3632
        %v3634 = vrot.slane %v3550, 1
        %v3635 = vsel %vm3590, %v3632, %v3634
        %v3636 = vrot.slane %v3551, 1
        %v3637 = vsel %vm3590, %v3634, %v3636
        %v3638 = vrot.slane %v3552, 1
        %v3639 = vsel %vm3590, %v3636, %v3638
        %v3640 = vrot.slane %v3553, 1
        %v3641 = vsel %vm3590, %v3638, %v3640
        %v3642 = vrot.slane %v3554, 1
        %v3643 = vsel %vm3590, %v3640, %v3642
        %v3644 = vrot.slane %v3555, 1
        %v3645 = vsel %vm3590, %v3642, %v3644
        %v3646 = vrot.slane %v3556, 1
        %v3647 = vsel %vm3590, %v3644, %v3646
        %v3648 = vrot.slane %v3557, 1
        %v3649 = vsel %vm3590, %v3646, %v3648
        %v3680 = vmax.f32 %v3528, %v3593
        %v3681 = vmax.f32 %v3529, %v3595
        %v3682 = vmax.f32 %v3530, %v3597
        %v3683 = vmax.f32 %v3531, %v3599
        %v3684 = vmax.f32 %v3532, %v3601
        %v3685 = vmax.f32 %v3533, %v3603
        %v3686 = vmax.f32 %v3534, %v3605
        %v3687 = vmax.f32 %v3535, %v3607
        %v3688 = vmax.f32 %v3536, %v3609
        %v3689 = vmax.f32 %v3537, %v3611
        %v3690 = vmax.f32 %v3538, %v3613
        %v3691 = vmax.f32 %v3539, %v3615
        %v3692 = vmax.f32 %v3540, %v3617
        %v3693 = vmax.f32 %v3541, %v3619
        %v3694 = vmax.f32 %v3542, %v3621
        %v3695 = vmax.f32 %v3543, %v3623
        %v3696 = vmax.f32 %v3544, %v3625
        %v3697 = vmax.f32 %v3545, %v3627
        %v3698 = vmax.f32 %v3546, %v3629
        %v3699 = vmax.f32 %v3547, %v3631
        %v3700 = vmax.f32 %v3548, %v3633
        %v3701 = vmax.f32 %v3549, %v3635
        %v3702 = vmax.f32 %v3550, %v3637
        %v3703 = vmax.f32 %v3551, %v3639
        %v3704 = vmax.f32 %v3552, %v3641
        %v3705 = vmax.f32 %v3553, %v3643
        %v3706 = vmax.f32 %v3554, %v3645
        %v3707 = vmax.f32 %v3555, %v3647
        %v3708 = vmax.f32 %v3556, %v3649
        %v3709 = vmax.f32 %v3557, %v3648
        %v3712 = vrot.slane %v3558, 1
        %v3713 = vsel %vm3590, %v3648, %v3712
        %v3714 = vrot.slane %v3559, 1
        %v3715 = vsel %vm3590, %v3712, %v3714
        %v3719 = vmax.f32 %v3557, %v3713
        %v3720 = vmax.f32 %v3558, %v3715
        %v3721 = vmax.f32 %v3559, %v3714
        %v3722 = vmax.f32 %v3680, %v3682
        %v3723 = vmax.f32 %v3681, %v3683
        %v3724 = vmax.f32 %v3682, %v3684
        %v3725 = vmax.f32 %v3683, %v3685
        %v3726 = vmax.f32 %v3684, %v3686
        %v3727 = vmax.f32 %v3685, %v3687
        %v3728 = vmax.f32 %v3686, %v3688
        %v3729 = vmax.f32 %v3687, %v3689
        %v3730 = vmax.f32 %v3688, %v3690
        %v3731 = vmax.f32 %v3689, %v3691
        %v3732 = vmax.f32 %v3690, %v3692
        %v3733 = vmax.f32 %v3691, %v3693
        %v3734 = vmax.f32 %v3692, %v3694
        %v3735 = vmax.f32 %v3693, %v3695
        %v3736 = vmax.f32 %v3694, %v3696
        %v3737 = vmax.f32 %v3695, %v3697
        %v3738 = vmax.f32 %v3696, %v3698
        %v3739 = vmax.f32 %v3697, %v3699
        %v3740 = vmax.f32 %v3698, %v3700
        %v3741 = vmax.f32 %v3699, %v3701
        %v3742 = vmax.f32 %v3700, %v3702
        %v3743 = vmax.f32 %v3701, %v3703
        %v3744 = vmax.f32 %v3702, %v3704
        %v3745 = vmax.f32 %v3703, %v3705
        %v3746 = vmax.f32 %v3704, %v3706
        %v3747 = vmax.f32 %v3705, %v3707
        %v3748 = vmax.f32 %v3706, %v3708
        %v3749 = vmax.f32 %v3707, %v3719
        %v3750 = vmax.f32 %v3708, %v3720
        %v3751 = vmax.f32 %v3709, %v3721
        %v3752 = vld [vmem:[%s9] sm:$0xff]
        %v3753 = vld [vmem:[%s9 + $0x8] sm:$0xff]
        %v3754 = vld [vmem:[%s9 + $0x10] sm:$0xff]
        %v3755 = vld [vmem:[%s9 + $0x18] sm:$0xff]
        %v3756 = vld [vmem:[%s9 + $0x20] sm:$0xff]
        %v3757 = vld [vmem:[%s9 + $0x28] sm:$0xff]
        %v3758 = vld [vmem:[%s9 + $0x30] sm:$0xff]
        %v3759 = vld [vmem:[%s9 + $0x38] sm:$0xff]
        %v3760 = vld [vmem:[%s9 + $0x40] sm:$0xff]
        %v3761 = vld [vmem:[%s9 + $0x48] sm:$0xff]
        %v3762 = vld [vmem:[%s9 + $0x50] sm:$0xff]
        %v3763 = vld [vmem:[%s9 + $0x58] sm:$0xff]
        %v3764 = vld [vmem:[%s9 + $0x60] sm:$0xff]
        %v3765 = vld [vmem:[%s9 + $0x68] sm:$0xff]
        %v3766 = vld [vmem:[%s9 + $0x70] sm:$0xff]
        %v3767 = vld [vmem:[%s9 + $0x78] sm:$0xff]
        %vm3768 = vcmask 908288
        %v3770 = vsel %vm3768, %v3753, 0
        %v3773 = vsel %vm3768, %v3755, 0
        %v3776 = vsel %vm3768, %v3757, 0
        %v3779 = vsel %vm3768, %v3759, 0
        %v3782 = vsel %vm3768, %v3761, 0
        %v3785 = vsel %vm3768, %v3763, 0
        %v3788 = vsel %vm3768, %v3765, 0
        %v3791 = vsel %vm3768, %v3767, 0
        %v3794 = vsel %vm3590, %v3751, 0
        %3796 = vmatprep.subr.mxu0 0.0
        %3797 = vmatpush1.msra.mxu0 %v3737
        %3798 = vmatprep.subr.mxu0 0.0
        %3799 = vmatpush1.msra.mxu0 %v3736
        %3800 = vmatprep.subr.mxu0 0.0
        %3801 = vmatpush1.msra.mxu0 %v3735
        %3802 = vmatprep.subr.mxu0 0.0
        %3803 = vmatpush1.msra.mxu0 %v3734
        %3804 = vmatprep.subr.mxu0 0.0
        %3805 = vmatpush1.msra.mxu0 %v3733
        %3806 = vmatprep.subr.mxu0 0.0
        %3807 = vmatpush1.msra.mxu0 %v3732
        %3808 = vmatprep.subr.mxu0 0.0
        %3809 = vmatpush1.msra.mxu0 %v3731
        %3810 = vmatprep.subr.mxu0 0.0
        %3811 = vmatpush1.msra.mxu0 %v3730
        %3812 = vmatprep.subr.mxu0 0.0
        %3813 = vmatpush1.msra.mxu0 %v3729
        %3814 = vmatprep.subr.mxu0 0.0
        %3815 = vmatpush1.msra.mxu0 %v3728
        %3816 = vmatprep.subr.mxu0 0.0
        %3817 = vmatpush1.msra.mxu0 %v3727
        %3818 = vmatprep.subr.mxu0 0.0
        %3819 = vmatpush1.msra.mxu0 %v3726
        %3820 = vmatprep.subr.mxu0 0.0
        %3821 = vmatpush1.msra.mxu0 %v3725
        %3822 = vmatprep.subr.mxu0 0.0
        %3823 = vmatpush1.msra.mxu0 %v3724
        %3824 = vmatprep.subr.mxu0 0.0
        %3825 = vmatpush1.msra.mxu0 %v3723
        %3826 = vmatprep.subr.mxu0 0.0
        %3827 = vmatpush1.msra.mxu0 %v3722
        %3828 = vmatprep.subr.mxu0 0.0
        %3829 = vmatpush2.msra.mxu0 0.0
        %3830 = vmatprep.subr.mxu0 0.0
        %3831 = vmatpush2.msra.mxu0 0.0
        %3832 = vmatprep.subr.mxu0 0.0
        %3833 = vmatpush2.msra.mxu0 %v3794
        %3834 = vmatprep.subr.mxu0 0.0
        %3835 = vmatpush2.msra.mxu0 %v3750
        %3836 = vmatprep.subr.mxu0 0.0
        %3837 = vmatpush2.msra.mxu0 %v3749
        %3838 = vmatprep.subr.mxu0 0.0
        %3839 = vmatpush2.msra.mxu0 %v3748
        %3840 = vmatprep.subr.mxu0 0.0
        %3841 = vmatpush2.msra.mxu0 %v3747
        %3842 = vmatprep.subr.mxu0 0.0
        %3843 = vmatpush2.msra.mxu0 %v3746
        %3844 = vmatprep.subr.mxu0 0.0
        %3845 = vmatpush2.msra.mxu0 %v3745
        %3846 = vmatprep.subr.mxu0 0.0
        %3847 = vmatpush2.msra.mxu0 %v3744
        %3848 = vmatprep.subr.mxu0 0.0
        %3849 = vmatpush2.msra.mxu0 %v3743
        %3850 = vmatprep.subr.mxu0 0.0
        %3851 = vmatpush2.msra.mxu0 %v3742
        %3852 = vmatprep.subr.mxu0 0.0
        %3853 = vmatpush2.msra.mxu0 %v3741
        %3854 = vmatprep.subr.mxu0 0.0
        %3855 = vmatpush2.msra.mxu0 %v3740
        %3856 = vmatprep.subr.mxu0 0.0
        %3857 = vmatpush2.msra.mxu0 %v3739
        %3858 = vmatprep.subr.mxu0 0.0
        %3859 = vmatpush2.msra.mxu0 %v3738
        %3860 = vmatprep.mubr.f32.mxu0 %v3770
        %3861 = vmatmul.mubr.f32.gmra.mxu0 %v3752
        %v3862 = vpop.f32.mrf.mxu0
        %v3863 = vadd.f32 0.0, %v3862
        %v3864 = vpop.f32.mrf.mxu0
        %3865 = vmatprep.mubr.f32.mxu0 %v3773
        %3866 = vmatmul.mubr.f32.gmra.mxu0 %v3754
        %v3867 = vpop.f32.mrf.mxu0
        %v3868 = vadd.f32 0.0, %v3867
        %v3869 = vpop.f32.mrf.mxu0
        %3870 = vmatprep.mubr.f32.mxu0 %v3776
        %3871 = vmatmul.mubr.f32.gmra.mxu0 %v3756
        %v3872 = vpop.f32.mrf.mxu0
        %v3873 = vadd.f32 0.0, %v3872
        %v3874 = vpop.f32.mrf.mxu0
        %3875 = vmatprep.mubr.f32.mxu0 %v3779
        %3876 = vmatmul.mubr.f32.gmra.mxu0 %v3758
        %v3877 = vpop.f32.mrf.mxu0
        %v3878 = vadd.f32 0.0, %v3877
        %v3879 = vpop.f32.mrf.mxu0
        %3880 = vmatprep.mubr.f32.mxu0 %v3782
        %3881 = vmatmul.mubr.f32.gmra.mxu0 %v3760
        %v3882 = vpop.f32.mrf.mxu0
        %v3883 = vadd.f32 0.0, %v3882
        %v3884 = vpop.f32.mrf.mxu0
        %3885 = vmatprep.mubr.f32.mxu0 %v3785
        %3886 = vmatmul.mubr.f32.gmra.mxu0 %v3762
        %v3887 = vpop.f32.mrf.mxu0
        %v3888 = vadd.f32 0.0, %v3887
        %v3889 = vpop.f32.mrf.mxu0
        %3890 = vmatprep.mubr.f32.mxu0 %v3788
        %3891 = vmatmul.mubr.f32.gmra.mxu0 %v3764
        %v3892 = vpop.f32.mrf.mxu0
        %v3893 = vadd.f32 0.0, %v3892
        %v3894 = vpop.f32.mrf.mxu0
        %3895 = vmatprep.mubr.f32.mxu0 %v3791
        %3896 = vmatmul.mubr.f32.gmra.mxu0 %v3766
        %v3897 = vpop.f32.mrf.mxu0
        %v3898 = vadd.f32 0.0, %v3897
        %v3899 = vpop.f32.mrf.mxu0
        %3900 = vdwg.mxu0
        %vm3901 = vcmask 261120
        %3902 = vst.msk [vmem:[#allocation3] sm:$0xff] %vm3901, 0.0
        %3903 = vst.msk [vmem:[#allocation3 + $0x8] sm:$0xff] %vm3901, 0.0
        %3904 = vst.msk [vmem:[#allocation3 + $0x10] sm:$0xff] %vm3901, 0.0
        %3905 = vst.msk [vmem:[#allocation3 + $0x18] sm:$0xff] %vm3901, 0.0
        %3906 = vst.msk [vmem:[#allocation3 + $0x20] sm:$0xff] %vm3901, 0.0
        %3907 = vst.msk [vmem:[#allocation3 + $0x28] sm:$0xff] %vm3901, 0.0
        %3908 = vst.msk [vmem:[#allocation3 + $0x30] sm:$0xff] %vm3901, 0.0
        %3909 = vst.msk [vmem:[#allocation3 + $0x38] sm:$0xff] %vm3901, 0.0
        %3910 = vst.msk [vmem:[#allocation3 + $0x40] sm:$0xff] %vm3901, 0.0
        %3911 = vst.msk [vmem:[#allocation3 + $0x48] sm:$0xff] %vm3901, 0.0
        %vm3912 = vcmask 254976
        %3913 = vst.msk [vmem:[#allocation3 + $0x50] sm:$0x3] %vm3912, 0.0
        %3914 = vst.msk [vmem:[#allocation3 + $0x9] sm:$0xff] %vm3901, %v3863
        %3915 = vst.msk [vmem:[#allocation3 + $0x11] sm:$0xff] %vm3901, %v3868
        %3916 = vst.msk [vmem:[#allocation3 + $0x19] sm:$0xff] %vm3901, %v3873
        %3917 = vst.msk [vmem:[#allocation3 + $0x21] sm:$0xff] %vm3901, %v3878
        %3918 = vst.msk [vmem:[#allocation3 + $0x29] sm:$0xff] %vm3901, %v3883
        %3919 = vst.msk [vmem:[#allocation3 + $0x31] sm:$0xff] %vm3901, %v3888
        %3920 = vst.msk [vmem:[#allocation3 + $0x39] sm:$0xff] %vm3901, %v3893
        %3921 = vst.msk [vmem:[#allocation3 + $0x41] sm:$0xff] %vm3901, %v3898
        %vm3922 = vcmp.lt.s32.totalorder %v623, 0
        %v3923 = vsub.s32 0, %v623
        %v3924 = vsel %vm3922, %v3923, %v623
        %v3925 = vshrl.u32 %v3924, 3
        %v3926 = vand.u32 %v3924, 7
        %v3927 = vsub.s32 0, %v3926
        %v3928 = vsel %vm3922, %v3927, %v3926
        %vm3929 = vcmp.lt.s32.totalorder %v624, 0
        %v3930 = vsub.s32 0, %v624
        %v3931 = vsel %vm3929, %v3930, %v624
        %v3932 = vshrl.u32 %v3931, 3
        %v3933 = vand.u32 %v3931, 7
        %v3934 = vsub.s32 0, %v3933
        %v3935 = vsel %vm3929, %v3934, %v3933
        %vm3936 = vcmp.lt.s32.totalorder %v625, 0
        %v3937 = vsub.s32 0, %v625
        %v3938 = vsel %vm3936, %v3937, %v625
        %v3939 = vshrl.u32 %v3938, 3
        %v3940 = vand.u32 %v3938, 7
        %v3941 = vsub.s32 0, %v3940
        %v3942 = vsel %vm3936, %v3941, %v3940
        %vm3943 = vcmp.lt.s32.totalorder %v626, 0
        %v3944 = vsub.s32 0, %v626
        %v3945 = vsel %vm3943, %v3944, %v626
        %v3946 = vshrl.u32 %v3945, 3
        %v3947 = vand.u32 %v3945, 7
        %v3948 = vsub.s32 0, %v3947
        %v3949 = vsel %vm3943, %v3948, %v3947
        %vm3950 = vcmp.lt.s32.totalorder %v627, 0
        %v3951 = vsub.s32 0, %v627
        %v3952 = vsel %vm3950, %v3951, %v627
        %v3953 = vshrl.u32 %v3952, 3
        %v3954 = vand.u32 %v3952, 7
        %v3955 = vsub.s32 0, %v3954
        %v3956 = vsel %vm3950, %v3955, %v3954
        %vm3957 = vcmp.lt.s32.totalorder %v628, 0
        %v3958 = vsub.s32 0, %v628
        %v3959 = vsel %vm3957, %v3958, %v628
        %v3960 = vshrl.u32 %v3959, 3
        %v3961 = vand.u32 %v3959, 7
        %v3962 = vsub.s32 0, %v3961
        %v3963 = vsel %vm3957, %v3962, %v3961
        %vm3964 = vcmp.lt.s32.totalorder %v629, 0
        %v3965 = vsub.s32 0, %v629
        %v3966 = vsel %vm3964, %v3965, %v629
        %v3967 = vshrl.u32 %v3966, 3
        %v3968 = vand.u32 %v3966, 7
        %v3969 = vsub.s32 0, %v3968
        %v3970 = vsel %vm3964, %v3969, %v3968
        %vm3971 = vcmp.lt.s32.totalorder %v630, 0
        %v3972 = vsub.s32 0, %v630
        %v3973 = vsel %vm3971, %v3972, %v630
        %v3974 = vshrl.u32 %v3973, 3
        %v3975 = vand.u32 %v3973, 7
        %v3976 = vsub.s32 0, %v3975
        %v3977 = vsel %vm3971, %v3976, %v3975
        %vm3978 = vcmp.ne.s32.totalorder %v3928, 0
        %vm3979 = vcmp.ne.s32.totalorder %v3935, 0
        %vm3980 = vcmp.ne.s32.totalorder %v3942, 0
        %vm3981 = vcmp.ne.s32.totalorder %v3949, 0
        %vm3982 = vcmp.ne.s32.totalorder %v3956, 0
        %vm3983 = vcmp.ne.s32.totalorder %v3963, 0
        %vm3984 = vcmp.ne.s32.totalorder %v3970, 0
        %vm3985 = vcmp.ne.s32.totalorder %v3977, 0
        %vm3986 = vcmp.lt.s32.totalorder %v3928, 0
        %vm3987 = vcmp.lt.s32.totalorder %v3935, 0
        %vm3988 = vcmp.lt.s32.totalorder %v3942, 0
        %vm3989 = vcmp.lt.s32.totalorder %v3949, 0
        %vm3990 = vcmp.lt.s32.totalorder %v3956, 0
        %vm3991 = vcmp.lt.s32.totalorder %v3963, 0
        %vm3992 = vcmp.lt.s32.totalorder %v3970, 0
        %vm3993 = vcmp.lt.s32.totalorder %v3977, 0
        %vm3994 = vmand %vm3986, %vm3978
        %vm3995 = vmand %vm3987, %vm3979
        %vm3996 = vmand %vm3988, %vm3980
        %vm3997 = vmand %vm3989, %vm3981
        %vm3998 = vmand %vm3990, %vm3982
        %vm3999 = vmand %vm3991, %vm3983
        %vm4000 = vmand %vm3992, %vm3984
        %vm4001 = vmand %vm3993, %vm3985
        %v4002 = vadd.s32 %v3928, 8
        %v4003 = vadd.s32 %v3935, 8
        %v4004 = vadd.s32 %v3942, 8
        %v4005 = vadd.s32 %v3949, 8
        %v4006 = vadd.s32 %v3956, 8
        %v4007 = vadd.s32 %v3963, 8
        %v4008 = vadd.s32 %v3970, 8
        %v4009 = vadd.s32 %v3977, 8
        %v4010 = vsel %vm3994, %v4002, %v3928
        %v4011 = vsel %vm3995, %v4003, %v3935
        %v4012 = vsel %vm3996, %v4004, %v3942
        %v4013 = vsel %vm3997, %v4005, %v3949
        %v4014 = vsel %vm3998, %v4006, %v3956
        %v4015 = vsel %vm3999, %v4007, %v3963
        %v4016 = vsel %vm4000, %v4008, %v3970
        %v4017 = vsel %vm4001, %v4009, %v3977
        %v4018 = vld [vmem:[#allocation3] sm:$0xff]
        %v4019 = vld [vmem:[#allocation3 + $0x8] sm:$0xff]
        %v4020 = vld [vmem:[#allocation3 + $0x10] sm:$0xff]
        %v4021 = vld [vmem:[#allocation3 + $0x18] sm:$0xff]
        %v4022 = vld [vmem:[#allocation3 + $0x20] sm:$0xff]
        %v4023 = vld [vmem:[#allocation3 + $0x28] sm:$0xff]
        %v4024 = vld [vmem:[#allocation3 + $0x30] sm:$0xff]
        %v4025 = vld [vmem:[#allocation3 + $0x38] sm:$0xff]
        %vm4026 = vcmp.ge.s32.totalorder %v4010, 1
        %vm4027 = vcmp.ge.s32.totalorder %v4011, 1
        %vm4028 = vcmp.ge.s32.totalorder %v4012, 1
        %vm4029 = vcmp.ge.s32.totalorder %v4013, 1
        %vm4030 = vcmp.ge.s32.totalorder %v4014, 1
        %vm4031 = vcmp.ge.s32.totalorder %v4015, 1
        %vm4032 = vcmp.ge.s32.totalorder %v4016, 1
        %vm4033 = vcmp.ge.s32.totalorder %v4017, 1
        %vm4034 = vcmp.lt.s32.totalorder %v4010, 9
        %vm4035 = vcmp.lt.s32.totalorder %v4011, 9
        %vm4036 = vcmp.lt.s32.totalorder %v4012, 9
        %vm4037 = vcmp.lt.s32.totalorder %v4013, 9
        %vm4038 = vcmp.lt.s32.totalorder %v4014, 9
        %vm4039 = vcmp.lt.s32.totalorder %v4015, 9
        %vm4040 = vcmp.lt.s32.totalorder %v4016, 9
        %vm4041 = vcmp.lt.s32.totalorder %v4017, 9
        %vm4042 = vmand %vm4026, %vm4034
        %vm4043 = vmand %vm4027, %vm4035
        %vm4044 = vmand %vm4028, %vm4036
        %vm4045 = vmand %vm4029, %vm4037
        %vm4046 = vmand %vm4030, %vm4038
        %vm4047 = vmand %vm4031, %vm4039
        %vm4048 = vmand %vm4032, %vm4040
        %vm4049 = vmand %vm4033, %vm4041
        %v4050 = vsel %vm4042, 1, 0
        %v4051 = vsel %vm4043, 1, 0
        %v4052 = vsel %vm4044, 1, 0
        %v4053 = vsel %vm4045, 1, 0
        %v4054 = vsel %vm4046, 1, 0
        %v4055 = vsel %vm4047, 1, 0
        %v4056 = vsel %vm4048, 1, 0
        %v4057 = vsel %vm4049, 1, 0
        %vm4058 = vcmp.eq.s32.totalorder %v4050, 1
        %vm4059 = vcmp.eq.s32.totalorder %v4051, 1
        %vm4060 = vcmp.eq.s32.totalorder %v4052, 1
        %vm4061 = vcmp.eq.s32.totalorder %v4053, 1
        %vm4062 = vcmp.eq.s32.totalorder %v4054, 1
        %vm4063 = vcmp.eq.s32.totalorder %v4055, 1
        %vm4064 = vcmp.eq.s32.totalorder %v4056, 1
        %vm4065 = vcmp.eq.s32.totalorder %v4057, 1
        %v4066 = vsel %vm4058, %v4018, 0.0
        %v4067 = vsel %vm4059, %v4019, 0.0
        %v4068 = vsel %vm4060, %v4020, 0.0
        %v4069 = vsel %vm4061, %v4021, 0.0
        %v4070 = vsel %vm4062, %v4022, 0.0
        %v4071 = vsel %vm4063, %v4023, 0.0
        %v4072 = vsel %vm4064, %v4024, 0.0
        %v4073 = vsel %vm4065, %v4025, 0.0
        %4074 = vst.msk [vmem:[#allocation7] sm:$0xff] %vm3901, %v4066
        %4075 = vst.msk [vmem:[#allocation7 + $0x18] sm:$0xff] %vm3901, %v4067
        %4076 = vst.msk [vmem:[#allocation7 + $0x30] sm:$0xff] %vm3901, %v4068
        %4077 = vst.msk [vmem:[#allocation7 + $0x48] sm:$0xff] %vm3901, %v4069
        %4078 = vst.msk [vmem:[#allocation7 + $0x60] sm:$0xff] %vm3901, %v4070
        %4079 = vst.msk [vmem:[#allocation7 + $0x78] sm:$0xff] %vm3901, %v4071
        %4080 = vst.msk [vmem:[#allocation7 + $0x90] sm:$0xff] %vm3901, %v4072
        %4081 = vst.msk [vmem:[#allocation7 + $0xa8] sm:$0xff] %vm3901, %v4073
        %v4082 = vld [vmem:[#allocation3 + $0x1] sm:$0xff]
        %v4083 = vld [vmem:[#allocation3 + $0x9] sm:$0xff]
        %v4084 = vld [vmem:[#allocation3 + $0x11] sm:$0xff]
        %v4085 = vld [vmem:[#allocation3 + $0x19] sm:$0xff]
        %v4086 = vld [vmem:[#allocation3 + $0x21] sm:$0xff]
        %v4087 = vld [vmem:[#allocation3 + $0x29] sm:$0xff]
        %v4088 = vld [vmem:[#allocation3 + $0x31] sm:$0xff]
        %v4089 = vld [vmem:[#allocation3 + $0x39] sm:$0xff]
        %4098 = vrot.lane.b32.xlu0 %v4082, 32
        %v4099 = vpop.permute.xlu0 %4098
        %4100 = vrot.lane.b32.xlu0 %v4083, 32
        %v4101 = vpop.permute.xlu0 %4100
        %4102 = vrot.lane.b32.xlu0 %v4084, 32
        %v4103 = vpop.permute.xlu0 %4102
        %4104 = vrot.lane.b32.xlu0 %v4085, 32
        %v4105 = vpop.permute.xlu0 %4104
        %4106 = vrot.lane.b32.xlu0 %v4086, 32
        %v4107 = vpop.permute.xlu0 %4106
        %4108 = vrot.lane.b32.xlu0 %v4087, 32
        %v4109 = vpop.permute.xlu0 %4108
        %4110 = vrot.lane.b32.xlu0 %v4088, 32
        %v4111 = vpop.permute.xlu0 %4110
        %4112 = vrot.lane.b32.xlu0 %v4089, 32
        %v4113 = vpop.permute.xlu0 %4112
        %vm4122 = vcmask 523520
        %4123 = vst.msk [vmem:[#allocation7] sm:$0xff] %vm4122, %v4099
        %4124 = vst.msk [vmem:[#allocation7 + $0x18] sm:$0xff] %vm4122, %v4101
        %4125 = vst.msk [vmem:[#allocation7 + $0x30] sm:$0xff] %vm4122, %v4103
        %4126 = vst.msk [vmem:[#allocation7 + $0x48] sm:$0xff] %vm4122, %v4105
        %4127 = vst.msk [vmem:[#allocation7 + $0x60] sm:$0xff] %vm4122, %v4107
        %4128 = vst.msk [vmem:[#allocation7 + $0x78] sm:$0xff] %vm4122, %v4109
        %4129 = vst.msk [vmem:[#allocation7 + $0x90] sm:$0xff] %vm4122, %v4111
        %4130 = vst.msk [vmem:[#allocation7 + $0xa8] sm:$0xff] %vm4122, %v4113
        %v4131 = vld [vmem:[#allocation3 + $0x2] sm:$0xff]
        %v4132 = vld [vmem:[#allocation3 + $0xa] sm:$0xff]
        %v4133 = vld [vmem:[#allocation3 + $0x12] sm:$0xff]
        %v4134 = vld [vmem:[#allocation3 + $0x1a] sm:$0xff]
        %v4135 = vld [vmem:[#allocation3 + $0x22] sm:$0xff]
        %v4136 = vld [vmem:[#allocation3 + $0x2a] sm:$0xff]
        %v4137 = vld [vmem:[#allocation3 + $0x32] sm:$0xff]
        %v4138 = vld [vmem:[#allocation3 + $0x3a] sm:$0xff]
        %vm4139 = vcmp.ge.s32.totalorder %v4010, 4294967295
        %vm4140 = vcmp.ge.s32.totalorder %v4011, 4294967295
        %vm4141 = vcmp.ge.s32.totalorder %v4012, 4294967295
        %vm4142 = vcmp.ge.s32.totalorder %v4013, 4294967295
        %vm4143 = vcmp.ge.s32.totalorder %v4014, 4294967295
        %vm4144 = vcmp.ge.s32.totalorder %v4015, 4294967295
        %vm4145 = vcmp.ge.s32.totalorder %v4016, 4294967295
        %vm4146 = vcmp.ge.s32.totalorder %v4017, 4294967295
        %vm4147 = vcmp.lt.s32.totalorder %v4010, 7
        %vm4148 = vcmp.lt.s32.totalorder %v4011, 7
        %vm4149 = vcmp.lt.s32.totalorder %v4012, 7
        %vm4150 = vcmp.lt.s32.totalorder %v4013, 7
        %vm4151 = vcmp.lt.s32.totalorder %v4014, 7
        %vm4152 = vcmp.lt.s32.totalorder %v4015, 7
        %vm4153 = vcmp.lt.s32.totalorder %v4016, 7
        %vm4154 = vcmp.lt.s32.totalorder %v4017, 7
        %vm4155 = vmand %vm4139, %vm4147
        %vm4156 = vmand %vm4140, %vm4148
        %vm4157 = vmand %vm4141, %vm4149
        %vm4158 = vmand %vm4142, %vm4150
        %vm4159 = vmand %vm4143, %vm4151
        %vm4160 = vmand %vm4144, %vm4152
        %vm4161 = vmand %vm4145, %vm4153
        %vm4162 = vmand %vm4146, %vm4154
        %v4163 = vsel %vm4155, 1, 0
        %v4164 = vsel %vm4156, 1, 0
        %v4165 = vsel %vm4157, 1, 0
        %v4166 = vsel %vm4158, 1, 0
        %v4167 = vsel %vm4159, 1, 0
        %v4168 = vsel %vm4160, 1, 0
        %v4169 = vsel %vm4161, 1, 0
        %v4170 = vsel %vm4162, 1, 0
        %vm4171 = vcmp.eq.s32.totalorder %v4163, 1
        %vm4172 = vcmp.eq.s32.totalorder %v4164, 1
        %vm4173 = vcmp.eq.s32.totalorder %v4165, 1
        %vm4174 = vcmp.eq.s32.totalorder %v4166, 1
        %vm4175 = vcmp.eq.s32.totalorder %v4167, 1
        %vm4176 = vcmp.eq.s32.totalorder %v4168, 1
        %vm4177 = vcmp.eq.s32.totalorder %v4169, 1
        %vm4178 = vcmp.eq.s32.totalorder %v4170, 1
        %v4179 = vsel %vm4171, %v4131, 0.0
        %v4180 = vsel %vm4172, %v4132, 0.0
        %v4181 = vsel %vm4173, %v4133, 0.0
        %v4182 = vsel %vm4174, %v4134, 0.0
        %v4183 = vsel %vm4175, %v4135, 0.0
        %v4184 = vsel %vm4176, %v4136, 0.0
        %v4185 = vsel %vm4177, %v4137, 0.0
        %v4186 = vsel %vm4178, %v4138, 0.0
        %4195 = vrot.lane.b32.xlu0 %v4179, 64
        %v4196 = vpop.permute.xlu0 %4195
        %4197 = vrot.lane.b32.xlu0 %v4180, 64
        %v4198 = vpop.permute.xlu0 %4197
        %4199 = vrot.lane.b32.xlu0 %v4181, 64
        %v4200 = vpop.permute.xlu0 %4199
        %4201 = vrot.lane.b32.xlu0 %v4182, 64
        %v4202 = vpop.permute.xlu0 %4201
        %4203 = vrot.lane.b32.xlu0 %v4183, 64
        %v4204 = vpop.permute.xlu0 %4203
        %4205 = vrot.lane.b32.xlu0 %v4184, 64
        %v4206 = vpop.permute.xlu0 %4205
        %4207 = vrot.lane.b32.xlu0 %v4185, 64
        %v4208 = vpop.permute.xlu0 %4207
        %4209 = vrot.lane.b32.xlu0 %v4186, 64
        %v4210 = vpop.permute.xlu0 %4209
        %vm4219 = vcmask 785920
        %4220 = vst.msk [vmem:[#allocation7] sm:$0xff] %vm4219, %v4196
        %4221 = vst.msk [vmem:[#allocation7 + $0x18] sm:$0xff] %vm4219, %v4198
        %4222 = vst.msk [vmem:[#allocation7 + $0x30] sm:$0xff] %vm4219, %v4200
        %4223 = vst.msk [vmem:[#allocation7 + $0x48] sm:$0xff] %vm4219, %v4202
        %4224 = vst.msk [vmem:[#allocation7 + $0x60] sm:$0xff] %vm4219, %v4204
        %4225 = vst.msk [vmem:[#allocation7 + $0x78] sm:$0xff] %vm4219, %v4206
        %4226 = vst.msk [vmem:[#allocation7 + $0x90] sm:$0xff] %vm4219, %v4208
        %4227 = vst.msk [vmem:[#allocation7 + $0xa8] sm:$0xff] %vm4219, %v4210
        %v4228 = vld [vmem:[#allocation3 + $0x8] sm:$0xff]
        %v4229 = vld [vmem:[#allocation3 + $0x10] sm:$0xff]
        %v4230 = vld [vmem:[#allocation3 + $0x18] sm:$0xff]
        %v4231 = vld [vmem:[#allocation3 + $0x20] sm:$0xff]
        %v4232 = vld [vmem:[#allocation3 + $0x28] sm:$0xff]
        %v4233 = vld [vmem:[#allocation3 + $0x30] sm:$0xff]
        %v4234 = vld [vmem:[#allocation3 + $0x38] sm:$0xff]
        %v4235 = vld [vmem:[#allocation3 + $0x40] sm:$0xff]
        %v4236 = vsel %vm4058, %v4228, 0.0
        %v4237 = vsel %vm4059, %v4229, 0.0
        %v4238 = vsel %vm4060, %v4230, 0.0
        %v4239 = vsel %vm4061, %v4231, 0.0
        %v4240 = vsel %vm4062, %v4232, 0.0
        %v4241 = vsel %vm4063, %v4233, 0.0
        %v4242 = vsel %vm4064, %v4234, 0.0
        %v4243 = vsel %vm4065, %v4235, 0.0
        %4252 = vrot.lane.b32.xlu0 %v4236, 96
        %v4253 = vpop.permute.xlu0 %4252
        %4254 = vrot.lane.b32.xlu0 %v4237, 96
        %v4255 = vpop.permute.xlu0 %4254
        %4256 = vrot.lane.b32.xlu0 %v4238, 96
        %v4257 = vpop.permute.xlu0 %4256
        %4258 = vrot.lane.b32.xlu0 %v4239, 96
        %v4259 = vpop.permute.xlu0 %4258
        %4260 = vrot.lane.b32.xlu0 %v4240, 96
        %v4261 = vpop.permute.xlu0 %4260
        %4262 = vrot.lane.b32.xlu0 %v4241, 96
        %v4263 = vpop.permute.xlu0 %4262
        %4264 = vrot.lane.b32.xlu0 %v4242, 96
        %v4265 = vpop.permute.xlu0 %4264
        %4266 = vrot.lane.b32.xlu0 %v4243, 96
        %v4267 = vpop.permute.xlu0 %4266
        %vm4276 = vcmask 1048320
        %4277 = vst.msk [vmem:[#allocation7] sm:$0xff] %vm4276, %v4253
        %4278 = vst.msk [vmem:[#allocation7 + $0x18] sm:$0xff] %vm4276, %v4255
        %4279 = vst.msk [vmem:[#allocation7 + $0x30] sm:$0xff] %vm4276, %v4257
        %4280 = vst.msk [vmem:[#allocation7 + $0x48] sm:$0xff] %vm4276, %v4259
        %4281 = vst.msk [vmem:[#allocation7 + $0x60] sm:$0xff] %vm4276, %v4261
        %4282 = vst.msk [vmem:[#allocation7 + $0x78] sm:$0xff] %vm4276, %v4263
        %4283 = vst.msk [vmem:[#allocation7 + $0x90] sm:$0xff] %vm4276, %v4265
        %4284 = vst.msk [vmem:[#allocation7 + $0xa8] sm:$0xff] %vm4276, %v4267
        %v4285 = vld [vmem:[#allocation3 + $0x9] sm:$0xff]
        %v4286 = vld [vmem:[#allocation3 + $0x11] sm:$0xff]
        %v4287 = vld [vmem:[#allocation3 + $0x19] sm:$0xff]
        %v4288 = vld [vmem:[#allocation3 + $0x21] sm:$0xff]
        %v4289 = vld [vmem:[#allocation3 + $0x29] sm:$0xff]
        %v4290 = vld [vmem:[#allocation3 + $0x31] sm:$0xff]
        %v4291 = vld [vmem:[#allocation3 + $0x39] sm:$0xff]
        %v4292 = vld [vmem:[#allocation3 + $0x41] sm:$0xff]
        %4293 = vst.msk [vmem:[#allocation7 + $0x8] sm:$0xff] %vm3901, %v4285
        %4294 = vst.msk [vmem:[#allocation7 + $0x20] sm:$0xff] %vm3901, %v4286
        %4295 = vst.msk [vmem:[#allocation7 + $0x38] sm:$0xff] %vm3901, %v4287
        %4296 = vst.msk [vmem:[#allocation7 + $0x50] sm:$0xff] %vm3901, %v4288
        %4297 = vst.msk [vmem:[#allocation7 + $0x68] sm:$0xff] %vm3901, %v4289
        %4298 = vst.msk [vmem:[#allocation7 + $0x80] sm:$0xff] %vm3901, %v4290
        %4299 = vst.msk [vmem:[#allocation7 + $0x98] sm:$0xff] %vm3901, %v4291
        %4300 = vst.msk [vmem:[#allocation7 + $0xb0] sm:$0xff] %vm3901, %v4292
        %v4301 = vld [vmem:[#allocation3 + $0xa] sm:$0xff]
        %v4302 = vld [vmem:[#allocation3 + $0x12] sm:$0xff]
        %v4303 = vld [vmem:[#allocation3 + $0x1a] sm:$0xff]
        %v4304 = vld [vmem:[#allocation3 + $0x22] sm:$0xff]
        %v4305 = vld [vmem:[#allocation3 + $0x2a] sm:$0xff]
        %v4306 = vld [vmem:[#allocation3 + $0x32] sm:$0xff]
        %v4307 = vld [vmem:[#allocation3 + $0x3a] sm:$0xff]
        %v4308 = vld [vmem:[#allocation3 + $0x42] sm:$0xff]
        %v4309 = vsel %vm4171, %v4301, 0.0
        %v4310 = vsel %vm4172, %v4302, 0.0
        %v4311 = vsel %vm4173, %v4303, 0.0
        %v4312 = vsel %vm4174, %v4304, 0.0
        %v4313 = vsel %vm4175, %v4305, 0.0
        %v4314 = vsel %vm4176, %v4306, 0.0
        %v4315 = vsel %vm4177, %v4307, 0.0
        %v4316 = vsel %vm4178, %v4308, 0.0
        %4325 = vrot.lane.b32.xlu0 %v4309, 32
        %v4326 = vpop.permute.xlu0 %4325
        %4327 = vrot.lane.b32.xlu0 %v4310, 32
        %v4328 = vpop.permute.xlu0 %4327
        %4329 = vrot.lane.b32.xlu0 %v4311, 32
        %v4330 = vpop.permute.xlu0 %4329
        %4331 = vrot.lane.b32.xlu0 %v4312, 32
        %v4332 = vpop.permute.xlu0 %4331
        %4333 = vrot.lane.b32.xlu0 %v4313, 32
        %v4334 = vpop.permute.xlu0 %4333
        %4335 = vrot.lane.b32.xlu0 %v4314, 32
        %v4336 = vpop.permute.xlu0 %4335
        %4337 = vrot.lane.b32.xlu0 %v4315, 32
        %v4338 = vpop.permute.xlu0 %4337
        %4339 = vrot.lane.b32.xlu0 %v4316, 32
        %v4340 = vpop.permute.xlu0 %4339
        %4349 = vst.msk [vmem:[#allocation7 + $0x8] sm:$0xff] %vm4122, %v4326
        %4350 = vst.msk [vmem:[#allocation7 + $0x20] sm:$0xff] %vm4122, %v4328
        %4351 = vst.msk [vmem:[#allocation7 + $0x38] sm:$0xff] %vm4122, %v4330
        %4352 = vst.msk [vmem:[#allocation7 + $0x50] sm:$0xff] %vm4122, %v4332
        %4353 = vst.msk [vmem:[#allocation7 + $0x68] sm:$0xff] %vm4122, %v4334
        %4354 = vst.msk [vmem:[#allocation7 + $0x80] sm:$0xff] %vm4122, %v4336
        %4355 = vst.msk [vmem:[#allocation7 + $0x98] sm:$0xff] %vm4122, %v4338
        %4356 = vst.msk [vmem:[#allocation7 + $0xb0] sm:$0xff] %vm4122, %v4340
        %v4357 = vld [vmem:[#allocation3 + $0x10] sm:$0xff]
        %v4358 = vld [vmem:[#allocation3 + $0x18] sm:$0xff]
        %v4359 = vld [vmem:[#allocation3 + $0x20] sm:$0xff]
        %v4360 = vld [vmem:[#allocation3 + $0x28] sm:$0xff]
        %v4361 = vld [vmem:[#allocation3 + $0x30] sm:$0xff]
        %v4362 = vld [vmem:[#allocation3 + $0x38] sm:$0xff]
        %v4363 = vld [vmem:[#allocation3 + $0x40] sm:$0xff]
        %v4364 = vld [vmem:[#allocation3 + $0x48] sm:$0xff]
        %v4365 = vsel %vm4058, %v4357, 0.0
        %v4366 = vsel %vm4059, %v4358, 0.0
        %v4367 = vsel %vm4060, %v4359, 0.0
        %v4368 = vsel %vm4061, %v4360, 0.0
        %v4369 = vsel %vm4062, %v4361, 0.0
        %v4370 = vsel %vm4063, %v4362, 0.0
        %v4371 = vsel %vm4064, %v4363, 0.0
        %v4372 = vsel %vm4065, %v4364, 0.0
        %4381 = vrot.lane.b32.xlu0 %v4365, 64
        %v4382 = vpop.permute.xlu0 %4381
        %4383 = vrot.lane.b32.xlu0 %v4366, 64
        %v4384 = vpop.permute.xlu0 %4383
        %4385 = vrot.lane.b32.xlu0 %v4367, 64
        %v4386 = vpop.permute.xlu0 %4385
        %4387 = vrot.lane.b32.xlu0 %v4368, 64
        %v4388 = vpop.permute.xlu0 %4387
        %4389 = vrot.lane.b32.xlu0 %v4369, 64
        %v4390 = vpop.permute.xlu0 %4389
        %4391 = vrot.lane.b32.xlu0 %v4370, 64
        %v4392 = vpop.permute.xlu0 %4391
        %4393 = vrot.lane.b32.xlu0 %v4371, 64
        %v4394 = vpop.permute.xlu0 %4393
        %4395 = vrot.lane.b32.xlu0 %v4372, 64
        %v4396 = vpop.permute.xlu0 %4395
        %4405 = vst.msk [vmem:[#allocation7 + $0x8] sm:$0xff] %vm4219, %v4382
        %4406 = vst.msk [vmem:[#allocation7 + $0x20] sm:$0xff] %vm4219, %v4384
        %4407 = vst.msk [vmem:[#allocation7 + $0x38] sm:$0xff] %vm4219, %v4386
        %4408 = vst.msk [vmem:[#allocation7 + $0x50] sm:$0xff] %vm4219, %v4388
        %4409 = vst.msk [vmem:[#allocation7 + $0x68] sm:$0xff] %vm4219, %v4390
        %4410 = vst.msk [vmem:[#allocation7 + $0x80] sm:$0xff] %vm4219, %v4392
        %4411 = vst.msk [vmem:[#allocation7 + $0x98] sm:$0xff] %vm4219, %v4394
        %4412 = vst.msk [vmem:[#allocation7 + $0xb0] sm:$0xff] %vm4219, %v4396
        %v4413 = vld [vmem:[#allocation3 + $0x11] sm:$0xff]
        %v4414 = vld [vmem:[#allocation3 + $0x19] sm:$0xff]
        %v4415 = vld [vmem:[#allocation3 + $0x21] sm:$0xff]
        %v4416 = vld [vmem:[#allocation3 + $0x29] sm:$0xff]
        %v4417 = vld [vmem:[#allocation3 + $0x31] sm:$0xff]
        %v4418 = vld [vmem:[#allocation3 + $0x39] sm:$0xff]
        %v4419 = vld [vmem:[#allocation3 + $0x41] sm:$0xff]
        %v4420 = vld [vmem:[#allocation3 + $0x49] sm:$0xff]
        %4429 = vrot.lane.b32.xlu0 %v4413, 96
        %v4430 = vpop.permute.xlu0 %4429
        %4431 = vrot.lane.b32.xlu0 %v4414, 96
        %v4432 = vpop.permute.xlu0 %4431
        %4433 = vrot.lane.b32.xlu0 %v4415, 96
        %v4434 = vpop.permute.xlu0 %4433
        %4435 = vrot.lane.b32.xlu0 %v4416, 96
        %v4436 = vpop.permute.xlu0 %4435
        %4437 = vrot.lane.b32.xlu0 %v4417, 96
        %v4438 = vpop.permute.xlu0 %4437
        %4439 = vrot.lane.b32.xlu0 %v4418, 96
        %v4440 = vpop.permute.xlu0 %4439
        %4441 = vrot.lane.b32.xlu0 %v4419, 96
        %v4442 = vpop.permute.xlu0 %4441
        %4443 = vrot.lane.b32.xlu0 %v4420, 96
        %v4444 = vpop.permute.xlu0 %4443
        %4453 = vst.msk [vmem:[#allocation7 + $0x8] sm:$0xff] %vm4276, %v4430
        %4454 = vst.msk [vmem:[#allocation7 + $0x20] sm:$0xff] %vm4276, %v4432
        %4455 = vst.msk [vmem:[#allocation7 + $0x38] sm:$0xff] %vm4276, %v4434
        %4456 = vst.msk [vmem:[#allocation7 + $0x50] sm:$0xff] %vm4276, %v4436
        %4457 = vst.msk [vmem:[#allocation7 + $0x68] sm:$0xff] %vm4276, %v4438
        %4458 = vst.msk [vmem:[#allocation7 + $0x80] sm:$0xff] %vm4276, %v4440
        %4459 = vst.msk [vmem:[#allocation7 + $0x98] sm:$0xff] %vm4276, %v4442
        %4460 = vst.msk [vmem:[#allocation7 + $0xb0] sm:$0xff] %vm4276, %v4444
        %v4461 = vld [vmem:[#allocation3 + $0x12] sm:$0xff]
        %v4462 = vld [vmem:[#allocation3 + $0x1a] sm:$0xff]
        %v4463 = vld [vmem:[#allocation3 + $0x22] sm:$0xff]
        %v4464 = vld [vmem:[#allocation3 + $0x2a] sm:$0xff]
        %v4465 = vld [vmem:[#allocation3 + $0x32] sm:$0xff]
        %v4466 = vld [vmem:[#allocation3 + $0x3a] sm:$0xff]
        %v4467 = vld [vmem:[#allocation3 + $0x42] sm:$0xff]
        %v4468 = vld [vmem:[#allocation3 + $0x4a] sm:$0xff]
        %v4469 = vsel %vm4171, %v4461, 0.0
        %v4470 = vsel %vm4172, %v4462, 0.0
        %v4471 = vsel %vm4173, %v4463, 0.0
        %v4472 = vsel %vm4174, %v4464, 0.0
        %v4473 = vsel %vm4175, %v4465, 0.0
        %v4474 = vsel %vm4176, %v4466, 0.0
        %v4475 = vsel %vm4177, %v4467, 0.0
        %v4476 = vsel %vm4178, %v4468, 0.0
        %4477 = vst.msk [vmem:[#allocation7 + $0x10] sm:$0xff] %vm3901, %v4469
        %4478 = vst.msk [vmem:[#allocation7 + $0x28] sm:$0xff] %vm3901, %v4470
        %4479 = vst.msk [vmem:[#allocation7 + $0x40] sm:$0xff] %vm3901, %v4471
        %4480 = vst.msk [vmem:[#allocation7 + $0x58] sm:$0xff] %vm3901, %v4472
        %4481 = vst.msk [vmem:[#allocation7 + $0x70] sm:$0xff] %vm3901, %v4473
        %4482 = vst.msk [vmem:[#allocation7 + $0x88] sm:$0xff] %vm3901, %v4474
        %4483 = vst.msk [vmem:[#allocation7 + $0xa0] sm:$0xff] %vm3901, %v4475
        %4484 = vst.msk [vmem:[#allocation7 + $0xb8] sm:$0xff] %vm3901, %v4476
        %v4485 = vld [vmem:[#allocation7] sm:$0xff]
        %v4486 = vld [vmem:[#allocation7 + $0x8] sm:$0xff]
        %v4487 = vld [vmem:[#allocation7 + $0x10] sm:$0xff]
        %v4488 = vld [vmem:[#allocation7 + $0x18] sm:$0xff]
        %v4489 = vld [vmem:[#allocation7 + $0x20] sm:$0xff]
        %v4490 = vld [vmem:[#allocation7 + $0x28] sm:$0xff]
        %v4491 = vld [vmem:[#allocation7 + $0x30] sm:$0xff]
        %v4492 = vld [vmem:[#allocation7 + $0x38] sm:$0xff]
        %v4493 = vld [vmem:[#allocation7 + $0x40] sm:$0xff]
        %v4494 = vld [vmem:[#allocation7 + $0x48] sm:$0xff]
        %v4495 = vld [vmem:[#allocation7 + $0x50] sm:$0xff]
        %v4496 = vld [vmem:[#allocation7 + $0x58] sm:$0xff]
        %v4497 = vld [vmem:[#allocation7 + $0x60] sm:$0xff]
        %v4498 = vld [vmem:[#allocation7 + $0x68] sm:$0xff]
        %v4499 = vld [vmem:[#allocation7 + $0x70] sm:$0xff]
        %v4500 = vld [vmem:[#allocation7 + $0x78] sm:$0xff]
        %v4501 = vld [vmem:[#allocation7 + $0x80] sm:$0xff]
        %v4502 = vld [vmem:[#allocation7 + $0x88] sm:$0xff]
        %v4503 = vld [vmem:[#allocation7 + $0x90] sm:$0xff]
        %v4504 = vld [vmem:[#allocation7 + $0x98] sm:$0xff]
        %v4505 = vld [vmem:[#allocation7 + $0xa0] sm:$0xff]
        %v4506 = vld [vmem:[#allocation7 + $0xa8] sm:$0xff]
        %v4507 = vld [vmem:[#allocation7 + $0xb0] sm:$0xff]
        %v4508 = vld [vmem:[#allocation7 + $0xb8] sm:$0xff]
        %v4509 = vld [vmem:[%s3] sm:$0xff]
        %v4510 = vld [vmem:[%s3 + $0x8] sm:$0xff]
        %v4511 = vld [vmem:[%s3 + $0x10] sm:$0xff]
        %v4512 = vld [vmem:[%s3 + $0x18] sm:$0xff]
        %v4513 = vld [vmem:[%s3 + $0x20] sm:$0xff]
        %v4514 = vld [vmem:[%s3 + $0x28] sm:$0xff]
        %v4515 = vld [vmem:[%s3 + $0x30] sm:$0xff]
        %v4516 = vld [vmem:[%s3 + $0x38] sm:$0xff]
        %v4517 = vld [vmem:[%s3 + $0x40] sm:$0xff]
        %v4518 = vld [vmem:[%s3 + $0x48] sm:$0xff]
        %v4519 = vld [vmem:[%s3 + $0x50] sm:$0xff]
        %v4520 = vld [vmem:[%s3 + $0x58] sm:$0xff]
        %v4521 = vld [vmem:[%s3 + $0x60] sm:$0xff]
        %v4522 = vld [vmem:[%s3 + $0x68] sm:$0xff]
        %v4523 = vld [vmem:[%s3 + $0x70] sm:$0xff]
        %v4524 = vld [vmem:[%s3 + $0x78] sm:$0xff]
        %v4525 = vld [vmem:[%s3 + $0x80] sm:$0xff]
        %v4526 = vld [vmem:[%s3 + $0x88] sm:$0xff]
        %v4527 = vld [vmem:[%s3 + $0x90] sm:$0xff]
        %v4528 = vld [vmem:[%s3 + $0x98] sm:$0xff]
        %v4529 = vld [vmem:[%s3 + $0xa0] sm:$0xff]
        %v4530 = vld [vmem:[%s3 + $0xa8] sm:$0xff]
        %v4531 = vld [vmem:[%s3 + $0xb0] sm:$0xff]
        %v4532 = vld [vmem:[%s3 + $0xb8] sm:$0xff]
        %v4533 = vld [vmem:[%s3 + $0xc0] sm:$0xff]
        %v4534 = vld [vmem:[%s3 + $0xc8] sm:$0xff]
        %v4535 = vld [vmem:[%s3 + $0xd0] sm:$0xff]
        %v4536 = vld [vmem:[%s3 + $0xd8] sm:$0xff]
        %v4537 = vld [vmem:[%s3 + $0xe0] sm:$0xff]
        %v4538 = vld [vmem:[%s3 + $0xe8] sm:$0xff]
        %v4539 = vld [vmem:[%s3 + $0xf0] sm:$0xff]
        %v4540 = vld [vmem:[%s3 + $0xf8] sm:$0xff]
        %v4541 = vld [vmem:[%s3 + $0x100] sm:$0xff]
        %v4542 = vld [vmem:[%s3 + $0x108] sm:$0xff]
        %v4543 = vld [vmem:[%s3 + $0x110] sm:$0xff]
        %v4544 = vld [vmem:[%s3 + $0x118] sm:$0xff]
        %v4545 = vld [vmem:[%s4] sm:$0x1]
        %v4547 = vlaneseq
        %v4548 = vshrl.u32 %v4547, 7
        %v4549 = vsub.s32 0, %v4548
        %v4550 = vrot.slane %v4545, %v4549
        %v4553 = vsel %vm3901, %v4487, 0
        %v4556 = vsel %vm3901, %v4490, 0
        %v4559 = vsel %vm3901, %v4493, 0
        %v4562 = vsel %vm3901, %v4496, 0
        %v4565 = vsel %vm3901, %v4499, 0
        %v4568 = vsel %vm3901, %v4502, 0
        %v4571 = vsel %vm3901, %v4505, 0
        %v4574 = vsel %vm3901, %v4508, 0
        %4576 = vmatprep.subr.mxu0 0.0
        %4577 = vmatpush1.msra.mxu0 %v4524
        %4578 = vmatprep.subr.mxu0 0.0
        %4579 = vmatpush1.msra.mxu0 %v4523
        %4580 = vmatprep.subr.mxu0 0.0
        %4581 = vmatpush1.msra.mxu0 %v4522
        %4582 = vmatprep.subr.mxu0 0.0
        %4583 = vmatpush1.msra.mxu0 %v4521
        %4584 = vmatprep.subr.mxu0 0.0
        %4585 = vmatpush1.msra.mxu0 %v4520
        %4586 = vmatprep.subr.mxu0 0.0
        %4587 = vmatpush1.msra.mxu0 %v4519
        %4588 = vmatprep.subr.mxu0 0.0
        %4589 = vmatpush1.msra.mxu0 %v4518
        %4590 = vmatprep.subr.mxu0 0.0
        %4591 = vmatpush1.msra.mxu0 %v4517
        %4592 = vmatprep.subr.mxu0 0.0
        %4593 = vmatpush1.msra.mxu0 %v4516
        %4594 = vmatprep.subr.mxu0 0.0
        %4595 = vmatpush1.msra.mxu0 %v4515
        %4596 = vmatprep.subr.mxu0 0.0
        %4597 = vmatpush1.msra.mxu0 %v4514
        %4598 = vmatprep.subr.mxu0 0.0
        %4599 = vmatpush1.msra.mxu0 %v4513
        %4600 = vmatprep.subr.mxu0 0.0
        %4601 = vmatpush1.msra.mxu0 %v4512
        %4602 = vmatprep.subr.mxu0 0.0
        %4603 = vmatpush1.msra.mxu0 %v4511
        %4604 = vmatprep.subr.mxu0 0.0
        %4605 = vmatpush1.msra.mxu0 %v4510
        %4606 = vmatprep.subr.mxu0 0.0
        %4607 = vmatpush1.msra.mxu0 %v4509
        %4608 = vmatprep.subr.mxu0 0.0
        %4609 = vmatpush2.msra.mxu0 %v4540
        %4610 = vmatprep.subr.mxu0 0.0
        %4611 = vmatpush2.msra.mxu0 %v4539
        %4612 = vmatprep.subr.mxu0 0.0
        %4613 = vmatpush2.msra.mxu0 %v4538
        %4614 = vmatprep.subr.mxu0 0.0
        %4615 = vmatpush2.msra.mxu0 %v4537
        %4616 = vmatprep.subr.mxu0 0.0
        %4617 = vmatpush2.msra.mxu0 %v4536
        %4618 = vmatprep.subr.mxu0 0.0
        %4619 = vmatpush2.msra.mxu0 %v4535
        %4620 = vmatprep.subr.mxu0 0.0
        %4621 = vmatpush2.msra.mxu0 %v4534
        %4622 = vmatprep.subr.mxu0 0.0
        %4623 = vmatpush2.msra.mxu0 %v4533
        %4624 = vmatprep.subr.mxu0 0.0
        %4625 = vmatpush2.msra.mxu0 %v4532
        %4626 = vmatprep.subr.mxu0 0.0
        %4627 = vmatpush2.msra.mxu0 %v4531
        %4628 = vmatprep.subr.mxu0 0.0
        %4629 = vmatpush2.msra.mxu0 %v4530
        %4630 = vmatprep.subr.mxu0 0.0
        %4631 = vmatpush2.msra.mxu0 %v4529
        %4632 = vmatprep.subr.mxu0 0.0
        %4633 = vmatpush2.msra.mxu0 %v4528
        %4634 = vmatprep.subr.mxu0 0.0
        %4635 = vmatpush2.msra.mxu0 %v4527
        %4636 = vmatprep.subr.mxu0 0.0
        %4637 = vmatpush2.msra.mxu0 %v4526
        %4638 = vmatprep.subr.mxu0 0.0
        %4639 = vmatpush2.msra.mxu0 %v4525
        %4640 = vmatprep.mubr.f32.mxu0 %v4486
        %4641 = vmatmul.mubr.f32.gmra.mxu0 %v4485
        %v4642 = vpop.f32.mrf.mxu0
        %v4643 = vadd.f32 %v4550, %v4642
        %v4644 = vpop.f32.mrf.mxu0
        %4645 = vmatprep.mubr.f32.mxu0 %v4489
        %4646 = vmatmul.mubr.f32.gmra.mxu0 %v4488
        %v4647 = vpop.f32.mrf.mxu0
        %v4648 = vadd.f32 %v4550, %v4647
        %v4649 = vpop.f32.mrf.mxu0
        %4650 = vmatprep.mubr.f32.mxu0 %v4492
        %4651 = vmatmul.mubr.f32.gmra.mxu0 %v4491
        %v4652 = vpop.f32.mrf.mxu0
        %v4653 = vadd.f32 %v4550, %v4652
        %v4654 = vpop.f32.mrf.mxu0
        %4655 = vmatprep.mubr.f32.mxu0 %v4495
        %4656 = vmatmul.mubr.f32.gmra.mxu0 %v4494
        %v4657 = vpop.f32.mrf.mxu0
        %v4658 = vadd.f32 %v4550, %v4657
        %v4659 = vpop.f32.mrf.mxu0
        %4660 = vmatprep.mubr.f32.mxu0 %v4498
        %4661 = vmatmul.mubr.f32.gmra.mxu0 %v4497
        %v4662 = vpop.f32.mrf.mxu0
        %v4663 = vadd.f32 %v4550, %v4662
        %v4664 = vpop.f32.mrf.mxu0
        %4665 = vmatprep.mubr.f32.mxu0 %v4501
        %4666 = vmatmul.mubr.f32.gmra.mxu0 %v4500
        %v4667 = vpop.f32.mrf.mxu0
        %v4668 = vadd.f32 %v4550, %v4667
        %v4669 = vpop.f32.mrf.mxu0
        %4670 = vmatprep.mubr.f32.mxu0 %v4504
        %4671 = vmatmul.mubr.f32.gmra.mxu0 %v4503
        %v4672 = vpop.f32.mrf.mxu0
        %v4673 = vadd.f32 %v4550, %v4672
        %v4674 = vpop.f32.mrf.mxu0
        %4675 = vmatprep.mubr.f32.mxu0 %v4507
        %4676 = vmatmul.mubr.f32.gmra.mxu0 %v4506
        %v4677 = vpop.f32.mrf.mxu0
        %v4678 = vadd.f32 %v4550, %v4677
        %v4679 = vpop.f32.mrf.mxu0
        %4680 = vdwg.mxu0
        %4681 = vmatprep.subr.mxu0 0.0
        %4682 = vmatpush1.msra.mxu0 0.0
        %4683 = vmatprep.subr.mxu0 0.0
        %4684 = vmatpush1.msra.mxu0 0.0
        %4685 = vmatprep.subr.mxu0 0.0
        %4686 = vmatpush1.msra.mxu0 0.0
        %4687 = vmatprep.subr.mxu0 0.0
        %4688 = vmatpush1.msra.mxu0 0.0
        %4689 = vmatprep.subr.mxu0 0.0
        %4690 = vmatpush1.msra.mxu0 0.0
        %4691 = vmatprep.subr.mxu0 0.0
        %4692 = vmatpush1.msra.mxu0 0.0
        %4693 = vmatprep.subr.mxu0 0.0
        %4694 = vmatpush1.msra.mxu0 0.0
        %4695 = vmatprep.subr.mxu0 0.0
        %4696 = vmatpush1.msra.mxu0 0.0
        %4697 = vmatprep.subr.mxu0 0.0
        %4698 = vmatpush1.msra.mxu0 0.0
        %4699 = vmatprep.subr.mxu0 0.0
        %4700 = vmatpush1.msra.mxu0 0.0
        %4701 = vmatprep.subr.mxu0 0.0
        %4702 = vmatpush1.msra.mxu0 0.0
        %4703 = vmatprep.subr.mxu0 0.0
        %4704 = vmatpush1.msra.mxu0 0.0
        %4705 = vmatprep.subr.mxu0 0.0
        %4706 = vmatpush1.msra.mxu0 %v4544
        %4707 = vmatprep.subr.mxu0 0.0
        %4708 = vmatpush1.msra.mxu0 %v4543
        %4709 = vmatprep.subr.mxu0 0.0
        %4710 = vmatpush1.msra.mxu0 %v4542
        %4711 = vmatprep.subr.mxu0 0.0
        %4712 = vmatpush1.msra.mxu0 %v4541
        %4713 = vmatprep.subr.mxu0 0.0
        %4714 = vmatpush2.msra.mxu0 0.0
        %4715 = vmatprep.subr.mxu0 0.0
        %4716 = vmatpush2.msra.mxu0 0.0
        %4717 = vmatprep.subr.mxu0 0.0
        %4718 = vmatpush2.msra.mxu0 0.0
        %4719 = vmatprep.subr.mxu0 0.0
        %4720 = vmatpush2.msra.mxu0 0.0
        %4721 = vmatprep.subr.mxu0 0.0
        %4722 = vmatpush2.msra.mxu0 0.0
        %4723 = vmatprep.subr.mxu0 0.0
        %4724 = vmatpush2.msra.mxu0 0.0
        %4725 = vmatprep.subr.mxu0 0.0
        %4726 = vmatpush2.msra.mxu0 0.0
        %4727 = vmatprep.subr.mxu0 0.0
        %4728 = vmatpush2.msra.mxu0 0.0
        %4729 = vmatprep.subr.mxu0 0.0
        %4730 = vmatpush2.msra.mxu0 0.0
        %4731 = vmatprep.subr.mxu0 0.0
        %4732 = vmatpush2.msra.mxu0 0.0
        %4733 = vmatprep.subr.mxu0 0.0
        %4734 = vmatpush2.msra.mxu0 0.0
        %4735 = vmatprep.subr.mxu0 0.0
        %4736 = vmatpush2.msra.mxu0 0.0
        %4737 = vmatprep.subr.mxu0 0.0
        %4738 = vmatpush2.msra.mxu0 0.0
        %4739 = vmatprep.subr.mxu0 0.0
        %4740 = vmatpush2.msra.mxu0 0.0
        %4741 = vmatprep.subr.mxu0 0.0
        %4742 = vmatpush2.msra.mxu0 0.0
        %4743 = vmatprep.subr.mxu0 0.0
        %4744 = vmatpush2.msra.mxu0 0.0
        %4745 = vmatprep.mubr.f32.mxu0 0.0
        %4746 = vmatmul.mubr.f32.gmra.mxu0 %v4553
        %v4747 = vpop.f32.mrf.mxu0
        %v4748 = vadd.f32 %v4643, %v4747
        %v4749 = vpop.f32.mrf.mxu0
        %4750 = vmatprep.mubr.f32.mxu0 0.0
        %4751 = vmatmul.mubr.f32.gmra.mxu0 %v4556
        %v4752 = vpop.f32.mrf.mxu0
        %v4753 = vadd.f32 %v4648, %v4752
        %v4754 = vpop.f32.mrf.mxu0
        %4755 = vmatprep.mubr.f32.mxu0 0.0
        %4756 = vmatmul.mubr.f32.gmra.mxu0 %v4559
        %v4757 = vpop.f32.mrf.mxu0
        %v4758 = vadd.f32 %v4653, %v4757
        %v4759 = vpop.f32.mrf.mxu0
        %4760 = vmatprep.mubr.f32.mxu0 0.0
        %4761 = vmatmul.mubr.f32.gmra.mxu0 %v4562
        %v4762 = vpop.f32.mrf.mxu0
        %v4763 = vadd.f32 %v4658, %v4762
        %v4764 = vpop.f32.mrf.mxu0
        %4765 = vmatprep.mubr.f32.mxu0 0.0
        %4766 = vmatmul.mubr.f32.gmra.mxu0 %v4565
        %v4767 = vpop.f32.mrf.mxu0
        %v4768 = vadd.f32 %v4663, %v4767
        %v4769 = vpop.f32.mrf.mxu0
        %4770 = vmatprep.mubr.f32.mxu0 0.0
        %4771 = vmatmul.mubr.f32.gmra.mxu0 %v4568
        %v4772 = vpop.f32.mrf.mxu0
        %v4773 = vadd.f32 %v4668, %v4772
        %v4774 = vpop.f32.mrf.mxu0
        %4775 = vmatprep.mubr.f32.mxu0 0.0
        %4776 = vmatmul.mubr.f32.gmra.mxu0 %v4571
        %v4777 = vpop.f32.mrf.mxu0
        %v4778 = vadd.f32 %v4673, %v4777
        %v4779 = vpop.f32.mrf.mxu0
        %4780 = vmatprep.mubr.f32.mxu0 0.0
        %4781 = vmatmul.mubr.f32.gmra.mxu0 %v4574
        %v4782 = vpop.f32.mrf.mxu0
        %v4783 = vadd.f32 %v4678, %v4782
        %v4784 = vpop.f32.mrf.mxu0
        %4785 = vdwg.mxu0
        %v4786 = vmax.f32 %v4748, 0.0
        %v4787 = vmax.f32 %v4753, 0.0
        %v4788 = vmax.f32 %v4758, 0.0
        %v4789 = vmax.f32 %v4763, 0.0
        %v4790 = vmax.f32 %v4768, 0.0
        %v4791 = vmax.f32 %v4773, 0.0
        %v4792 = vmax.f32 %v4778, 0.0
        %v4793 = vmax.f32 %v4783, 0.0
        %v4801 = vrot.slane %v4786, 1
        %v4802 = vrot.slane %v4787, 1
        %v4803 = vsel %vm3590, %v4801, %v4802
        %v4804 = vrot.slane %v4788, 1
        %v4805 = vsel %vm3590, %v4802, %v4804
        %v4806 = vrot.slane %v4789, 1
        %v4807 = vsel %vm3590, %v4804, %v4806
        %v4808 = vrot.slane %v4790, 1
        %v4809 = vsel %vm3590, %v4806, %v4808
        %v4810 = vrot.slane %v4791, 1
        %v4811 = vsel %vm3590, %v4808, %v4810
        %v4812 = vrot.slane %v4792, 1
        %v4813 = vsel %vm3590, %v4810, %v4812
        %v4821 = vmax.f32 %v4786, %v4803
        %v4822 = vmax.f32 %v4787, %v4805
        %v4823 = vmax.f32 %v4788, %v4807
        %v4824 = vmax.f32 %v4789, %v4809
        %v4825 = vmax.f32 %v4790, %v4811
        %v4826 = vmax.f32 %v4791, %v4813
        %v4827 = vmax.f32 %v4792, %v4812
        %v4829 = vrot.slane %v4793, 1
        %v4830 = vsel %vm3590, %v4812, %v4829
        %v4833 = vmax.f32 %v4792, %v4830
        %v4834 = vmax.f32 %v4793, %v4829
        %v4835 = vmax.f32 %v4821, %v4822
        %v4836 = vmax.f32 %v4822, %v4823
        %v4837 = vmax.f32 %v4823, %v4824
        %v4838 = vmax.f32 %v4824, %v4825
        %v4839 = vmax.f32 %v4825, %v4826
        %v4840 = vmax.f32 %v4826, %v4833
        %v4841 = vmax.f32 %v4827, %v4834
        %v4842 = vld [vmem:[%s10] sm:$0xff]
        %v4843 = vld [vmem:[%s10 + $0x8] sm:$0xff]
        %vm4844 = vcmask 449536
        %v4846 = vsel %vm4844, %v4842, 0
        %v4849 = vsel %vm4844, %v4843, 0
        %v4852 = vsel %vm3590, %v4841, 0
        %4854 = vmatprep.subr.mxu0 0.0
        %4855 = vmatpush1.msra.mxu0 0.0
        %4856 = vmatprep.subr.mxu0 0.0
        %4857 = vmatpush1.msra.mxu0 0.0
        %4858 = vmatprep.subr.mxu0 0.0
        %4859 = vmatpush1.msra.mxu0 0.0
        %4860 = vmatprep.subr.mxu0 0.0
        %4861 = vmatpush1.msra.mxu0 0.0
        %4862 = vmatprep.subr.mxu0 0.0
        %4863 = vmatpush1.msra.mxu0 0.0
        %4864 = vmatprep.subr.mxu0 0.0
        %4865 = vmatpush1.msra.mxu0 0.0
        %4866 = vmatprep.subr.mxu0 0.0
        %4867 = vmatpush1.msra.mxu0 0.0
        %4868 = vmatprep.subr.mxu0 0.0
        %4869 = vmatpush1.msra.mxu0 0.0
        %4870 = vmatprep.subr.mxu0 0.0
        %4871 = vmatpush1.msra.mxu0 0.0
        %4872 = vmatprep.subr.mxu0 0.0
        %4873 = vmatpush1.msra.mxu0 %v4852
        %4874 = vmatprep.subr.mxu0 0.0
        %4875 = vmatpush1.msra.mxu0 %v4840
        %4876 = vmatprep.subr.mxu0 0.0
        %4877 = vmatpush1.msra.mxu0 %v4839
        %4878 = vmatprep.subr.mxu0 0.0
        %4879 = vmatpush1.msra.mxu0 %v4838
        %4880 = vmatprep.subr.mxu0 0.0
        %4881 = vmatpush1.msra.mxu0 %v4837
        %4882 = vmatprep.subr.mxu0 0.0
        %4883 = vmatpush1.msra.mxu0 %v4836
        %4884 = vmatprep.subr.mxu0 0.0
        %4885 = vmatpush1.msra.mxu0 %v4835
        %4886 = vmatprep.subr.mxu0 0.0
        %4887 = vmatpush2.msra.mxu0 0.0
        %4888 = vmatprep.subr.mxu0 0.0
        %4889 = vmatpush2.msra.mxu0 0.0
        %4890 = vmatprep.subr.mxu0 0.0
        %4891 = vmatpush2.msra.mxu0 0.0
        %4892 = vmatprep.subr.mxu0 0.0
        %4893 = vmatpush2.msra.mxu0 0.0
        %4894 = vmatprep.subr.mxu0 0.0
        %4895 = vmatpush2.msra.mxu0 0.0
        %4896 = vmatprep.subr.mxu0 0.0
        %4897 = vmatpush2.msra.mxu0 0.0
        %4898 = vmatprep.subr.mxu0 0.0
        %4899 = vmatpush2.msra.mxu0 0.0
        %4900 = vmatprep.subr.mxu0 0.0
        %4901 = vmatpush2.msra.mxu0 0.0
        %4902 = vmatprep.subr.mxu0 0.0
        %4903 = vmatpush2.msra.mxu0 0.0
        %4904 = vmatprep.subr.mxu0 0.0
        %4905 = vmatpush2.msra.mxu0 0.0
        %4906 = vmatprep.subr.mxu0 0.0
        %4907 = vmatpush2.msra.mxu0 0.0
        %4908 = vmatprep.subr.mxu0 0.0
        %4909 = vmatpush2.msra.mxu0 0.0
        %4910 = vmatprep.subr.mxu0 0.0
        %4911 = vmatpush2.msra.mxu0 0.0
        %4912 = vmatprep.subr.mxu0 0.0
        %4913 = vmatpush2.msra.mxu0 0.0
        %4914 = vmatprep.subr.mxu0 0.0
        %4915 = vmatpush2.msra.mxu0 0.0
        %4916 = vmatprep.subr.mxu0 0.0
        %4917 = vmatpush2.msra.mxu0 0.0
        %4918 = vmatprep.mubr.f32.mxu0 0.0
        %4919 = vmatmul.mubr.f32.gmra.mxu0 %v4846
        %v4920 = vpop.f32.mrf.mxu0
        %v4921 = vadd.f32 0.0, %v4920
        %v4922 = vpop.f32.mrf.mxu0
        %4923 = vmatprep.mubr.f32.mxu0 0.0
        %4924 = vmatmul.mubr.f32.gmra.mxu0 %v4849
        %v4925 = vpop.f32.mrf.mxu0
        %v4926 = vadd.f32 0.0, %v4925
        %v4927 = vpop.f32.mrf.mxu0
        %4928 = vdwg.mxu0
        %vm4929 = vcmask 523264
        %4930 = vst.msk [vmem:[#allocation4] sm:$0xff] %vm4929, 0.0
        %4931 = vst.msk [vmem:[#allocation4 + $0x8] sm:$0xff] %vm4929, 0.0
        %4932 = vst.msk [vmem:[#allocation4 + $0x10] sm:$0xff] %vm4929, 0.0
        %vm4933 = vcmask 517120
        %4934 = vst.msk [vmem:[#allocation4 + $0x18] sm:$0x3] %vm4933, 0.0
        %4935 = vst.msk [vmem:[#allocation4 + $0x5] sm:$0xff] %vm4929, %v4921
        %4936 = vst.msk [vmem:[#allocation4 + $0xd] sm:$0xff] %vm4929, %v4926
        %vm4937 = vcmp.lt.s32.totalorder %v623, 0
        %v4938 = vsub.s32 0, %v623
        %v4939 = vsel %vm4937, %v4938, %v623
        %v4940 = vshrl.u32 %v4939, 2
        %v4941 = vand.u32 %v4939, 3
        %v4942 = vsub.s32 0, %v4941
        %v4943 = vsel %vm4937, %v4942, %v4941
        %vm4944 = vcmp.lt.s32.totalorder %v624, 0
        %v4945 = vsub.s32 0, %v624
        %v4946 = vsel %vm4944, %v4945, %v624
        %v4947 = vshrl.u32 %v4946, 2
        %v4948 = vand.u32 %v4946, 3
        %v4949 = vsub.s32 0, %v4948
        %v4950 = vsel %vm4944, %v4949, %v4948
        %vm4951 = vcmp.ne.s32.totalorder %v4943, 0
        %vm4952 = vcmp.ne.s32.totalorder %v4950, 0
        %vm4953 = vcmp.lt.s32.totalorder %v4943, 0
        %vm4954 = vcmp.lt.s32.totalorder %v4950, 0
        %vm4955 = vmand %vm4953, %vm4951
        %vm4956 = vmand %vm4954, %vm4952
        %v4957 = vadd.s32 %v4943, 4
        %v4958 = vadd.s32 %v4950, 4
        %v4959 = vsel %vm4955, %v4957, %v4943
        %v4960 = vsel %vm4956, %v4958, %v4950
        %v4961 = vld [vmem:[#allocation4] sm:$0xff]
        %v4962 = vld [vmem:[#allocation4 + $0x8] sm:$0xff]
        %vm4963 = vcmp.ge.s32.totalorder %v4959, 1
        %vm4964 = vcmp.ge.s32.totalorder %v4960, 1
        %vm4965 = vcmp.lt.s32.totalorder %v4959, 5
        %vm4966 = vcmp.lt.s32.totalorder %v4960, 5
        %vm4967 = vmand %vm4963, %vm4965
        %vm4968 = vmand %vm4964, %vm4966
        %v4969 = vsel %vm4967, 1, 0
        %v4970 = vsel %vm4968, 1, 0
        %vm4971 = vcmp.eq.s32.totalorder %v4969, 1
        %vm4972 = vcmp.eq.s32.totalorder %v4970, 1
        %v4973 = vsel %vm4971, %v4961, 0.0
        %v4974 = vsel %vm4972, %v4962, 0.0
        %4975 = vst.msk [vmem:[#allocation8] sm:$0xff] %vm4929, %v4973
        %4976 = vst.msk [vmem:[#allocation8 + $0x28] sm:$0xff] %vm4929, %v4974
        %v4977 = vld [vmem:[#allocation4 + $0x1] sm:$0xff]
        %v4978 = vld [vmem:[#allocation4 + $0x9] sm:$0xff]
        %4981 = vrot.lane.b32.xlu0 %v4977, 64
        %v4982 = vpop.permute.xlu0 %4981
        %4983 = vrot.lane.b32.xlu0 %v4978, 64
        %v4984 = vpop.permute.xlu0 %4983
        %vm4987 = vcmask 1048064
        %4988 = vst.msk [vmem:[#allocation8] sm:$0xff] %vm4987, %v4982
        %4989 = vst.msk [vmem:[#allocation8 + $0x28] sm:$0xff] %vm4987, %v4984
        %v4990 = vld [vmem:[#allocation4 + $0x2] sm:$0xff]
        %v4991 = vld [vmem:[#allocation4 + $0xa] sm:$0xff]
        %vm4992 = vcmp.ge.s32.totalorder %v4959, 4294967295
        %vm4993 = vcmp.ge.s32.totalorder %v4960, 4294967295
        %vm4994 = vcmp.lt.s32.totalorder %v4959, 3
        %vm4995 = vcmp.lt.s32.totalorder %v4960, 3
        %vm4996 = vmand %vm4992, %vm4994
        %vm4997 = vmand %vm4993, %vm4995
        %v4998 = vsel %vm4996, 1, 0
        %v4999 = vsel %vm4997, 1, 0
        %vm5000 = vcmp.eq.s32.totalorder %v4998, 1
        %vm5001 = vcmp.eq.s32.totalorder %v4999, 1
        %v5002 = vsel %vm5000, %v4990, 0.0
        %v5003 = vsel %vm5001, %v4991, 0.0
        %5004 = vst.msk [vmem:[#allocation8 + $0x8] sm:$0xff] %vm4929, %v5002
        %5005 = vst.msk [vmem:[#allocation8 + $0x30] sm:$0xff] %vm4929, %v5003
        %v5006 = vld [vmem:[#allocation4 + $0x4] sm:$0xff]
        %v5007 = vld [vmem:[#allocation4 + $0xc] sm:$0xff]
        %v5008 = vsel %vm4971, %v5006, 0.0
        %v5009 = vsel %vm4972, %v5007, 0.0
        %5012 = vrot.lane.b32.xlu0 %v5008, 64
        %v5013 = vpop.permute.xlu0 %5012
        %5014 = vrot.lane.b32.xlu0 %v5009, 64
        %v5015 = vpop.permute.xlu0 %5014
        %5018 = vst.msk [vmem:[#allocation8 + $0x8] sm:$0xff] %vm4987, %v5013
        %5019 = vst.msk [vmem:[#allocation8 + $0x30] sm:$0xff] %vm4987, %v5015
        %v5020 = vld [vmem:[#allocation4 + $0x5] sm:$0xff]
        %v5021 = vld [vmem:[#allocation4 + $0xd] sm:$0xff]
        %5022 = vst.msk [vmem:[#allocation8 + $0x10] sm:$0xff] %vm4929, %v5020
        %5023 = vst.msk [vmem:[#allocation8 + $0x38] sm:$0xff] %vm4929, %v5021
        %v5024 = vld [vmem:[#allocation4 + $0x6] sm:$0xff]
        %v5025 = vld [vmem:[#allocation4 + $0xe] sm:$0xff]
        %v5026 = vsel %vm5000, %v5024, 0.0
        %v5027 = vsel %vm5001, %v5025, 0.0
        %5030 = vrot.lane.b32.xlu0 %v5026, 64
        %v5031 = vpop.permute.xlu0 %5030
        %5032 = vrot.lane.b32.xlu0 %v5027, 64
        %v5033 = vpop.permute.xlu0 %5032
        %5036 = vst.msk [vmem:[#allocation8 + $0x10] sm:$0xff] %vm4987, %v5031
        %5037 = vst.msk [vmem:[#allocation8 + $0x38] sm:$0xff] %vm4987, %v5033
        %v5038 = vld [vmem:[#allocation4 + $0x8] sm:$0xff]
        %v5039 = vld [vmem:[#allocation4 + $0x10] sm:$0xff]
        %v5040 = vsel %vm4971, %v5038, 0.0
        %v5041 = vsel %vm4972, %v5039, 0.0
        %5042 = vst.msk [vmem:[#allocation8 + $0x18] sm:$0xff] %vm4929, %v5040
        %5043 = vst.msk [vmem:[#allocation8 + $0x40] sm:$0xff] %vm4929, %v5041
        %v5044 = vld [vmem:[#allocation4 + $0x9] sm:$0xff]
        %v5045 = vld [vmem:[#allocation4 + $0x11] sm:$0xff]
        %5048 = vrot.lane.b32.xlu0 %v5044, 64
        %v5049 = vpop.permute.xlu0 %5048
        %5050 = vrot.lane.b32.xlu0 %v5045, 64
        %v5051 = vpop.permute.xlu0 %5050
        %5054 = vst.msk [vmem:[#allocation8 + $0x18] sm:$0xff] %vm4987, %v5049
        %5055 = vst.msk [vmem:[#allocation8 + $0x40] sm:$0xff] %vm4987, %v5051
        %v5056 = vld [vmem:[#allocation4 + $0xa] sm:$0xff]
        %v5057 = vld [vmem:[#allocation4 + $0x12] sm:$0xff]
        %v5058 = vsel %vm5000, %v5056, 0.0
        %v5059 = vsel %vm5001, %v5057, 0.0
        %5060 = vst.msk [vmem:[#allocation8 + $0x20] sm:$0xff] %vm4929, %v5058
        %5061 = vst.msk [vmem:[#allocation8 + $0x48] sm:$0xff] %vm4929, %v5059
        %v5062 = vld [vmem:[#allocation8] sm:$0xff]
        %v5063 = vld [vmem:[#allocation8 + $0x8] sm:$0xff]
        %v5064 = vld [vmem:[#allocation8 + $0x10] sm:$0xff]
        %v5065 = vld [vmem:[#allocation8 + $0x18] sm:$0xff]
        %v5066 = vld [vmem:[#allocation8 + $0x20] sm:$0xff]
        %v5067 = vld [vmem:[#allocation8 + $0x28] sm:$0xff]
        %v5068 = vld [vmem:[#allocation8 + $0x30] sm:$0xff]
        %v5069 = vld [vmem:[#allocation8 + $0x38] sm:$0xff]
        %v5070 = vld [vmem:[#allocation8 + $0x40] sm:$0xff]
        %v5071 = vld [vmem:[#allocation8 + $0x48] sm:$0xff]
        %v5072 = vld [vmem:[%s5] sm:$0xff]
        %v5073 = vld [vmem:[%s5 + $0x8] sm:$0xff]
        %v5074 = vld [vmem:[%s5 + $0x10] sm:$0xff]
        %v5075 = vld [vmem:[%s5 + $0x18] sm:$0xff]
        %v5076 = vld [vmem:[%s5 + $0x20] sm:$0xff]
        %v5077 = vld [vmem:[%s5 + $0x28] sm:$0xff]
        %v5078 = vld [vmem:[%s5 + $0x30] sm:$0xff]
        %v5079 = vld [vmem:[%s5 + $0x38] sm:$0xff]
        %v5080 = vld [vmem:[%s5 + $0x40] sm:$0xff]
        %v5081 = vld [vmem:[%s5 + $0x48] sm:$0xff]
        %v5082 = vld [vmem:[%s5 + $0x50] sm:$0xff]
        %v5083 = vld [vmem:[%s5 + $0x58] sm:$0xff]
        %v5084 = vld [vmem:[%s5 + $0x60] sm:$0xff]
        %v5085 = vld [vmem:[%s5 + $0x68] sm:$0xff]
        %v5086 = vld [vmem:[%s5 + $0x70] sm:$0xff]
        %v5087 = vld [vmem:[%s5 + $0x78] sm:$0xff]
        %v5088 = vld [vmem:[%s5 + $0x80] sm:$0xff]
        %v5089 = vld [vmem:[%s5 + $0x88] sm:$0xff]
        %v5090 = vld [vmem:[%s5 + $0x90] sm:$0xff]
        %v5091 = vld [vmem:[%s5 + $0x98] sm:$0xff]
        %v5092 = vld [vmem:[%s5 + $0xa0] sm:$0xff]
        %v5093 = vld [vmem:[%s5 + $0xa8] sm:$0xff]
        %v5094 = vld [vmem:[%s5 + $0xb0] sm:$0xff]
        %v5095 = vld [vmem:[%s5 + $0xb8] sm:$0xff]
        %v5096 = vld [vmem:[%s5 + $0xc0] sm:$0xff]
        %v5097 = vld [vmem:[%s5 + $0xc8] sm:$0xff]
        %v5098 = vld [vmem:[%s5 + $0xd0] sm:$0xff]
        %v5099 = vld [vmem:[%s5 + $0xd8] sm:$0xff]
        %v5100 = vld [vmem:[%s5 + $0xe0] sm:$0xff]
        %v5101 = vld [vmem:[%s5 + $0xe8] sm:$0xff]
        %v5102 = vld [vmem:[%s5 + $0xf0] sm:$0xff]
        %v5103 = vld [vmem:[%s5 + $0xf8] sm:$0xff]
        %v5104 = vld [vmem:[%s5 + $0x100] sm:$0xff]
        %v5105 = vld [vmem:[%s5 + $0x108] sm:$0xff]
        %v5106 = vld [vmem:[%s5 + $0x110] sm:$0xff]
        %v5107 = vld [vmem:[%s5 + $0x118] sm:$0xff]
        %v5108 = vld [vmem:[%s5 + $0x120] sm:$0xff]
        %v5109 = vld [vmem:[%s5 + $0x128] sm:$0xff]
        %v5110 = vld [vmem:[%s5 + $0x130] sm:$0xff]
        %v5111 = vld [vmem:[%s5 + $0x138] sm:$0xff]
        %v5112 = vld [vmem:[%s5 + $0x140] sm:$0xff]
        %v5113 = vld [vmem:[%s5 + $0x148] sm:$0xff]
        %v5114 = vld [vmem:[%s5 + $0x150] sm:$0xff]
        %v5115 = vld [vmem:[%s5 + $0x158] sm:$0xff]
        %v5116 = vld [vmem:[%s5 + $0x160] sm:$0xff]
        %v5117 = vld [vmem:[%s5 + $0x168] sm:$0xff]
        %v5118 = vld [vmem:[%s5 + $0x170] sm:$0xff]
        %v5119 = vld [vmem:[%s5 + $0x178] sm:$0xff]
        %v5120 = vld [vmem:[%s5 + $0x180] sm:$0xff]
        %v5121 = vld [vmem:[%s5 + $0x188] sm:$0xff]
        %v5122 = vld [vmem:[%s5 + $0x190] sm:$0xff]
        %v5123 = vld [vmem:[%s5 + $0x198] sm:$0xff]
        %v5124 = vld [vmem:[%s5 + $0x1a0] sm:$0xff]
        %v5125 = vld [vmem:[%s5 + $0x1a8] sm:$0xff]
        %v5126 = vld [vmem:[%s5 + $0x1b0] sm:$0xff]
        %v5127 = vld [vmem:[%s5 + $0x1b8] sm:$0xff]
        %v5128 = vld [vmem:[%s5 + $0x1c0] sm:$0xff]
        %v5129 = vld [vmem:[%s5 + $0x1c8] sm:$0xff]
        %v5130 = vld [vmem:[%s5 + $0x1d0] sm:$0xff]
        %v5131 = vld [vmem:[%s5 + $0x1d8] sm:$0xff]
        %v5132 = vld [vmem:[%s5 + $0x1e0] sm:$0xff]
        %v5133 = vld [vmem:[%s5 + $0x1e8] sm:$0xff]
        %v5134 = vld [vmem:[%s5 + $0x1f0] sm:$0xff]
        %v5135 = vld [vmem:[%s5 + $0x1f8] sm:$0xff]
        %v5136 = vld [vmem:[%s5 + $0x200] sm:$0xff]
        %v5137 = vld [vmem:[%s5 + $0x208] sm:$0xff]
        %v5138 = vld [vmem:[%s5 + $0x210] sm:$0xff]
        %v5139 = vld [vmem:[%s5 + $0x218] sm:$0xff]
        %v5140 = vld [vmem:[%s5 + $0x220] sm:$0xff]
        %v5141 = vld [vmem:[%s5 + $0x228] sm:$0xff]
        %v5142 = vld [vmem:[%s5 + $0x230] sm:$0xff]
        %v5143 = vld [vmem:[%s5 + $0x238] sm:$0xff]
        %v5144 = vld [vmem:[%s6] sm:$0x1]
        %v5146 = vlaneseq
        %v5147 = vshrl.u32 %v5146, 7
        %v5148 = vsub.s32 0, %v5147
        %v5149 = vrot.slane %v5144, %v5148
        %v5152 = vsel %vm4929, %v5066, 0
        %v5155 = vsel %vm4929, %v5071, 0
        %5157 = vmatprep.subr.mxu0 0.0
        %5158 = vmatpush1.msra.mxu0 %v5087
        %5159 = vmatprep.subr.mxu0 0.0
        %5160 = vmatpush1.msra.mxu0 %v5086
        %5161 = vmatprep.subr.mxu0 0.0
        %5162 = vmatpush1.msra.mxu0 %v5085
        %5163 = vmatprep.subr.mxu0 0.0
        %5164 = vmatpush1.msra.mxu0 %v5084
        %5165 = vmatprep.subr.mxu0 0.0
        %5166 = vmatpush1.msra.mxu0 %v5083
        %5167 = vmatprep.subr.mxu0 0.0
        %5168 = vmatpush1.msra.mxu0 %v5082
        %5169 = vmatprep.subr.mxu0 0.0
        %5170 = vmatpush1.msra.mxu0 %v5081
        %5171 = vmatprep.subr.mxu0 0.0
        %5172 = vmatpush1.msra.mxu0 %v5080
        %5173 = vmatprep.subr.mxu0 0.0
        %5174 = vmatpush1.msra.mxu0 %v5079
        %5175 = vmatprep.subr.mxu0 0.0
        %5176 = vmatpush1.msra.mxu0 %v5078
        %5177 = vmatprep.subr.mxu0 0.0
        %5178 = vmatpush1.msra.mxu0 %v5077
        %5179 = vmatprep.subr.mxu0 0.0
        %5180 = vmatpush1.msra.mxu0 %v5076
        %5181 = vmatprep.subr.mxu0 0.0
        %5182 = vmatpush1.msra.mxu0 %v5075
        %5183 = vmatprep.subr.mxu0 0.0
        %5184 = vmatpush1.msra.mxu0 %v5074
        %5185 = vmatprep.subr.mxu0 0.0
        %5186 = vmatpush1.msra.mxu0 %v5073
        %5187 = vmatprep.subr.mxu0 0.0
        %5188 = vmatpush1.msra.mxu0 %v5072
        %5189 = vmatprep.subr.mxu0 0.0
        %5190 = vmatpush2.msra.mxu0 %v5103
        %5191 = vmatprep.subr.mxu0 0.0
        %5192 = vmatpush2.msra.mxu0 %v5102
        %5193 = vmatprep.subr.mxu0 0.0
        %5194 = vmatpush2.msra.mxu0 %v5101
        %5195 = vmatprep.subr.mxu0 0.0
        %5196 = vmatpush2.msra.mxu0 %v5100
        %5197 = vmatprep.subr.mxu0 0.0
        %5198 = vmatpush2.msra.mxu0 %v5099
        %5199 = vmatprep.subr.mxu0 0.0
        %5200 = vmatpush2.msra.mxu0 %v5098
        %5201 = vmatprep.subr.mxu0 0.0
        %5202 = vmatpush2.msra.mxu0 %v5097
        %5203 = vmatprep.subr.mxu0 0.0
        %5204 = vmatpush2.msra.mxu0 %v5096
        %5205 = vmatprep.subr.mxu0 0.0
        %5206 = vmatpush2.msra.mxu0 %v5095
        %5207 = vmatprep.subr.mxu0 0.0
        %5208 = vmatpush2.msra.mxu0 %v5094
        %5209 = vmatprep.subr.mxu0 0.0
        %5210 = vmatpush2.msra.mxu0 %v5093
        %5211 = vmatprep.subr.mxu0 0.0
        %5212 = vmatpush2.msra.mxu0 %v5092
        %5213 = vmatprep.subr.mxu0 0.0
        %5214 = vmatpush2.msra.mxu0 %v5091
        %5215 = vmatprep.subr.mxu0 0.0
        %5216 = vmatpush2.msra.mxu0 %v5090
        %5217 = vmatprep.subr.mxu0 0.0
        %5218 = vmatpush2.msra.mxu0 %v5089
        %5219 = vmatprep.subr.mxu0 0.0
        %5220 = vmatpush2.msra.mxu0 %v5088
        %5221 = vmatprep.mubr.f32.mxu0 %v5063
        %5222 = vmatmul.mubr.f32.gmra.mxu0 %v5062
        %v5223 = vpop.f32.mrf.mxu0
        %v5224 = vadd.f32 %v5149, %v5223
        %v5225 = vpop.f32.mrf.mxu0
        %5226 = vmatprep.mubr.f32.mxu0 %v5068
        %5227 = vmatmul.mubr.f32.gmra.mxu0 %v5067
        %v5228 = vpop.f32.mrf.mxu0
        %v5229 = vadd.f32 %v5149, %v5228
        %v5230 = vpop.f32.mrf.mxu0
        %5231 = vdwg.mxu0
        %5232 = vmatprep.subr.mxu0 0.0
        %5233 = vmatpush1.msra.mxu0 %v5119
        %5234 = vmatprep.subr.mxu0 0.0
        %5235 = vmatpush1.msra.mxu0 %v5118
        %5236 = vmatprep.subr.mxu0 0.0
        %5237 = vmatpush1.msra.mxu0 %v5117
        %5238 = vmatprep.subr.mxu0 0.0
        %5239 = vmatpush1.msra.mxu0 %v5116
        %5240 = vmatprep.subr.mxu0 0.0
        %5241 = vmatpush1.msra.mxu0 %v5115
        %5242 = vmatprep.subr.mxu0 0.0
        %5243 = vmatpush1.msra.mxu0 %v5114
        %5244 = vmatprep.subr.mxu0 0.0
        %5245 = vmatpush1.msra.mxu0 %v5113
        %5246 = vmatprep.subr.mxu0 0.0
        %5247 = vmatpush1.msra.mxu0 %v5112
        %5248 = vmatprep.subr.mxu0 0.0
        %5249 = vmatpush1.msra.mxu0 %v5111
        %5250 = vmatprep.subr.mxu0 0.0
        %5251 = vmatpush1.msra.mxu0 %v5110
        %5252 = vmatprep.subr.mxu0 0.0
        %5253 = vmatpush1.msra.mxu0 %v5109
        %5254 = vmatprep.subr.mxu0 0.0
        %5255 = vmatpush1.msra.mxu0 %v5108
        %5256 = vmatprep.subr.mxu0 0.0
        %5257 = vmatpush1.msra.mxu0 %v5107
        %5258 = vmatprep.subr.mxu0 0.0
        %5259 = vmatpush1.msra.mxu0 %v5106
        %5260 = vmatprep.subr.mxu0 0.0
        %5261 = vmatpush1.msra.mxu0 %v5105
        %5262 = vmatprep.subr.mxu0 0.0
        %5263 = vmatpush1.msra.mxu0 %v5104
        %5264 = vmatprep.subr.mxu0 0.0
        %5265 = vmatpush2.msra.mxu0 %v5135
        %5266 = vmatprep.subr.mxu0 0.0
        %5267 = vmatpush2.msra.mxu0 %v5134
        %5268 = vmatprep.subr.mxu0 0.0
        %5269 = vmatpush2.msra.mxu0 %v5133
        %5270 = vmatprep.subr.mxu0 0.0
        %5271 = vmatpush2.msra.mxu0 %v5132
        %5272 = vmatprep.subr.mxu0 0.0
        %5273 = vmatpush2.msra.mxu0 %v5131
        %5274 = vmatprep.subr.mxu0 0.0
        %5275 = vmatpush2.msra.mxu0 %v5130
        %5276 = vmatprep.subr.mxu0 0.0
        %5277 = vmatpush2.msra.mxu0 %v5129
        %5278 = vmatprep.subr.mxu0 0.0
        %5279 = vmatpush2.msra.mxu0 %v5128
        %5280 = vmatprep.subr.mxu0 0.0
        %5281 = vmatpush2.msra.mxu0 %v5127
        %5282 = vmatprep.subr.mxu0 0.0
        %5283 = vmatpush2.msra.mxu0 %v5126
        %5284 = vmatprep.subr.mxu0 0.0
        %5285 = vmatpush2.msra.mxu0 %v5125
        %5286 = vmatprep.subr.mxu0 0.0
        %5287 = vmatpush2.msra.mxu0 %v5124
        %5288 = vmatprep.subr.mxu0 0.0
        %5289 = vmatpush2.msra.mxu0 %v5123
        %5290 = vmatprep.subr.mxu0 0.0
        %5291 = vmatpush2.msra.mxu0 %v5122
        %5292 = vmatprep.subr.mxu0 0.0
        %5293 = vmatpush2.msra.mxu0 %v5121
        %5294 = vmatprep.subr.mxu0 0.0
        %5295 = vmatpush2.msra.mxu0 %v5120
        %5296 = vmatprep.mubr.f32.mxu0 %v5065
        %5297 = vmatmul.mubr.f32.gmra.mxu0 %v5064
        %v5298 = vpop.f32.mrf.mxu0
        %v5299 = vadd.f32 %v5224, %v5298
        %v5300 = vpop.f32.mrf.mxu0
        %5301 = vmatprep.mubr.f32.mxu0 %v5070
        %5302 = vmatmul.mubr.f32.gmra.mxu0 %v5069
        %v5303 = vpop.f32.mrf.mxu0
        %v5304 = vadd.f32 %v5229, %v5303
        %v5305 = vpop.f32.mrf.mxu0
        %5306 = vdwg.mxu0
        %5307 = vmatprep.subr.mxu0 0.0
        %5308 = vmatpush1.msra.mxu0 0.0
        %5309 = vmatprep.subr.mxu0 0.0
        %5310 = vmatpush1.msra.mxu0 0.0
        %5311 = vmatprep.subr.mxu0 0.0
        %5312 = vmatpush1.msra.mxu0 0.0
        %5313 = vmatprep.subr.mxu0 0.0
        %5314 = vmatpush1.msra.mxu0 0.0
        %5315 = vmatprep.subr.mxu0 0.0
        %5316 = vmatpush1.msra.mxu0 0.0
        %5317 = vmatprep.subr.mxu0 0.0
        %5318 = vmatpush1.msra.mxu0 0.0
        %5319 = vmatprep.subr.mxu0 0.0
        %5320 = vmatpush1.msra.mxu0 0.0
        %5321 = vmatprep.subr.mxu0 0.0
        %5322 = vmatpush1.msra.mxu0 0.0
        %5323 = vmatprep.subr.mxu0 0.0
        %5324 = vmatpush1.msra.mxu0 %v5143
        %5325 = vmatprep.subr.mxu0 0.0
        %5326 = vmatpush1.msra.mxu0 %v5142
        %5327 = vmatprep.subr.mxu0 0.0
        %5328 = vmatpush1.msra.mxu0 %v5141
        %5329 = vmatprep.subr.mxu0 0.0
        %5330 = vmatpush1.msra.mxu0 %v5140
        %5331 = vmatprep.subr.mxu0 0.0
        %5332 = vmatpush1.msra.mxu0 %v5139
        %5333 = vmatprep.subr.mxu0 0.0
        %5334 = vmatpush1.msra.mxu0 %v5138
        %5335 = vmatprep.subr.mxu0 0.0
        %5336 = vmatpush1.msra.mxu0 %v5137
        %5337 = vmatprep.subr.mxu0 0.0
        %5338 = vmatpush1.msra.mxu0 %v5136
        %5339 = vmatprep.subr.mxu0 0.0
        %5340 = vmatpush2.msra.mxu0 0.0
        %5341 = vmatprep.subr.mxu0 0.0
        %5342 = vmatpush2.msra.mxu0 0.0
        %5343 = vmatprep.subr.mxu0 0.0
        %5344 = vmatpush2.msra.mxu0 0.0
        %5345 = vmatprep.subr.mxu0 0.0
        %5346 = vmatpush2.msra.mxu0 0.0
        %5347 = vmatprep.subr.mxu0 0.0
        %5348 = vmatpush2.msra.mxu0 0.0
        %5349 = vmatprep.subr.mxu0 0.0
        %5350 = vmatpush2.msra.mxu0 0.0
        %5351 = vmatprep.subr.mxu0 0.0
        %5352 = vmatpush2.msra.mxu0 0.0
        %5353 = vmatprep.subr.mxu0 0.0
        %5354 = vmatpush2.msra.mxu0 0.0
        %5355 = vmatprep.subr.mxu0 0.0
        %5356 = vmatpush2.msra.mxu0 0.0
        %5357 = vmatprep.subr.mxu0 0.0
        %5358 = vmatpush2.msra.mxu0 0.0
        %5359 = vmatprep.subr.mxu0 0.0
        %5360 = vmatpush2.msra.mxu0 0.0
        %5361 = vmatprep.subr.mxu0 0.0
        %5362 = vmatpush2.msra.mxu0 0.0
        %5363 = vmatprep.subr.mxu0 0.0
        %5364 = vmatpush2.msra.mxu0 0.0
        %5365 = vmatprep.subr.mxu0 0.0
        %5366 = vmatpush2.msra.mxu0 0.0
        %5367 = vmatprep.subr.mxu0 0.0
        %5368 = vmatpush2.msra.mxu0 0.0
        %5369 = vmatprep.subr.mxu0 0.0
        %5370 = vmatpush2.msra.mxu0 0.0
        %5371 = vmatprep.mubr.f32.mxu0 0.0
        %5372 = vmatmul.mubr.f32.gmra.mxu0 %v5152
        %v5373 = vpop.f32.mrf.mxu0
        %v5374 = vadd.f32 %v5299, %v5373
        %v5375 = vpop.f32.mrf.mxu0
        %5376 = vmatprep.mubr.f32.mxu0 0.0
        %5377 = vmatmul.mubr.f32.gmra.mxu0 %v5155
        %v5378 = vpop.f32.mrf.mxu0
        %v5379 = vadd.f32 %v5304, %v5378
        %v5380 = vpop.f32.mrf.mxu0
        %5381 = vdwg.mxu0
        %v5382 = vmax.f32 %v5374, 0.0
        %v5383 = vmax.f32 %v5379, 0.0
        %v5386 = vrot.slane %v5382, 1
        %v5387 = vrot.slane %v5383, 1
        %v5388 = vsel %vm3590, %v5386, %v5387
        %v5391 = vmax.f32 %v5382, %v5388
        %v5392 = vmax.f32 %v5383, %v5387
        %vm5395 = vcmask 1043456
        %v5396 = vrot.slane %v5391, 4
        %v5397 = vrot.slane %v5392, 4
        %v5398 = vsel %vm5395, %v5396, %v5397
        %v5401 = vmax.f32 %v5391, %v5398
        %v5402 = vmax.f32 %v5392, %v5397
        %v5403 = vld [vmem:[%s11] sm:$0xf]
        %vm5404 = vcmask 89088
        %v5406 = vsel %vm5404, %v5403, 0
        %v5409 = vsel %vm3299, %v5402, 0
        %5411 = vmatprep.subr.mxu0 0.0
        %5412 = vmatpush1.msra.mxu0 0.0
        %5413 = vmatprep.subr.mxu0 0.0
        %5414 = vmatpush1.msra.mxu0 0.0
        %5415 = vmatprep.subr.mxu0 0.0
        %5416 = vmatpush1.msra.mxu0 0.0
        %5417 = vmatprep.subr.mxu0 0.0
        %5418 = vmatpush1.msra.mxu0 0.0
        %5419 = vmatprep.subr.mxu0 0.0
        %5420 = vmatpush1.msra.mxu0 0.0
        %5421 = vmatprep.subr.mxu0 0.0
        %5422 = vmatpush1.msra.mxu0 0.0
        %5423 = vmatprep.subr.mxu0 0.0
        %5424 = vmatpush1.msra.mxu0 0.0
        %5425 = vmatprep.subr.mxu0 0.0
        %5426 = vmatpush1.msra.mxu0 0.0
        %5427 = vmatprep.subr.mxu0 0.0
        %5428 = vmatpush1.msra.mxu0 0.0
        %5429 = vmatprep.subr.mxu0 0.0
        %5430 = vmatpush1.msra.mxu0 0.0
        %5431 = vmatprep.subr.mxu0 0.0
        %5432 = vmatpush1.msra.mxu0 0.0
        %5433 = vmatprep.subr.mxu0 0.0
        %5434 = vmatpush1.msra.mxu0 0.0
        %5435 = vmatprep.subr.mxu0 0.0
        %5436 = vmatpush1.msra.mxu0 0.0
        %5437 = vmatprep.subr.mxu0 0.0
        %5438 = vmatpush1.msra.mxu0 0.0
        %5439 = vmatprep.subr.mxu0 0.0
        %5440 = vmatpush1.msra.mxu0 %v5409
        %5441 = vmatprep.subr.mxu0 0.0
        %5442 = vmatpush1.msra.mxu0 %v5401
        %5443 = vmatprep.subr.mxu0 0.0
        %5444 = vmatpush2.msra.mxu0 0.0
        %5445 = vmatprep.subr.mxu0 0.0
        %5446 = vmatpush2.msra.mxu0 0.0
        %5447 = vmatprep.subr.mxu0 0.0
        %5448 = vmatpush2.msra.mxu0 0.0
        %5449 = vmatprep.subr.mxu0 0.0
        %5450 = vmatpush2.msra.mxu0 0.0
        %5451 = vmatprep.subr.mxu0 0.0
        %5452 = vmatpush2.msra.mxu0 0.0
        %5453 = vmatprep.subr.mxu0 0.0
        %5454 = vmatpush2.msra.mxu0 0.0
        %5455 = vmatprep.subr.mxu0 0.0
        %5456 = vmatpush2.msra.mxu0 0.0
        %5457 = vmatprep.subr.mxu0 0.0
        %5458 = vmatpush2.msra.mxu0 0.0
        %5459 = vmatprep.subr.mxu0 0.0
        %5460 = vmatpush2.msra.mxu0 0.0
        %5461 = vmatprep.subr.mxu0 0.0
        %5462 = vmatpush2.msra.mxu0 0.0
        %5463 = vmatprep.subr.mxu0 0.0
        %5464 = vmatpush2.msra.mxu0 0.0
        %5465 = vmatprep.subr.mxu0 0.0
        %5466 = vmatpush2.msra.mxu0 0.0
        %5467 = vmatprep.subr.mxu0 0.0
        %5468 = vmatpush2.msra.mxu0 0.0
        %5469 = vmatprep.subr.mxu0 0.0
        %5470 = vmatpush2.msra.mxu0 0.0
        %5471 = vmatprep.subr.mxu0 0.0
        %5472 = vmatpush2.msra.mxu0 0.0
        %5473 = vmatprep.subr.mxu0 0.0
        %5474 = vmatpush2.msra.mxu0 0.0
        %5475 = vmatprep.mubr.f32.mxu0 0.0
        %5476 = vmatmul.mubr.f32.gmra.mxu0 %v5406
        %v5477 = vpop.f32.mrf.mxu0
        %v5478 = vadd.f32 0.0, %v5477
        %v5479 = vpop.f32.mrf.mxu0
        %5480 = vdwg.mxu0
        %5481 = vst.msk [vmem:[#allocation5] sm:$0xff] %vm4929, 0.0
        %5482 = vst.msk [vmem:[#allocation5 + $0x8] sm:$0x3] %vm4933, 0.0
        %vm5483 = vcmask 519168
        %5484 = vst.msk [vmem:[#allocation5 + $0x3] sm:$0xf] %vm5483, %v5478
        %vm5485 = vcmp.lt.s32.totalorder %v623, 0
        %v5486 = vsub.s32 0, %v623
        %v5487 = vsel %vm5485, %v5486, %v623
        %v5488 = vshrl.u32 %v5487, 1
        %v5489 = vand.u32 %v5487, 1
        %v5490 = vsub.s32 0, %v5489
        %v5491 = vsel %vm5485, %v5490, %v5489
        %vm5492 = vcmp.ne.s32.totalorder %v5491, 0
        %vm5493 = vcmp.lt.s32.totalorder %v5491, 0
        %vm5494 = vmand %vm5493, %vm5492
        %v5495 = vadd.s32 %v5491, 2
        %v5496 = vsel %vm5494, %v5495, %v5491
        %v5497 = vld [vmem:[#allocation5] sm:$0xf]
        %vm5498 = vcmp.ge.s32.totalorder %v5496, 1
        %vm5499 = vcmp.lt.s32.totalorder %v5496, 3
        %vm5500 = vmand %vm5498, %vm5499
        %v5501 = vsel %vm5500, 1, 0
        %vm5502 = vcmp.eq.s32.totalorder %v5501, 1
        %v5503 = vsel %vm5502, %v5497, 0.0
        %5504 = vst.msk [vmem:[#allocation9] sm:$0xf] %vm5483, %v5503
        %v5505 = vld [vmem:[#allocation5 + $0x1] sm:$0xf]
        %5507 = vrot.lane.b32.xlu0 %v5505, 64
        %v5508 = vpop.permute.xlu0 %5507
        %vm5510 = vcmask 1043968
        %5511 = vst.msk [vmem:[#allocation9] sm:$0xf] %vm5510, %v5508
        %v5512 = vld [vmem:[#allocation5 + $0x2] sm:$0xf]
        %vm5513 = vcmp.ge.s32.totalorder %v5496, 4294967295
        %vm5514 = vcmp.lt.s32.totalorder %v5496, 1
        %vm5515 = vmand %vm5513, %vm5514
        %v5516 = vsel %vm5515, 1, 0
        %vm5517 = vcmp.eq.s32.totalorder %v5516, 1
        %v5518 = vsel %vm5517, %v5512, 0.0
        %5519 = vst.msk [vmem:[#allocation9 + $0x4] sm:$0xf] %vm5483, %v5518
        %v5520 = vld [vmem:[#allocation5 + $0x2] sm:$0xf]
        %v5521 = vsel %vm5502, %v5520, 0.0
        %5523 = vrot.lane.b32.xlu0 %v5521, 64
        %v5524 = vpop.permute.xlu0 %5523
        %5526 = vst.msk [vmem:[#allocation9 + $0x4] sm:$0xf] %vm5510, %v5524
        %v5527 = vld [vmem:[#allocation5 + $0x3] sm:$0xf]
        %5528 = vst.msk [vmem:[#allocation9 + $0x8] sm:$0xf] %vm5483, %v5527
        %v5529 = vld [vmem:[#allocation5 + $0x4] sm:$0xf]
        %v5530 = vsel %vm5517, %v5529, 0.0
        %5532 = vrot.lane.b32.xlu0 %v5530, 64
        %v5533 = vpop.permute.xlu0 %5532
        %5535 = vst.msk [vmem:[#allocation9 + $0x8] sm:$0xf] %vm5510, %v5533
        %v5536 = vld [vmem:[#allocation5 + $0x4] sm:$0xf]
        %v5537 = vsel %vm5502, %v5536, 0.0
        %5538 = vst.msk [vmem:[#allocation9 + $0xc] sm:$0xf] %vm5483, %v5537
        %v5539 = vld [vmem:[#allocation5 + $0x5] sm:$0xf]
        %5541 = vrot.lane.b32.xlu0 %v5539, 64
        %v5542 = vpop.permute.xlu0 %5541
        %5544 = vst.msk [vmem:[#allocation9 + $0xc] sm:$0xf] %vm5510, %v5542
        %v5545 = vld [vmem:[#allocation5 + $0x6] sm:$0xf]
        %v5546 = vsel %vm5517, %v5545, 0.0
        %5547 = vst.msk [vmem:[#allocation9 + $0x10] sm:$0xf] %vm5483, %v5546
        %v5548 = vld [vmem:[#allocation9] sm:$0xff]
        %v5549 = vld [vmem:[#allocation9 + $0x8] sm:$0xff]
        %v5550 = vld [vmem:[#allocation9 + $0x10] sm:$0xf]
        %v5551 = vld [vmem:[%s7] sm:$0xff]
        %v5552 = vld [vmem:[%s7 + $0x8] sm:$0xff]
        %v5553 = vld [vmem:[%s7 + $0x10] sm:$0xff]
        %v5554 = vld [vmem:[%s7 + $0x18] sm:$0xff]
        %v5555 = vld [vmem:[%s7 + $0x20] sm:$0xff]
        %v5556 = vld [vmem:[%s7 + $0x28] sm:$0xff]
        %v5557 = vld [vmem:[%s7 + $0x30] sm:$0xff]
        %v5558 = vld [vmem:[%s7 + $0x38] sm:$0xff]
        %v5559 = vld [vmem:[%s7 + $0x40] sm:$0xff]
        %v5560 = vld [vmem:[%s7 + $0x48] sm:$0xff]
        %v5561 = vld [vmem:[%s7 + $0x50] sm:$0xff]
        %v5562 = vld [vmem:[%s7 + $0x58] sm:$0xff]
        %v5563 = vld [vmem:[%s7 + $0x60] sm:$0xff]
        %v5564 = vld [vmem:[%s7 + $0x68] sm:$0xff]
        %v5565 = vld [vmem:[%s7 + $0x70] sm:$0xff]
        %v5566 = vld [vmem:[%s7 + $0x78] sm:$0xff]
        %v5567 = vld [vmem:[%s7 + $0x80] sm:$0xff]
        %v5568 = vld [vmem:[%s7 + $0x88] sm:$0xff]
        %v5569 = vld [vmem:[%s7 + $0x90] sm:$0xff]
        %v5570 = vld [vmem:[%s7 + $0x98] sm:$0xff]
        %v5571 = vld [vmem:[%s7 + $0xa0] sm:$0xff]
        %v5572 = vld [vmem:[%s7 + $0xa8] sm:$0xff]
        %v5573 = vld [vmem:[%s7 + $0xb0] sm:$0xff]
        %v5574 = vld [vmem:[%s7 + $0xb8] sm:$0xff]
        %v5575 = vld [vmem:[%s7 + $0xc0] sm:$0xff]
        %v5576 = vld [vmem:[%s7 + $0xc8] sm:$0xff]
        %v5577 = vld [vmem:[%s7 + $0xd0] sm:$0xff]
        %v5578 = vld [vmem:[%s7 + $0xd8] sm:$0xff]
        %v5579 = vld [vmem:[%s7 + $0xe0] sm:$0xff]
        %v5580 = vld [vmem:[%s7 + $0xe8] sm:$0xff]
        %v5581 = vld [vmem:[%s7 + $0xf0] sm:$0xff]
        %v5582 = vld [vmem:[%s7 + $0xf8] sm:$0xff]
        %v5583 = vld [vmem:[%s7 + $0x100] sm:$0xff]
        %v5584 = vld [vmem:[%s7 + $0x108] sm:$0xff]
        %v5585 = vld [vmem:[%s7 + $0x110] sm:$0xff]
        %v5586 = vld [vmem:[%s7 + $0x118] sm:$0xff]
        %v5587 = vld [vmem:[%s7 + $0x120] sm:$0xff]
        %v5588 = vld [vmem:[%s7 + $0x128] sm:$0xff]
        %v5589 = vld [vmem:[%s7 + $0x130] sm:$0xff]
        %v5590 = vld [vmem:[%s7 + $0x138] sm:$0xff]
        %v5591 = vld [vmem:[%s7 + $0x140] sm:$0xff]
        %v5592 = vld [vmem:[%s7 + $0x148] sm:$0xff]
        %v5593 = vld [vmem:[%s7 + $0x150] sm:$0xff]
        %v5594 = vld [vmem:[%s7 + $0x158] sm:$0xff]
        %v5595 = vld [vmem:[%s7 + $0x160] sm:$0xff]
        %v5596 = vld [vmem:[%s7 + $0x168] sm:$0xff]
        %v5597 = vld [vmem:[%s7 + $0x170] sm:$0xff]
        %v5598 = vld [vmem:[%s7 + $0x178] sm:$0xff]
        %v5599 = vld [vmem:[%s7 + $0x180] sm:$0xff]
        %v5600 = vld [vmem:[%s7 + $0x188] sm:$0xff]
        %v5601 = vld [vmem:[%s7 + $0x190] sm:$0xff]
        %v5602 = vld [vmem:[%s7 + $0x198] sm:$0xff]
        %v5603 = vld [vmem:[%s7 + $0x1a0] sm:$0xff]
        %v5604 = vld [vmem:[%s7 + $0x1a8] sm:$0xff]
        %v5605 = vld [vmem:[%s7 + $0x1b0] sm:$0xff]
        %v5606 = vld [vmem:[%s7 + $0x1b8] sm:$0xff]
        %v5607 = vld [vmem:[%s7 + $0x1c0] sm:$0xff]
        %v5608 = vld [vmem:[%s7 + $0x1c8] sm:$0xff]
        %v5609 = vld [vmem:[%s7 + $0x1d0] sm:$0xff]
        %v5610 = vld [vmem:[%s7 + $0x1d8] sm:$0xff]
        %v5611 = vld [vmem:[%s7 + $0x1e0] sm:$0xff]
        %v5612 = vld [vmem:[%s7 + $0x1e8] sm:$0xff]
        %v5613 = vld [vmem:[%s7 + $0x1f0] sm:$0xff]
        %v5614 = vld [vmem:[%s7 + $0x1f8] sm:$0xff]
        %v5615 = vld [vmem:[%s7 + $0x200] sm:$0xff]
        %v5616 = vld [vmem:[%s7 + $0x208] sm:$0xff]
        %v5617 = vld [vmem:[%s7 + $0x210] sm:$0xff]
        %v5618 = vld [vmem:[%s7 + $0x218] sm:$0xff]
        %v5619 = vld [vmem:[%s7 + $0x220] sm:$0xff]
        %v5620 = vld [vmem:[%s7 + $0x228] sm:$0xff]
        %v5621 = vld [vmem:[%s7 + $0x230] sm:$0xff]
        %v5622 = vld [vmem:[%s7 + $0x238] sm:$0xff]
        %v5623 = vld [vmem:[%s8] sm:$0x1]
        %v5625 = vlaneseq
        %v5626 = vshrl.u32 %v5625, 7
        %v5627 = vsub.s32 0, %v5626
        %v5628 = vrot.slane %v5623, %v5627
        %v5633 = vcombine.high %v5548, %v5548
        %v5634 = vcombine.high %v5549, %v5549
        %v5637 = vsel %vm4929, %v5550, 0
        %5639 = vmatprep.subr.mxu0 0.0
        %5640 = vmatpush1.msra.mxu0 %v5566
        %5641 = vmatprep.subr.mxu0 0.0
        %5642 = vmatpush1.msra.mxu0 %v5565
        %5643 = vmatprep.subr.mxu0 0.0
        %5644 = vmatpush1.msra.mxu0 %v5564
        %5645 = vmatprep.subr.mxu0 0.0
        %5646 = vmatpush1.msra.mxu0 %v5563
        %5647 = vmatprep.subr.mxu0 0.0
        %5648 = vmatpush1.msra.mxu0 %v5562
        %5649 = vmatprep.subr.mxu0 0.0
        %5650 = vmatpush1.msra.mxu0 %v5561
        %5651 = vmatprep.subr.mxu0 0.0
        %5652 = vmatpush1.msra.mxu0 %v5560
        %5653 = vmatprep.subr.mxu0 0.0
        %5654 = vmatpush1.msra.mxu0 %v5559
        %5655 = vmatprep.subr.mxu0 0.0
        %5656 = vmatpush1.msra.mxu0 %v5558
        %5657 = vmatprep.subr.mxu0 0.0
        %5658 = vmatpush1.msra.mxu0 %v5557
        %5659 = vmatprep.subr.mxu0 0.0
        %5660 = vmatpush1.msra.mxu0 %v5556
        %5661 = vmatprep.subr.mxu0 0.0
        %5662 = vmatpush1.msra.mxu0 %v5555
        %5663 = vmatprep.subr.mxu0 0.0
        %5664 = vmatpush1.msra.mxu0 %v5554
        %5665 = vmatprep.subr.mxu0 0.0
        %5666 = vmatpush1.msra.mxu0 %v5553
        %5667 = vmatprep.subr.mxu0 0.0
        %5668 = vmatpush1.msra.mxu0 %v5552
        %5669 = vmatprep.subr.mxu0 0.0
        %5670 = vmatpush1.msra.mxu0 %v5551
        %5671 = vmatprep.subr.mxu0 0.0
        %5672 = vmatpush2.msra.mxu0 %v5582
        %5673 = vmatprep.subr.mxu0 0.0
        %5674 = vmatpush2.msra.mxu0 %v5581
        %5675 = vmatprep.subr.mxu0 0.0
        %5676 = vmatpush2.msra.mxu0 %v5580
        %5677 = vmatprep.subr.mxu0 0.0
        %5678 = vmatpush2.msra.mxu0 %v5579
        %5679 = vmatprep.subr.mxu0 0.0
        %5680 = vmatpush2.msra.mxu0 %v5578
        %5681 = vmatprep.subr.mxu0 0.0
        %5682 = vmatpush2.msra.mxu0 %v5577
        %5683 = vmatprep.subr.mxu0 0.0
        %5684 = vmatpush2.msra.mxu0 %v5576
        %5685 = vmatprep.subr.mxu0 0.0
        %5686 = vmatpush2.msra.mxu0 %v5575
        %5687 = vmatprep.subr.mxu0 0.0
        %5688 = vmatpush2.msra.mxu0 %v5574
        %5689 = vmatprep.subr.mxu0 0.0
        %5690 = vmatpush2.msra.mxu0 %v5573
        %5691 = vmatprep.subr.mxu0 0.0
        %5692 = vmatpush2.msra.mxu0 %v5572
        %5693 = vmatprep.subr.mxu0 0.0
        %5694 = vmatpush2.msra.mxu0 %v5571
        %5695 = vmatprep.subr.mxu0 0.0
        %5696 = vmatpush2.msra.mxu0 %v5570
        %5697 = vmatprep.subr.mxu0 0.0
        %5698 = vmatpush2.msra.mxu0 %v5569
        %5699 = vmatprep.subr.mxu0 0.0
        %5700 = vmatpush2.msra.mxu0 %v5568
        %5701 = vmatprep.subr.mxu0 0.0
        %5702 = vmatpush2.msra.mxu0 %v5567
        %5703 = vmatprep.mubr.f32.mxu0 %v5633
        %5704 = vmatmul.mubr.f32.gmra.mxu0 %v5548
        %v5705 = vpop.f32.mrf.mxu0
        %v5706 = vadd.f32 %v5628, %v5705
        %v5707 = vpop.f32.mrf.mxu0
        %5708 = vdwg.mxu0
        %5709 = vmatprep.subr.mxu0 0.0
        %5710 = vmatpush1.msra.mxu0 %v5598
        %5711 = vmatprep.subr.mxu0 0.0
        %5712 = vmatpush1.msra.mxu0 %v5597
        %5713 = vmatprep.subr.mxu0 0.0
        %5714 = vmatpush1.msra.mxu0 %v5596
        %5715 = vmatprep.subr.mxu0 0.0
        %5716 = vmatpush1.msra.mxu0 %v5595
        %5717 = vmatprep.subr.mxu0 0.0
        %5718 = vmatpush1.msra.mxu0 %v5594
        %5719 = vmatprep.subr.mxu0 0.0
        %5720 = vmatpush1.msra.mxu0 %v5593
        %5721 = vmatprep.subr.mxu0 0.0
        %5722 = vmatpush1.msra.mxu0 %v5592
        %5723 = vmatprep.subr.mxu0 0.0
        %5724 = vmatpush1.msra.mxu0 %v5591
        %5725 = vmatprep.subr.mxu0 0.0
        %5726 = vmatpush1.msra.mxu0 %v5590
        %5727 = vmatprep.subr.mxu0 0.0
        %5728 = vmatpush1.msra.mxu0 %v5589
        %5729 = vmatprep.subr.mxu0 0.0
        %5730 = vmatpush1.msra.mxu0 %v5588
        %5731 = vmatprep.subr.mxu0 0.0
        %5732 = vmatpush1.msra.mxu0 %v5587
        %5733 = vmatprep.subr.mxu0 0.0
        %5734 = vmatpush1.msra.mxu0 %v5586
        %5735 = vmatprep.subr.mxu0 0.0
        %5736 = vmatpush1.msra.mxu0 %v5585
        %5737 = vmatprep.subr.mxu0 0.0
        %5738 = vmatpush1.msra.mxu0 %v5584
        %5739 = vmatprep.subr.mxu0 0.0
        %5740 = vmatpush1.msra.mxu0 %v5583
        %5741 = vmatprep.subr.mxu0 0.0
        %5742 = vmatpush2.msra.mxu0 %v5614
        %5743 = vmatprep.subr.mxu0 0.0
        %5744 = vmatpush2.msra.mxu0 %v5613
        %5745 = vmatprep.subr.mxu0 0.0
        %5746 = vmatpush2.msra.mxu0 %v5612
        %5747 = vmatprep.subr.mxu0 0.0
        %5748 = vmatpush2.msra.mxu0 %v5611
        %5749 = vmatprep.subr.mxu0 0.0
        %5750 = vmatpush2.msra.mxu0 %v5610
        %5751 = vmatprep.subr.mxu0 0.0
        %5752 = vmatpush2.msra.mxu0 %v5609
        %5753 = vmatprep.subr.mxu0 0.0
        %5754 = vmatpush2.msra.mxu0 %v5608
        %5755 = vmatprep.subr.mxu0 0.0
        %5756 = vmatpush2.msra.mxu0 %v5607
        %5757 = vmatprep.subr.mxu0 0.0
        %5758 = vmatpush2.msra.mxu0 %v5606
        %5759 = vmatprep.subr.mxu0 0.0
        %5760 = vmatpush2.msra.mxu0 %v5605
        %5761 = vmatprep.subr.mxu0 0.0
        %5762 = vmatpush2.msra.mxu0 %v5604
        %5763 = vmatprep.subr.mxu0 0.0
        %5764 = vmatpush2.msra.mxu0 %v5603
        %5765 = vmatprep.subr.mxu0 0.0
        %5766 = vmatpush2.msra.mxu0 %v5602
        %5767 = vmatprep.subr.mxu0 0.0
        %5768 = vmatpush2.msra.mxu0 %v5601
        %5769 = vmatprep.subr.mxu0 0.0
        %5770 = vmatpush2.msra.mxu0 %v5600
        %5771 = vmatprep.subr.mxu0 0.0
        %5772 = vmatpush2.msra.mxu0 %v5599
        %5773 = vmatprep.mubr.f32.mxu0 %v5634
        %5774 = vmatmul.mubr.f32.gmra.mxu0 %v5549
        %v5775 = vpop.f32.mrf.mxu0
        %v5776 = vadd.f32 %v5706, %v5775
        %v5777 = vpop.f32.mrf.mxu0
        %5778 = vdwg.mxu0
        %5779 = vmatprep.subr.mxu0 0.0
        %5780 = vmatpush1.msra.mxu0 0.0
        %5781 = vmatprep.subr.mxu0 0.0
        %5782 = vmatpush1.msra.mxu0 0.0
        %5783 = vmatprep.subr.mxu0 0.0
        %5784 = vmatpush1.msra.mxu0 0.0
        %5785 = vmatprep.subr.mxu0 0.0
        %5786 = vmatpush1.msra.mxu0 0.0
        %5787 = vmatprep.subr.mxu0 0.0
        %5788 = vmatpush1.msra.mxu0 0.0
        %5789 = vmatprep.subr.mxu0 0.0
        %5790 = vmatpush1.msra.mxu0 0.0
        %5791 = vmatprep.subr.mxu0 0.0
        %5792 = vmatpush1.msra.mxu0 0.0
        %5793 = vmatprep.subr.mxu0 0.0
        %5794 = vmatpush1.msra.mxu0 0.0
        %5795 = vmatprep.subr.mxu0 0.0
        %5796 = vmatpush1.msra.mxu0 %v5622
        %5797 = vmatprep.subr.mxu0 0.0
        %5798 = vmatpush1.msra.mxu0 %v5621
        %5799 = vmatprep.subr.mxu0 0.0
        %5800 = vmatpush1.msra.mxu0 %v5620
        %5801 = vmatprep.subr.mxu0 0.0
        %5802 = vmatpush1.msra.mxu0 %v5619
        %5803 = vmatprep.subr.mxu0 0.0
        %5804 = vmatpush1.msra.mxu0 %v5618
        %5805 = vmatprep.subr.mxu0 0.0
        %5806 = vmatpush1.msra.mxu0 %v5617
        %5807 = vmatprep.subr.mxu0 0.0
        %5808 = vmatpush1.msra.mxu0 %v5616
        %5809 = vmatprep.subr.mxu0 0.0
        %5810 = vmatpush1.msra.mxu0 %v5615
        %5811 = vmatprep.subr.mxu0 0.0
        %5812 = vmatpush2.msra.mxu0 0.0
        %5813 = vmatprep.subr.mxu0 0.0
        %5814 = vmatpush2.msra.mxu0 0.0
        %5815 = vmatprep.subr.mxu0 0.0
        %5816 = vmatpush2.msra.mxu0 0.0
        %5817 = vmatprep.subr.mxu0 0.0
        %5818 = vmatpush2.msra.mxu0 0.0
        %5819 = vmatprep.subr.mxu0 0.0
        %5820 = vmatpush2.msra.mxu0 0.0
        %5821 = vmatprep.subr.mxu0 0.0
        %5822 = vmatpush2.msra.mxu0 0.0
        %5823 = vmatprep.subr.mxu0 0.0
        %5824 = vmatpush2.msra.mxu0 0.0
        %5825 = vmatprep.subr.mxu0 0.0
        %5826 = vmatpush2.msra.mxu0 0.0
        %5827 = vmatprep.subr.mxu0 0.0
        %5828 = vmatpush2.msra.mxu0 0.0
        %5829 = vmatprep.subr.mxu0 0.0
        %5830 = vmatpush2.msra.mxu0 0.0
        %5831 = vmatprep.subr.mxu0 0.0
        %5832 = vmatpush2.msra.mxu0 0.0
        %5833 = vmatprep.subr.mxu0 0.0
        %5834 = vmatpush2.msra.mxu0 0.0
        %5835 = vmatprep.subr.mxu0 0.0
        %5836 = vmatpush2.msra.mxu0 0.0
        %5837 = vmatprep.subr.mxu0 0.0
        %5838 = vmatpush2.msra.mxu0 0.0
        %5839 = vmatprep.subr.mxu0 0.0
        %5840 = vmatpush2.msra.mxu0 0.0
        %5841 = vmatprep.subr.mxu0 0.0
        %5842 = vmatpush2.msra.mxu0 0.0
        %5843 = vmatprep.mubr.f32.mxu0 0.0
        %5844 = vmatmul.mubr.f32.gmra.mxu0 %v5637
        %v5845 = vpop.f32.mrf.mxu0
        %v5846 = vadd.f32 %v5776, %v5845
        %v5847 = vpop.f32.mrf.mxu0
        %5848 = vdwg.mxu0
        %v5849 = vmax.f32 %v5846, 0.0
        %v5850 = vsel %vm5395, %v5849, 0.0
        %v5851 = vrot.slane %v5850, 4
        %v5852 = vadd.f32 %v5850, %v5851
        %v5853 = vrot.slane %v5852, 2
        %v5854 = vadd.f32 %v5852, %v5853
        %v5855 = vrot.slane %v5854, 1
        %v5856 = vadd.f32 %v5854, %v5855
        %v5857 = vmul.f32 %v5856, 0.25
        %v5858 = vld [vmem:[%s12] sm:$0xff]
        %v5859 = vld [vmem:[%s12 + $0x8] sm:$0xff]
        %v5860 = vld [vmem:[%s12 + $0x10] sm:$0xff]
        %v5861 = vld [vmem:[%s12 + $0x18] sm:$0xff]
        %v5862 = vld [vmem:[%s12 + $0x20] sm:$0xff]
        %v5863 = vld [vmem:[%s12 + $0x28] sm:$0xff]
        %v5864 = vld [vmem:[%s12 + $0x30] sm:$0xff]
        %v5865 = vld [vmem:[%s12 + $0x38] sm:$0xff]
        %v5866 = vld [vmem:[%s12 + $0x40] sm:$0xff]
        %v5867 = vld [vmem:[%s12 + $0x48] sm:$0xff]
        %v5868 = vld [vmem:[%s12 + $0x50] sm:$0xff]
        %v5869 = vld [vmem:[%s12 + $0x58] sm:$0xff]
        %v5870 = vld [vmem:[%s12 + $0x60] sm:$0xff]
        %v5871 = vld [vmem:[%s12 + $0x68] sm:$0xff]
        %v5872 = vld [vmem:[%s12 + $0x70] sm:$0xff]
        %v5873 = vld [vmem:[%s12 + $0x78] sm:$0xff]
        %v5874 = vld [vmem:[%s13] sm:$0x1]
        %5875 = vmatprep.subr.mxu0 0.0
        %5876 = vmatpush1.msra.mxu0 %v5873
        %5877 = vmatprep.subr.mxu0 0.0
        %5878 = vmatpush1.msra.mxu0 %v5872
        %5879 = vmatprep.subr.mxu0 0.0
        %5880 = vmatpush1.msra.mxu0 %v5871
        %5881 = vmatprep.subr.mxu0 0.0
        %5882 = vmatpush1.msra.mxu0 %v5870
        %5883 = vmatprep.subr.mxu0 0.0
        %5884 = vmatpush1.msra.mxu0 %v5869
        %5885 = vmatprep.subr.mxu0 0.0
        %5886 = vmatpush1.msra.mxu0 %v5868
        %5887 = vmatprep.subr.mxu0 0.0
        %5888 = vmatpush1.msra.mxu0 %v5867
        %5889 = vmatprep.subr.mxu0 0.0
        %5890 = vmatpush1.msra.mxu0 %v5866
        %5891 = vmatprep.subr.mxu0 0.0
        %5892 = vmatpush1.msra.mxu0 %v5865
        %5893 = vmatprep.subr.mxu0 0.0
        %5894 = vmatpush1.msra.mxu0 %v5864
        %5895 = vmatprep.subr.mxu0 0.0
        %5896 = vmatpush1.msra.mxu0 %v5863
        %5897 = vmatprep.subr.mxu0 0.0
        %5898 = vmatpush1.msra.mxu0 %v5862
        %5899 = vmatprep.subr.mxu0 0.0
        %5900 = vmatpush1.msra.mxu0 %v5861
        %5901 = vmatprep.subr.mxu0 0.0
        %5902 = vmatpush1.msra.mxu0 %v5860
        %5903 = vmatprep.subr.mxu0 0.0
        %5904 = vmatpush1.msra.mxu0 %v5859
        %5905 = vmatprep.subr.mxu0 0.0
        %5906 = vmatpush1.msra.mxu0 %v5858
        %5907 = vmatprep.subr.mxu0 0.0
        %5908 = vmatpush2.msra.mxu0 0.0
        %5909 = vmatprep.subr.mxu0 0.0
        %5910 = vmatpush2.msra.mxu0 0.0
        %5911 = vmatprep.subr.mxu0 0.0
        %5912 = vmatpush2.msra.mxu0 0.0
        %5913 = vmatprep.subr.mxu0 0.0
        %5914 = vmatpush2.msra.mxu0 0.0
        %5915 = vmatprep.subr.mxu0 0.0
        %5916 = vmatpush2.msra.mxu0 0.0
        %5917 = vmatprep.subr.mxu0 0.0
        %5918 = vmatpush2.msra.mxu0 0.0
        %5919 = vmatprep.subr.mxu0 0.0
        %5920 = vmatpush2.msra.mxu0 0.0
        %5921 = vmatprep.subr.mxu0 0.0
        %5922 = vmatpush2.msra.mxu0 0.0
        %5923 = vmatprep.subr.mxu0 0.0
        %5924 = vmatpush2.msra.mxu0 0.0
        %5925 = vmatprep.subr.mxu0 0.0
        %5926 = vmatpush2.msra.mxu0 0.0
        %5927 = vmatprep.subr.mxu0 0.0
        %5928 = vmatpush2.msra.mxu0 0.0
        %5929 = vmatprep.subr.mxu0 0.0
        %5930 = vmatpush2.msra.mxu0 0.0
        %5931 = vmatprep.subr.mxu0 0.0
        %5932 = vmatpush2.msra.mxu0 0.0
        %5933 = vmatprep.subr.mxu0 0.0
        %5934 = vmatpush2.msra.mxu0 0.0
        %5935 = vmatprep.subr.mxu0 0.0
        %5936 = vmatpush2.msra.mxu0 0.0
        %5937 = vmatprep.subr.mxu0 0.0
        %5938 = vmatpush2.msra.mxu0 0.0
        %5939 = vmatprep.mubr.f32.mxu0 0.0
        %5940 = vmatmul.mubr.f32.gmra.mxu0 %v5857
        %v5941 = vpop.f32.mrf.mxu0
        %v5942 = vadd.f32 %v5874, %v5941
        %v5943 = vpop.f32.mrf.mxu0
        %5944 = vdwg.mxu0
        %v5945 = vmax.f32 %v5942, 0.0
        %v5946 = vld [vmem:[%s14] sm:$0xff]
        %v5947 = vld [vmem:[%s14 + $0x8] sm:$0xff]
        %v5948 = vld [vmem:[%s14 + $0x10] sm:$0xff]
        %v5949 = vld [vmem:[%s14 + $0x18] sm:$0xff]
        %v5950 = vld [vmem:[%s14 + $0x20] sm:$0xff]
        %v5951 = vld [vmem:[%s14 + $0x28] sm:$0xff]
        %v5952 = vld [vmem:[%s14 + $0x30] sm:$0xff]
        %v5953 = vld [vmem:[%s14 + $0x38] sm:$0xff]
        %v5954 = vld [vmem:[%s15] sm:$0x1]
        %v5956 = vsel %vm4929, %v5945, 0
        %5958 = vmatprep.subr.mxu0 0.0
        %5959 = vmatpush1.msra.mxu0 0.0
        %5960 = vmatprep.subr.mxu0 0.0
        %5961 = vmatpush1.msra.mxu0 0.0
        %5962 = vmatprep.subr.mxu0 0.0
        %5963 = vmatpush1.msra.mxu0 0.0
        %5964 = vmatprep.subr.mxu0 0.0
        %5965 = vmatpush1.msra.mxu0 0.0
        %5966 = vmatprep.subr.mxu0 0.0
        %5967 = vmatpush1.msra.mxu0 0.0
        %5968 = vmatprep.subr.mxu0 0.0
        %5969 = vmatpush1.msra.mxu0 0.0
        %5970 = vmatprep.subr.mxu0 0.0
        %5971 = vmatpush1.msra.mxu0 0.0
        %5972 = vmatprep.subr.mxu0 0.0
        %5973 = vmatpush1.msra.mxu0 0.0
        %5974 = vmatprep.subr.mxu0 0.0
        %5975 = vmatpush1.msra.mxu0 %v5953
        %5976 = vmatprep.subr.mxu0 0.0
        %5977 = vmatpush1.msra.mxu0 %v5952
        %5978 = vmatprep.subr.mxu0 0.0
        %5979 = vmatpush1.msra.mxu0 %v5951
        %5980 = vmatprep.subr.mxu0 0.0
        %5981 = vmatpush1.msra.mxu0 %v5950
        %5982 = vmatprep.subr.mxu0 0.0
        %5983 = vmatpush1.msra.mxu0 %v5949
        %5984 = vmatprep.subr.mxu0 0.0
        %5985 = vmatpush1.msra.mxu0 %v5948
        %5986 = vmatprep.subr.mxu0 0.0
        %5987 = vmatpush1.msra.mxu0 %v5947
        %5988 = vmatprep.subr.mxu0 0.0
        %5989 = vmatpush1.msra.mxu0 %v5946
        %5990 = vmatprep.subr.mxu0 0.0
        %5991 = vmatpush2.msra.mxu0 0.0
        %5992 = vmatprep.subr.mxu0 0.0
        %5993 = vmatpush2.msra.mxu0 0.0
        %5994 = vmatprep.subr.mxu0 0.0
        %5995 = vmatpush2.msra.mxu0 0.0
        %5996 = vmatprep.subr.mxu0 0.0
        %5997 = vmatpush2.msra.mxu0 0.0
        %5998 = vmatprep.subr.mxu0 0.0
        %5999 = vmatpush2.msra.mxu0 0.0
        %6000 = vmatprep.subr.mxu0 0.0
        %6001 = vmatpush2.msra.mxu0 0.0
        %6002 = vmatprep.subr.mxu0 0.0
        %6003 = vmatpush2.msra.mxu0 0.0
        %6004 = vmatprep.subr.mxu0 0.0
        %6005 = vmatpush2.msra.mxu0 0.0
        %6006 = vmatprep.subr.mxu0 0.0
        %6007 = vmatpush2.msra.mxu0 0.0
        %6008 = vmatprep.subr.mxu0 0.0
        %6009 = vmatpush2.msra.mxu0 0.0
        %6010 = vmatprep.subr.mxu0 0.0
        %6011 = vmatpush2.msra.mxu0 0.0
        %6012 = vmatprep.subr.mxu0 0.0
        %6013 = vmatpush2.msra.mxu0 0.0
        %6014 = vmatprep.subr.mxu0 0.0
        %6015 = vmatpush2.msra.mxu0 0.0
        %6016 = vmatprep.subr.mxu0 0.0
        %6017 = vmatpush2.msra.mxu0 0.0
        %6018 = vmatprep.subr.mxu0 0.0
        %6019 = vmatpush2.msra.mxu0 0.0
        %6020 = vmatprep.subr.mxu0 0.0
        %6021 = vmatpush2.msra.mxu0 0.0
        %6022 = vmatprep.mubr.f32.mxu0 0.0
        %6023 = vmatmul.mubr.f32.gmra.mxu0 %v5956
        %v6024 = vpop.f32.mrf.mxu0
        %v6025 = vadd.f32 %v5954, %v6024
        %v6026 = vpop.f32.mrf.mxu0
        %6027 = vdwg.mxu0
        %v6028 = vmul.f32 %v6025, %v6025
        %vm6029 = vcmask 253952
        %v6030 = vsel %vm6029, %v6028, 0.0
        %6031 = vadd.xlane.f32.xlu0 %v6030
        %v6032 = vpop.xlane.xlu0 %6031
        %v6033 = vmax.f32 %v6032, 1e-24
        %v6034 = vrsqrt.pop %v6033
        %v6035 = vmul.f32 %v6025, %v6034
        %6036 = vst.msk [vmem:[%s513] sm:$0x1] %vm6029, %v6035
        %s6037 = sand.u32 %s379, 1
        %s6038 = scalar_lea.sflag [#allocation11], %s6037
        %s6039 = sand.u32 %s379, 1
        %s6040 = scalar_lea.vmem [#allocation10], %s6039
        // Predicated region
        $region85: #{tpu_custom_call.1} parent=83 // pred_check
          %p6041 = pneg %p389
        $region86: #{tpu_custom_call.1} parent=83 // pred_check_branch
          %6043 = sbr.rel (%p6041) target = $region88
        $region87: #{tpu_custom_call.1} parent=83 // pred_region
          %s6045 = ssub.s32 16, 16
          %6046 = vsyncadd %s6038, %s6045
          %s6047 = smul.addr %s30, 16
          %s6048 = scalar_lea.hbm %s16, %s6047
          %s6050 = sshll.u32 %s6040, 4
          %s6051 = int_to_ptr.vmem [resolvable:$true] %s6050
          %6053 = dma.vmem_to_hbm [thread:$0]  %s6051, 16, %s6048, %s6038
        $region88: #{tpu_custom_call.1} parent=83 // pred_fallthru
          _
      $region84: #{tpu_custom_call.1} parent=5 // pred_fallthru
        _
      %p6054 = scmp.le.s32.totalorder 2, %s25
      // Predicated region
      $region89: #{tpu_custom_call.1} parent=5 // pred_check
        %p6055 = pneg %p6054
      $region90: #{tpu_custom_call.1} parent=5 // pred_check_branch
        %6057 = sbr.rel (%p6055) target = $region92
      $region91: #{tpu_custom_call.1} parent=5 // pred_region
        %s6058 = ssub.s32 %s25, 2
        // Predicated region
        $region93: #{tpu_custom_call.1} parent=91 // pred_check
          %p6059 = pneg %p395
        $region94: #{tpu_custom_call.1} parent=91 // pred_check_branch
          %6061 = sbr.rel (%p6059) target = $region96
        $region95: #{tpu_custom_call.1} parent=91 // pred_region
          %s6062 = sand.u32 %s380, 1
          %s6063 = scalar_lea.sflag [#allocation11], %s6062
          %s6064 = sand.u32 %s380, 1
          %s6065 = scalar_lea.vmem [#allocation10], %s6064
          %6066 = dma.done %s6063, 16
        $region96: #{tpu_custom_call.1} parent=91 // pred_fallthru
          _
      $region92: #{tpu_custom_call.1} parent=5 // pred_fallthru
        _
    $region6: #{tpu_custom_call.1} parent=1 // loop_footer
      %s29 = sadd.s32 1, %s25
    $region7: #{tpu_custom_call.1} parent=1 // loop_footer_branch
      %24 = sbr.rel target = $region3
    $region8: #{tpu_custom_call.1} parent=1 // loop_exit
      _
    %6067 = vsyncpa [#allocation11], 1
    %s6068 = scalar_lea.sflag [#allocation11], 1
    %6069 = vsyncpa %s6068, 1

</llo_original>
